<compile_context>
chip_gen: v7x
topology: tpu7x:2x2x1
jax: 0.10.0
libtpu: 0.0.40
codegen_flags: <defaults>
</compile_context>

<pallas_src>
import math
import functools

import jax
import jax.numpy as jnp
from jax.experimental import pallas as pl
from jax.experimental.pallas import tpu as pltpu

# ----- model hyper-parameters (small, consistent with the module) -----------
D_MODEL = 32          # input_size / d_model
NUM_HEADS = 4
NUM_LAYERS = 2
DIM_FF = 2048         # nn.TransformerEncoderLayer default dim_feedforward
NUM_CLASSES = 2
SEQ = 8
BATCH = 2
LN_EPS = 1e-5         # nn.LayerNorm default eps

PARAM_ORDER = ("wq", "bq", "wk", "bk", "wv", "bv", "wo", "bo",
               "w1", "b1", "w2", "b2", "g1", "be1", "g2", "be2",
               "fc_wT", "fc_b")


def _layernorm(x, gamma, beta):
    """LayerNorm over the last axis (biased variance, eps=1e-5), affine, f32."""
    mu = jnp.mean(x, axis=-1, keepdims=True)
    xc = x - mu
    var = jnp.mean(xc * xc, axis=-1, keepdims=True)
    inv = jax.lax.rsqrt(var + LN_EPS)
    return xc * inv * gamma + beta


# ---------------------------------------------------------------------------
# Fused Pallas kernel: full forward pass
#   x_ref    : (seq*batch, d_model)  seq-major rows (row = s*batch + b)
#   mask_ref : (seq*batch, seq*batch) additive mask (0 same-batch, -1e30 else)
#   o_ref    : (batch, num_classes)
# ---------------------------------------------------------------------------
def fused_forward_kernel(x_ref, mask_ref,
                         wq_ref, bq_ref, wk_ref, bk_ref, wv_ref, bv_ref,
                         wo_ref, bo_ref, w1_ref, b1_ref, w2_ref, b2_ref,
                         g1_ref, be1_ref, g2_ref, be2_ref,
                         fcw_ref, fcb_ref, a_ref, b_ref, o_ref,
                         *, num_layers, num_heads, batch):
    n, d = x_ref.shape

    x = x_ref[...]                 # (N, D) f32
    mask_add = mask_ref[...]       # (N, N) f32, hoisted (shared by all layers)

    for l in range(num_layers):
        # ---- multi-head self-attention (per-head packed weights) ------------
        # q/k/v are produced per head directly from per-head weights, so there
        # are no 8-lane slices; the out-projection is accumulated per head, so
        # there is no concatenate. The 1/sqrt(dh) scale is folded into wq/bq.
        attn = None
        for h in range(num_heads):
            q = jnp.dot(x, wq_ref[l, h],
                        preferred_element_type=jnp.float32) + bq_ref[l, h]   # (N, dh)
            k = jnp.dot(x, wk_ref[l, h],
                        preferred_element_type=jnp.float32) + bk_ref[l, h]   # (N, dh)
            v = jnp.dot(x, wv_ref[l, h],
                        preferred_element_type=jnp.float32) + bv_ref[l, h]   # (N, dh)

            s = jax.lax.dot_general(q, k, (((1,), (1,)), ((), ())),
                                    preferred_element_type=jnp.float32)       # (N, N)
            s = s + mask_add
            s = s - jnp.max(s, axis=-1, keepdims=True)
            p = jnp.exp(s)
            p = p * pl.reciprocal(jnp.sum(p, axis=-1, keepdims=True), approx=True)

            hv = jnp.dot(p, v, preferred_element_type=jnp.float32)            # (N, dh)
            contrib = jnp.dot(hv, wo_ref[l, h],
                              preferred_element_type=jnp.float32)             # (N, D)
            attn = contrib if attn is None else attn + contrib
        attn = attn + bo_ref[l]

        # ---- residual + LayerNorm 1 (post-norm) -----------------------------
        y = _layernorm(x + attn, g1_ref[l], be1_ref[l])

        # ---- feed-forward: linear -> ReLU -> linear (bf16 MXU, f32 accum) ----
        hdn = jnp.dot(y.astype(jnp.bfloat16), w1_ref[l],
                      preferred_element_type=jnp.float32) + b1_ref[l]          # (N, F)
        hdn = jnp.maximum(hdn, 0.0)
        ff = jnp.dot(hdn.astype(jnp.bfloat16), w2_ref[l],
                     preferred_element_type=jnp.float32) + b2_ref[l]           # (N, D)

        # ---- residual + LayerNorm 2 ------------------------------------------
        x = _layernorm(y + ff, g2_ref[l], be2_ref[l])

    # ---- classifier head: x[-1] == last `batch` rows (seq-major layout) -----
    x_last = x[n - batch:, :]                                                  # (B, D)
    logits = jnp.dot(x_last, fcw_ref[...],
                     preferred_element_type=jnp.float32) + fcb_ref[...]        # (B, C)
    z = b_ref[0] * logits - a_ref[0]         # a/b are SMEM scalars
    o_ref[...] = 1.0 / (1.0 + jnp.exp(-z))


# ---------------------------------------------------------------------------
# Wrapper: one pallas_call for the whole model
# ---------------------------------------------------------------------------
@jax.jit
def transformer_model_forward(x_sbd, params):
    """x_sbd: (seq, batch, d_model) — same convention as the PyTorch module."""
    S, B, D = x_sbd.shape
    N = S * B
    # seq-major flatten (contiguous -> free bitcast at the XLA level)
    x2 = x_sbd.reshape(N, D)

    # Additive block mask keeping attention within each batch element
    # (row r belongs to batch r % B). Built from static shapes only, so XLA
    # constant-folds it at compile time.
    rb = jnp.arange(N, dtype=jnp.int32) % B
    mask_add = jnp.where(rb[:, None] == rb[None, :], 0.0, -1e30).astype(jnp.float32)

    kernel = functools.partial(fused_forward_kernel,
                               num_layers=NUM_LAYERS,
                               num_heads=NUM_HEADS,
                               batch=B)
    vmem = pl.BlockSpec(memory_space=pltpu.MemorySpace.VMEM)
    smem = pl.BlockSpec(memory_space=pltpu.MemorySpace.SMEM)

    args = [x2, mask_add] + [params[name] for name in PARAM_ORDER] \
           + [params["a"], params["b"]]
    return pl.pallas_call(
        kernel,
        out_shape=jax.ShapeDtypeStruct((B, NUM_CLASSES), jnp.float32),
        in_specs=[vmem] * (2 + len(PARAM_ORDER)) + [smem, smem],
        out_specs=vmem,
    )(*args)


# ---------------------------------------------------------------------------
# Deterministic parameter init (synthetic values; shapes match the PyTorch
# module) + packing into the kernel-friendly per-head layout.
# ---------------------------------------------------------------------------
def init_params(key):
    L, H, D, F, C = NUM_LAYERS, NUM_HEADS, D_MODEL, DIM_FF, NUM_CLASSES
    dh = D // H
    scale = 1.0 / math.sqrt(dh)
    keys = jax.random.split(key, 8 * L + 2)

    packed = {name: [] for name in PARAM_ORDER[:-2]}
    for l in range(L):
        k = keys[8 * l: 8 * (l + 1)]
        # PyTorch-convention parameters (out_features, in_features)
        in_proj_w = jax.random.normal(k[0], (3 * D, D), jnp.float32) / math.sqrt(D)
        in_proj_b = 0.02 * jax.random.normal(k[1], (3 * D,), jnp.float32)
        out_proj_w = jax.random.normal(k[2], (D, D), jnp.float32) / math.sqrt(D)
        out_proj_b = 0.02 * jax.random.normal(k[3], (D,), jnp.float32)
        lin1_w = jax.random.normal(k[4], (F, D), jnp.float32) / math.sqrt(D)
        lin1_b = 0.02 * jax.random.normal(k[5], (F,), jnp.float32)
        lin2_w = jax.random.normal(k[6], (D, F), jnp.float32) / math.sqrt(F)
        lin2_b = 0.02 * jax.random.normal(k[7], (D,), jnp.float32)

        wq_t = in_proj_w[0 * D:1 * D].T        # (D, D): q = x @ wq_t + bq
        wk_t = in_proj_w[1 * D:2 * D].T
        wv_t = in_proj_w[2 * D:3 * D].T
        bq = in_proj_b[0 * D:1 * D]
        bk = in_proj_b[1 * D:2 * D]
        bv = in_proj_b[2 * D:3 * D]

        # per-head packing; fold 1/sqrt(dh) into the Q projection (free)
        packed["wq"].append(wq_t.reshape(D, H, dh).transpose(1, 0, 2) * scale)  # (H,D,dh)
        packed["wk"].append(wk_t.reshape(D, H, dh).transpose(1, 0, 2))
        packed["wv"].append(wv_t.reshape(D, H, dh).transpose(1, 0, 2))
        packed["bq"].append(bq.reshape(H, 1, dh) * scale)
        packed["bk"].append(bk.reshape(H, 1, dh))
        packed["bv"].append(bv.reshape(H, 1, dh))
        packed["wo"].append(out_proj_w.T.reshape(H, dh, D))                     # (H,dh,D)
        packed["bo"].append(out_proj_b.reshape(1, D))

        packed["w1"].append(lin1_w.T)                                           # (D, F)
        packed["b1"].append(lin1_b.reshape(1, F))
        packed["w2"].append(lin2_w.T)                                           # (F, D)
        packed["b2"].append(lin2_b.reshape(1, D))

        packed["g1"].append(jnp.ones((1, D), jnp.float32))
        packed["be1"].append(jnp.zeros((1, D), jnp.float32))
        packed["g2"].append(jnp.ones((1, D), jnp.float32))
        packed["be2"].append(jnp.zeros((1, D), jnp.float32))

    params = {name: jnp.stack(vals) for name, vals in packed.items()}
    # FFN weights in bf16 (MXU-native on v6e/v7x); accumulation stays f32
    params["w1"] = params["w1"].astype(jnp.bfloat16)
    params["w2"] = params["w2"].astype(jnp.bfloat16)

    fc_w = jax.random.normal(keys[-2], (C, D), jnp.float32) / math.sqrt(D)
    fc_b = 0.02 * jax.random.normal(keys[-1], (C,), jnp.float32)
    params["fc_wT"] = fc_w.T                                # (D, C)
    params["fc_b"] = fc_b.reshape(1, C)
    params["a"] = jnp.array([0.001], jnp.float32)           # nn.Parameter a (SMEM)
    params["b"] = jnp.array([0.999], jnp.float32)           # nn.Parameter b (SMEM)
    return params


if __name__ == "__main__":
    key = jax.random.PRNGKey(0)
    pkey, xkey = jax.random.split(key)
    params = init_params(pkey)
    x = jax.random.normal(xkey, (SEQ, BATCH, D_MODEL), jnp.float32)

    prob = transformer_model_forward(x, params)
    prob = jax.block_until_ready(prob)

    assert prob.shape == (BATCH, NUM_CLASSES)
    assert bool(jnp.all(jnp.isfinite(prob)))
    print("KERNEL_OK")
</pallas_src>

<mosaic_0001>
module attributes {stable_mosaic.version = 11 : i64} {
  func.func @fused_forward_kernel(%arg0: memref<16x32xf32, #tpu.memory_space<vmem>>, %arg1: memref<16x16xf32, #tpu.memory_space<vmem>>, %arg2: memref<2x4x32x8xf32, #tpu.memory_space<vmem>>, %arg3: memref<2x4x1x8xf32, #tpu.memory_space<vmem>>, %arg4: memref<2x4x32x8xf32, #tpu.memory_space<vmem>>, %arg5: memref<2x4x1x8xf32, #tpu.memory_space<vmem>>, %arg6: memref<2x4x32x8xf32, #tpu.memory_space<vmem>>, %arg7: memref<2x4x1x8xf32, #tpu.memory_space<vmem>>, %arg8: memref<2x4x8x32xf32, #tpu.memory_space<vmem>>, %arg9: memref<2x1x32xf32, #tpu.memory_space<vmem>>, %arg10: memref<2x32x2048xbf16, #tpu.memory_space<vmem>>, %arg11: memref<2x1x2048xf32, #tpu.memory_space<vmem>>, %arg12: memref<2x2048x32xbf16, #tpu.memory_space<vmem>>, %arg13: memref<2x1x32xf32, #tpu.memory_space<vmem>>, %arg14: memref<2x1x32xf32, #tpu.memory_space<vmem>>, %arg15: memref<2x1x32xf32, #tpu.memory_space<vmem>>, %arg16: memref<2x1x32xf32, #tpu.memory_space<vmem>>, %arg17: memref<2x1x32xf32, #tpu.memory_space<vmem>>, %arg18: memref<32x2xf32, #tpu.memory_space<vmem>>, %arg19: memref<1x2xf32, #tpu.memory_space<vmem>>, %arg20: memref<1xf32, #tpu.memory_space<smem>>, %arg21: memref<1xf32, #tpu.memory_space<smem>>, %arg22: memref<2x2xf32, #tpu.memory_space<vmem>>) attributes {dimension_semantics = [], scalar_prefetch = 0 : i64, scratch_operands = 0 : i64, tpu.core_type = #tpu.core_type<tc>} {
    %c0 = arith.constant 0 : index
    %c0_0 = arith.constant 0 : index
    %0 = vector.load %arg0[%c0, %c0_0] : memref<16x32xf32, #tpu.memory_space<vmem>>, vector<16x32xf32>
    %c0_1 = arith.constant 0 : index
    %c0_2 = arith.constant 0 : index
    %1 = vector.load %arg1[%c0_1, %c0_2] : memref<16x16xf32, #tpu.memory_space<vmem>>, vector<16x16xf32>
    %c0_3 = arith.constant 0 : index
    %c0_4 = arith.constant 0 : index
    %c0_5 = arith.constant 0 : index
    %c0_6 = arith.constant 0 : index
    %2 = vector.load %arg2[%c0_3, %c0_4, %c0_5, %c0_6] : memref<2x4x32x8xf32, #tpu.memory_space<vmem>>, vector<1x1x32x8xf32>
    %3 = vector.shape_cast %2 : vector<1x1x32x8xf32> to vector<32x8xf32>
    %cst = arith.constant dense<0.000000e+00> : vector<16x8xf32>
    %4 = tpu.matmul %0, %3, %cst {dimension_numbers = #tpu.dot_dimension_numbers<[1], [0], [0], [1], [0, 0, 1, 1], [], []>} : vector<16x32xf32>, vector<32x8xf32>, vector<16x8xf32> -> vector<16x8xf32>
    %c0_7 = arith.constant 0 : index
    %c0_8 = arith.constant 0 : index
    %c0_9 = arith.constant 0 : index
    %c0_10 = arith.constant 0 : index
    %5 = vector.load %arg3[%c0_7, %c0_8, %c0_9, %c0_10] : memref<2x4x1x8xf32, #tpu.memory_space<vmem>>, vector<1x1x1x8xf32>
    %6 = vector.shape_cast %5 : vector<1x1x1x8xf32> to vector<1x8xf32>
    %7 = vector.broadcast %6 : vector<1x8xf32> to vector<16x8xf32>
    %8 = arith.addf %4, %7 : vector<16x8xf32>
    %c0_11 = arith.constant 0 : index
    %c0_12 = arith.constant 0 : index
    %c0_13 = arith.constant 0 : index
    %c0_14 = arith.constant 0 : index
    %9 = vector.load %arg4[%c0_11, %c0_12, %c0_13, %c0_14] : memref<2x4x32x8xf32, #tpu.memory_space<vmem>>, vector<1x1x32x8xf32>
    %10 = vector.shape_cast %9 : vector<1x1x32x8xf32> to vector<32x8xf32>
    %cst_15 = arith.constant dense<0.000000e+00> : vector<16x8xf32>
    %11 = tpu.matmul %0, %10, %cst_15 {dimension_numbers = #tpu.dot_dimension_numbers<[1], [0], [0], [1], [0, 0, 1, 1], [], []>} : vector<16x32xf32>, vector<32x8xf32>, vector<16x8xf32> -> vector<16x8xf32>
    %c0_16 = arith.constant 0 : index
    %c0_17 = arith.constant 0 : index
    %c0_18 = arith.constant 0 : index
    %c0_19 = arith.constant 0 : index
    %12 = vector.load %arg5[%c0_16, %c0_17, %c0_18, %c0_19] : memref<2x4x1x8xf32, #tpu.memory_space<vmem>>, vector<1x1x1x8xf32>
    %13 = vector.shape_cast %12 : vector<1x1x1x8xf32> to vector<1x8xf32>
    %14 = vector.broadcast %13 : vector<1x8xf32> to vector<16x8xf32>
    %15 = arith.addf %11, %14 : vector<16x8xf32>
    %c0_20 = arith.constant 0 : index
    %c0_21 = arith.constant 0 : index
    %c0_22 = arith.constant 0 : index
    %c0_23 = arith.constant 0 : index
    %16 = vector.load %arg6[%c0_20, %c0_21, %c0_22, %c0_23] : memref<2x4x32x8xf32, #tpu.memory_space<vmem>>, vector<1x1x32x8xf32>
    %17 = vector.shape_cast %16 : vector<1x1x32x8xf32> to vector<32x8xf32>
    %cst_24 = arith.constant dense<0.000000e+00> : vector<16x8xf32>
    %18 = tpu.matmul %0, %17, %cst_24 {dimension_numbers = #tpu.dot_dimension_numbers<[1], [0], [0], [1], [0, 0, 1, 1], [], []>} : vector<16x32xf32>, vector<32x8xf32>, vector<16x8xf32> -> vector<16x8xf32>
    %c0_25 = arith.constant 0 : index
    %c0_26 = arith.constant 0 : index
    %c0_27 = arith.constant 0 : index
    %c0_28 = arith.constant 0 : index
    %19 = vector.load %arg7[%c0_25, %c0_26, %c0_27, %c0_28] : memref<2x4x1x8xf32, #tpu.memory_space<vmem>>, vector<1x1x1x8xf32>
    %20 = vector.shape_cast %19 : vector<1x1x1x8xf32> to vector<1x8xf32>
    %21 = vector.broadcast %20 : vector<1x8xf32> to vector<16x8xf32>
    %22 = arith.addf %18, %21 : vector<16x8xf32>
    %cst_29 = arith.constant dense<0.000000e+00> : vector<16x16xf32>
    %23 = tpu.matmul %8, %15, %cst_29 {dimension_numbers = #tpu.dot_dimension_numbers<[1], [1], [0], [0], [0, 0, 1, 0], [], []>} : vector<16x8xf32>, vector<16x8xf32>, vector<16x16xf32> -> vector<16x16xf32>
    %24 = arith.addf %23, %1 : vector<16x16xf32>
    %cst_30 = arith.constant dense<0xFF800000> : vector<16xf32>
    %25 = vector.multi_reduction <maximumf>, %24, %cst_30 [1] : vector<16x16xf32> to vector<16xf32>
    %26 = vector.shape_cast %25 : vector<16xf32> to vector<16x1xf32>
    %27 = vector.broadcast %26 : vector<16x1xf32> to vector<16x16xf32>
    %28 = arith.subf %24, %27 : vector<16x16xf32>
    %29 = math.exp %28 : vector<16x16xf32>
    %cst_31 = arith.constant dense<0.000000e+00> : vector<16xf32>
    %30 = vector.multi_reduction <add>, %29, %cst_31 [1] : vector<16x16xf32> to vector<16xf32>
    %31 = vector.shape_cast %30 : vector<16xf32> to vector<16x1xf32>
    %32 = tpu.reciprocal %31 {approx = true} : vector<16x1xf32> -> vector<16x1xf32>
    %33 = vector.broadcast %32 : vector<16x1xf32> to vector<16x16xf32>
    %34 = arith.mulf %29, %33 : vector<16x16xf32>
    %cst_32 = arith.constant dense<0.000000e+00> : vector<16x8xf32>
    %35 = tpu.matmul %34, %22, %cst_32 {dimension_numbers = #tpu.dot_dimension_numbers<[1], [0], [0], [1], [0, 0, 1, 1], [], []>} : vector<16x16xf32>, vector<16x8xf32>, vector<16x8xf32> -> vector<16x8xf32>
    %c0_33 = arith.constant 0 : index
    %c0_34 = arith.constant 0 : index
    %c0_35 = arith.constant 0 : index
    %c0_36 = arith.constant 0 : index
    %36 = vector.load %arg8[%c0_33, %c0_34, %c0_35, %c0_36] : memref<2x4x8x32xf32, #tpu.memory_space<vmem>>, vector<1x1x8x32xf32>
    %37 = vector.shape_cast %36 : vector<1x1x8x32xf32> to vector<8x32xf32>
    %cst_37 = arith.constant dense<0.000000e+00> : vector<16x32xf32>
    %38 = tpu.matmul %35, %37, %cst_37 {dimension_numbers = #tpu.dot_dimension_numbers<[1], [0], [0], [1], [0, 0, 1, 1], [], []>} : vector<16x8xf32>, vector<8x32xf32>, vector<16x32xf32> -> vector<16x32xf32>
    %c0_38 = arith.constant 0 : index
    %c1 = arith.constant 1 : index
    %c0_39 = arith.constant 0 : index
    %c0_40 = arith.constant 0 : index
    %39 = vector.load %arg2[%c0_38, %c1, %c0_39, %c0_40] : memref<2x4x32x8xf32, #tpu.memory_space<vmem>>, vector<1x1x32x8xf32>
    %40 = vector.shape_cast %39 : vector<1x1x32x8xf32> to vector<32x8xf32>
    %cst_41 = arith.constant dense<0.000000e+00> : vector<16x8xf32>
    %41 = tpu.matmul %0, %40, %cst_41 {dimension_numbers = #tpu.dot_dimension_numbers<[1], [0], [0], [1], [0, 0, 1, 1], [], []>} : vector<16x32xf32>, vector<32x8xf32>, vector<16x8xf32> -> vector<16x8xf32>
    %c0_42 = arith.constant 0 : index
    %c1_43 = arith.constant 1 : index
    %c0_44 = arith.constant 0 : index
    %c0_45 = arith.constant 0 : index
    %42 = vector.load %arg3[%c0_42, %c1_43, %c0_44, %c0_45] : memref<2x4x1x8xf32, #tpu.memory_space<vmem>>, vector<1x1x1x8xf32>
    %43 = vector.shape_cast %42 : vector<1x1x1x8xf32> to vector<1x8xf32>
    %44 = vector.broadcast %43 : vector<1x8xf32> to vector<16x8xf32>
    %45 = arith.addf %41, %44 : vector<16x8xf32>
    %c0_46 = arith.constant 0 : index
    %c1_47 = arith.constant 1 : index
    %c0_48 = arith.constant 0 : index
    %c0_49 = arith.constant 0 : index
    %46 = vector.load %arg4[%c0_46, %c1_47, %c0_48, %c0_49] : memref<2x4x32x8xf32, #tpu.memory_space<vmem>>, vector<1x1x32x8xf32>
    %47 = vector.shape_cast %46 : vector<1x1x32x8xf32> to vector<32x8xf32>
    %cst_50 = arith.constant dense<0.000000e+00> : vector<16x8xf32>
    %48 = tpu.matmul %0, %47, %cst_50 {dimension_numbers = #tpu.dot_dimension_numbers<[1], [0], [0], [1], [0, 0, 1, 1], [], []>} : vector<16x32xf32>, vector<32x8xf32>, vector<16x8xf32> -> vector<16x8xf32>
    %c0_51 = arith.constant 0 : index
    %c1_52 = arith.constant 1 : index
    %c0_53 = arith.constant 0 : index
    %c0_54 = arith.constant 0 : index
    %49 = vector.load %arg5[%c0_51, %c1_52, %c0_53, %c0_54] : memref<2x4x1x8xf32, #tpu.memory_space<vmem>>, vector<1x1x1x8xf32>
    %50 = vector.shape_cast %49 : vector<1x1x1x8xf32> to vector<1x8xf32>
    %51 = vector.broadcast %50 : vector<1x8xf32> to vector<16x8xf32>
    %52 = arith.addf %48, %51 : vector<16x8xf32>
    %c0_55 = arith.constant 0 : index
    %c1_56 = arith.constant 1 : index
    %c0_57 = arith.constant 0 : index
    %c0_58 = arith.constant 0 : index
    %53 = vector.load %arg6[%c0_55, %c1_56, %c0_57, %c0_58] : memref<2x4x32x8xf32, #tpu.memory_space<vmem>>, vector<1x1x32x8xf32>
    %54 = vector.shape_cast %53 : vector<1x1x32x8xf32> to vector<32x8xf32>
    %cst_59 = arith.constant dense<0.000000e+00> : vector<16x8xf32>
    %55 = tpu.matmul %0, %54, %cst_59 {dimension_numbers = #tpu.dot_dimension_numbers<[1], [0], [0], [1], [0, 0, 1, 1], [], []>} : vector<16x32xf32>, vector<32x8xf32>, vector<16x8xf32> -> vector<16x8xf32>
    %c0_60 = arith.constant 0 : index
    %c1_61 = arith.constant 1 : index
    %c0_62 = arith.constant 0 : index
    %c0_63 = arith.constant 0 : index
    %56 = vector.load %arg7[%c0_60, %c1_61, %c0_62, %c0_63] : memref<2x4x1x8xf32, #tpu.memory_space<vmem>>, vector<1x1x1x8xf32>
    %57 = vector.shape_cast %56 : vector<1x1x1x8xf32> to vector<1x8xf32>
    %58 = vector.broadcast %57 : vector<1x8xf32> to vector<16x8xf32>
    %59 = arith.addf %55, %58 : vector<16x8xf32>
    %cst_64 = arith.constant dense<0.000000e+00> : vector<16x16xf32>
    %60 = tpu.matmul %45, %52, %cst_64 {dimension_numbers = #tpu.dot_dimension_numbers<[1], [1], [0], [0], [0, 0, 1, 0], [], []>} : vector<16x8xf32>, vector<16x8xf32>, vector<16x16xf32> -> vector<16x16xf32>
    %61 = arith.addf %60, %1 : vector<16x16xf32>
    %cst_65 = arith.constant dense<0xFF800000> : vector<16xf32>
    %62 = vector.multi_reduction <maximumf>, %61, %cst_65 [1] : vector<16x16xf32> to vector<16xf32>
    %63 = vector.shape_cast %62 : vector<16xf32> to vector<16x1xf32>
    %64 = vector.broadcast %63 : vector<16x1xf32> to vector<16x16xf32>
    %65 = arith.subf %61, %64 : vector<16x16xf32>
    %66 = math.exp %65 : vector<16x16xf32>
    %cst_66 = arith.constant dense<0.000000e+00> : vector<16xf32>
    %67 = vector.multi_reduction <add>, %66, %cst_66 [1] : vector<16x16xf32> to vector<16xf32>
    %68 = vector.shape_cast %67 : vector<16xf32> to vector<16x1xf32>
    %69 = tpu.reciprocal %68 {approx = true} : vector<16x1xf32> -> vector<16x1xf32>
    %70 = vector.broadcast %69 : vector<16x1xf32> to vector<16x16xf32>
    %71 = arith.mulf %66, %70 : vector<16x16xf32>
    %cst_67 = arith.constant dense<0.000000e+00> : vector<16x8xf32>
    %72 = tpu.matmul %71, %59, %cst_67 {dimension_numbers = #tpu.dot_dimension_numbers<[1], [0], [0], [1], [0, 0, 1, 1], [], []>} : vector<16x16xf32>, vector<16x8xf32>, vector<16x8xf32> -> vector<16x8xf32>
    %c0_68 = arith.constant 0 : index
    %c1_69 = arith.constant 1 : index
    %c0_70 = arith.constant 0 : index
    %c0_71 = arith.constant 0 : index
    %73 = vector.load %arg8[%c0_68, %c1_69, %c0_70, %c0_71] : memref<2x4x8x32xf32, #tpu.memory_space<vmem>>, vector<1x1x8x32xf32>
    %74 = vector.shape_cast %73 : vector<1x1x8x32xf32> to vector<8x32xf32>
    %cst_72 = arith.constant dense<0.000000e+00> : vector<16x32xf32>
    %75 = tpu.matmul %72, %74, %cst_72 {dimension_numbers = #tpu.dot_dimension_numbers<[1], [0], [0], [1], [0, 0, 1, 1], [], []>} : vector<16x8xf32>, vector<8x32xf32>, vector<16x32xf32> -> vector<16x32xf32>
    %76 = arith.addf %38, %75 : vector<16x32xf32>
    %c0_73 = arith.constant 0 : index
    %c2 = arith.constant 2 : index
    %c0_74 = arith.constant 0 : index
    %c0_75 = arith.constant 0 : index
    %77 = vector.load %arg2[%c0_73, %c2, %c0_74, %c0_75] : memref<2x4x32x8xf32, #tpu.memory_space<vmem>>, vector<1x1x32x8xf32>
    %78 = vector.shape_cast %77 : vector<1x1x32x8xf32> to vector<32x8xf32>
    %cst_76 = arith.constant dense<0.000000e+00> : vector<16x8xf32>
    %79 = tpu.matmul %0, %78, %cst_76 {dimension_numbers = #tpu.dot_dimension_numbers<[1], [0], [0], [1], [0, 0, 1, 1], [], []>} : vector<16x32xf32>, vector<32x8xf32>, vector<16x8xf32> -> vector<16x8xf32>
    %c0_77 = arith.constant 0 : index
    %c2_78 = arith.constant 2 : index
    %c0_79 = arith.constant 0 : index
    %c0_80 = arith.constant 0 : index
    %80 = vector.load %arg3[%c0_77, %c2_78, %c0_79, %c0_80] : memref<2x4x1x8xf32, #tpu.memory_space<vmem>>, vector<1x1x1x8xf32>
    %81 = vector.shape_cast %80 : vector<1x1x1x8xf32> to vector<1x8xf32>
    %82 = vector.broadcast %81 : vector<1x8xf32> to vector<16x8xf32>
    %83 = arith.addf %79, %82 : vector<16x8xf32>
    %c0_81 = arith.constant 0 : index
    %c2_82 = arith.constant 2 : index
    %c0_83 = arith.constant 0 : index
    %c0_84 = arith.constant 0 : index
    %84 = vector.load %arg4[%c0_81, %c2_82, %c0_83, %c0_84] : memref<2x4x32x8xf32, #tpu.memory_space<vmem>>, vector<1x1x32x8xf32>
    %85 = vector.shape_cast %84 : vector<1x1x32x8xf32> to vector<32x8xf32>
    %cst_85 = arith.constant dense<0.000000e+00> : vector<16x8xf32>
    %86 = tpu.matmul %0, %85, %cst_85 {dimension_numbers = #tpu.dot_dimension_numbers<[1], [0], [0], [1], [0, 0, 1, 1], [], []>} : vector<16x32xf32>, vector<32x8xf32>, vector<16x8xf32> -> vector<16x8xf32>
    %c0_86 = arith.constant 0 : index
    %c2_87 = arith.constant 2 : index
    %c0_88 = arith.constant 0 : index
    %c0_89 = arith.constant 0 : index
    %87 = vector.load %arg5[%c0_86, %c2_87, %c0_88, %c0_89] : memref<2x4x1x8xf32, #tpu.memory_space<vmem>>, vector<1x1x1x8xf32>
    %88 = vector.shape_cast %87 : vector<1x1x1x8xf32> to vector<1x8xf32>
    %89 = vector.broadcast %88 : vector<1x8xf32> to vector<16x8xf32>
    %90 = arith.addf %86, %89 : vector<16x8xf32>
    %c0_90 = arith.constant 0 : index
    %c2_91 = arith.constant 2 : index
    %c0_92 = arith.constant 0 : index
    %c0_93 = arith.constant 0 : index
    %91 = vector.load %arg6[%c0_90, %c2_91, %c0_92, %c0_93] : memref<2x4x32x8xf32, #tpu.memory_space<vmem>>, vector<1x1x32x8xf32>
    %92 = vector.shape_cast %91 : vector<1x1x32x8xf32> to vector<32x8xf32>
    %cst_94 = arith.constant dense<0.000000e+00> : vector<16x8xf32>
    %93 = tpu.matmul %0, %92, %cst_94 {dimension_numbers = #tpu.dot_dimension_numbers<[1], [0], [0], [1], [0, 0, 1, 1], [], []>} : vector<16x32xf32>, vector<32x8xf32>, vector<16x8xf32> -> vector<16x8xf32>
    %c0_95 = arith.constant 0 : index
    %c2_96 = arith.constant 2 : index
    %c0_97 = arith.constant 0 : index
    %c0_98 = arith.constant 0 : index
    %94 = vector.load %arg7[%c0_95, %c2_96, %c0_97, %c0_98] : memref<2x4x1x8xf32, #tpu.memory_space<vmem>>, vector<1x1x1x8xf32>
    %95 = vector.shape_cast %94 : vector<1x1x1x8xf32> to vector<1x8xf32>
    %96 = vector.broadcast %95 : vector<1x8xf32> to vector<16x8xf32>
    %97 = arith.addf %93, %96 : vector<16x8xf32>
    %cst_99 = arith.constant dense<0.000000e+00> : vector<16x16xf32>
    %98 = tpu.matmul %83, %90, %cst_99 {dimension_numbers = #tpu.dot_dimension_numbers<[1], [1], [0], [0], [0, 0, 1, 0], [], []>} : vector<16x8xf32>, vector<16x8xf32>, vector<16x16xf32> -> vector<16x16xf32>
    %99 = arith.addf %98, %1 : vector<16x16xf32>
    %cst_100 = arith.constant dense<0xFF800000> : vector<16xf32>
    %100 = vector.multi_reduction <maximumf>, %99, %cst_100 [1] : vector<16x16xf32> to vector<16xf32>
    %101 = vector.shape_cast %100 : vector<16xf32> to vector<16x1xf32>
    %102 = vector.broadcast %101 : vector<16x1xf32> to vector<16x16xf32>
    %103 = arith.subf %99, %102 : vector<16x16xf32>
    %104 = math.exp %103 : vector<16x16xf32>
    %cst_101 = arith.constant dense<0.000000e+00> : vector<16xf32>
    %105 = vector.multi_reduction <add>, %104, %cst_101 [1] : vector<16x16xf32> to vector<16xf32>
    %106 = vector.shape_cast %105 : vector<16xf32> to vector<16x1xf32>
    %107 = tpu.reciprocal %106 {approx = true} : vector<16x1xf32> -> vector<16x1xf32>
    %108 = vector.broadcast %107 : vector<16x1xf32> to vector<16x16xf32>
    %109 = arith.mulf %104, %108 : vector<16x16xf32>
    %cst_102 = arith.constant dense<0.000000e+00> : vector<16x8xf32>
    %110 = tpu.matmul %109, %97, %cst_102 {dimension_numbers = #tpu.dot_dimension_numbers<[1], [0], [0], [1], [0, 0, 1, 1], [], []>} : vector<16x16xf32>, vector<16x8xf32>, vector<16x8xf32> -> vector<16x8xf32>
    %c0_103 = arith.constant 0 : index
    %c2_104 = arith.constant 2 : index
    %c0_105 = arith.constant 0 : index
    %c0_106 = arith.constant 0 : index
    %111 = vector.load %arg8[%c0_103, %c2_104, %c0_105, %c0_106] : memref<2x4x8x32xf32, #tpu.memory_space<vmem>>, vector<1x1x8x32xf32>
    %112 = vector.shape_cast %111 : vector<1x1x8x32xf32> to vector<8x32xf32>
    %cst_107 = arith.constant dense<0.000000e+00> : vector<16x32xf32>
    %113 = tpu.matmul %110, %112, %cst_107 {dimension_numbers = #tpu.dot_dimension_numbers<[1], [0], [0], [1], [0, 0, 1, 1], [], []>} : vector<16x8xf32>, vector<8x32xf32>, vector<16x32xf32> -> vector<16x32xf32>
    %114 = arith.addf %76, %113 : vector<16x32xf32>
    %c0_108 = arith.constant 0 : index
    %c3 = arith.constant 3 : index
    %c0_109 = arith.constant 0 : index
    %c0_110 = arith.constant 0 : index
    %115 = vector.load %arg2[%c0_108, %c3, %c0_109, %c0_110] : memref<2x4x32x8xf32, #tpu.memory_space<vmem>>, vector<1x1x32x8xf32>
    %116 = vector.shape_cast %115 : vector<1x1x32x8xf32> to vector<32x8xf32>
    %cst_111 = arith.constant dense<0.000000e+00> : vector<16x8xf32>
    %117 = tpu.matmul %0, %116, %cst_111 {dimension_numbers = #tpu.dot_dimension_numbers<[1], [0], [0], [1], [0, 0, 1, 1], [], []>} : vector<16x32xf32>, vector<32x8xf32>, vector<16x8xf32> -> vector<16x8xf32>
    %c0_112 = arith.constant 0 : index
    %c3_113 = arith.constant 3 : index
    %c0_114 = arith.constant 0 : index
    %c0_115 = arith.constant 0 : index
    %118 = vector.load %arg3[%c0_112, %c3_113, %c0_114, %c0_115] : memref<2x4x1x8xf32, #tpu.memory_space<vmem>>, vector<1x1x1x8xf32>
    %119 = vector.shape_cast %118 : vector<1x1x1x8xf32> to vector<1x8xf32>
    %120 = vector.broadcast %119 : vector<1x8xf32> to vector<16x8xf32>
    %121 = arith.addf %117, %120 : vector<16x8xf32>
    %c0_116 = arith.constant 0 : index
    %c3_117 = arith.constant 3 : index
    %c0_118 = arith.constant 0 : index
    %c0_119 = arith.constant 0 : index
    %122 = vector.load %arg4[%c0_116, %c3_117, %c0_118, %c0_119] : memref<2x4x32x8xf32, #tpu.memory_space<vmem>>, vector<1x1x32x8xf32>
    %123 = vector.shape_cast %122 : vector<1x1x32x8xf32> to vector<32x8xf32>
    %cst_120 = arith.constant dense<0.000000e+00> : vector<16x8xf32>
    %124 = tpu.matmul %0, %123, %cst_120 {dimension_numbers = #tpu.dot_dimension_numbers<[1], [0], [0], [1], [0, 0, 1, 1], [], []>} : vector<16x32xf32>, vector<32x8xf32>, vector<16x8xf32> -> vector<16x8xf32>
    %c0_121 = arith.constant 0 : index
    %c3_122 = arith.constant 3 : index
    %c0_123 = arith.constant 0 : index
    %c0_124 = arith.constant 0 : index
    %125 = vector.load %arg5[%c0_121, %c3_122, %c0_123, %c0_124] : memref<2x4x1x8xf32, #tpu.memory_space<vmem>>, vector<1x1x1x8xf32>
    %126 = vector.shape_cast %125 : vector<1x1x1x8xf32> to vector<1x8xf32>
    %127 = vector.broadcast %126 : vector<1x8xf32> to vector<16x8xf32>
    %128 = arith.addf %124, %127 : vector<16x8xf32>
    %c0_125 = arith.constant 0 : index
    %c3_126 = arith.constant 3 : index
    %c0_127 = arith.constant 0 : index
    %c0_128 = arith.constant 0 : index
    %129 = vector.load %arg6[%c0_125, %c3_126, %c0_127, %c0_128] : memref<2x4x32x8xf32, #tpu.memory_space<vmem>>, vector<1x1x32x8xf32>
    %130 = vector.shape_cast %129 : vector<1x1x32x8xf32> to vector<32x8xf32>
    %cst_129 = arith.constant dense<0.000000e+00> : vector<16x8xf32>
    %131 = tpu.matmul %0, %130, %cst_129 {dimension_numbers = #tpu.dot_dimension_numbers<[1], [0], [0], [1], [0, 0, 1, 1], [], []>} : vector<16x32xf32>, vector<32x8xf32>, vector<16x8xf32> -> vector<16x8xf32>
    %c0_130 = arith.constant 0 : index
    %c3_131 = arith.constant 3 : index
    %c0_132 = arith.constant 0 : index
    %c0_133 = arith.constant 0 : index
    %132 = vector.load %arg7[%c0_130, %c3_131, %c0_132, %c0_133] : memref<2x4x1x8xf32, #tpu.memory_space<vmem>>, vector<1x1x1x8xf32>
    %133 = vector.shape_cast %132 : vector<1x1x1x8xf32> to vector<1x8xf32>
    %134 = vector.broadcast %133 : vector<1x8xf32> to vector<16x8xf32>
    %135 = arith.addf %131, %134 : vector<16x8xf32>
    %cst_134 = arith.constant dense<0.000000e+00> : vector<16x16xf32>
    %136 = tpu.matmul %121, %128, %cst_134 {dimension_numbers = #tpu.dot_dimension_numbers<[1], [1], [0], [0], [0, 0, 1, 0], [], []>} : vector<16x8xf32>, vector<16x8xf32>, vector<16x16xf32> -> vector<16x16xf32>
    %137 = arith.addf %136, %1 : vector<16x16xf32>
    %cst_135 = arith.constant dense<0xFF800000> : vector<16xf32>
    %138 = vector.multi_reduction <maximumf>, %137, %cst_135 [1] : vector<16x16xf32> to vector<16xf32>
    %139 = vector.shape_cast %138 : vector<16xf32> to vector<16x1xf32>
    %140 = vector.broadcast %139 : vector<16x1xf32> to vector<16x16xf32>
    %141 = arith.subf %137, %140 : vector<16x16xf32>
    %142 = math.exp %141 : vector<16x16xf32>
    %cst_136 = arith.constant dense<0.000000e+00> : vector<16xf32>
    %143 = vector.multi_reduction <add>, %142, %cst_136 [1] : vector<16x16xf32> to vector<16xf32>
    %144 = vector.shape_cast %143 : vector<16xf32> to vector<16x1xf32>
    %145 = tpu.reciprocal %144 {approx = true} : vector<16x1xf32> -> vector<16x1xf32>
    %146 = vector.broadcast %145 : vector<16x1xf32> to vector<16x16xf32>
    %147 = arith.mulf %142, %146 : vector<16x16xf32>
    %cst_137 = arith.constant dense<0.000000e+00> : vector<16x8xf32>
    %148 = tpu.matmul %147, %135, %cst_137 {dimension_numbers = #tpu.dot_dimension_numbers<[1], [0], [0], [1], [0, 0, 1, 1], [], []>} : vector<16x16xf32>, vector<16x8xf32>, vector<16x8xf32> -> vector<16x8xf32>
    %c0_138 = arith.constant 0 : index
    %c3_139 = arith.constant 3 : index
    %c0_140 = arith.constant 0 : index
    %c0_141 = arith.constant 0 : index
    %149 = vector.load %arg8[%c0_138, %c3_139, %c0_140, %c0_141] : memref<2x4x8x32xf32, #tpu.memory_space<vmem>>, vector<1x1x8x32xf32>
    %150 = vector.shape_cast %149 : vector<1x1x8x32xf32> to vector<8x32xf32>
    %cst_142 = arith.constant dense<0.000000e+00> : vector<16x32xf32>
    %151 = tpu.matmul %148, %150, %cst_142 {dimension_numbers = #tpu.dot_dimension_numbers<[1], [0], [0], [1], [0, 0, 1, 1], [], []>} : vector<16x8xf32>, vector<8x32xf32>, vector<16x32xf32> -> vector<16x32xf32>
    %152 = arith.addf %114, %151 : vector<16x32xf32>
    %c0_143 = arith.constant 0 : index
    %c0_144 = arith.constant 0 : index
    %c0_145 = arith.constant 0 : index
    %153 = vector.load %arg9[%c0_143, %c0_144, %c0_145] : memref<2x1x32xf32, #tpu.memory_space<vmem>>, vector<1x1x32xf32>
    %154 = vector.shape_cast %153 : vector<1x1x32xf32> to vector<1x32xf32>
    %155 = vector.broadcast %154 : vector<1x32xf32> to vector<16x32xf32>
    %156 = arith.addf %152, %155 : vector<16x32xf32>
    %157 = arith.addf %0, %156 : vector<16x32xf32>
    %c0_146 = arith.constant 0 : index
    %c0_147 = arith.constant 0 : index
    %c0_148 = arith.constant 0 : index
    %158 = vector.load %arg14[%c0_146, %c0_147, %c0_148] : memref<2x1x32xf32, #tpu.memory_space<vmem>>, vector<1x1x32xf32>
    %159 = vector.shape_cast %158 : vector<1x1x32xf32> to vector<1x32xf32>
    %c0_149 = arith.constant 0 : index
    %c0_150 = arith.constant 0 : index
    %c0_151 = arith.constant 0 : index
    %160 = vector.load %arg15[%c0_149, %c0_150, %c0_151] : memref<2x1x32xf32, #tpu.memory_space<vmem>>, vector<1x1x32xf32>
    %161 = vector.shape_cast %160 : vector<1x1x32xf32> to vector<1x32xf32>
    %cst_152 = arith.constant dense<0.000000e+00> : vector<16xf32>
    %162 = vector.multi_reduction <add>, %157, %cst_152 [1] : vector<16x32xf32> to vector<16xf32>
    %163 = vector.shape_cast %162 : vector<16xf32> to vector<16x1xf32>
    %cst_153 = arith.constant 3.200000e+01 : f32
    %164 = vector.broadcast %cst_153 : f32 to vector<16x1xf32>
    %165 = arith.divf %163, %164 : vector<16x1xf32>
    %166 = vector.broadcast %165 : vector<16x1xf32> to vector<16x32xf32>
    %167 = arith.subf %157, %166 : vector<16x32xf32>
    %168 = arith.mulf %167, %167 : vector<16x32xf32>
    %cst_154 = arith.constant dense<0.000000e+00> : vector<16xf32>
    %169 = vector.multi_reduction <add>, %168, %cst_154 [1] : vector<16x32xf32> to vector<16xf32>
    %170 = vector.shape_cast %169 : vector<16xf32> to vector<16x1xf32>
    %cst_155 = arith.constant 3.200000e+01 : f32
    %171 = vector.broadcast %cst_155 : f32 to vector<16x1xf32>
    %172 = arith.divf %170, %171 : vector<16x1xf32>
    %cst_156 = arith.constant 9.99999974E-6 : f32
    %173 = vector.broadcast %cst_156 : f32 to vector<16x1xf32>
    %174 = arith.addf %172, %173 : vector<16x1xf32>
    %175 = math.rsqrt %174 : vector<16x1xf32>
    %176 = vector.broadcast %175 : vector<16x1xf32> to vector<16x32xf32>
    %177 = arith.mulf %167, %176 : vector<16x32xf32>
    %178 = vector.broadcast %159 : vector<1x32xf32> to vector<16x32xf32>
    %179 = arith.mulf %177, %178 : vector<16x32xf32>
    %180 = vector.broadcast %161 : vector<1x32xf32> to vector<16x32xf32>
    %181 = arith.addf %179, %180 : vector<16x32xf32>
    %182 = arith.truncf %181 : vector<16x32xf32> to vector<16x32xbf16>
    %c0_157 = arith.constant 0 : index
    %c0_158 = arith.constant 0 : index
    %c0_159 = arith.constant 0 : index
    %183 = vector.load %arg10[%c0_157, %c0_158, %c0_159] : memref<2x32x2048xbf16, #tpu.memory_space<vmem>>, vector<1x32x2048xbf16>
    %184 = vector.shape_cast %183 : vector<1x32x2048xbf16> to vector<32x2048xbf16>
    %cst_160 = arith.constant dense<0.000000e+00> : vector<16x2048xf32>
    %185 = tpu.matmul %182, %184, %cst_160 {dimension_numbers = #tpu.dot_dimension_numbers<[1], [0], [0], [1], [0, 0, 1, 1], [], []>} : vector<16x32xbf16>, vector<32x2048xbf16>, vector<16x2048xf32> -> vector<16x2048xf32>
    %c0_161 = arith.constant 0 : index
    %c0_162 = arith.constant 0 : index
    %c0_163 = arith.constant 0 : index
    %186 = vector.load %arg11[%c0_161, %c0_162, %c0_163] : memref<2x1x2048xf32, #tpu.memory_space<vmem>>, vector<1x1x2048xf32>
    %187 = vector.shape_cast %186 : vector<1x1x2048xf32> to vector<1x2048xf32>
    %188 = vector.broadcast %187 : vector<1x2048xf32> to vector<16x2048xf32>
    %189 = arith.addf %185, %188 : vector<16x2048xf32>
    %cst_164 = arith.constant 0.000000e+00 : f32
    %190 = vector.broadcast %cst_164 : f32 to vector<16x2048xf32>
    %191 = arith.maximumf %189, %190 : vector<16x2048xf32>
    %192 = arith.truncf %191 : vector<16x2048xf32> to vector<16x2048xbf16>
    %c0_165 = arith.constant 0 : index
    %c0_166 = arith.constant 0 : index
    %c0_167 = arith.constant 0 : index
    %193 = vector.load %arg12[%c0_165, %c0_166, %c0_167] : memref<2x2048x32xbf16, #tpu.memory_space<vmem>>, vector<1x2048x32xbf16>
    %194 = vector.shape_cast %193 : vector<1x2048x32xbf16> to vector<2048x32xbf16>
    %cst_168 = arith.constant dense<0.000000e+00> : vector<16x32xf32>
    %195 = tpu.matmul %192, %194, %cst_168 {dimension_numbers = #tpu.dot_dimension_numbers<[1], [0], [0], [1], [0, 0, 1, 1], [], []>} : vector<16x2048xbf16>, vector<2048x32xbf16>, vector<16x32xf32> -> vector<16x32xf32>
    %c0_169 = arith.constant 0 : index
    %c0_170 = arith.constant 0 : index
    %c0_171 = arith.constant 0 : index
    %196 = vector.load %arg13[%c0_169, %c0_170, %c0_171] : memref<2x1x32xf32, #tpu.memory_space<vmem>>, vector<1x1x32xf32>
    %197 = vector.shape_cast %196 : vector<1x1x32xf32> to vector<1x32xf32>
    %198 = vector.broadcast %197 : vector<1x32xf32> to vector<16x32xf32>
    %199 = arith.addf %195, %198 : vector<16x32xf32>
    %200 = arith.addf %181, %199 : vector<16x32xf32>
    %c0_172 = arith.constant 0 : index
    %c0_173 = arith.constant 0 : index
    %c0_174 = arith.constant 0 : index
    %201 = vector.load %arg16[%c0_172, %c0_173, %c0_174] : memref<2x1x32xf32, #tpu.memory_space<vmem>>, vector<1x1x32xf32>
    %202 = vector.shape_cast %201 : vector<1x1x32xf32> to vector<1x32xf32>
    %c0_175 = arith.constant 0 : index
    %c0_176 = arith.constant 0 : index
    %c0_177 = arith.constant 0 : index
    %203 = vector.load %arg17[%c0_175, %c0_176, %c0_177] : memref<2x1x32xf32, #tpu.memory_space<vmem>>, vector<1x1x32xf32>
    %204 = vector.shape_cast %203 : vector<1x1x32xf32> to vector<1x32xf32>
    %cst_178 = arith.constant dense<0.000000e+00> : vector<16xf32>
    %205 = vector.multi_reduction <add>, %200, %cst_178 [1] : vector<16x32xf32> to vector<16xf32>
    %206 = vector.shape_cast %205 : vector<16xf32> to vector<16x1xf32>
    %cst_179 = arith.constant 3.200000e+01 : f32
    %207 = vector.broadcast %cst_179 : f32 to vector<16x1xf32>
    %208 = arith.divf %206, %207 : vector<16x1xf32>
    %209 = vector.broadcast %208 : vector<16x1xf32> to vector<16x32xf32>
    %210 = arith.subf %200, %209 : vector<16x32xf32>
    %211 = arith.mulf %210, %210 : vector<16x32xf32>
    %cst_180 = arith.constant dense<0.000000e+00> : vector<16xf32>
    %212 = vector.multi_reduction <add>, %211, %cst_180 [1] : vector<16x32xf32> to vector<16xf32>
    %213 = vector.shape_cast %212 : vector<16xf32> to vector<16x1xf32>
    %cst_181 = arith.constant 3.200000e+01 : f32
    %214 = vector.broadcast %cst_181 : f32 to vector<16x1xf32>
    %215 = arith.divf %213, %214 : vector<16x1xf32>
    %cst_182 = arith.constant 9.99999974E-6 : f32
    %216 = vector.broadcast %cst_182 : f32 to vector<16x1xf32>
    %217 = arith.addf %215, %216 : vector<16x1xf32>
    %218 = math.rsqrt %217 : vector<16x1xf32>
    %219 = vector.broadcast %218 : vector<16x1xf32> to vector<16x32xf32>
    %220 = arith.mulf %210, %219 : vector<16x32xf32>
    %221 = vector.broadcast %202 : vector<1x32xf32> to vector<16x32xf32>
    %222 = arith.mulf %220, %221 : vector<16x32xf32>
    %223 = vector.broadcast %204 : vector<1x32xf32> to vector<16x32xf32>
    %224 = arith.addf %222, %223 : vector<16x32xf32>
    %c1_183 = arith.constant 1 : index
    %c0_184 = arith.constant 0 : index
    %c0_185 = arith.constant 0 : index
    %c0_186 = arith.constant 0 : index
    %225 = vector.load %arg2[%c1_183, %c0_184, %c0_185, %c0_186] : memref<2x4x32x8xf32, #tpu.memory_space<vmem>>, vector<1x1x32x8xf32>
    %226 = vector.shape_cast %225 : vector<1x1x32x8xf32> to vector<32x8xf32>
    %cst_187 = arith.constant dense<0.000000e+00> : vector<16x8xf32>
    %227 = tpu.matmul %224, %226, %cst_187 {dimension_numbers = #tpu.dot_dimension_numbers<[1], [0], [0], [1], [0, 0, 1, 1], [], []>} : vector<16x32xf32>, vector<32x8xf32>, vector<16x8xf32> -> vector<16x8xf32>
    %c1_188 = arith.constant 1 : index
    %c0_189 = arith.constant 0 : index
    %c0_190 = arith.constant 0 : index
    %c0_191 = arith.constant 0 : index
    %228 = vector.load %arg3[%c1_188, %c0_189, %c0_190, %c0_191] : memref<2x4x1x8xf32, #tpu.memory_space<vmem>>, vector<1x1x1x8xf32>
    %229 = vector.shape_cast %228 : vector<1x1x1x8xf32> to vector<1x8xf32>
    %230 = vector.broadcast %229 : vector<1x8xf32> to vector<16x8xf32>
    %231 = arith.addf %227, %230 : vector<16x8xf32>
    %c1_192 = arith.constant 1 : index
    %c0_193 = arith.constant 0 : index
    %c0_194 = arith.constant 0 : index
    %c0_195 = arith.constant 0 : index
    %232 = vector.load %arg4[%c1_192, %c0_193, %c0_194, %c0_195] : memref<2x4x32x8xf32, #tpu.memory_space<vmem>>, vector<1x1x32x8xf32>
    %233 = vector.shape_cast %232 : vector<1x1x32x8xf32> to vector<32x8xf32>
    %cst_196 = arith.constant dense<0.000000e+00> : vector<16x8xf32>
    %234 = tpu.matmul %224, %233, %cst_196 {dimension_numbers = #tpu.dot_dimension_numbers<[1], [0], [0], [1], [0, 0, 1, 1], [], []>} : vector<16x32xf32>, vector<32x8xf32>, vector<16x8xf32> -> vector<16x8xf32>
    %c1_197 = arith.constant 1 : index
    %c0_198 = arith.constant 0 : index
    %c0_199 = arith.constant 0 : index
    %c0_200 = arith.constant 0 : index
    %235 = vector.load %arg5[%c1_197, %c0_198, %c0_199, %c0_200] : memref<2x4x1x8xf32, #tpu.memory_space<vmem>>, vector<1x1x1x8xf32>
    %236 = vector.shape_cast %235 : vector<1x1x1x8xf32> to vector<1x8xf32>
    %237 = vector.broadcast %236 : vector<1x8xf32> to vector<16x8xf32>
    %238 = arith.addf %234, %237 : vector<16x8xf32>
    %c1_201 = arith.constant 1 : index
    %c0_202 = arith.constant 0 : index
    %c0_203 = arith.constant 0 : index
    %c0_204 = arith.constant 0 : index
    %239 = vector.load %arg6[%c1_201, %c0_202, %c0_203, %c0_204] : memref<2x4x32x8xf32, #tpu.memory_space<vmem>>, vector<1x1x32x8xf32>
    %240 = vector.shape_cast %239 : vector<1x1x32x8xf32> to vector<32x8xf32>
    %cst_205 = arith.constant dense<0.000000e+00> : vector<16x8xf32>
    %241 = tpu.matmul %224, %240, %cst_205 {dimension_numbers = #tpu.dot_dimension_numbers<[1], [0], [0], [1], [0, 0, 1, 1], [], []>} : vector<16x32xf32>, vector<32x8xf32>, vector<16x8xf32> -> vector<16x8xf32>
    %c1_206 = arith.constant 1 : index
    %c0_207 = arith.constant 0 : index
    %c0_208 = arith.constant 0 : index
    %c0_209 = arith.constant 0 : index
    %242 = vector.load %arg7[%c1_206, %c0_207, %c0_208, %c0_209] : memref<2x4x1x8xf32, #tpu.memory_space<vmem>>, vector<1x1x1x8xf32>
    %243 = vector.shape_cast %242 : vector<1x1x1x8xf32> to vector<1x8xf32>
    %244 = vector.broadcast %243 : vector<1x8xf32> to vector<16x8xf32>
    %245 = arith.addf %241, %244 : vector<16x8xf32>
    %cst_210 = arith.constant dense<0.000000e+00> : vector<16x16xf32>
    %246 = tpu.matmul %231, %238, %cst_210 {dimension_numbers = #tpu.dot_dimension_numbers<[1], [1], [0], [0], [0, 0, 1, 0], [], []>} : vector<16x8xf32>, vector<16x8xf32>, vector<16x16xf32> -> vector<16x16xf32>
    %247 = arith.addf %246, %1 : vector<16x16xf32>
    %cst_211 = arith.constant dense<0xFF800000> : vector<16xf32>
    %248 = vector.multi_reduction <maximumf>, %247, %cst_211 [1] : vector<16x16xf32> to vector<16xf32>
    %249 = vector.shape_cast %248 : vector<16xf32> to vector<16x1xf32>
    %250 = vector.broadcast %249 : vector<16x1xf32> to vector<16x16xf32>
    %251 = arith.subf %247, %250 : vector<16x16xf32>
    %252 = math.exp %251 : vector<16x16xf32>
    %cst_212 = arith.constant dense<0.000000e+00> : vector<16xf32>
    %253 = vector.multi_reduction <add>, %252, %cst_212 [1] : vector<16x16xf32> to vector<16xf32>
    %254 = vector.shape_cast %253 : vector<16xf32> to vector<16x1xf32>
    %255 = tpu.reciprocal %254 {approx = true} : vector<16x1xf32> -> vector<16x1xf32>
    %256 = vector.broadcast %255 : vector<16x1xf32> to vector<16x16xf32>
    %257 = arith.mulf %252, %256 : vector<16x16xf32>
    %cst_213 = arith.constant dense<0.000000e+00> : vector<16x8xf32>
    %258 = tpu.matmul %257, %245, %cst_213 {dimension_numbers = #tpu.dot_dimension_numbers<[1], [0], [0], [1], [0, 0, 1, 1], [], []>} : vector<16x16xf32>, vector<16x8xf32>, vector<16x8xf32> -> vector<16x8xf32>
    %c1_214 = arith.constant 1 : index
    %c0_215 = arith.constant 0 : index
    %c0_216 = arith.constant 0 : index
    %c0_217 = arith.constant 0 : index
    %259 = vector.load %arg8[%c1_214, %c0_215, %c0_216, %c0_217] : memref<2x4x8x32xf32, #tpu.memory_space<vmem>>, vector<1x1x8x32xf32>
    %260 = vector.shape_cast %259 : vector<1x1x8x32xf32> to vector<8x32xf32>
    %cst_218 = arith.constant dense<0.000000e+00> : vector<16x32xf32>
    %261 = tpu.matmul %258, %260, %cst_218 {dimension_numbers = #tpu.dot_dimension_numbers<[1], [0], [0], [1], [0, 0, 1, 1], [], []>} : vector<16x8xf32>, vector<8x32xf32>, vector<16x32xf32> -> vector<16x32xf32>
    %c1_219 = arith.constant 1 : index
    %c1_220 = arith.constant 1 : index
    %c0_221 = arith.constant 0 : index
    %c0_222 = arith.constant 0 : index
    %262 = vector.load %arg2[%c1_219, %c1_220, %c0_221, %c0_222] : memref<2x4x32x8xf32, #tpu.memory_space<vmem>>, vector<1x1x32x8xf32>
    %263 = vector.shape_cast %262 : vector<1x1x32x8xf32> to vector<32x8xf32>
    %cst_223 = arith.constant dense<0.000000e+00> : vector<16x8xf32>
    %264 = tpu.matmul %224, %263, %cst_223 {dimension_numbers = #tpu.dot_dimension_numbers<[1], [0], [0], [1], [0, 0, 1, 1], [], []>} : vector<16x32xf32>, vector<32x8xf32>, vector<16x8xf32> -> vector<16x8xf32>
    %c1_224 = arith.constant 1 : index
    %c1_225 = arith.constant 1 : index
    %c0_226 = arith.constant 0 : index
    %c0_227 = arith.constant 0 : index
    %265 = vector.load %arg3[%c1_224, %c1_225, %c0_226, %c0_227] : memref<2x4x1x8xf32, #tpu.memory_space<vmem>>, vector<1x1x1x8xf32>
    %266 = vector.shape_cast %265 : vector<1x1x1x8xf32> to vector<1x8xf32>
    %267 = vector.broadcast %266 : vector<1x8xf32> to vector<16x8xf32>
    %268 = arith.addf %264, %267 : vector<16x8xf32>
    %c1_228 = arith.constant 1 : index
    %c1_229 = arith.constant 1 : index
    %c0_230 = arith.constant 0 : index
    %c0_231 = arith.constant 0 : index
    %269 = vector.load %arg4[%c1_228, %c1_229, %c0_230, %c0_231] : memref<2x4x32x8xf32, #tpu.memory_space<vmem>>, vector<1x1x32x8xf32>
    %270 = vector.shape_cast %269 : vector<1x1x32x8xf32> to vector<32x8xf32>
    %cst_232 = arith.constant dense<0.000000e+00> : vector<16x8xf32>
    %271 = tpu.matmul %224, %270, %cst_232 {dimension_numbers = #tpu.dot_dimension_numbers<[1], [0], [0], [1], [0, 0, 1, 1], [], []>} : vector<16x32xf32>, vector<32x8xf32>, vector<16x8xf32> -> vector<16x8xf32>
    %c1_233 = arith.constant 1 : index
    %c1_234 = arith.constant 1 : index
    %c0_235 = arith.constant 0 : index
    %c0_236 = arith.constant 0 : index
    %272 = vector.load %arg5[%c1_233, %c1_234, %c0_235, %c0_236] : memref<2x4x1x8xf32, #tpu.memory_space<vmem>>, vector<1x1x1x8xf32>
    %273 = vector.shape_cast %272 : vector<1x1x1x8xf32> to vector<1x8xf32>
    %274 = vector.broadcast %273 : vector<1x8xf32> to vector<16x8xf32>
    %275 = arith.addf %271, %274 : vector<16x8xf32>
    %c1_237 = arith.constant 1 : index
    %c1_238 = arith.constant 1 : index
    %c0_239 = arith.constant 0 : index
    %c0_240 = arith.constant 0 : index
    %276 = vector.load %arg6[%c1_237, %c1_238, %c0_239, %c0_240] : memref<2x4x32x8xf32, #tpu.memory_space<vmem>>, vector<1x1x32x8xf32>
    %277 = vector.shape_cast %276 : vector<1x1x32x8xf32> to vector<32x8xf32>
    %cst_241 = arith.constant dense<0.000000e+00> : vector<16x8xf32>
    %278 = tpu.matmul %224, %277, %cst_241 {dimension_numbers = #tpu.dot_dimension_numbers<[1], [0], [0], [1], [0, 0, 1, 1], [], []>} : vector<16x32xf32>, vector<32x8xf32>, vector<16x8xf32> -> vector<16x8xf32>
    %c1_242 = arith.constant 1 : index
    %c1_243 = arith.constant 1 : index
    %c0_244 = arith.constant 0 : index
    %c0_245 = arith.constant 0 : index
    %279 = vector.load %arg7[%c1_242, %c1_243, %c0_244, %c0_245] : memref<2x4x1x8xf32, #tpu.memory_space<vmem>>, vector<1x1x1x8xf32>
    %280 = vector.shape_cast %279 : vector<1x1x1x8xf32> to vector<1x8xf32>
    %281 = vector.broadcast %280 : vector<1x8xf32> to vector<16x8xf32>
    %282 = arith.addf %278, %281 : vector<16x8xf32>
    %cst_246 = arith.constant dense<0.000000e+00> : vector<16x16xf32>
    %283 = tpu.matmul %268, %275, %cst_246 {dimension_numbers = #tpu.dot_dimension_numbers<[1], [1], [0], [0], [0, 0, 1, 0], [], []>} : vector<16x8xf32>, vector<16x8xf32>, vector<16x16xf32> -> vector<16x16xf32>
    %284 = arith.addf %283, %1 : vector<16x16xf32>
    %cst_247 = arith.constant dense<0xFF800000> : vector<16xf32>
    %285 = vector.multi_reduction <maximumf>, %284, %cst_247 [1] : vector<16x16xf32> to vector<16xf32>
    %286 = vector.shape_cast %285 : vector<16xf32> to vector<16x1xf32>
    %287 = vector.broadcast %286 : vector<16x1xf32> to vector<16x16xf32>
    %288 = arith.subf %284, %287 : vector<16x16xf32>
    %289 = math.exp %288 : vector<16x16xf32>
    %cst_248 = arith.constant dense<0.000000e+00> : vector<16xf32>
    %290 = vector.multi_reduction <add>, %289, %cst_248 [1] : vector<16x16xf32> to vector<16xf32>
    %291 = vector.shape_cast %290 : vector<16xf32> to vector<16x1xf32>
    %292 = tpu.reciprocal %291 {approx = true} : vector<16x1xf32> -> vector<16x1xf32>
    %293 = vector.broadcast %292 : vector<16x1xf32> to vector<16x16xf32>
    %294 = arith.mulf %289, %293 : vector<16x16xf32>
    %cst_249 = arith.constant dense<0.000000e+00> : vector<16x8xf32>
    %295 = tpu.matmul %294, %282, %cst_249 {dimension_numbers = #tpu.dot_dimension_numbers<[1], [0], [0], [1], [0, 0, 1, 1], [], []>} : vector<16x16xf32>, vector<16x8xf32>, vector<16x8xf32> -> vector<16x8xf32>
    %c1_250 = arith.constant 1 : index
    %c1_251 = arith.constant 1 : index
    %c0_252 = arith.constant 0 : index
    %c0_253 = arith.constant 0 : index
    %296 = vector.load %arg8[%c1_250, %c1_251, %c0_252, %c0_253] : memref<2x4x8x32xf32, #tpu.memory_space<vmem>>, vector<1x1x8x32xf32>
    %297 = vector.shape_cast %296 : vector<1x1x8x32xf32> to vector<8x32xf32>
    %cst_254 = arith.constant dense<0.000000e+00> : vector<16x32xf32>
    %298 = tpu.matmul %295, %297, %cst_254 {dimension_numbers = #tpu.dot_dimension_numbers<[1], [0], [0], [1], [0, 0, 1, 1], [], []>} : vector<16x8xf32>, vector<8x32xf32>, vector<16x32xf32> -> vector<16x32xf32>
    %299 = arith.addf %261, %298 : vector<16x32xf32>
    %c1_255 = arith.constant 1 : index
    %c2_256 = arith.constant 2 : index
    %c0_257 = arith.constant 0 : index
    %c0_258 = arith.constant 0 : index
    %300 = vector.load %arg2[%c1_255, %c2_256, %c0_257, %c0_258] : memref<2x4x32x8xf32, #tpu.memory_space<vmem>>, vector<1x1x32x8xf32>
    %301 = vector.shape_cast %300 : vector<1x1x32x8xf32> to vector<32x8xf32>
    %cst_259 = arith.constant dense<0.000000e+00> : vector<16x8xf32>
    %302 = tpu.matmul %224, %301, %cst_259 {dimension_numbers = #tpu.dot_dimension_numbers<[1], [0], [0], [1], [0, 0, 1, 1], [], []>} : vector<16x32xf32>, vector<32x8xf32>, vector<16x8xf32> -> vector<16x8xf32>
    %c1_260 = arith.constant 1 : index
    %c2_261 = arith.constant 2 : index
    %c0_262 = arith.constant 0 : index
    %c0_263 = arith.constant 0 : index
    %303 = vector.load %arg3[%c1_260, %c2_261, %c0_262, %c0_263] : memref<2x4x1x8xf32, #tpu.memory_space<vmem>>, vector<1x1x1x8xf32>
    %304 = vector.shape_cast %303 : vector<1x1x1x8xf32> to vector<1x8xf32>
    %305 = vector.broadcast %304 : vector<1x8xf32> to vector<16x8xf32>
    %306 = arith.addf %302, %305 : vector<16x8xf32>
    %c1_264 = arith.constant 1 : index
    %c2_265 = arith.constant 2 : index
    %c0_266 = arith.constant 0 : index
    %c0_267 = arith.constant 0 : index
    %307 = vector.load %arg4[%c1_264, %c2_265, %c0_266, %c0_267] : memref<2x4x32x8xf32, #tpu.memory_space<vmem>>, vector<1x1x32x8xf32>
    %308 = vector.shape_cast %307 : vector<1x1x32x8xf32> to vector<32x8xf32>
    %cst_268 = arith.constant dense<0.000000e+00> : vector<16x8xf32>
    %309 = tpu.matmul %224, %308, %cst_268 {dimension_numbers = #tpu.dot_dimension_numbers<[1], [0], [0], [1], [0, 0, 1, 1], [], []>} : vector<16x32xf32>, vector<32x8xf32>, vector<16x8xf32> -> vector<16x8xf32>
    %c1_269 = arith.constant 1 : index
    %c2_270 = arith.constant 2 : index
    %c0_271 = arith.constant 0 : index
    %c0_272 = arith.constant 0 : index
    %310 = vector.load %arg5[%c1_269, %c2_270, %c0_271, %c0_272] : memref<2x4x1x8xf32, #tpu.memory_space<vmem>>, vector<1x1x1x8xf32>
    %311 = vector.shape_cast %310 : vector<1x1x1x8xf32> to vector<1x8xf32>
    %312 = vector.broadcast %311 : vector<1x8xf32> to vector<16x8xf32>
    %313 = arith.addf %309, %312 : vector<16x8xf32>
    %c1_273 = arith.constant 1 : index
    %c2_274 = arith.constant 2 : index
    %c0_275 = arith.constant 0 : index
    %c0_276 = arith.constant 0 : index
    %314 = vector.load %arg6[%c1_273, %c2_274, %c0_275, %c0_276] : memref<2x4x32x8xf32, #tpu.memory_space<vmem>>, vector<1x1x32x8xf32>
    %315 = vector.shape_cast %314 : vector<1x1x32x8xf32> to vector<32x8xf32>
    %cst_277 = arith.constant dense<0.000000e+00> : vector<16x8xf32>
    %316 = tpu.matmul %224, %315, %cst_277 {dimension_numbers = #tpu.dot_dimension_numbers<[1], [0], [0], [1], [0, 0, 1, 1], [], []>} : vector<16x32xf32>, vector<32x8xf32>, vector<16x8xf32> -> vector<16x8xf32>
    %c1_278 = arith.constant 1 : index
    %c2_279 = arith.constant 2 : index
    %c0_280 = arith.constant 0 : index
    %c0_281 = arith.constant 0 : index
    %317 = vector.load %arg7[%c1_278, %c2_279, %c0_280, %c0_281] : memref<2x4x1x8xf32, #tpu.memory_space<vmem>>, vector<1x1x1x8xf32>
    %318 = vector.shape_cast %317 : vector<1x1x1x8xf32> to vector<1x8xf32>
    %319 = vector.broadcast %318 : vector<1x8xf32> to vector<16x8xf32>
    %320 = arith.addf %316, %319 : vector<16x8xf32>
    %cst_282 = arith.constant dense<0.000000e+00> : vector<16x16xf32>
    %321 = tpu.matmul %306, %313, %cst_282 {dimension_numbers = #tpu.dot_dimension_numbers<[1], [1], [0], [0], [0, 0, 1, 0], [], []>} : vector<16x8xf32>, vector<16x8xf32>, vector<16x16xf32> -> vector<16x16xf32>
    %322 = arith.addf %321, %1 : vector<16x16xf32>
    %cst_283 = arith.constant dense<0xFF800000> : vector<16xf32>
    %323 = vector.multi_reduction <maximumf>, %322, %cst_283 [1] : vector<16x16xf32> to vector<16xf32>
    %324 = vector.shape_cast %323 : vector<16xf32> to vector<16x1xf32>
    %325 = vector.broadcast %324 : vector<16x1xf32> to vector<16x16xf32>
    %326 = arith.subf %322, %325 : vector<16x16xf32>
    %327 = math.exp %326 : vector<16x16xf32>
    %cst_284 = arith.constant dense<0.000000e+00> : vector<16xf32>
    %328 = vector.multi_reduction <add>, %327, %cst_284 [1] : vector<16x16xf32> to vector<16xf32>
    %329 = vector.shape_cast %328 : vector<16xf32> to vector<16x1xf32>
    %330 = tpu.reciprocal %329 {approx = true} : vector<16x1xf32> -> vector<16x1xf32>
    %331 = vector.broadcast %330 : vector<16x1xf32> to vector<16x16xf32>
    %332 = arith.mulf %327, %331 : vector<16x16xf32>
    %cst_285 = arith.constant dense<0.000000e+00> : vector<16x8xf32>
    %333 = tpu.matmul %332, %320, %cst_285 {dimension_numbers = #tpu.dot_dimension_numbers<[1], [0], [0], [1], [0, 0, 1, 1], [], []>} : vector<16x16xf32>, vector<16x8xf32>, vector<16x8xf32> -> vector<16x8xf32>
    %c1_286 = arith.constant 1 : index
    %c2_287 = arith.constant 2 : index
    %c0_288 = arith.constant 0 : index
    %c0_289 = arith.constant 0 : index
    %334 = vector.load %arg8[%c1_286, %c2_287, %c0_288, %c0_289] : memref<2x4x8x32xf32, #tpu.memory_space<vmem>>, vector<1x1x8x32xf32>
    %335 = vector.shape_cast %334 : vector<1x1x8x32xf32> to vector<8x32xf32>
    %cst_290 = arith.constant dense<0.000000e+00> : vector<16x32xf32>
    %336 = tpu.matmul %333, %335, %cst_290 {dimension_numbers = #tpu.dot_dimension_numbers<[1], [0], [0], [1], [0, 0, 1, 1], [], []>} : vector<16x8xf32>, vector<8x32xf32>, vector<16x32xf32> -> vector<16x32xf32>
    %337 = arith.addf %299, %336 : vector<16x32xf32>
    %c1_291 = arith.constant 1 : index
    %c3_292 = arith.constant 3 : index
    %c0_293 = arith.constant 0 : index
    %c0_294 = arith.constant 0 : index
    %338 = vector.load %arg2[%c1_291, %c3_292, %c0_293, %c0_294] : memref<2x4x32x8xf32, #tpu.memory_space<vmem>>, vector<1x1x32x8xf32>
    %339 = vector.shape_cast %338 : vector<1x1x32x8xf32> to vector<32x8xf32>
    %cst_295 = arith.constant dense<0.000000e+00> : vector<16x8xf32>
    %340 = tpu.matmul %224, %339, %cst_295 {dimension_numbers = #tpu.dot_dimension_numbers<[1], [0], [0], [1], [0, 0, 1, 1], [], []>} : vector<16x32xf32>, vector<32x8xf32>, vector<16x8xf32> -> vector<16x8xf32>
    %c1_296 = arith.constant 1 : index
    %c3_297 = arith.constant 3 : index
    %c0_298 = arith.constant 0 : index
    %c0_299 = arith.constant 0 : index
    %341 = vector.load %arg3[%c1_296, %c3_297, %c0_298, %c0_299] : memref<2x4x1x8xf32, #tpu.memory_space<vmem>>, vector<1x1x1x8xf32>
    %342 = vector.shape_cast %341 : vector<1x1x1x8xf32> to vector<1x8xf32>
    %343 = vector.broadcast %342 : vector<1x8xf32> to vector<16x8xf32>
    %344 = arith.addf %340, %343 : vector<16x8xf32>
    %c1_300 = arith.constant 1 : index
    %c3_301 = arith.constant 3 : index
    %c0_302 = arith.constant 0 : index
    %c0_303 = arith.constant 0 : index
    %345 = vector.load %arg4[%c1_300, %c3_301, %c0_302, %c0_303] : memref<2x4x32x8xf32, #tpu.memory_space<vmem>>, vector<1x1x32x8xf32>
    %346 = vector.shape_cast %345 : vector<1x1x32x8xf32> to vector<32x8xf32>
    %cst_304 = arith.constant dense<0.000000e+00> : vector<16x8xf32>
    %347 = tpu.matmul %224, %346, %cst_304 {dimension_numbers = #tpu.dot_dimension_numbers<[1], [0], [0], [1], [0, 0, 1, 1], [], []>} : vector<16x32xf32>, vector<32x8xf32>, vector<16x8xf32> -> vector<16x8xf32>
    %c1_305 = arith.constant 1 : index
    %c3_306 = arith.constant 3 : index
    %c0_307 = arith.constant 0 : index
    %c0_308 = arith.constant 0 : index
    %348 = vector.load %arg5[%c1_305, %c3_306, %c0_307, %c0_308] : memref<2x4x1x8xf32, #tpu.memory_space<vmem>>, vector<1x1x1x8xf32>
    %349 = vector.shape_cast %348 : vector<1x1x1x8xf32> to vector<1x8xf32>
    %350 = vector.broadcast %349 : vector<1x8xf32> to vector<16x8xf32>
    %351 = arith.addf %347, %350 : vector<16x8xf32>
    %c1_309 = arith.constant 1 : index
    %c3_310 = arith.constant 3 : index
    %c0_311 = arith.constant 0 : index
    %c0_312 = arith.constant 0 : index
    %352 = vector.load %arg6[%c1_309, %c3_310, %c0_311, %c0_312] : memref<2x4x32x8xf32, #tpu.memory_space<vmem>>, vector<1x1x32x8xf32>
    %353 = vector.shape_cast %352 : vector<1x1x32x8xf32> to vector<32x8xf32>
    %cst_313 = arith.constant dense<0.000000e+00> : vector<16x8xf32>
    %354 = tpu.matmul %224, %353, %cst_313 {dimension_numbers = #tpu.dot_dimension_numbers<[1], [0], [0], [1], [0, 0, 1, 1], [], []>} : vector<16x32xf32>, vector<32x8xf32>, vector<16x8xf32> -> vector<16x8xf32>
    %c1_314 = arith.constant 1 : index
    %c3_315 = arith.constant 3 : index
    %c0_316 = arith.constant 0 : index
    %c0_317 = arith.constant 0 : index
    %355 = vector.load %arg7[%c1_314, %c3_315, %c0_316, %c0_317] : memref<2x4x1x8xf32, #tpu.memory_space<vmem>>, vector<1x1x1x8xf32>
    %356 = vector.shape_cast %355 : vector<1x1x1x8xf32> to vector<1x8xf32>
    %357 = vector.broadcast %356 : vector<1x8xf32> to vector<16x8xf32>
    %358 = arith.addf %354, %357 : vector<16x8xf32>
    %cst_318 = arith.constant dense<0.000000e+00> : vector<16x16xf32>
    %359 = tpu.matmul %344, %351, %cst_318 {dimension_numbers = #tpu.dot_dimension_numbers<[1], [1], [0], [0], [0, 0, 1, 0], [], []>} : vector<16x8xf32>, vector<16x8xf32>, vector<16x16xf32> -> vector<16x16xf32>
    %360 = arith.addf %359, %1 : vector<16x16xf32>
    %cst_319 = arith.constant dense<0xFF800000> : vector<16xf32>
    %361 = vector.multi_reduction <maximumf>, %360, %cst_319 [1] : vector<16x16xf32> to vector<16xf32>
    %362 = vector.shape_cast %361 : vector<16xf32> to vector<16x1xf32>
    %363 = vector.broadcast %362 : vector<16x1xf32> to vector<16x16xf32>
    %364 = arith.subf %360, %363 : vector<16x16xf32>
    %365 = math.exp %364 : vector<16x16xf32>
    %cst_320 = arith.constant dense<0.000000e+00> : vector<16xf32>
    %366 = vector.multi_reduction <add>, %365, %cst_320 [1] : vector<16x16xf32> to vector<16xf32>
    %367 = vector.shape_cast %366 : vector<16xf32> to vector<16x1xf32>
    %368 = tpu.reciprocal %367 {approx = true} : vector<16x1xf32> -> vector<16x1xf32>
    %369 = vector.broadcast %368 : vector<16x1xf32> to vector<16x16xf32>
    %370 = arith.mulf %365, %369 : vector<16x16xf32>
    %cst_321 = arith.constant dense<0.000000e+00> : vector<16x8xf32>
    %371 = tpu.matmul %370, %358, %cst_321 {dimension_numbers = #tpu.dot_dimension_numbers<[1], [0], [0], [1], [0, 0, 1, 1], [], []>} : vector<16x16xf32>, vector<16x8xf32>, vector<16x8xf32> -> vector<16x8xf32>
    %c1_322 = arith.constant 1 : index
    %c3_323 = arith.constant 3 : index
    %c0_324 = arith.constant 0 : index
    %c0_325 = arith.constant 0 : index
    %372 = vector.load %arg8[%c1_322, %c3_323, %c0_324, %c0_325] : memref<2x4x8x32xf32, #tpu.memory_space<vmem>>, vector<1x1x8x32xf32>
    %373 = vector.shape_cast %372 : vector<1x1x8x32xf32> to vector<8x32xf32>
    %cst_326 = arith.constant dense<0.000000e+00> : vector<16x32xf32>
    %374 = tpu.matmul %371, %373, %cst_326 {dimension_numbers = #tpu.dot_dimension_numbers<[1], [0], [0], [1], [0, 0, 1, 1], [], []>} : vector<16x8xf32>, vector<8x32xf32>, vector<16x32xf32> -> vector<16x32xf32>
    %375 = arith.addf %337, %374 : vector<16x32xf32>
    %c1_327 = arith.constant 1 : index
    %c0_328 = arith.constant 0 : index
    %c0_329 = arith.constant 0 : index
    %376 = vector.load %arg9[%c1_327, %c0_328, %c0_329] : memref<2x1x32xf32, #tpu.memory_space<vmem>>, vector<1x1x32xf32>
    %377 = vector.shape_cast %376 : vector<1x1x32xf32> to vector<1x32xf32>
    %378 = vector.broadcast %377 : vector<1x32xf32> to vector<16x32xf32>
    %379 = arith.addf %375, %378 : vector<16x32xf32>
    %380 = arith.addf %224, %379 : vector<16x32xf32>
    %c1_330 = arith.constant 1 : index
    %c0_331 = arith.constant 0 : index
    %c0_332 = arith.constant 0 : index
    %381 = vector.load %arg14[%c1_330, %c0_331, %c0_332] : memref<2x1x32xf32, #tpu.memory_space<vmem>>, vector<1x1x32xf32>
    %382 = vector.shape_cast %381 : vector<1x1x32xf32> to vector<1x32xf32>
    %c1_333 = arith.constant 1 : index
    %c0_334 = arith.constant 0 : index
    %c0_335 = arith.constant 0 : index
    %383 = vector.load %arg15[%c1_333, %c0_334, %c0_335] : memref<2x1x32xf32, #tpu.memory_space<vmem>>, vector<1x1x32xf32>
    %384 = vector.shape_cast %383 : vector<1x1x32xf32> to vector<1x32xf32>
    %cst_336 = arith.constant dense<0.000000e+00> : vector<16xf32>
    %385 = vector.multi_reduction <add>, %380, %cst_336 [1] : vector<16x32xf32> to vector<16xf32>
    %386 = vector.shape_cast %385 : vector<16xf32> to vector<16x1xf32>
    %cst_337 = arith.constant 3.200000e+01 : f32
    %387 = vector.broadcast %cst_337 : f32 to vector<16x1xf32>
    %388 = arith.divf %386, %387 : vector<16x1xf32>
    %389 = vector.broadcast %388 : vector<16x1xf32> to vector<16x32xf32>
    %390 = arith.subf %380, %389 : vector<16x32xf32>
    %391 = arith.mulf %390, %390 : vector<16x32xf32>
    %cst_338 = arith.constant dense<0.000000e+00> : vector<16xf32>
    %392 = vector.multi_reduction <add>, %391, %cst_338 [1] : vector<16x32xf32> to vector<16xf32>
    %393 = vector.shape_cast %392 : vector<16xf32> to vector<16x1xf32>
    %cst_339 = arith.constant 3.200000e+01 : f32
    %394 = vector.broadcast %cst_339 : f32 to vector<16x1xf32>
    %395 = arith.divf %393, %394 : vector<16x1xf32>
    %cst_340 = arith.constant 9.99999974E-6 : f32
    %396 = vector.broadcast %cst_340 : f32 to vector<16x1xf32>
    %397 = arith.addf %395, %396 : vector<16x1xf32>
    %398 = math.rsqrt %397 : vector<16x1xf32>
    %399 = vector.broadcast %398 : vector<16x1xf32> to vector<16x32xf32>
    %400 = arith.mulf %390, %399 : vector<16x32xf32>
    %401 = vector.broadcast %382 : vector<1x32xf32> to vector<16x32xf32>
    %402 = arith.mulf %400, %401 : vector<16x32xf32>
    %403 = vector.broadcast %384 : vector<1x32xf32> to vector<16x32xf32>
    %404 = arith.addf %402, %403 : vector<16x32xf32>
    %405 = arith.truncf %404 : vector<16x32xf32> to vector<16x32xbf16>
    %c1_341 = arith.constant 1 : index
    %c0_342 = arith.constant 0 : index
    %c0_343 = arith.constant 0 : index
    %406 = vector.load %arg10[%c1_341, %c0_342, %c0_343] : memref<2x32x2048xbf16, #tpu.memory_space<vmem>>, vector<1x32x2048xbf16>
    %407 = vector.shape_cast %406 : vector<1x32x2048xbf16> to vector<32x2048xbf16>
    %cst_344 = arith.constant dense<0.000000e+00> : vector<16x2048xf32>
    %408 = tpu.matmul %405, %407, %cst_344 {dimension_numbers = #tpu.dot_dimension_numbers<[1], [0], [0], [1], [0, 0, 1, 1], [], []>} : vector<16x32xbf16>, vector<32x2048xbf16>, vector<16x2048xf32> -> vector<16x2048xf32>
    %c1_345 = arith.constant 1 : index
    %c0_346 = arith.constant 0 : index
    %c0_347 = arith.constant 0 : index
    %409 = vector.load %arg11[%c1_345, %c0_346, %c0_347] : memref<2x1x2048xf32, #tpu.memory_space<vmem>>, vector<1x1x2048xf32>
    %410 = vector.shape_cast %409 : vector<1x1x2048xf32> to vector<1x2048xf32>
    %411 = vector.broadcast %410 : vector<1x2048xf32> to vector<16x2048xf32>
    %412 = arith.addf %408, %411 : vector<16x2048xf32>
    %cst_348 = arith.constant 0.000000e+00 : f32
    %413 = vector.broadcast %cst_348 : f32 to vector<16x2048xf32>
    %414 = arith.maximumf %412, %413 : vector<16x2048xf32>
    %415 = arith.truncf %414 : vector<16x2048xf32> to vector<16x2048xbf16>
    %c1_349 = arith.constant 1 : index
    %c0_350 = arith.constant 0 : index
    %c0_351 = arith.constant 0 : index
    %416 = vector.load %arg12[%c1_349, %c0_350, %c0_351] : memref<2x2048x32xbf16, #tpu.memory_space<vmem>>, vector<1x2048x32xbf16>
    %417 = vector.shape_cast %416 : vector<1x2048x32xbf16> to vector<2048x32xbf16>
    %cst_352 = arith.constant dense<0.000000e+00> : vector<16x32xf32>
    %418 = tpu.matmul %415, %417, %cst_352 {dimension_numbers = #tpu.dot_dimension_numbers<[1], [0], [0], [1], [0, 0, 1, 1], [], []>} : vector<16x2048xbf16>, vector<2048x32xbf16>, vector<16x32xf32> -> vector<16x32xf32>
    %c1_353 = arith.constant 1 : index
    %c0_354 = arith.constant 0 : index
    %c0_355 = arith.constant 0 : index
    %419 = vector.load %arg13[%c1_353, %c0_354, %c0_355] : memref<2x1x32xf32, #tpu.memory_space<vmem>>, vector<1x1x32xf32>
    %420 = vector.shape_cast %419 : vector<1x1x32xf32> to vector<1x32xf32>
    %421 = vector.broadcast %420 : vector<1x32xf32> to vector<16x32xf32>
    %422 = arith.addf %418, %421 : vector<16x32xf32>
    %423 = arith.addf %404, %422 : vector<16x32xf32>
    %c1_356 = arith.constant 1 : index
    %c0_357 = arith.constant 0 : index
    %c0_358 = arith.constant 0 : index
    %424 = vector.load %arg16[%c1_356, %c0_357, %c0_358] : memref<2x1x32xf32, #tpu.memory_space<vmem>>, vector<1x1x32xf32>
    %425 = vector.shape_cast %424 : vector<1x1x32xf32> to vector<1x32xf32>
    %c1_359 = arith.constant 1 : index
    %c0_360 = arith.constant 0 : index
    %c0_361 = arith.constant 0 : index
    %426 = vector.load %arg17[%c1_359, %c0_360, %c0_361] : memref<2x1x32xf32, #tpu.memory_space<vmem>>, vector<1x1x32xf32>
    %427 = vector.shape_cast %426 : vector<1x1x32xf32> to vector<1x32xf32>
    %cst_362 = arith.constant dense<0.000000e+00> : vector<16xf32>
    %428 = vector.multi_reduction <add>, %423, %cst_362 [1] : vector<16x32xf32> to vector<16xf32>
    %429 = vector.shape_cast %428 : vector<16xf32> to vector<16x1xf32>
    %cst_363 = arith.constant 3.200000e+01 : f32
    %430 = vector.broadcast %cst_363 : f32 to vector<16x1xf32>
    %431 = arith.divf %429, %430 : vector<16x1xf32>
    %432 = vector.broadcast %431 : vector<16x1xf32> to vector<16x32xf32>
    %433 = arith.subf %423, %432 : vector<16x32xf32>
    %434 = arith.mulf %433, %433 : vector<16x32xf32>
    %cst_364 = arith.constant dense<0.000000e+00> : vector<16xf32>
    %435 = vector.multi_reduction <add>, %434, %cst_364 [1] : vector<16x32xf32> to vector<16xf32>
    %436 = vector.shape_cast %435 : vector<16xf32> to vector<16x1xf32>
    %cst_365 = arith.constant 3.200000e+01 : f32
    %437 = vector.broadcast %cst_365 : f32 to vector<16x1xf32>
    %438 = arith.divf %436, %437 : vector<16x1xf32>
    %cst_366 = arith.constant 9.99999974E-6 : f32
    %439 = vector.broadcast %cst_366 : f32 to vector<16x1xf32>
    %440 = arith.addf %438, %439 : vector<16x1xf32>
    %441 = math.rsqrt %440 : vector<16x1xf32>
    %442 = vector.broadcast %441 : vector<16x1xf32> to vector<16x32xf32>
    %443 = arith.mulf %433, %442 : vector<16x32xf32>
    %444 = vector.broadcast %425 : vector<1x32xf32> to vector<16x32xf32>
    %445 = arith.mulf %443, %444 : vector<16x32xf32>
    %446 = vector.broadcast %427 : vector<1x32xf32> to vector<16x32xf32>
    %447 = arith.addf %445, %446 : vector<16x32xf32>
    %448 = vector.extract_strided_slice %447 {offsets = [14, 0], sizes = [2, 32], strides = [1, 1]} : vector<16x32xf32> to vector<2x32xf32>
    %c0_367 = arith.constant 0 : index
    %c0_368 = arith.constant 0 : index
    %449 = vector.load %arg18[%c0_367, %c0_368] : memref<32x2xf32, #tpu.memory_space<vmem>>, vector<32x2xf32>
    %cst_369 = arith.constant dense<0.000000e+00> : vector<2x2xf32>
    %450 = tpu.matmul %448, %449, %cst_369 {dimension_numbers = #tpu.dot_dimension_numbers<[1], [0], [0], [1], [0, 0, 1, 1], [], []>} : vector<2x32xf32>, vector<32x2xf32>, vector<2x2xf32> -> vector<2x2xf32>
    %c0_370 = arith.constant 0 : index
    %c0_371 = arith.constant 0 : index
    %451 = vector.load %arg19[%c0_370, %c0_371] : memref<1x2xf32, #tpu.memory_space<vmem>>, vector<1x2xf32>
    %452 = vector.broadcast %451 : vector<1x2xf32> to vector<2x2xf32>
    %453 = arith.addf %450, %452 : vector<2x2xf32>
    %c0_372 = arith.constant 0 : index
    %454 = memref.load %arg21[%c0_372] : memref<1xf32, #tpu.memory_space<smem>>
    %455 = vector.broadcast %454 : f32 to vector<2x2xf32>
    %456 = arith.mulf %455, %453 : vector<2x2xf32>
    %c0_373 = arith.constant 0 : index
    %457 = memref.load %arg20[%c0_373] : memref<1xf32, #tpu.memory_space<smem>>
    %458 = vector.broadcast %457 : f32 to vector<2x2xf32>
    %459 = arith.subf %456, %458 : vector<2x2xf32>
    %cst_374 = arith.constant 0.000000e+00 : f32
    %460 = vector.broadcast %cst_374 : f32 to vector<2x2xf32>
    %461 = arith.subf %460, %459 : vector<2x2xf32>
    %462 = math.exp %461 : vector<2x2xf32>
    %cst_375 = arith.constant 1.000000e+00 : f32
    %463 = vector.broadcast %cst_375 : f32 to vector<2x2xf32>
    %464 = arith.addf %463, %462 : vector<2x2xf32>
    %cst_376 = arith.constant 1.000000e+00 : f32
    %465 = vector.broadcast %cst_376 : f32 to vector<2x2xf32>
    %466 = arith.divf %465, %464 : vector<2x2xf32>
    %c0_377 = arith.constant 0 : index
    %c0_378 = arith.constant 0 : index
    %467 = vector.load %arg22[%c0_377, %c0_378] : memref<2x2xf32, #tpu.memory_space<vmem>>, vector<2x2xf32>
    tpu.vector_store %arg22[%c0_377, %c0_378], %466 {strides = array<i32>} : memref<2x2xf32, #tpu.memory_space<vmem>>, vector<2x2xf32>,
    return
  }
}

</mosaic_0001>

<llo_original>
// kernel: transformer_model_forward.1
$region0: #{transformer_model_forward.1}
  #allocation0 [shape = 'u32[]', space=smem, size = 0x4, offset = 0x4, fixed_abs, tag = 'smem constant byte address 0x4 - core index']
  #allocation1 [shape = 'u32[144,128]{1,0:T(1,128)}', space=vmem, size = 0x12000, scoped, tag = 'internal scratch']
  #allocation2 [shape = 'f32[1]{0:T(128)S(6)}', space=smem, size = 0x200, scoped, tag = 'scoped memory for transformer_model_forward.1']
  #allocation3 [shape = 'f32[1]{0:T(128)S(6)}', space=smem, size = 0x200, scoped, tag = 'scoped memory for transformer_model_forward.1']
  %s0 = inlined_call_operand.vmem [shape: f32[16,32], index: 0, kind: input, shape index: {}]
  %s1 = inlined_call_operand.vmem [shape: f32[16,16], index: 1, kind: input, shape index: {}]
  %s2 = inlined_call_operand.vmem [shape: f32[2,4,32,8], index: 2, kind: input, shape index: {}]
  %s3 = inlined_call_operand.vmem [shape: f32[2,4,1,8], index: 3, kind: input, shape index: {}]
  %s4 = inlined_call_operand.vmem [shape: f32[2,4,32,8], index: 4, kind: input, shape index: {}]
  %s5 = inlined_call_operand.vmem [shape: f32[2,4,1,8], index: 5, kind: input, shape index: {}]
  %s6 = inlined_call_operand.vmem [shape: f32[2,4,32,8], index: 6, kind: input, shape index: {}]
  %s7 = inlined_call_operand.vmem [shape: f32[2,4,1,8], index: 7, kind: input, shape index: {}]
  %s8 = inlined_call_operand.vmem [shape: f32[2,4,8,32], index: 8, kind: input, shape index: {}]
  %s9 = inlined_call_operand.vmem [shape: f32[2,1,32], index: 9, kind: input, shape index: {}]
  %s10 = inlined_call_operand.vmem [shape: bf16[2,32,2048], index: 10, kind: input, shape index: {}]
  %s11 = inlined_call_operand.vmem [shape: f32[2,1,2048], index: 11, kind: input, shape index: {}]
  %s12 = inlined_call_operand.vmem [shape: bf16[2,2048,32], index: 12, kind: input, shape index: {}]
  %s13 = inlined_call_operand.vmem [shape: f32[2,1,32], index: 13, kind: input, shape index: {}]
  %s14 = inlined_call_operand.vmem [shape: f32[2,1,32], index: 14, kind: input, shape index: {}]
  %s15 = inlined_call_operand.vmem [shape: f32[2,1,32], index: 15, kind: input, shape index: {}]
  %s16 = inlined_call_operand.vmem [shape: f32[2,1,32], index: 16, kind: input, shape index: {}]
  %s17 = inlined_call_operand.vmem [shape: f32[2,1,32], index: 17, kind: input, shape index: {}]
  %s18 = inlined_call_operand.vmem [shape: f32[32,2], index: 18, kind: input, shape index: {}]
  %s19 = inlined_call_operand.vmem [shape: f32[1,2], index: 19, kind: input, shape index: {}]
  %s20 = inlined_call_operand.<no memory space> [shape: f32[1], index: 20, kind: input, shape index: {}]
  %s21 = inlined_call_operand.<no memory space> [shape: f32[1], index: 21, kind: input, shape index: {}]
  %s22 = inlined_call_operand.hbm [shape: f32[2,2], index: 22, kind: output, shape index: {}]
  %s23 = sld [smem:[#allocation0]]
  $region98: #{transformer_model_forward.1} parent=0
    _
  %s25 = ssub.s32 1, %s23
  %s26 = scalar_select 0, %s25, %s23
  %27 = sst [smem:[#allocation2]] %s20
  %28 = sst [smem:[#allocation3]] %s21
  $region1: #{transformer_model_forward.1} parent=0
    #allocation4 [shape = 'u8[1024]{0}', space=vmem, size = 0x400, scoped, tag = 'output window, operand 0, single buffered']
    #allocation5 [shape = 's32[1]{0}', space=sflag, size = 0x4, scoped, tag = 'scoped memory for transformer_model_forward.1']
    %29 = vsyncpa [#allocation5], 0
    // Predicated region
    $region2: #{transformer_model_forward.1} parent=1 // pred_check
      _
    $region3: #{transformer_model_forward.1} parent=1 // pred_check_branch
      %31 = sbr.rel (0) target = $region5
    $region4: #{transformer_model_forward.1} parent=1 // pred_region
      _
    $region5: #{transformer_model_forward.1} parent=1 // pred_fallthru
      _
    // Predicated region
    $region6: #{transformer_model_forward.1} parent=1 // pred_check
      _
    $region7: #{transformer_model_forward.1} parent=1 // pred_check_branch
      %33 = sbr.rel (0) target = $region9
    $region8: #{transformer_model_forward.1} parent=1 // pred_region
      _
    $region9: #{transformer_model_forward.1} parent=1 // pred_fallthru
      _
    // Predicated region
    $region10: #{transformer_model_forward.1} parent=1 // pred_check
      _
    $region11: #{transformer_model_forward.1} parent=1 // pred_check_branch
      %35 = sbr.rel (0) target = $region13
    $region12: #{transformer_model_forward.1} parent=1 // pred_region
      _
    $region13: #{transformer_model_forward.1} parent=1 // pred_fallthru
      _
    // Predicated region
    $region14: #{transformer_model_forward.1} parent=1 // pred_check
      _
    $region15: #{transformer_model_forward.1} parent=1 // pred_check_branch
      %37 = sbr.rel (0) target = $region17
    $region16: #{transformer_model_forward.1} parent=1 // pred_region
      _
    $region17: #{transformer_model_forward.1} parent=1 // pred_fallthru
      _
    // Predicated region
    $region18: #{transformer_model_forward.1} parent=1 // pred_check
      _
    $region19: #{transformer_model_forward.1} parent=1 // pred_check_branch
      %39 = sbr.rel (0) target = $region21
    $region20: #{transformer_model_forward.1} parent=1 // pred_region
      _
    $region21: #{transformer_model_forward.1} parent=1 // pred_fallthru
      _
    // Predicated region
    $region22: #{transformer_model_forward.1} parent=1 // pred_check
      _
    $region23: #{transformer_model_forward.1} parent=1 // pred_check_branch
      %41 = sbr.rel (0) target = $region25
    $region24: #{transformer_model_forward.1} parent=1 // pred_region
      _
    $region25: #{transformer_model_forward.1} parent=1 // pred_fallthru
      _
    // Predicated region
    $region26: #{transformer_model_forward.1} parent=1 // pred_check
      _
    $region27: #{transformer_model_forward.1} parent=1 // pred_check_branch
      %43 = sbr.rel (0) target = $region29
    $region28: #{transformer_model_forward.1} parent=1 // pred_region
      _
    $region29: #{transformer_model_forward.1} parent=1 // pred_fallthru
      _
    // Predicated region
    $region30: #{transformer_model_forward.1} parent=1 // pred_check
      _
    $region31: #{transformer_model_forward.1} parent=1 // pred_check_branch
      %45 = sbr.rel (0) target = $region33
    $region32: #{transformer_model_forward.1} parent=1 // pred_region
      _
    $region33: #{transformer_model_forward.1} parent=1 // pred_fallthru
      _
    // Predicated region
    $region34: #{transformer_model_forward.1} parent=1 // pred_check
      _
    $region35: #{transformer_model_forward.1} parent=1 // pred_check_branch
      %47 = sbr.rel (0) target = $region37
    $region36: #{transformer_model_forward.1} parent=1 // pred_region
      _
    $region37: #{transformer_model_forward.1} parent=1 // pred_fallthru
      _
    // Predicated region
    $region38: #{transformer_model_forward.1} parent=1 // pred_check
      _
    $region39: #{transformer_model_forward.1} parent=1 // pred_check_branch
      %49 = sbr.rel (0) target = $region41
    $region40: #{transformer_model_forward.1} parent=1 // pred_region
      _
    $region41: #{transformer_model_forward.1} parent=1 // pred_fallthru
      _
    // Predicated region
    $region42: #{transformer_model_forward.1} parent=1 // pred_check
      _
    $region43: #{transformer_model_forward.1} parent=1 // pred_check_branch
      %51 = sbr.rel (0) target = $region45
    $region44: #{transformer_model_forward.1} parent=1 // pred_region
      _
    $region45: #{transformer_model_forward.1} parent=1 // pred_fallthru
      _
    // Predicated region
    $region46: #{transformer_model_forward.1} parent=1 // pred_check
      _
    $region47: #{transformer_model_forward.1} parent=1 // pred_check_branch
      %53 = sbr.rel (0) target = $region49
    $region48: #{transformer_model_forward.1} parent=1 // pred_region
      _
    $region49: #{transformer_model_forward.1} parent=1 // pred_fallthru
      _
    // Predicated region
    $region50: #{transformer_model_forward.1} parent=1 // pred_check
      _
    $region51: #{transformer_model_forward.1} parent=1 // pred_check_branch
      %55 = sbr.rel (0) target = $region53
    $region52: #{transformer_model_forward.1} parent=1 // pred_region
      _
    $region53: #{transformer_model_forward.1} parent=1 // pred_fallthru
      _
    // Predicated region
    $region54: #{transformer_model_forward.1} parent=1 // pred_check
      _
    $region55: #{transformer_model_forward.1} parent=1 // pred_check_branch
      %57 = sbr.rel (0) target = $region57
    $region56: #{transformer_model_forward.1} parent=1 // pred_region
      _
    $region57: #{transformer_model_forward.1} parent=1 // pred_fallthru
      _
    // Predicated region
    $region58: #{transformer_model_forward.1} parent=1 // pred_check
      _
    $region59: #{transformer_model_forward.1} parent=1 // pred_check_branch
      %59 = sbr.rel (0) target = $region61
    $region60: #{transformer_model_forward.1} parent=1 // pred_region
      _
    $region61: #{transformer_model_forward.1} parent=1 // pred_fallthru
      _
    // Predicated region
    $region62: #{transformer_model_forward.1} parent=1 // pred_check
      _
    $region63: #{transformer_model_forward.1} parent=1 // pred_check_branch
      %61 = sbr.rel (0) target = $region65
    $region64: #{transformer_model_forward.1} parent=1 // pred_region
      _
    $region65: #{transformer_model_forward.1} parent=1 // pred_fallthru
      _
    // Predicated region
    $region66: #{transformer_model_forward.1} parent=1 // pred_check
      _
    $region67: #{transformer_model_forward.1} parent=1 // pred_check_branch
      %63 = sbr.rel (0) target = $region69
    $region68: #{transformer_model_forward.1} parent=1 // pred_region
      _
    $region69: #{transformer_model_forward.1} parent=1 // pred_fallthru
      _
    // Predicated region
    $region70: #{transformer_model_forward.1} parent=1 // pred_check
      _
    $region71: #{transformer_model_forward.1} parent=1 // pred_check_branch
      %65 = sbr.rel (0) target = $region73
    $region72: #{transformer_model_forward.1} parent=1 // pred_region
      _
    $region73: #{transformer_model_forward.1} parent=1 // pred_fallthru
      _
    // Predicated region
    $region74: #{transformer_model_forward.1} parent=1 // pred_check
      _
    $region75: #{transformer_model_forward.1} parent=1 // pred_check_branch
      %67 = sbr.rel (0) target = $region77
    $region76: #{transformer_model_forward.1} parent=1 // pred_region
      _
    $region77: #{transformer_model_forward.1} parent=1 // pred_fallthru
      _
    // Predicated region
    $region78: #{transformer_model_forward.1} parent=1 // pred_check
      _
    $region79: #{transformer_model_forward.1} parent=1 // pred_check_branch
      %69 = sbr.rel (0) target = $region81
    $region80: #{transformer_model_forward.1} parent=1 // pred_region
      _
    $region81: #{transformer_model_forward.1} parent=1 // pred_fallthru
      _
    // Predicated region
    $region82: #{transformer_model_forward.1} parent=1 // pred_check
      _
    $region83: #{transformer_model_forward.1} parent=1 // pred_check_branch
      %71 = sbr.rel (0) target = $region85
    $region84: #{transformer_model_forward.1} parent=1 // pred_region
      _
    $region85: #{transformer_model_forward.1} parent=1 // pred_fallthru
      _
    // Predicated region
    $region86: #{transformer_model_forward.1} parent=1 // pred_check
      _
    $region87: #{transformer_model_forward.1} parent=1 // pred_check_branch
      %73 = sbr.rel (0) target = $region89
    $region88: #{transformer_model_forward.1} parent=1 // pred_region
      _
    $region89: #{transformer_model_forward.1} parent=1 // pred_fallthru
      _
    %v75 = vld [vmem:[%s0] sm:$0xff]
    %v76 = vld [vmem:[%s0 + $0x8] sm:$0xff]
    %v77 = vld [vmem:[%s1] sm:$0xff]
    %v78 = vld [vmem:[%s1 + $0x8] sm:$0xff]
    %v79 = vld [vmem:[%s2] sm:$0xff]
    %v80 = vld [vmem:[%s2 + $0x8] sm:$0xff]
    %v81 = vld [vmem:[%s2 + $0x10] sm:$0xff]
    %v82 = vld [vmem:[%s2 + $0x18] sm:$0xff]
    %v83 = vld [vmem:[%s3] sm:$0x1]
    %v85 = vlaneseq
    %v86 = vshrl.u32 %v85, 7
    %v87 = vsub.s32 0, %v86
    %v88 = vrot.slane %v83, %v87
    %vm90 = vcmask 261120
    %v92 = vsel %vm90, %v75, 0
    %v95 = vsel %vm90, %v76, 0
    %97 = vmatprep.subr.mxu0 0.0
    %98 = vmatpush1.msra.mxu0 %v79
    %99 = vmatprep.subr.mxu0 0.0
    %100 = vmatpush1.msra.mxu0 %v80
    %101 = vmatprep.subr.mxu0 0.0
    %102 = vmatpush1.msra.mxu0 %v81
    %103 = vmatprep.subr.mxu0 0.0
    %104 = vmatpush1.msra.mxu0 %v82
    %105 = vmatprep.subr.mxu0 0.0
    %106 = vmatpush1.msra.mxu0 0.0
    %107 = vmatprep.subr.mxu0 0.0
    %108 = vmatpush1.msra.mxu0 0.0
    %109 = vmatprep.subr.mxu0 0.0
    %110 = vmatpush1.msra.mxu0 0.0
    %111 = vmatprep.subr.mxu0 0.0
    %112 = vmatpush1.msra.mxu0 0.0
    %113 = vmatprep.subr.mxu0 0.0
    %114 = vmatpush1.msra.mxu0 0.0
    %115 = vmatprep.subr.mxu0 0.0
    %116 = vmatpush1.msra.mxu0 0.0
    %117 = vmatprep.subr.mxu0 0.0
    %118 = vmatpush1.msra.mxu0 0.0
    %119 = vmatprep.subr.mxu0 0.0
    %120 = vmatpush1.msra.mxu0 0.0
    %121 = vmatprep.subr.mxu0 0.0
    %122 = vmatpush1.msra.mxu0 0.0
    %123 = vmatprep.subr.mxu0 0.0
    %124 = vmatpush1.msra.mxu0 0.0
    %125 = vmatprep.subr.mxu0 0.0
    %126 = vmatpush1.msra.mxu0 0.0
    %127 = vmatprep.subr.mxu0 0.0
    %128 = vmatpush1.msra.mxu0 0.0
    %129 = vmatprep.subr.mxu0 0.0
    %130 = vmatpush1.msra.mxu0 0.0
    %131 = vmatprep.subr.mxu0 0.0
    %132 = vmatpush1.msra.mxu0 0.0
    %133 = vmatprep.subr.mxu0 0.0
    %134 = vmatpush1.msra.mxu0 0.0
    %135 = vmatprep.subr.mxu0 0.0
    %136 = vmatpush1.msra.mxu0 0.0
    %137 = vmatprep.subr.mxu0 0.0
    %138 = vmatpush1.msra.mxu0 0.0
    %139 = vmatprep.subr.mxu0 0.0
    %140 = vmatpush1.msra.mxu0 0.0
    %141 = vmatprep.subr.mxu0 0.0
    %142 = vmatpush1.msra.mxu0 0.0
    %143 = vmatprep.subr.mxu0 0.0
    %144 = vmatpush1.msra.mxu0 0.0
    %145 = vmatprep.subr.mxu0 0.0
    %146 = vmatpush1.msra.mxu0 0.0
    %147 = vmatprep.subr.mxu0 0.0
    %148 = vmatpush1.msra.mxu0 0.0
    %149 = vmatprep.subr.mxu0 0.0
    %150 = vmatpush1.msra.mxu0 0.0
    %151 = vmatprep.subr.mxu0 0.0
    %152 = vmatpush1.msra.mxu0 0.0
    %153 = vmatprep.subr.mxu0 0.0
    %154 = vmatpush1.msra.mxu0 0.0
    %155 = vmatprep.subr.mxu0 0.0
    %156 = vmatpush1.msra.mxu0 0.0
    %157 = vmatprep.subr.mxu0 0.0
    %158 = vmatpush1.msra.mxu0 0.0
    %159 = vmatprep.subr.mxu0 0.0
    %160 = vmatpush1.msra.mxu0 0.0
    %161 = vmatprep.mubr.f32.mxu0 0.0
    %162 = vmatmul.mubr.f32.gmra.mrb[0].mxu0 %v92
    %v163 = vpop.f32.mrb[0].mxu0
    %v164 = vadd.f32 %v88, %v163
    %v165 = vpop.f32.mrb[0].mxu0
    %166 = vmatprep.mubr.f32.mxu0 0.0
    %167 = vmatmul.mubr.f32.gmra.mrb[0].mxu0 %v95
    %v168 = vpop.f32.mrb[0].mxu0
    %v169 = vadd.f32 %v88, %v168
    %v170 = vpop.f32.mrb[0].mxu0
    %171 = vdwg.mxu0
    %v172 = vld [vmem:[%s4] sm:$0xff]
    %v173 = vld [vmem:[%s4 + $0x8] sm:$0xff]
    %v174 = vld [vmem:[%s4 + $0x10] sm:$0xff]
    %v175 = vld [vmem:[%s4 + $0x18] sm:$0xff]
    %v176 = vld [vmem:[%s5] sm:$0x1]
    %v178 = vlaneseq
    %v179 = vshrl.u32 %v178, 7
    %v180 = vsub.s32 0, %v179
    %v181 = vrot.slane %v176, %v180
    %183 = vmatprep.subr.mxu0 0.0
    %184 = vmatpush1.msra.mxu0 %v172
    %185 = vmatprep.subr.mxu0 0.0
    %186 = vmatpush1.msra.mxu0 %v173
    %187 = vmatprep.subr.mxu0 0.0
    %188 = vmatpush1.msra.mxu0 %v174
    %189 = vmatprep.subr.mxu0 0.0
    %190 = vmatpush1.msra.mxu0 %v175
    %191 = vmatprep.subr.mxu0 0.0
    %192 = vmatpush1.msra.mxu0 0.0
    %193 = vmatprep.subr.mxu0 0.0
    %194 = vmatpush1.msra.mxu0 0.0
    %195 = vmatprep.subr.mxu0 0.0
    %196 = vmatpush1.msra.mxu0 0.0
    %197 = vmatprep.subr.mxu0 0.0
    %198 = vmatpush1.msra.mxu0 0.0
    %199 = vmatprep.subr.mxu0 0.0
    %200 = vmatpush1.msra.mxu0 0.0
    %201 = vmatprep.subr.mxu0 0.0
    %202 = vmatpush1.msra.mxu0 0.0
    %203 = vmatprep.subr.mxu0 0.0
    %204 = vmatpush1.msra.mxu0 0.0
    %205 = vmatprep.subr.mxu0 0.0
    %206 = vmatpush1.msra.mxu0 0.0
    %207 = vmatprep.subr.mxu0 0.0
    %208 = vmatpush1.msra.mxu0 0.0
    %209 = vmatprep.subr.mxu0 0.0
    %210 = vmatpush1.msra.mxu0 0.0
    %211 = vmatprep.subr.mxu0 0.0
    %212 = vmatpush1.msra.mxu0 0.0
    %213 = vmatprep.subr.mxu0 0.0
    %214 = vmatpush1.msra.mxu0 0.0
    %215 = vmatprep.subr.mxu0 0.0
    %216 = vmatpush1.msra.mxu0 0.0
    %217 = vmatprep.subr.mxu0 0.0
    %218 = vmatpush1.msra.mxu0 0.0
    %219 = vmatprep.subr.mxu0 0.0
    %220 = vmatpush1.msra.mxu0 0.0
    %221 = vmatprep.subr.mxu0 0.0
    %222 = vmatpush1.msra.mxu0 0.0
    %223 = vmatprep.subr.mxu0 0.0
    %224 = vmatpush1.msra.mxu0 0.0
    %225 = vmatprep.subr.mxu0 0.0
    %226 = vmatpush1.msra.mxu0 0.0
    %227 = vmatprep.subr.mxu0 0.0
    %228 = vmatpush1.msra.mxu0 0.0
    %229 = vmatprep.subr.mxu0 0.0
    %230 = vmatpush1.msra.mxu0 0.0
    %231 = vmatprep.subr.mxu0 0.0
    %232 = vmatpush1.msra.mxu0 0.0
    %233 = vmatprep.subr.mxu0 0.0
    %234 = vmatpush1.msra.mxu0 0.0
    %235 = vmatprep.subr.mxu0 0.0
    %236 = vmatpush1.msra.mxu0 0.0
    %237 = vmatprep.subr.mxu0 0.0
    %238 = vmatpush1.msra.mxu0 0.0
    %239 = vmatprep.subr.mxu0 0.0
    %240 = vmatpush1.msra.mxu0 0.0
    %241 = vmatprep.subr.mxu0 0.0
    %242 = vmatpush1.msra.mxu0 0.0
    %243 = vmatprep.subr.mxu0 0.0
    %244 = vmatpush1.msra.mxu0 0.0
    %245 = vmatprep.subr.mxu0 0.0
    %246 = vmatpush1.msra.mxu0 0.0
    %247 = vmatprep.mubr.f32.mxu0 0.0
    %248 = vmatmul.mubr.f32.gmra.mrb[0].mxu0 %v92
    %v249 = vpop.f32.mrb[0].mxu0
    %v250 = vadd.f32 %v181, %v249
    %v251 = vpop.f32.mrb[0].mxu0
    %252 = vmatprep.mubr.f32.mxu0 0.0
    %253 = vmatmul.mubr.f32.gmra.mrb[0].mxu0 %v95
    %v254 = vpop.f32.mrb[0].mxu0
    %v255 = vadd.f32 %v181, %v254
    %v256 = vpop.f32.mrb[0].mxu0
    %257 = vdwg.mxu0
    %v258 = vld [vmem:[%s6] sm:$0xff]
    %v259 = vld [vmem:[%s6 + $0x8] sm:$0xff]
    %v260 = vld [vmem:[%s6 + $0x10] sm:$0xff]
    %v261 = vld [vmem:[%s6 + $0x18] sm:$0xff]
    %v262 = vld [vmem:[%s7] sm:$0x1]
    %v264 = vlaneseq
    %v265 = vshrl.u32 %v264, 7
    %v266 = vsub.s32 0, %v265
    %v267 = vrot.slane %v262, %v266
    %269 = vmatprep.subr.mxu0 0.0
    %270 = vmatpush1.msra.mxu0 %v258
    %271 = vmatprep.subr.mxu0 0.0
    %272 = vmatpush1.msra.mxu0 %v259
    %273 = vmatprep.subr.mxu0 0.0
    %274 = vmatpush1.msra.mxu0 %v260
    %275 = vmatprep.subr.mxu0 0.0
    %276 = vmatpush1.msra.mxu0 %v261
    %277 = vmatprep.subr.mxu0 0.0
    %278 = vmatpush1.msra.mxu0 0.0
    %279 = vmatprep.subr.mxu0 0.0
    %280 = vmatpush1.msra.mxu0 0.0
    %281 = vmatprep.subr.mxu0 0.0
    %282 = vmatpush1.msra.mxu0 0.0
    %283 = vmatprep.subr.mxu0 0.0
    %284 = vmatpush1.msra.mxu0 0.0
    %285 = vmatprep.subr.mxu0 0.0
    %286 = vmatpush1.msra.mxu0 0.0
    %287 = vmatprep.subr.mxu0 0.0
    %288 = vmatpush1.msra.mxu0 0.0
    %289 = vmatprep.subr.mxu0 0.0
    %290 = vmatpush1.msra.mxu0 0.0
    %291 = vmatprep.subr.mxu0 0.0
    %292 = vmatpush1.msra.mxu0 0.0
    %293 = vmatprep.subr.mxu0 0.0
    %294 = vmatpush1.msra.mxu0 0.0
    %295 = vmatprep.subr.mxu0 0.0
    %296 = vmatpush1.msra.mxu0 0.0
    %297 = vmatprep.subr.mxu0 0.0
    %298 = vmatpush1.msra.mxu0 0.0
    %299 = vmatprep.subr.mxu0 0.0
    %300 = vmatpush1.msra.mxu0 0.0
    %301 = vmatprep.subr.mxu0 0.0
    %302 = vmatpush1.msra.mxu0 0.0
    %303 = vmatprep.subr.mxu0 0.0
    %304 = vmatpush1.msra.mxu0 0.0
    %305 = vmatprep.subr.mxu0 0.0
    %306 = vmatpush1.msra.mxu0 0.0
    %307 = vmatprep.subr.mxu0 0.0
    %308 = vmatpush1.msra.mxu0 0.0
    %309 = vmatprep.subr.mxu0 0.0
    %310 = vmatpush1.msra.mxu0 0.0
    %311 = vmatprep.subr.mxu0 0.0
    %312 = vmatpush1.msra.mxu0 0.0
    %313 = vmatprep.subr.mxu0 0.0
    %314 = vmatpush1.msra.mxu0 0.0
    %315 = vmatprep.subr.mxu0 0.0
    %316 = vmatpush1.msra.mxu0 0.0
    %317 = vmatprep.subr.mxu0 0.0
    %318 = vmatpush1.msra.mxu0 0.0
    %319 = vmatprep.subr.mxu0 0.0
    %320 = vmatpush1.msra.mxu0 0.0
    %321 = vmatprep.subr.mxu0 0.0
    %322 = vmatpush1.msra.mxu0 0.0
    %323 = vmatprep.subr.mxu0 0.0
    %324 = vmatpush1.msra.mxu0 0.0
    %325 = vmatprep.subr.mxu0 0.0
    %326 = vmatpush1.msra.mxu0 0.0
    %327 = vmatprep.subr.mxu0 0.0
    %328 = vmatpush1.msra.mxu0 0.0
    %329 = vmatprep.subr.mxu0 0.0
    %330 = vmatpush1.msra.mxu0 0.0
    %331 = vmatprep.subr.mxu0 0.0
    %332 = vmatpush1.msra.mxu0 0.0
    %333 = vmatprep.mubr.f32.mxu0 0.0
    %334 = vmatmul.mubr.f32.gmra.mrb[0].mxu0 %v92
    %v335 = vpop.f32.mrb[0].mxu0
    %v336 = vadd.f32 %v267, %v335
    %v337 = vpop.f32.mrb[0].mxu0
    %338 = vmatprep.mubr.f32.mxu0 0.0
    %339 = vmatmul.mubr.f32.gmra.mrb[0].mxu0 %v95
    %v340 = vpop.f32.mrb[0].mxu0
    %v341 = vadd.f32 %v267, %v340
    %v342 = vpop.f32.mrb[0].mxu0
    %343 = vdwg.mxu0
    %vm344 = vcmask 64512
    %v346 = vsel %vm344, %v164, 0
    %v349 = vsel %vm344, %v169, 0
    %v352 = vsel %vm344, %v250, 0
    %v355 = vsel %vm344, %v255, 0
    %357 = vmatprep.subr.mxu0 0.0
    %358 = vmatpush1.xpose.msra.mxu0 %v352
    %359 = vmatprep.subr.mxu0 0.0
    %360 = vmatpush1.xpose.msra.mxu0 %v355
    %361 = vmatprep.subr.mxu0 0.0
    %362 = vmatpush1.xpose.msra.mxu0 0.0
    %363 = vmatprep.subr.mxu0 0.0
    %364 = vmatpush1.xpose.msra.mxu0 0.0
    %365 = vmatprep.subr.mxu0 0.0
    %366 = vmatpush1.xpose.msra.mxu0 0.0
    %367 = vmatprep.subr.mxu0 0.0
    %368 = vmatpush1.xpose.msra.mxu0 0.0
    %369 = vmatprep.subr.mxu0 0.0
    %370 = vmatpush1.xpose.msra.mxu0 0.0
    %371 = vmatprep.subr.mxu0 0.0
    %372 = vmatpush1.xpose.msra.mxu0 0.0
    %373 = vmatprep.subr.mxu0 0.0
    %374 = vmatpush1.xpose.msra.mxu0 0.0
    %375 = vmatprep.subr.mxu0 0.0
    %376 = vmatpush1.xpose.msra.mxu0 0.0
    %377 = vmatprep.subr.mxu0 0.0
    %378 = vmatpush1.xpose.msra.mxu0 0.0
    %379 = vmatprep.subr.mxu0 0.0
    %380 = vmatpush1.xpose.msra.mxu0 0.0
    %381 = vmatprep.subr.mxu0 0.0
    %382 = vmatpush1.xpose.msra.mxu0 0.0
    %383 = vmatprep.subr.mxu0 0.0
    %384 = vmatpush1.xpose.msra.mxu0 0.0
    %385 = vmatprep.subr.mxu0 0.0
    %386 = vmatpush1.xpose.msra.mxu0 0.0
    %387 = vmatprep.subr.mxu0 0.0
    %388 = vmatpush1.xpose.msra.mxu0 0.0
    %389 = vmatprep.subr.mxu0 0.0
    %390 = vmatpush1.xpose.msra.mxu0 0.0
    %391 = vmatprep.subr.mxu0 0.0
    %392 = vmatpush1.xpose.msra.mxu0 0.0
    %393 = vmatprep.subr.mxu0 0.0
    %394 = vmatpush1.xpose.msra.mxu0 0.0
    %395 = vmatprep.subr.mxu0 0.0
    %396 = vmatpush1.xpose.msra.mxu0 0.0
    %397 = vmatprep.subr.mxu0 0.0
    %398 = vmatpush1.xpose.msra.mxu0 0.0
    %399 = vmatprep.subr.mxu0 0.0
    %400 = vmatpush1.xpose.msra.mxu0 0.0
    %401 = vmatprep.subr.mxu0 0.0
    %402 = vmatpush1.xpose.msra.mxu0 0.0
    %403 = vmatprep.subr.mxu0 0.0
    %404 = vmatpush1.xpose.msra.mxu0 0.0
    %405 = vmatprep.subr.mxu0 0.0
    %406 = vmatpush1.xpose.msra.mxu0 0.0
    %407 = vmatprep.subr.mxu0 0.0
    %408 = vmatpush1.xpose.msra.mxu0 0.0
    %409 = vmatprep.subr.mxu0 0.0
    %410 = vmatpush1.xpose.msra.mxu0 0.0
    %411 = vmatprep.subr.mxu0 0.0
    %412 = vmatpush1.xpose.msra.mxu0 0.0
    %413 = vmatprep.subr.mxu0 0.0
    %414 = vmatpush1.xpose.msra.mxu0 0.0
    %415 = vmatprep.subr.mxu0 0.0
    %416 = vmatpush1.xpose.msra.mxu0 0.0
    %417 = vmatprep.subr.mxu0 0.0
    %418 = vmatpush1.xpose.msra.mxu0 0.0
    %419 = vmatprep.subr.mxu0 0.0
    %420 = vmatpush1.xpose.msra.mxu0 0.0
    %421 = vmatprep.mubr.f32.mxu0 0.0
    %422 = vmatmul.mubr.f32.gmra.mrb[0].mxu0 %v346
    %v423 = vpop.f32.mrb[0].mxu0
    %v424 = vadd.f32 %v77, %v423
    %v425 = vpop.f32.mrb[0].mxu0
    %426 = vmatprep.mubr.f32.mxu0 0.0
    %427 = vmatmul.mubr.f32.gmra.mrb[0].mxu0 %v349
    %v428 = vpop.f32.mrb[0].mxu0
    %v429 = vadd.f32 %v78, %v428
    %v430 = vpop.f32.mrb[0].mxu0
    %431 = vdwg.mxu0
    %vm432 = vcmask 130048
    %v433 = vsel %vm432, %v424, -inf
    %434 = vmax.xlane.f32.xlu0 %v433
    %v435 = vpop.xlane.xlu0 %434
    %v436 = vsel %vm432, %v429, -inf
    %437 = vmax.xlane.f32.xlu0 %v436
    %v438 = vpop.xlane.xlu0 %437
    %v439 = vsub.f32 %v424, %v435
    %v440 = vsub.f32 %v429, %v438
    %v441 = vmul.f32 %v439, 1.442695
    %v442 = vpow.pop %v441
    %v443 = vmul.f32 %v440, 1.442695
    %v444 = vpow.pop %v443
    %v445 = vsel %vm432, %v442, 0.0
    %446 = vadd.xlane.f32.xlu0 %v445
    %v447 = vpop.xlane.xlu0 %446
    %v448 = vsel %vm432, %v444, 0.0
    %449 = vadd.xlane.f32.xlu0 %v448
    %v450 = vpop.xlane.xlu0 %449
    %v451 = vrcp.pop %v447
    %v452 = vrcp.pop %v450
    %v453 = vmul.f32 %v442, %v451
    %v454 = vmul.f32 %v444, %v452
    %v456 = vsel %vm432, %v453, 0
    %v459 = vsel %vm432, %v454, 0
    %461 = vmatprep.subr.mxu0 0.0
    %462 = vmatpush1.msra.mxu0 %v336
    %463 = vmatprep.subr.mxu0 0.0
    %464 = vmatpush1.msra.mxu0 %v341
    %465 = vmatprep.subr.mxu0 0.0
    %466 = vmatpush1.msra.mxu0 0.0
    %467 = vmatprep.subr.mxu0 0.0
    %468 = vmatpush1.msra.mxu0 0.0
    %469 = vmatprep.subr.mxu0 0.0
    %470 = vmatpush1.msra.mxu0 0.0
    %471 = vmatprep.subr.mxu0 0.0
    %472 = vmatpush1.msra.mxu0 0.0
    %473 = vmatprep.subr.mxu0 0.0
    %474 = vmatpush1.msra.mxu0 0.0
    %475 = vmatprep.subr.mxu0 0.0
    %476 = vmatpush1.msra.mxu0 0.0
    %477 = vmatprep.subr.mxu0 0.0
    %478 = vmatpush1.msra.mxu0 0.0
    %479 = vmatprep.subr.mxu0 0.0
    %480 = vmatpush1.msra.mxu0 0.0
    %481 = vmatprep.subr.mxu0 0.0
    %482 = vmatpush1.msra.mxu0 0.0
    %483 = vmatprep.subr.mxu0 0.0
    %484 = vmatpush1.msra.mxu0 0.0
    %485 = vmatprep.subr.mxu0 0.0
    %486 = vmatpush1.msra.mxu0 0.0
    %487 = vmatprep.subr.mxu0 0.0
    %488 = vmatpush1.msra.mxu0 0.0
    %489 = vmatprep.subr.mxu0 0.0
    %490 = vmatpush1.msra.mxu0 0.0
    %491 = vmatprep.subr.mxu0 0.0
    %492 = vmatpush1.msra.mxu0 0.0
    %493 = vmatprep.subr.mxu0 0.0
    %494 = vmatpush1.msra.mxu0 0.0
    %495 = vmatprep.subr.mxu0 0.0
    %496 = vmatpush1.msra.mxu0 0.0
    %497 = vmatprep.subr.mxu0 0.0
    %498 = vmatpush1.msra.mxu0 0.0
    %499 = vmatprep.subr.mxu0 0.0
    %500 = vmatpush1.msra.mxu0 0.0
    %501 = vmatprep.subr.mxu0 0.0
    %502 = vmatpush1.msra.mxu0 0.0
    %503 = vmatprep.subr.mxu0 0.0
    %504 = vmatpush1.msra.mxu0 0.0
    %505 = vmatprep.subr.mxu0 0.0
    %506 = vmatpush1.msra.mxu0 0.0
    %507 = vmatprep.subr.mxu0 0.0
    %508 = vmatpush1.msra.mxu0 0.0
    %509 = vmatprep.subr.mxu0 0.0
    %510 = vmatpush1.msra.mxu0 0.0
    %511 = vmatprep.subr.mxu0 0.0
    %512 = vmatpush1.msra.mxu0 0.0
    %513 = vmatprep.subr.mxu0 0.0
    %514 = vmatpush1.msra.mxu0 0.0
    %515 = vmatprep.subr.mxu0 0.0
    %516 = vmatpush1.msra.mxu0 0.0
    %517 = vmatprep.subr.mxu0 0.0
    %518 = vmatpush1.msra.mxu0 0.0
    %519 = vmatprep.subr.mxu0 0.0
    %520 = vmatpush1.msra.mxu0 0.0
    %521 = vmatprep.subr.mxu0 0.0
    %522 = vmatpush1.msra.mxu0 0.0
    %523 = vmatprep.subr.mxu0 0.0
    %524 = vmatpush1.msra.mxu0 0.0
    %525 = vmatprep.mubr.f32.mxu0 0.0
    %526 = vmatmul.mubr.f32.gmra.mrb[0].mxu0 %v456
    %v527 = vpop.f32.mrb[0].mxu0
    %v528 = vadd.f32 0.0, %v527
    %v529 = vpop.f32.mrb[0].mxu0
    %530 = vmatprep.mubr.f32.mxu0 0.0
    %531 = vmatmul.mubr.f32.gmra.mrb[0].mxu0 %v459
    %v532 = vpop.f32.mrb[0].mxu0
    %v533 = vadd.f32 0.0, %v532
    %v534 = vpop.f32.mrb[0].mxu0
    %535 = vdwg.mxu0
    %v536 = vld [vmem:[%s8] sm:$0xff]
    %s537 = scalar_lea.vmem %s2, 32
    %v538 = vld [vmem:[%s537] sm:$0xff]
    %v539 = vld [vmem:[%s537 + $0x8] sm:$0xff]
    %v540 = vld [vmem:[%s537 + $0x10] sm:$0xff]
    %v541 = vld [vmem:[%s537 + $0x18] sm:$0xff]
    %s542 = scalar_lea.vmem %s3, 1
    %v543 = vld [vmem:[%s542] sm:$0x1]
    %v545 = vlaneseq
    %v546 = vshrl.u32 %v545, 7
    %v547 = vsub.s32 0, %v546
    %v548 = vrot.slane %v543, %v547
    %550 = vmatprep.subr.mxu0 0.0
    %551 = vmatpush1.msra.mxu0 %v538
    %552 = vmatprep.subr.mxu0 0.0
    %553 = vmatpush1.msra.mxu0 %v539
    %554 = vmatprep.subr.mxu0 0.0
    %555 = vmatpush1.msra.mxu0 %v540
    %556 = vmatprep.subr.mxu0 0.0
    %557 = vmatpush1.msra.mxu0 %v541
    %558 = vmatprep.subr.mxu0 0.0
    %559 = vmatpush1.msra.mxu0 0.0
    %560 = vmatprep.subr.mxu0 0.0
    %561 = vmatpush1.msra.mxu0 0.0
    %562 = vmatprep.subr.mxu0 0.0
    %563 = vmatpush1.msra.mxu0 0.0
    %564 = vmatprep.subr.mxu0 0.0
    %565 = vmatpush1.msra.mxu0 0.0
    %566 = vmatprep.subr.mxu0 0.0
    %567 = vmatpush1.msra.mxu0 0.0
    %568 = vmatprep.subr.mxu0 0.0
    %569 = vmatpush1.msra.mxu0 0.0
    %570 = vmatprep.subr.mxu0 0.0
    %571 = vmatpush1.msra.mxu0 0.0
    %572 = vmatprep.subr.mxu0 0.0
    %573 = vmatpush1.msra.mxu0 0.0
    %574 = vmatprep.subr.mxu0 0.0
    %575 = vmatpush1.msra.mxu0 0.0
    %576 = vmatprep.subr.mxu0 0.0
    %577 = vmatpush1.msra.mxu0 0.0
    %578 = vmatprep.subr.mxu0 0.0
    %579 = vmatpush1.msra.mxu0 0.0
    %580 = vmatprep.subr.mxu0 0.0
    %581 = vmatpush1.msra.mxu0 0.0
    %582 = vmatprep.subr.mxu0 0.0
    %583 = vmatpush1.msra.mxu0 0.0
    %584 = vmatprep.subr.mxu0 0.0
    %585 = vmatpush1.msra.mxu0 0.0
    %586 = vmatprep.subr.mxu0 0.0
    %587 = vmatpush1.msra.mxu0 0.0
    %588 = vmatprep.subr.mxu0 0.0
    %589 = vmatpush1.msra.mxu0 0.0
    %590 = vmatprep.subr.mxu0 0.0
    %591 = vmatpush1.msra.mxu0 0.0
    %592 = vmatprep.subr.mxu0 0.0
    %593 = vmatpush1.msra.mxu0 0.0
    %594 = vmatprep.subr.mxu0 0.0
    %595 = vmatpush1.msra.mxu0 0.0
    %596 = vmatprep.subr.mxu0 0.0
    %597 = vmatpush1.msra.mxu0 0.0
    %598 = vmatprep.subr.mxu0 0.0
    %599 = vmatpush1.msra.mxu0 0.0
    %600 = vmatprep.subr.mxu0 0.0
    %601 = vmatpush1.msra.mxu0 0.0
    %602 = vmatprep.subr.mxu0 0.0
    %603 = vmatpush1.msra.mxu0 0.0
    %604 = vmatprep.subr.mxu0 0.0
    %605 = vmatpush1.msra.mxu0 0.0
    %606 = vmatprep.subr.mxu0 0.0
    %607 = vmatpush1.msra.mxu0 0.0
    %608 = vmatprep.subr.mxu0 0.0
    %609 = vmatpush1.msra.mxu0 0.0
    %610 = vmatprep.subr.mxu0 0.0
    %611 = vmatpush1.msra.mxu0 0.0
    %612 = vmatprep.subr.mxu0 0.0
    %613 = vmatpush1.msra.mxu0 0.0
    %614 = vmatprep.mubr.f32.mxu0 0.0
    %615 = vmatmul.mubr.f32.gmra.mrb[0].mxu0 %v92
    %v616 = vpop.f32.mrb[0].mxu0
    %v617 = vadd.f32 %v548, %v616
    %v618 = vpop.f32.mrb[0].mxu0
    %619 = vmatprep.mubr.f32.mxu0 0.0
    %620 = vmatmul.mubr.f32.gmra.mrb[0].mxu0 %v95
    %v621 = vpop.f32.mrb[0].mxu0
    %v622 = vadd.f32 %v548, %v621
    %v623 = vpop.f32.mrb[0].mxu0
    %624 = vdwg.mxu0
    %s625 = scalar_lea.vmem %s4, 32
    %v626 = vld [vmem:[%s625] sm:$0xff]
    %v627 = vld [vmem:[%s625 + $0x8] sm:$0xff]
    %v628 = vld [vmem:[%s625 + $0x10] sm:$0xff]
    %v629 = vld [vmem:[%s625 + $0x18] sm:$0xff]
    %s630 = scalar_lea.vmem %s5, 1
    %v631 = vld [vmem:[%s630] sm:$0x1]
    %v633 = vlaneseq
    %v634 = vshrl.u32 %v633, 7
    %v635 = vsub.s32 0, %v634
    %v636 = vrot.slane %v631, %v635
    %638 = vmatprep.subr.mxu0 0.0
    %639 = vmatpush1.msra.mxu0 %v626
    %640 = vmatprep.subr.mxu0 0.0
    %641 = vmatpush1.msra.mxu0 %v627
    %642 = vmatprep.subr.mxu0 0.0
    %643 = vmatpush1.msra.mxu0 %v628
    %644 = vmatprep.subr.mxu0 0.0
    %645 = vmatpush1.msra.mxu0 %v629
    %646 = vmatprep.subr.mxu0 0.0
    %647 = vmatpush1.msra.mxu0 0.0
    %648 = vmatprep.subr.mxu0 0.0
    %649 = vmatpush1.msra.mxu0 0.0
    %650 = vmatprep.subr.mxu0 0.0
    %651 = vmatpush1.msra.mxu0 0.0
    %652 = vmatprep.subr.mxu0 0.0
    %653 = vmatpush1.msra.mxu0 0.0
    %654 = vmatprep.subr.mxu0 0.0
    %655 = vmatpush1.msra.mxu0 0.0
    %656 = vmatprep.subr.mxu0 0.0
    %657 = vmatpush1.msra.mxu0 0.0
    %658 = vmatprep.subr.mxu0 0.0
    %659 = vmatpush1.msra.mxu0 0.0
    %660 = vmatprep.subr.mxu0 0.0
    %661 = vmatpush1.msra.mxu0 0.0
    %662 = vmatprep.subr.mxu0 0.0
    %663 = vmatpush1.msra.mxu0 0.0
    %664 = vmatprep.subr.mxu0 0.0
    %665 = vmatpush1.msra.mxu0 0.0
    %666 = vmatprep.subr.mxu0 0.0
    %667 = vmatpush1.msra.mxu0 0.0
    %668 = vmatprep.subr.mxu0 0.0
    %669 = vmatpush1.msra.mxu0 0.0
    %670 = vmatprep.subr.mxu0 0.0
    %671 = vmatpush1.msra.mxu0 0.0
    %672 = vmatprep.subr.mxu0 0.0
    %673 = vmatpush1.msra.mxu0 0.0
    %674 = vmatprep.subr.mxu0 0.0
    %675 = vmatpush1.msra.mxu0 0.0
    %676 = vmatprep.subr.mxu0 0.0
    %677 = vmatpush1.msra.mxu0 0.0
    %678 = vmatprep.subr.mxu0 0.0
    %679 = vmatpush1.msra.mxu0 0.0
    %680 = vmatprep.subr.mxu0 0.0
    %681 = vmatpush1.msra.mxu0 0.0
    %682 = vmatprep.subr.mxu0 0.0
    %683 = vmatpush1.msra.mxu0 0.0
    %684 = vmatprep.subr.mxu0 0.0
    %685 = vmatpush1.msra.mxu0 0.0
    %686 = vmatprep.subr.mxu0 0.0
    %687 = vmatpush1.msra.mxu0 0.0
    %688 = vmatprep.subr.mxu0 0.0
    %689 = vmatpush1.msra.mxu0 0.0
    %690 = vmatprep.subr.mxu0 0.0
    %691 = vmatpush1.msra.mxu0 0.0
    %692 = vmatprep.subr.mxu0 0.0
    %693 = vmatpush1.msra.mxu0 0.0
    %694 = vmatprep.subr.mxu0 0.0
    %695 = vmatpush1.msra.mxu0 0.0
    %696 = vmatprep.subr.mxu0 0.0
    %697 = vmatpush1.msra.mxu0 0.0
    %698 = vmatprep.subr.mxu0 0.0
    %699 = vmatpush1.msra.mxu0 0.0
    %700 = vmatprep.subr.mxu0 0.0
    %701 = vmatpush1.msra.mxu0 0.0
    %702 = vmatprep.mubr.f32.mxu0 0.0
    %703 = vmatmul.mubr.f32.gmra.mrb[0].mxu0 %v92
    %v704 = vpop.f32.mrb[0].mxu0
    %v705 = vadd.f32 %v636, %v704
    %v706 = vpop.f32.mrb[0].mxu0
    %707 = vmatprep.mubr.f32.mxu0 0.0
    %708 = vmatmul.mubr.f32.gmra.mrb[0].mxu0 %v95
    %v709 = vpop.f32.mrb[0].mxu0
    %v710 = vadd.f32 %v636, %v709
    %v711 = vpop.f32.mrb[0].mxu0
    %712 = vdwg.mxu0
    %s713 = scalar_lea.vmem %s6, 32
    %v714 = vld [vmem:[%s713] sm:$0xff]
    %v715 = vld [vmem:[%s713 + $0x8] sm:$0xff]
    %v716 = vld [vmem:[%s713 + $0x10] sm:$0xff]
    %v717 = vld [vmem:[%s713 + $0x18] sm:$0xff]
    %s718 = scalar_lea.vmem %s7, 1
    %v719 = vld [vmem:[%s718] sm:$0x1]
    %v721 = vlaneseq
    %v722 = vshrl.u32 %v721, 7
    %v723 = vsub.s32 0, %v722
    %v724 = vrot.slane %v719, %v723
    %726 = vmatprep.subr.mxu0 0.0
    %727 = vmatpush1.msra.mxu0 %v714
    %728 = vmatprep.subr.mxu0 0.0
    %729 = vmatpush1.msra.mxu0 %v715
    %730 = vmatprep.subr.mxu0 0.0
    %731 = vmatpush1.msra.mxu0 %v716
    %732 = vmatprep.subr.mxu0 0.0
    %733 = vmatpush1.msra.mxu0 %v717
    %734 = vmatprep.subr.mxu0 0.0
    %735 = vmatpush1.msra.mxu0 0.0
    %736 = vmatprep.subr.mxu0 0.0
    %737 = vmatpush1.msra.mxu0 0.0
    %738 = vmatprep.subr.mxu0 0.0
    %739 = vmatpush1.msra.mxu0 0.0
    %740 = vmatprep.subr.mxu0 0.0
    %741 = vmatpush1.msra.mxu0 0.0
    %742 = vmatprep.subr.mxu0 0.0
    %743 = vmatpush1.msra.mxu0 0.0
    %744 = vmatprep.subr.mxu0 0.0
    %745 = vmatpush1.msra.mxu0 0.0
    %746 = vmatprep.subr.mxu0 0.0
    %747 = vmatpush1.msra.mxu0 0.0
    %748 = vmatprep.subr.mxu0 0.0
    %749 = vmatpush1.msra.mxu0 0.0
    %750 = vmatprep.subr.mxu0 0.0
    %751 = vmatpush1.msra.mxu0 0.0
    %752 = vmatprep.subr.mxu0 0.0
    %753 = vmatpush1.msra.mxu0 0.0
    %754 = vmatprep.subr.mxu0 0.0
    %755 = vmatpush1.msra.mxu0 0.0
    %756 = vmatprep.subr.mxu0 0.0
    %757 = vmatpush1.msra.mxu0 0.0
    %758 = vmatprep.subr.mxu0 0.0
    %759 = vmatpush1.msra.mxu0 0.0
    %760 = vmatprep.subr.mxu0 0.0
    %761 = vmatpush1.msra.mxu0 0.0
    %762 = vmatprep.subr.mxu0 0.0
    %763 = vmatpush1.msra.mxu0 0.0
    %764 = vmatprep.subr.mxu0 0.0
    %765 = vmatpush1.msra.mxu0 0.0
    %766 = vmatprep.subr.mxu0 0.0
    %767 = vmatpush1.msra.mxu0 0.0
    %768 = vmatprep.subr.mxu0 0.0
    %769 = vmatpush1.msra.mxu0 0.0
    %770 = vmatprep.subr.mxu0 0.0
    %771 = vmatpush1.msra.mxu0 0.0
    %772 = vmatprep.subr.mxu0 0.0
    %773 = vmatpush1.msra.mxu0 0.0
    %774 = vmatprep.subr.mxu0 0.0
    %775 = vmatpush1.msra.mxu0 0.0
    %776 = vmatprep.subr.mxu0 0.0
    %777 = vmatpush1.msra.mxu0 0.0
    %778 = vmatprep.subr.mxu0 0.0
    %779 = vmatpush1.msra.mxu0 0.0
    %780 = vmatprep.subr.mxu0 0.0
    %781 = vmatpush1.msra.mxu0 0.0
    %782 = vmatprep.subr.mxu0 0.0
    %783 = vmatpush1.msra.mxu0 0.0
    %784 = vmatprep.subr.mxu0 0.0
    %785 = vmatpush1.msra.mxu0 0.0
    %786 = vmatprep.subr.mxu0 0.0
    %787 = vmatpush1.msra.mxu0 0.0
    %788 = vmatprep.subr.mxu0 0.0
    %789 = vmatpush1.msra.mxu0 0.0
    %790 = vmatprep.mubr.f32.mxu0 0.0
    %791 = vmatmul.mubr.f32.gmra.mrb[0].mxu0 %v92
    %v792 = vpop.f32.mrb[0].mxu0
    %v793 = vadd.f32 %v724, %v792
    %v794 = vpop.f32.mrb[0].mxu0
    %795 = vmatprep.mubr.f32.mxu0 0.0
    %796 = vmatmul.mubr.f32.gmra.mrb[0].mxu0 %v95
    %v797 = vpop.f32.mrb[0].mxu0
    %v798 = vadd.f32 %v724, %v797
    %v799 = vpop.f32.mrb[0].mxu0
    %800 = vdwg.mxu0
    %v802 = vsel %vm344, %v617, 0
    %v805 = vsel %vm344, %v622, 0
    %v808 = vsel %vm344, %v705, 0
    %v811 = vsel %vm344, %v710, 0
    %813 = vmatprep.subr.mxu0 0.0
    %814 = vmatpush1.xpose.msra.mxu0 %v808
    %815 = vmatprep.subr.mxu0 0.0
    %816 = vmatpush1.xpose.msra.mxu0 %v811
    %817 = vmatprep.subr.mxu0 0.0
    %818 = vmatpush1.xpose.msra.mxu0 0.0
    %819 = vmatprep.subr.mxu0 0.0
    %820 = vmatpush1.xpose.msra.mxu0 0.0
    %821 = vmatprep.subr.mxu0 0.0
    %822 = vmatpush1.xpose.msra.mxu0 0.0
    %823 = vmatprep.subr.mxu0 0.0
    %824 = vmatpush1.xpose.msra.mxu0 0.0
    %825 = vmatprep.subr.mxu0 0.0
    %826 = vmatpush1.xpose.msra.mxu0 0.0
    %827 = vmatprep.subr.mxu0 0.0
    %828 = vmatpush1.xpose.msra.mxu0 0.0
    %829 = vmatprep.subr.mxu0 0.0
    %830 = vmatpush1.xpose.msra.mxu0 0.0
    %831 = vmatprep.subr.mxu0 0.0
    %832 = vmatpush1.xpose.msra.mxu0 0.0
    %833 = vmatprep.subr.mxu0 0.0
    %834 = vmatpush1.xpose.msra.mxu0 0.0
    %835 = vmatprep.subr.mxu0 0.0
    %836 = vmatpush1.xpose.msra.mxu0 0.0
    %837 = vmatprep.subr.mxu0 0.0
    %838 = vmatpush1.xpose.msra.mxu0 0.0
    %839 = vmatprep.subr.mxu0 0.0
    %840 = vmatpush1.xpose.msra.mxu0 0.0
    %841 = vmatprep.subr.mxu0 0.0
    %842 = vmatpush1.xpose.msra.mxu0 0.0
    %843 = vmatprep.subr.mxu0 0.0
    %844 = vmatpush1.xpose.msra.mxu0 0.0
    %845 = vmatprep.subr.mxu0 0.0
    %846 = vmatpush1.xpose.msra.mxu0 0.0
    %847 = vmatprep.subr.mxu0 0.0
    %848 = vmatpush1.xpose.msra.mxu0 0.0
    %849 = vmatprep.subr.mxu0 0.0
    %850 = vmatpush1.xpose.msra.mxu0 0.0
    %851 = vmatprep.subr.mxu0 0.0
    %852 = vmatpush1.xpose.msra.mxu0 0.0
    %853 = vmatprep.subr.mxu0 0.0
    %854 = vmatpush1.xpose.msra.mxu0 0.0
    %855 = vmatprep.subr.mxu0 0.0
    %856 = vmatpush1.xpose.msra.mxu0 0.0
    %857 = vmatprep.subr.mxu0 0.0
    %858 = vmatpush1.xpose.msra.mxu0 0.0
    %859 = vmatprep.subr.mxu0 0.0
    %860 = vmatpush1.xpose.msra.mxu0 0.0
    %861 = vmatprep.subr.mxu0 0.0
    %862 = vmatpush1.xpose.msra.mxu0 0.0
    %863 = vmatprep.subr.mxu0 0.0
    %864 = vmatpush1.xpose.msra.mxu0 0.0
    %865 = vmatprep.subr.mxu0 0.0
    %866 = vmatpush1.xpose.msra.mxu0 0.0
    %867 = vmatprep.subr.mxu0 0.0
    %868 = vmatpush1.xpose.msra.mxu0 0.0
    %869 = vmatprep.subr.mxu0 0.0
    %870 = vmatpush1.xpose.msra.mxu0 0.0
    %871 = vmatprep.subr.mxu0 0.0
    %872 = vmatpush1.xpose.msra.mxu0 0.0
    %873 = vmatprep.subr.mxu0 0.0
    %874 = vmatpush1.xpose.msra.mxu0 0.0
    %875 = vmatprep.subr.mxu0 0.0
    %876 = vmatpush1.xpose.msra.mxu0 0.0
    %877 = vmatprep.mubr.f32.mxu0 0.0
    %878 = vmatmul.mubr.f32.gmra.mrb[0].mxu0 %v802
    %v879 = vpop.f32.mrb[0].mxu0
    %v880 = vadd.f32 %v77, %v879
    %v881 = vpop.f32.mrb[0].mxu0
    %882 = vmatprep.mubr.f32.mxu0 0.0
    %883 = vmatmul.mubr.f32.gmra.mrb[0].mxu0 %v805
    %v884 = vpop.f32.mrb[0].mxu0
    %v885 = vadd.f32 %v78, %v884
    %v886 = vpop.f32.mrb[0].mxu0
    %887 = vdwg.mxu0
    %v888 = vsel %vm432, %v880, -inf
    %889 = vmax.xlane.f32.xlu0 %v888
    %v890 = vpop.xlane.xlu0 %889
    %v891 = vsel %vm432, %v885, -inf
    %892 = vmax.xlane.f32.xlu0 %v891
    %v893 = vpop.xlane.xlu0 %892
    %v894 = vsub.f32 %v880, %v890
    %v895 = vsub.f32 %v885, %v893
    %v896 = vmul.f32 %v894, 1.442695
    %v897 = vpow.pop %v896
    %v898 = vmul.f32 %v895, 1.442695
    %v899 = vpow.pop %v898
    %v900 = vsel %vm432, %v897, 0.0
    %901 = vadd.xlane.f32.xlu0 %v900
    %v902 = vpop.xlane.xlu0 %901
    %v903 = vsel %vm432, %v899, 0.0
    %904 = vadd.xlane.f32.xlu0 %v903
    %v905 = vpop.xlane.xlu0 %904
    %v906 = vrcp.pop %v902
    %v907 = vrcp.pop %v905
    %v908 = vmul.f32 %v897, %v906
    %v909 = vmul.f32 %v899, %v907
    %v911 = vsel %vm432, %v908, 0
    %v914 = vsel %vm432, %v909, 0
    %916 = vmatprep.subr.mxu0 0.0
    %917 = vmatpush1.msra.mxu0 %v793
    %918 = vmatprep.subr.mxu0 0.0
    %919 = vmatpush1.msra.mxu0 %v798
    %920 = vmatprep.subr.mxu0 0.0
    %921 = vmatpush1.msra.mxu0 0.0
    %922 = vmatprep.subr.mxu0 0.0
    %923 = vmatpush1.msra.mxu0 0.0
    %924 = vmatprep.subr.mxu0 0.0
    %925 = vmatpush1.msra.mxu0 0.0
    %926 = vmatprep.subr.mxu0 0.0
    %927 = vmatpush1.msra.mxu0 0.0
    %928 = vmatprep.subr.mxu0 0.0
    %929 = vmatpush1.msra.mxu0 0.0
    %930 = vmatprep.subr.mxu0 0.0
    %931 = vmatpush1.msra.mxu0 0.0
    %932 = vmatprep.subr.mxu0 0.0
    %933 = vmatpush1.msra.mxu0 0.0
    %934 = vmatprep.subr.mxu0 0.0
    %935 = vmatpush1.msra.mxu0 0.0
    %936 = vmatprep.subr.mxu0 0.0
    %937 = vmatpush1.msra.mxu0 0.0
    %938 = vmatprep.subr.mxu0 0.0
    %939 = vmatpush1.msra.mxu0 0.0
    %940 = vmatprep.subr.mxu0 0.0
    %941 = vmatpush1.msra.mxu0 0.0
    %942 = vmatprep.subr.mxu0 0.0
    %943 = vmatpush1.msra.mxu0 0.0
    %944 = vmatprep.subr.mxu0 0.0
    %945 = vmatpush1.msra.mxu0 0.0
    %946 = vmatprep.subr.mxu0 0.0
    %947 = vmatpush1.msra.mxu0 0.0
    %948 = vmatprep.subr.mxu0 0.0
    %949 = vmatpush1.msra.mxu0 0.0
    %950 = vmatprep.subr.mxu0 0.0
    %951 = vmatpush1.msra.mxu0 0.0
    %952 = vmatprep.subr.mxu0 0.0
    %953 = vmatpush1.msra.mxu0 0.0
    %954 = vmatprep.subr.mxu0 0.0
    %955 = vmatpush1.msra.mxu0 0.0
    %956 = vmatprep.subr.mxu0 0.0
    %957 = vmatpush1.msra.mxu0 0.0
    %958 = vmatprep.subr.mxu0 0.0
    %959 = vmatpush1.msra.mxu0 0.0
    %960 = vmatprep.subr.mxu0 0.0
    %961 = vmatpush1.msra.mxu0 0.0
    %962 = vmatprep.subr.mxu0 0.0
    %963 = vmatpush1.msra.mxu0 0.0
    %964 = vmatprep.subr.mxu0 0.0
    %965 = vmatpush1.msra.mxu0 0.0
    %966 = vmatprep.subr.mxu0 0.0
    %967 = vmatpush1.msra.mxu0 0.0
    %968 = vmatprep.subr.mxu0 0.0
    %969 = vmatpush1.msra.mxu0 0.0
    %970 = vmatprep.subr.mxu0 0.0
    %971 = vmatpush1.msra.mxu0 0.0
    %972 = vmatprep.subr.mxu0 0.0
    %973 = vmatpush1.msra.mxu0 0.0
    %974 = vmatprep.subr.mxu0 0.0
    %975 = vmatpush1.msra.mxu0 0.0
    %976 = vmatprep.subr.mxu0 0.0
    %977 = vmatpush1.msra.mxu0 0.0
    %978 = vmatprep.subr.mxu0 0.0
    %979 = vmatpush1.msra.mxu0 0.0
    %980 = vmatprep.mubr.f32.mxu0 0.0
    %981 = vmatmul.mubr.f32.gmra.mrb[0].mxu0 %v911
    %v982 = vpop.f32.mrb[0].mxu0
    %v983 = vadd.f32 0.0, %v982
    %v984 = vpop.f32.mrb[0].mxu0
    %985 = vmatprep.mubr.f32.mxu0 0.0
    %986 = vmatmul.mubr.f32.gmra.mrb[0].mxu0 %v914
    %v987 = vpop.f32.mrb[0].mxu0
    %v988 = vadd.f32 0.0, %v987
    %v989 = vpop.f32.mrb[0].mxu0
    %990 = vdwg.mxu0
    %s991 = scalar_lea.vmem %s8, 8
    %v992 = vld [vmem:[%s991] sm:$0xff]
    %v994 = vsel %vm344, %v983, 0
    %v997 = vsel %vm344, %v988, 0
    %999 = vmatprep.subr.mxu0 0.0
    %1000 = vmatpush1.msra.mxu0 %v992
    %1001 = vmatprep.subr.mxu0 0.0
    %1002 = vmatpush1.msra.mxu0 0.0
    %1003 = vmatprep.subr.mxu0 0.0
    %1004 = vmatpush1.msra.mxu0 0.0
    %1005 = vmatprep.subr.mxu0 0.0
    %1006 = vmatpush1.msra.mxu0 0.0
    %1007 = vmatprep.subr.mxu0 0.0
    %1008 = vmatpush1.msra.mxu0 0.0
    %1009 = vmatprep.subr.mxu0 0.0
    %1010 = vmatpush1.msra.mxu0 0.0
    %1011 = vmatprep.subr.mxu0 0.0
    %1012 = vmatpush1.msra.mxu0 0.0
    %1013 = vmatprep.subr.mxu0 0.0
    %1014 = vmatpush1.msra.mxu0 0.0
    %1015 = vmatprep.subr.mxu0 0.0
    %1016 = vmatpush1.msra.mxu0 0.0
    %1017 = vmatprep.subr.mxu0 0.0
    %1018 = vmatpush1.msra.mxu0 0.0
    %1019 = vmatprep.subr.mxu0 0.0
    %1020 = vmatpush1.msra.mxu0 0.0
    %1021 = vmatprep.subr.mxu0 0.0
    %1022 = vmatpush1.msra.mxu0 0.0
    %1023 = vmatprep.subr.mxu0 0.0
    %1024 = vmatpush1.msra.mxu0 0.0
    %1025 = vmatprep.subr.mxu0 0.0
    %1026 = vmatpush1.msra.mxu0 0.0
    %1027 = vmatprep.subr.mxu0 0.0
    %1028 = vmatpush1.msra.mxu0 0.0
    %1029 = vmatprep.subr.mxu0 0.0
    %1030 = vmatpush1.msra.mxu0 0.0
    %1031 = vmatprep.subr.mxu0 0.0
    %1032 = vmatpush1.msra.mxu0 0.0
    %1033 = vmatprep.subr.mxu0 0.0
    %1034 = vmatpush1.msra.mxu0 0.0
    %1035 = vmatprep.subr.mxu0 0.0
    %1036 = vmatpush1.msra.mxu0 0.0
    %1037 = vmatprep.subr.mxu0 0.0
    %1038 = vmatpush1.msra.mxu0 0.0
    %1039 = vmatprep.subr.mxu0 0.0
    %1040 = vmatpush1.msra.mxu0 0.0
    %1041 = vmatprep.subr.mxu0 0.0
    %1042 = vmatpush1.msra.mxu0 0.0
    %1043 = vmatprep.subr.mxu0 0.0
    %1044 = vmatpush1.msra.mxu0 0.0
    %1045 = vmatprep.subr.mxu0 0.0
    %1046 = vmatpush1.msra.mxu0 0.0
    %1047 = vmatprep.subr.mxu0 0.0
    %1048 = vmatpush1.msra.mxu0 0.0
    %1049 = vmatprep.subr.mxu0 0.0
    %1050 = vmatpush1.msra.mxu0 0.0
    %1051 = vmatprep.subr.mxu0 0.0
    %1052 = vmatpush1.msra.mxu0 0.0
    %1053 = vmatprep.subr.mxu0 0.0
    %1054 = vmatpush1.msra.mxu0 0.0
    %1055 = vmatprep.subr.mxu0 0.0
    %1056 = vmatpush1.msra.mxu0 0.0
    %1057 = vmatprep.subr.mxu0 0.0
    %1058 = vmatpush1.msra.mxu0 0.0
    %1059 = vmatprep.subr.mxu0 0.0
    %1060 = vmatpush1.msra.mxu0 0.0
    %1061 = vmatprep.subr.mxu0 0.0
    %1062 = vmatpush1.msra.mxu0 0.0
    %1063 = vmatprep.mubr.f32.mxu0 0.0
    %1064 = vmatmul.mubr.f32.gmra.mrb[0].mxu0 %v994
    %v1065 = vpop.f32.mrb[0].mxu0
    %v1066 = vadd.f32 0.0, %v1065
    %v1067 = vpop.f32.mrb[0].mxu0
    %1068 = vmatprep.mubr.f32.mxu0 0.0
    %1069 = vmatmul.mubr.f32.gmra.mrb[0].mxu0 %v997
    %v1070 = vpop.f32.mrb[0].mxu0
    %v1071 = vadd.f32 0.0, %v1070
    %v1072 = vpop.f32.mrb[0].mxu0
    %1073 = vdwg.mxu0
    %v1075 = vsel %vm344, %v528, 0
    %v1078 = vsel %vm344, %v533, 0
    %1080 = vmatprep.subr.mxu0 0.0
    %1081 = vmatpush1.msra.mxu0 %v536
    %1082 = vmatprep.subr.mxu0 0.0
    %1083 = vmatpush1.msra.mxu0 0.0
    %1084 = vmatprep.subr.mxu0 0.0
    %1085 = vmatpush1.msra.mxu0 0.0
    %1086 = vmatprep.subr.mxu0 0.0
    %1087 = vmatpush1.msra.mxu0 0.0
    %1088 = vmatprep.subr.mxu0 0.0
    %1089 = vmatpush1.msra.mxu0 0.0
    %1090 = vmatprep.subr.mxu0 0.0
    %1091 = vmatpush1.msra.mxu0 0.0
    %1092 = vmatprep.subr.mxu0 0.0
    %1093 = vmatpush1.msra.mxu0 0.0
    %1094 = vmatprep.subr.mxu0 0.0
    %1095 = vmatpush1.msra.mxu0 0.0
    %1096 = vmatprep.subr.mxu0 0.0
    %1097 = vmatpush1.msra.mxu0 0.0
    %1098 = vmatprep.subr.mxu0 0.0
    %1099 = vmatpush1.msra.mxu0 0.0
    %1100 = vmatprep.subr.mxu0 0.0
    %1101 = vmatpush1.msra.mxu0 0.0
    %1102 = vmatprep.subr.mxu0 0.0
    %1103 = vmatpush1.msra.mxu0 0.0
    %1104 = vmatprep.subr.mxu0 0.0
    %1105 = vmatpush1.msra.mxu0 0.0
    %1106 = vmatprep.subr.mxu0 0.0
    %1107 = vmatpush1.msra.mxu0 0.0
    %1108 = vmatprep.subr.mxu0 0.0
    %1109 = vmatpush1.msra.mxu0 0.0
    %1110 = vmatprep.subr.mxu0 0.0
    %1111 = vmatpush1.msra.mxu0 0.0
    %1112 = vmatprep.subr.mxu0 0.0
    %1113 = vmatpush1.msra.mxu0 0.0
    %1114 = vmatprep.subr.mxu0 0.0
    %1115 = vmatpush1.msra.mxu0 0.0
    %1116 = vmatprep.subr.mxu0 0.0
    %1117 = vmatpush1.msra.mxu0 0.0
    %1118 = vmatprep.subr.mxu0 0.0
    %1119 = vmatpush1.msra.mxu0 0.0
    %1120 = vmatprep.subr.mxu0 0.0
    %1121 = vmatpush1.msra.mxu0 0.0
    %1122 = vmatprep.subr.mxu0 0.0
    %1123 = vmatpush1.msra.mxu0 0.0
    %1124 = vmatprep.subr.mxu0 0.0
    %1125 = vmatpush1.msra.mxu0 0.0
    %1126 = vmatprep.subr.mxu0 0.0
    %1127 = vmatpush1.msra.mxu0 0.0
    %1128 = vmatprep.subr.mxu0 0.0
    %1129 = vmatpush1.msra.mxu0 0.0
    %1130 = vmatprep.subr.mxu0 0.0
    %1131 = vmatpush1.msra.mxu0 0.0
    %1132 = vmatprep.subr.mxu0 0.0
    %1133 = vmatpush1.msra.mxu0 0.0
    %1134 = vmatprep.subr.mxu0 0.0
    %1135 = vmatpush1.msra.mxu0 0.0
    %1136 = vmatprep.subr.mxu0 0.0
    %1137 = vmatpush1.msra.mxu0 0.0
    %1138 = vmatprep.subr.mxu0 0.0
    %1139 = vmatpush1.msra.mxu0 0.0
    %1140 = vmatprep.subr.mxu0 0.0
    %1141 = vmatpush1.msra.mxu0 0.0
    %1142 = vmatprep.subr.mxu0 0.0
    %1143 = vmatpush1.msra.mxu0 0.0
    %1144 = vmatprep.mubr.f32.mxu0 0.0
    %1145 = vmatmul.mubr.f32.gmra.mrb[0].mxu0 %v1075
    %v1146 = vpop.f32.mrb[0].mxu0
    %v1147 = vadd.f32 %v1066, %v1146
    %v1148 = vpop.f32.mrb[0].mxu0
    %1149 = vmatprep.mubr.f32.mxu0 0.0
    %1150 = vmatmul.mubr.f32.gmra.mrb[0].mxu0 %v1078
    %v1151 = vpop.f32.mrb[0].mxu0
    %v1152 = vadd.f32 %v1071, %v1151
    %v1153 = vpop.f32.mrb[0].mxu0
    %1154 = vdwg.mxu0
    %s1155 = scalar_lea.vmem %s2, 64
    %v1156 = vld [vmem:[%s1155] sm:$0xff]
    %v1157 = vld [vmem:[%s1155 + $0x8] sm:$0xff]
    %v1158 = vld [vmem:[%s1155 + $0x10] sm:$0xff]
    %v1159 = vld [vmem:[%s1155 + $0x18] sm:$0xff]
    %s1160 = scalar_lea.vmem %s3, 2
    %v1161 = vld [vmem:[%s1160] sm:$0x1]
    %v1163 = vlaneseq
    %v1164 = vshrl.u32 %v1163, 7
    %v1165 = vsub.s32 0, %v1164
    %v1166 = vrot.slane %v1161, %v1165
    %1168 = vmatprep.subr.mxu0 0.0
    %1169 = vmatpush1.msra.mxu0 %v1156
    %1170 = vmatprep.subr.mxu0 0.0
    %1171 = vmatpush1.msra.mxu0 %v1157
    %1172 = vmatprep.subr.mxu0 0.0
    %1173 = vmatpush1.msra.mxu0 %v1158
    %1174 = vmatprep.subr.mxu0 0.0
    %1175 = vmatpush1.msra.mxu0 %v1159
    %1176 = vmatprep.subr.mxu0 0.0
    %1177 = vmatpush1.msra.mxu0 0.0
    %1178 = vmatprep.subr.mxu0 0.0
    %1179 = vmatpush1.msra.mxu0 0.0
    %1180 = vmatprep.subr.mxu0 0.0
    %1181 = vmatpush1.msra.mxu0 0.0
    %1182 = vmatprep.subr.mxu0 0.0
    %1183 = vmatpush1.msra.mxu0 0.0
    %1184 = vmatprep.subr.mxu0 0.0
    %1185 = vmatpush1.msra.mxu0 0.0
    %1186 = vmatprep.subr.mxu0 0.0
    %1187 = vmatpush1.msra.mxu0 0.0
    %1188 = vmatprep.subr.mxu0 0.0
    %1189 = vmatpush1.msra.mxu0 0.0
    %1190 = vmatprep.subr.mxu0 0.0
    %1191 = vmatpush1.msra.mxu0 0.0
    %1192 = vmatprep.subr.mxu0 0.0
    %1193 = vmatpush1.msra.mxu0 0.0
    %1194 = vmatprep.subr.mxu0 0.0
    %1195 = vmatpush1.msra.mxu0 0.0
    %1196 = vmatprep.subr.mxu0 0.0
    %1197 = vmatpush1.msra.mxu0 0.0
    %1198 = vmatprep.subr.mxu0 0.0
    %1199 = vmatpush1.msra.mxu0 0.0
    %1200 = vmatprep.subr.mxu0 0.0
    %1201 = vmatpush1.msra.mxu0 0.0
    %1202 = vmatprep.subr.mxu0 0.0
    %1203 = vmatpush1.msra.mxu0 0.0
    %1204 = vmatprep.subr.mxu0 0.0
    %1205 = vmatpush1.msra.mxu0 0.0
    %1206 = vmatprep.subr.mxu0 0.0
    %1207 = vmatpush1.msra.mxu0 0.0
    %1208 = vmatprep.subr.mxu0 0.0
    %1209 = vmatpush1.msra.mxu0 0.0
    %1210 = vmatprep.subr.mxu0 0.0
    %1211 = vmatpush1.msra.mxu0 0.0
    %1212 = vmatprep.subr.mxu0 0.0
    %1213 = vmatpush1.msra.mxu0 0.0
    %1214 = vmatprep.subr.mxu0 0.0
    %1215 = vmatpush1.msra.mxu0 0.0
    %1216 = vmatprep.subr.mxu0 0.0
    %1217 = vmatpush1.msra.mxu0 0.0
    %1218 = vmatprep.subr.mxu0 0.0
    %1219 = vmatpush1.msra.mxu0 0.0
    %1220 = vmatprep.subr.mxu0 0.0
    %1221 = vmatpush1.msra.mxu0 0.0
    %1222 = vmatprep.subr.mxu0 0.0
    %1223 = vmatpush1.msra.mxu0 0.0
    %1224 = vmatprep.subr.mxu0 0.0
    %1225 = vmatpush1.msra.mxu0 0.0
    %1226 = vmatprep.subr.mxu0 0.0
    %1227 = vmatpush1.msra.mxu0 0.0
    %1228 = vmatprep.subr.mxu0 0.0
    %1229 = vmatpush1.msra.mxu0 0.0
    %1230 = vmatprep.subr.mxu0 0.0
    %1231 = vmatpush1.msra.mxu0 0.0
    %1232 = vmatprep.mubr.f32.mxu0 0.0
    %1233 = vmatmul.mubr.f32.gmra.mrb[0].mxu0 %v92
    %v1234 = vpop.f32.mrb[0].mxu0
    %v1235 = vadd.f32 %v1166, %v1234
    %v1236 = vpop.f32.mrb[0].mxu0
    %1237 = vmatprep.mubr.f32.mxu0 0.0
    %1238 = vmatmul.mubr.f32.gmra.mrb[0].mxu0 %v95
    %v1239 = vpop.f32.mrb[0].mxu0
    %v1240 = vadd.f32 %v1166, %v1239
    %v1241 = vpop.f32.mrb[0].mxu0
    %1242 = vdwg.mxu0
    %s1243 = scalar_lea.vmem %s4, 64
    %v1244 = vld [vmem:[%s1243] sm:$0xff]
    %v1245 = vld [vmem:[%s1243 + $0x8] sm:$0xff]
    %v1246 = vld [vmem:[%s1243 + $0x10] sm:$0xff]
    %v1247 = vld [vmem:[%s1243 + $0x18] sm:$0xff]
    %s1248 = scalar_lea.vmem %s5, 2
    %v1249 = vld [vmem:[%s1248] sm:$0x1]
    %v1251 = vlaneseq
    %v1252 = vshrl.u32 %v1251, 7
    %v1253 = vsub.s32 0, %v1252
    %v1254 = vrot.slane %v1249, %v1253
    %1256 = vmatprep.subr.mxu0 0.0
    %1257 = vmatpush1.msra.mxu0 %v1244
    %1258 = vmatprep.subr.mxu0 0.0
    %1259 = vmatpush1.msra.mxu0 %v1245
    %1260 = vmatprep.subr.mxu0 0.0
    %1261 = vmatpush1.msra.mxu0 %v1246
    %1262 = vmatprep.subr.mxu0 0.0
    %1263 = vmatpush1.msra.mxu0 %v1247
    %1264 = vmatprep.subr.mxu0 0.0
    %1265 = vmatpush1.msra.mxu0 0.0
    %1266 = vmatprep.subr.mxu0 0.0
    %1267 = vmatpush1.msra.mxu0 0.0
    %1268 = vmatprep.subr.mxu0 0.0
    %1269 = vmatpush1.msra.mxu0 0.0
    %1270 = vmatprep.subr.mxu0 0.0
    %1271 = vmatpush1.msra.mxu0 0.0
    %1272 = vmatprep.subr.mxu0 0.0
    %1273 = vmatpush1.msra.mxu0 0.0
    %1274 = vmatprep.subr.mxu0 0.0
    %1275 = vmatpush1.msra.mxu0 0.0
    %1276 = vmatprep.subr.mxu0 0.0
    %1277 = vmatpush1.msra.mxu0 0.0
    %1278 = vmatprep.subr.mxu0 0.0
    %1279 = vmatpush1.msra.mxu0 0.0
    %1280 = vmatprep.subr.mxu0 0.0
    %1281 = vmatpush1.msra.mxu0 0.0
    %1282 = vmatprep.subr.mxu0 0.0
    %1283 = vmatpush1.msra.mxu0 0.0
    %1284 = vmatprep.subr.mxu0 0.0
    %1285 = vmatpush1.msra.mxu0 0.0
    %1286 = vmatprep.subr.mxu0 0.0
    %1287 = vmatpush1.msra.mxu0 0.0
    %1288 = vmatprep.subr.mxu0 0.0
    %1289 = vmatpush1.msra.mxu0 0.0
    %1290 = vmatprep.subr.mxu0 0.0
    %1291 = vmatpush1.msra.mxu0 0.0
    %1292 = vmatprep.subr.mxu0 0.0
    %1293 = vmatpush1.msra.mxu0 0.0
    %1294 = vmatprep.subr.mxu0 0.0
    %1295 = vmatpush1.msra.mxu0 0.0
    %1296 = vmatprep.subr.mxu0 0.0
    %1297 = vmatpush1.msra.mxu0 0.0
    %1298 = vmatprep.subr.mxu0 0.0
    %1299 = vmatpush1.msra.mxu0 0.0
    %1300 = vmatprep.subr.mxu0 0.0
    %1301 = vmatpush1.msra.mxu0 0.0
    %1302 = vmatprep.subr.mxu0 0.0
    %1303 = vmatpush1.msra.mxu0 0.0
    %1304 = vmatprep.subr.mxu0 0.0
    %1305 = vmatpush1.msra.mxu0 0.0
    %1306 = vmatprep.subr.mxu0 0.0
    %1307 = vmatpush1.msra.mxu0 0.0
    %1308 = vmatprep.subr.mxu0 0.0
    %1309 = vmatpush1.msra.mxu0 0.0
    %1310 = vmatprep.subr.mxu0 0.0
    %1311 = vmatpush1.msra.mxu0 0.0
    %1312 = vmatprep.subr.mxu0 0.0
    %1313 = vmatpush1.msra.mxu0 0.0
    %1314 = vmatprep.subr.mxu0 0.0
    %1315 = vmatpush1.msra.mxu0 0.0
    %1316 = vmatprep.subr.mxu0 0.0
    %1317 = vmatpush1.msra.mxu0 0.0
    %1318 = vmatprep.subr.mxu0 0.0
    %1319 = vmatpush1.msra.mxu0 0.0
    %1320 = vmatprep.mubr.f32.mxu0 0.0
    %1321 = vmatmul.mubr.f32.gmra.mrb[0].mxu0 %v92
    %v1322 = vpop.f32.mrb[0].mxu0
    %v1323 = vadd.f32 %v1254, %v1322
    %v1324 = vpop.f32.mrb[0].mxu0
    %1325 = vmatprep.mubr.f32.mxu0 0.0
    %1326 = vmatmul.mubr.f32.gmra.mrb[0].mxu0 %v95
    %v1327 = vpop.f32.mrb[0].mxu0
    %v1328 = vadd.f32 %v1254, %v1327
    %v1329 = vpop.f32.mrb[0].mxu0
    %1330 = vdwg.mxu0
    %s1331 = scalar_lea.vmem %s6, 64
    %v1332 = vld [vmem:[%s1331] sm:$0xff]
    %v1333 = vld [vmem:[%s1331 + $0x8] sm:$0xff]
    %v1334 = vld [vmem:[%s1331 + $0x10] sm:$0xff]
    %v1335 = vld [vmem:[%s1331 + $0x18] sm:$0xff]
    %s1336 = scalar_lea.vmem %s7, 2
    %v1337 = vld [vmem:[%s1336] sm:$0x1]
    %v1339 = vlaneseq
    %v1340 = vshrl.u32 %v1339, 7
    %v1341 = vsub.s32 0, %v1340
    %v1342 = vrot.slane %v1337, %v1341
    %1344 = vmatprep.subr.mxu0 0.0
    %1345 = vmatpush1.msra.mxu0 %v1332
    %1346 = vmatprep.subr.mxu0 0.0
    %1347 = vmatpush1.msra.mxu0 %v1333
    %1348 = vmatprep.subr.mxu0 0.0
    %1349 = vmatpush1.msra.mxu0 %v1334
    %1350 = vmatprep.subr.mxu0 0.0
    %1351 = vmatpush1.msra.mxu0 %v1335
    %1352 = vmatprep.subr.mxu0 0.0
    %1353 = vmatpush1.msra.mxu0 0.0
    %1354 = vmatprep.subr.mxu0 0.0
    %1355 = vmatpush1.msra.mxu0 0.0
    %1356 = vmatprep.subr.mxu0 0.0
    %1357 = vmatpush1.msra.mxu0 0.0
    %1358 = vmatprep.subr.mxu0 0.0
    %1359 = vmatpush1.msra.mxu0 0.0
    %1360 = vmatprep.subr.mxu0 0.0
    %1361 = vmatpush1.msra.mxu0 0.0
    %1362 = vmatprep.subr.mxu0 0.0
    %1363 = vmatpush1.msra.mxu0 0.0
    %1364 = vmatprep.subr.mxu0 0.0
    %1365 = vmatpush1.msra.mxu0 0.0
    %1366 = vmatprep.subr.mxu0 0.0
    %1367 = vmatpush1.msra.mxu0 0.0
    %1368 = vmatprep.subr.mxu0 0.0
    %1369 = vmatpush1.msra.mxu0 0.0
    %1370 = vmatprep.subr.mxu0 0.0
    %1371 = vmatpush1.msra.mxu0 0.0
    %1372 = vmatprep.subr.mxu0 0.0
    %1373 = vmatpush1.msra.mxu0 0.0
    %1374 = vmatprep.subr.mxu0 0.0
    %1375 = vmatpush1.msra.mxu0 0.0
    %1376 = vmatprep.subr.mxu0 0.0
    %1377 = vmatpush1.msra.mxu0 0.0
    %1378 = vmatprep.subr.mxu0 0.0
    %1379 = vmatpush1.msra.mxu0 0.0
    %1380 = vmatprep.subr.mxu0 0.0
    %1381 = vmatpush1.msra.mxu0 0.0
    %1382 = vmatprep.subr.mxu0 0.0
    %1383 = vmatpush1.msra.mxu0 0.0
    %1384 = vmatprep.subr.mxu0 0.0
    %1385 = vmatpush1.msra.mxu0 0.0
    %1386 = vmatprep.subr.mxu0 0.0
    %1387 = vmatpush1.msra.mxu0 0.0
    %1388 = vmatprep.subr.mxu0 0.0
    %1389 = vmatpush1.msra.mxu0 0.0
    %1390 = vmatprep.subr.mxu0 0.0
    %1391 = vmatpush1.msra.mxu0 0.0
    %1392 = vmatprep.subr.mxu0 0.0
    %1393 = vmatpush1.msra.mxu0 0.0
    %1394 = vmatprep.subr.mxu0 0.0
    %1395 = vmatpush1.msra.mxu0 0.0
    %1396 = vmatprep.subr.mxu0 0.0
    %1397 = vmatpush1.msra.mxu0 0.0
    %1398 = vmatprep.subr.mxu0 0.0
    %1399 = vmatpush1.msra.mxu0 0.0
    %1400 = vmatprep.subr.mxu0 0.0
    %1401 = vmatpush1.msra.mxu0 0.0
    %1402 = vmatprep.subr.mxu0 0.0
    %1403 = vmatpush1.msra.mxu0 0.0
    %1404 = vmatprep.subr.mxu0 0.0
    %1405 = vmatpush1.msra.mxu0 0.0
    %1406 = vmatprep.subr.mxu0 0.0
    %1407 = vmatpush1.msra.mxu0 0.0
    %1408 = vmatprep.mubr.f32.mxu0 0.0
    %1409 = vmatmul.mubr.f32.gmra.mrb[0].mxu0 %v92
    %v1410 = vpop.f32.mrb[0].mxu0
    %v1411 = vadd.f32 %v1342, %v1410
    %v1412 = vpop.f32.mrb[0].mxu0
    %1413 = vmatprep.mubr.f32.mxu0 0.0
    %1414 = vmatmul.mubr.f32.gmra.mrb[0].mxu0 %v95
    %v1415 = vpop.f32.mrb[0].mxu0
    %v1416 = vadd.f32 %v1342, %v1415
    %v1417 = vpop.f32.mrb[0].mxu0
    %1418 = vdwg.mxu0
    %v1420 = vsel %vm344, %v1235, 0
    %v1423 = vsel %vm344, %v1240, 0
    %v1426 = vsel %vm344, %v1323, 0
    %v1429 = vsel %vm344, %v1328, 0
    %1431 = vmatprep.subr.mxu0 0.0
    %1432 = vmatpush1.xpose.msra.mxu0 %v1426
    %1433 = vmatprep.subr.mxu0 0.0
    %1434 = vmatpush1.xpose.msra.mxu0 %v1429
    %1435 = vmatprep.subr.mxu0 0.0
    %1436 = vmatpush1.xpose.msra.mxu0 0.0
    %1437 = vmatprep.subr.mxu0 0.0
    %1438 = vmatpush1.xpose.msra.mxu0 0.0
    %1439 = vmatprep.subr.mxu0 0.0
    %1440 = vmatpush1.xpose.msra.mxu0 0.0
    %1441 = vmatprep.subr.mxu0 0.0
    %1442 = vmatpush1.xpose.msra.mxu0 0.0
    %1443 = vmatprep.subr.mxu0 0.0
    %1444 = vmatpush1.xpose.msra.mxu0 0.0
    %1445 = vmatprep.subr.mxu0 0.0
    %1446 = vmatpush1.xpose.msra.mxu0 0.0
    %1447 = vmatprep.subr.mxu0 0.0
    %1448 = vmatpush1.xpose.msra.mxu0 0.0
    %1449 = vmatprep.subr.mxu0 0.0
    %1450 = vmatpush1.xpose.msra.mxu0 0.0
    %1451 = vmatprep.subr.mxu0 0.0
    %1452 = vmatpush1.xpose.msra.mxu0 0.0
    %1453 = vmatprep.subr.mxu0 0.0
    %1454 = vmatpush1.xpose.msra.mxu0 0.0
    %1455 = vmatprep.subr.mxu0 0.0
    %1456 = vmatpush1.xpose.msra.mxu0 0.0
    %1457 = vmatprep.subr.mxu0 0.0
    %1458 = vmatpush1.xpose.msra.mxu0 0.0
    %1459 = vmatprep.subr.mxu0 0.0
    %1460 = vmatpush1.xpose.msra.mxu0 0.0
    %1461 = vmatprep.subr.mxu0 0.0
    %1462 = vmatpush1.xpose.msra.mxu0 0.0
    %1463 = vmatprep.subr.mxu0 0.0
    %1464 = vmatpush1.xpose.msra.mxu0 0.0
    %1465 = vmatprep.subr.mxu0 0.0
    %1466 = vmatpush1.xpose.msra.mxu0 0.0
    %1467 = vmatprep.subr.mxu0 0.0
    %1468 = vmatpush1.xpose.msra.mxu0 0.0
    %1469 = vmatprep.subr.mxu0 0.0
    %1470 = vmatpush1.xpose.msra.mxu0 0.0
    %1471 = vmatprep.subr.mxu0 0.0
    %1472 = vmatpush1.xpose.msra.mxu0 0.0
    %1473 = vmatprep.subr.mxu0 0.0
    %1474 = vmatpush1.xpose.msra.mxu0 0.0
    %1475 = vmatprep.subr.mxu0 0.0
    %1476 = vmatpush1.xpose.msra.mxu0 0.0
    %1477 = vmatprep.subr.mxu0 0.0
    %1478 = vmatpush1.xpose.msra.mxu0 0.0
    %1479 = vmatprep.subr.mxu0 0.0
    %1480 = vmatpush1.xpose.msra.mxu0 0.0
    %1481 = vmatprep.subr.mxu0 0.0
    %1482 = vmatpush1.xpose.msra.mxu0 0.0
    %1483 = vmatprep.subr.mxu0 0.0
    %1484 = vmatpush1.xpose.msra.mxu0 0.0
    %1485 = vmatprep.subr.mxu0 0.0
    %1486 = vmatpush1.xpose.msra.mxu0 0.0
    %1487 = vmatprep.subr.mxu0 0.0
    %1488 = vmatpush1.xpose.msra.mxu0 0.0
    %1489 = vmatprep.subr.mxu0 0.0
    %1490 = vmatpush1.xpose.msra.mxu0 0.0
    %1491 = vmatprep.subr.mxu0 0.0
    %1492 = vmatpush1.xpose.msra.mxu0 0.0
    %1493 = vmatprep.subr.mxu0 0.0
    %1494 = vmatpush1.xpose.msra.mxu0 0.0
    %1495 = vmatprep.mubr.f32.mxu0 0.0
    %1496 = vmatmul.mubr.f32.gmra.mrb[0].mxu0 %v1420
    %v1497 = vpop.f32.mrb[0].mxu0
    %v1498 = vadd.f32 %v77, %v1497
    %v1499 = vpop.f32.mrb[0].mxu0
    %1500 = vmatprep.mubr.f32.mxu0 0.0
    %1501 = vmatmul.mubr.f32.gmra.mrb[0].mxu0 %v1423
    %v1502 = vpop.f32.mrb[0].mxu0
    %v1503 = vadd.f32 %v78, %v1502
    %v1504 = vpop.f32.mrb[0].mxu0
    %1505 = vdwg.mxu0
    %v1506 = vsel %vm432, %v1498, -inf
    %1507 = vmax.xlane.f32.xlu0 %v1506
    %v1508 = vpop.xlane.xlu0 %1507
    %v1509 = vsel %vm432, %v1503, -inf
    %1510 = vmax.xlane.f32.xlu0 %v1509
    %v1511 = vpop.xlane.xlu0 %1510
    %v1512 = vsub.f32 %v1498, %v1508
    %v1513 = vsub.f32 %v1503, %v1511
    %v1514 = vmul.f32 %v1512, 1.442695
    %v1515 = vpow.pop %v1514
    %v1516 = vmul.f32 %v1513, 1.442695
    %v1517 = vpow.pop %v1516
    %v1518 = vsel %vm432, %v1515, 0.0
    %1519 = vadd.xlane.f32.xlu0 %v1518
    %v1520 = vpop.xlane.xlu0 %1519
    %v1521 = vsel %vm432, %v1517, 0.0
    %1522 = vadd.xlane.f32.xlu0 %v1521
    %v1523 = vpop.xlane.xlu0 %1522
    %v1524 = vrcp.pop %v1520
    %v1525 = vrcp.pop %v1523
    %v1526 = vmul.f32 %v1515, %v1524
    %v1527 = vmul.f32 %v1517, %v1525
    %v1529 = vsel %vm432, %v1526, 0
    %v1532 = vsel %vm432, %v1527, 0
    %1534 = vmatprep.subr.mxu0 0.0
    %1535 = vmatpush1.msra.mxu0 %v1411
    %1536 = vmatprep.subr.mxu0 0.0
    %1537 = vmatpush1.msra.mxu0 %v1416
    %1538 = vmatprep.subr.mxu0 0.0
    %1539 = vmatpush1.msra.mxu0 0.0
    %1540 = vmatprep.subr.mxu0 0.0
    %1541 = vmatpush1.msra.mxu0 0.0
    %1542 = vmatprep.subr.mxu0 0.0
    %1543 = vmatpush1.msra.mxu0 0.0
    %1544 = vmatprep.subr.mxu0 0.0
    %1545 = vmatpush1.msra.mxu0 0.0
    %1546 = vmatprep.subr.mxu0 0.0
    %1547 = vmatpush1.msra.mxu0 0.0
    %1548 = vmatprep.subr.mxu0 0.0
    %1549 = vmatpush1.msra.mxu0 0.0
    %1550 = vmatprep.subr.mxu0 0.0
    %1551 = vmatpush1.msra.mxu0 0.0
    %1552 = vmatprep.subr.mxu0 0.0
    %1553 = vmatpush1.msra.mxu0 0.0
    %1554 = vmatprep.subr.mxu0 0.0
    %1555 = vmatpush1.msra.mxu0 0.0
    %1556 = vmatprep.subr.mxu0 0.0
    %1557 = vmatpush1.msra.mxu0 0.0
    %1558 = vmatprep.subr.mxu0 0.0
    %1559 = vmatpush1.msra.mxu0 0.0
    %1560 = vmatprep.subr.mxu0 0.0
    %1561 = vmatpush1.msra.mxu0 0.0
    %1562 = vmatprep.subr.mxu0 0.0
    %1563 = vmatpush1.msra.mxu0 0.0
    %1564 = vmatprep.subr.mxu0 0.0
    %1565 = vmatpush1.msra.mxu0 0.0
    %1566 = vmatprep.subr.mxu0 0.0
    %1567 = vmatpush1.msra.mxu0 0.0
    %1568 = vmatprep.subr.mxu0 0.0
    %1569 = vmatpush1.msra.mxu0 0.0
    %1570 = vmatprep.subr.mxu0 0.0
    %1571 = vmatpush1.msra.mxu0 0.0
    %1572 = vmatprep.subr.mxu0 0.0
    %1573 = vmatpush1.msra.mxu0 0.0
    %1574 = vmatprep.subr.mxu0 0.0
    %1575 = vmatpush1.msra.mxu0 0.0
    %1576 = vmatprep.subr.mxu0 0.0
    %1577 = vmatpush1.msra.mxu0 0.0
    %1578 = vmatprep.subr.mxu0 0.0
    %1579 = vmatpush1.msra.mxu0 0.0
    %1580 = vmatprep.subr.mxu0 0.0
    %1581 = vmatpush1.msra.mxu0 0.0
    %1582 = vmatprep.subr.mxu0 0.0
    %1583 = vmatpush1.msra.mxu0 0.0
    %1584 = vmatprep.subr.mxu0 0.0
    %1585 = vmatpush1.msra.mxu0 0.0
    %1586 = vmatprep.subr.mxu0 0.0
    %1587 = vmatpush1.msra.mxu0 0.0
    %1588 = vmatprep.subr.mxu0 0.0
    %1589 = vmatpush1.msra.mxu0 0.0
    %1590 = vmatprep.subr.mxu0 0.0
    %1591 = vmatpush1.msra.mxu0 0.0
    %1592 = vmatprep.subr.mxu0 0.0
    %1593 = vmatpush1.msra.mxu0 0.0
    %1594 = vmatprep.subr.mxu0 0.0
    %1595 = vmatpush1.msra.mxu0 0.0
    %1596 = vmatprep.subr.mxu0 0.0
    %1597 = vmatpush1.msra.mxu0 0.0
    %1598 = vmatprep.mubr.f32.mxu0 0.0
    %1599 = vmatmul.mubr.f32.gmra.mrb[0].mxu0 %v1529
    %v1600 = vpop.f32.mrb[0].mxu0
    %v1601 = vadd.f32 0.0, %v1600
    %v1602 = vpop.f32.mrb[0].mxu0
    %1603 = vmatprep.mubr.f32.mxu0 0.0
    %1604 = vmatmul.mubr.f32.gmra.mrb[0].mxu0 %v1532
    %v1605 = vpop.f32.mrb[0].mxu0
    %v1606 = vadd.f32 0.0, %v1605
    %v1607 = vpop.f32.mrb[0].mxu0
    %1608 = vdwg.mxu0
    %s1609 = scalar_lea.vmem %s8, 16
    %v1610 = vld [vmem:[%s1609] sm:$0xff]
    %v1612 = vsel %vm344, %v1601, 0
    %v1615 = vsel %vm344, %v1606, 0
    %1617 = vmatprep.subr.mxu0 0.0
    %1618 = vmatpush1.msra.mxu0 %v1610
    %1619 = vmatprep.subr.mxu0 0.0
    %1620 = vmatpush1.msra.mxu0 0.0
    %1621 = vmatprep.subr.mxu0 0.0
    %1622 = vmatpush1.msra.mxu0 0.0
    %1623 = vmatprep.subr.mxu0 0.0
    %1624 = vmatpush1.msra.mxu0 0.0
    %1625 = vmatprep.subr.mxu0 0.0
    %1626 = vmatpush1.msra.mxu0 0.0
    %1627 = vmatprep.subr.mxu0 0.0
    %1628 = vmatpush1.msra.mxu0 0.0
    %1629 = vmatprep.subr.mxu0 0.0
    %1630 = vmatpush1.msra.mxu0 0.0
    %1631 = vmatprep.subr.mxu0 0.0
    %1632 = vmatpush1.msra.mxu0 0.0
    %1633 = vmatprep.subr.mxu0 0.0
    %1634 = vmatpush1.msra.mxu0 0.0
    %1635 = vmatprep.subr.mxu0 0.0
    %1636 = vmatpush1.msra.mxu0 0.0
    %1637 = vmatprep.subr.mxu0 0.0
    %1638 = vmatpush1.msra.mxu0 0.0
    %1639 = vmatprep.subr.mxu0 0.0
    %1640 = vmatpush1.msra.mxu0 0.0
    %1641 = vmatprep.subr.mxu0 0.0
    %1642 = vmatpush1.msra.mxu0 0.0
    %1643 = vmatprep.subr.mxu0 0.0
    %1644 = vmatpush1.msra.mxu0 0.0
    %1645 = vmatprep.subr.mxu0 0.0
    %1646 = vmatpush1.msra.mxu0 0.0
    %1647 = vmatprep.subr.mxu0 0.0
    %1648 = vmatpush1.msra.mxu0 0.0
    %1649 = vmatprep.subr.mxu0 0.0
    %1650 = vmatpush1.msra.mxu0 0.0
    %1651 = vmatprep.subr.mxu0 0.0
    %1652 = vmatpush1.msra.mxu0 0.0
    %1653 = vmatprep.subr.mxu0 0.0
    %1654 = vmatpush1.msra.mxu0 0.0
    %1655 = vmatprep.subr.mxu0 0.0
    %1656 = vmatpush1.msra.mxu0 0.0
    %1657 = vmatprep.subr.mxu0 0.0
    %1658 = vmatpush1.msra.mxu0 0.0
    %1659 = vmatprep.subr.mxu0 0.0
    %1660 = vmatpush1.msra.mxu0 0.0
    %1661 = vmatprep.subr.mxu0 0.0
    %1662 = vmatpush1.msra.mxu0 0.0
    %1663 = vmatprep.subr.mxu0 0.0
    %1664 = vmatpush1.msra.mxu0 0.0
    %1665 = vmatprep.subr.mxu0 0.0
    %1666 = vmatpush1.msra.mxu0 0.0
    %1667 = vmatprep.subr.mxu0 0.0
    %1668 = vmatpush1.msra.mxu0 0.0
    %1669 = vmatprep.subr.mxu0 0.0
    %1670 = vmatpush1.msra.mxu0 0.0
    %1671 = vmatprep.subr.mxu0 0.0
    %1672 = vmatpush1.msra.mxu0 0.0
    %1673 = vmatprep.subr.mxu0 0.0
    %1674 = vmatpush1.msra.mxu0 0.0
    %1675 = vmatprep.subr.mxu0 0.0
    %1676 = vmatpush1.msra.mxu0 0.0
    %1677 = vmatprep.subr.mxu0 0.0
    %1678 = vmatpush1.msra.mxu0 0.0
    %1679 = vmatprep.subr.mxu0 0.0
    %1680 = vmatpush1.msra.mxu0 0.0
    %1681 = vmatprep.mubr.f32.mxu0 0.0
    %1682 = vmatmul.mubr.f32.gmra.mrb[0].mxu0 %v1612
    %v1683 = vpop.f32.mrb[0].mxu0
    %v1684 = vadd.f32 0.0, %v1683
    %v1685 = vpop.f32.mrb[0].mxu0
    %1686 = vmatprep.mubr.f32.mxu0 0.0
    %1687 = vmatmul.mubr.f32.gmra.mrb[0].mxu0 %v1615
    %v1688 = vpop.f32.mrb[0].mxu0
    %v1689 = vadd.f32 0.0, %v1688
    %v1690 = vpop.f32.mrb[0].mxu0
    %1691 = vdwg.mxu0
    %v1692 = vadd.f32 %v1147, %v1684
    %v1693 = vadd.f32 %v1152, %v1689
    %s1694 = scalar_lea.vmem %s2, 96
    %v1695 = vld [vmem:[%s1694] sm:$0xff]
    %v1696 = vld [vmem:[%s1694 + $0x8] sm:$0xff]
    %v1697 = vld [vmem:[%s1694 + $0x10] sm:$0xff]
    %v1698 = vld [vmem:[%s1694 + $0x18] sm:$0xff]
    %s1699 = scalar_lea.vmem %s3, 3
    %v1700 = vld [vmem:[%s1699] sm:$0x1]
    %v1702 = vlaneseq
    %v1703 = vshrl.u32 %v1702, 7
    %v1704 = vsub.s32 0, %v1703
    %v1705 = vrot.slane %v1700, %v1704
    %1707 = vmatprep.subr.mxu0 0.0
    %1708 = vmatpush1.msra.mxu0 %v1695
    %1709 = vmatprep.subr.mxu0 0.0
    %1710 = vmatpush1.msra.mxu0 %v1696
    %1711 = vmatprep.subr.mxu0 0.0
    %1712 = vmatpush1.msra.mxu0 %v1697
    %1713 = vmatprep.subr.mxu0 0.0
    %1714 = vmatpush1.msra.mxu0 %v1698
    %1715 = vmatprep.subr.mxu0 0.0
    %1716 = vmatpush1.msra.mxu0 0.0
    %1717 = vmatprep.subr.mxu0 0.0
    %1718 = vmatpush1.msra.mxu0 0.0
    %1719 = vmatprep.subr.mxu0 0.0
    %1720 = vmatpush1.msra.mxu0 0.0
    %1721 = vmatprep.subr.mxu0 0.0
    %1722 = vmatpush1.msra.mxu0 0.0
    %1723 = vmatprep.subr.mxu0 0.0
    %1724 = vmatpush1.msra.mxu0 0.0
    %1725 = vmatprep.subr.mxu0 0.0
    %1726 = vmatpush1.msra.mxu0 0.0
    %1727 = vmatprep.subr.mxu0 0.0
    %1728 = vmatpush1.msra.mxu0 0.0
    %1729 = vmatprep.subr.mxu0 0.0
    %1730 = vmatpush1.msra.mxu0 0.0
    %1731 = vmatprep.subr.mxu0 0.0
    %1732 = vmatpush1.msra.mxu0 0.0
    %1733 = vmatprep.subr.mxu0 0.0
    %1734 = vmatpush1.msra.mxu0 0.0
    %1735 = vmatprep.subr.mxu0 0.0
    %1736 = vmatpush1.msra.mxu0 0.0
    %1737 = vmatprep.subr.mxu0 0.0
    %1738 = vmatpush1.msra.mxu0 0.0
    %1739 = vmatprep.subr.mxu0 0.0
    %1740 = vmatpush1.msra.mxu0 0.0
    %1741 = vmatprep.subr.mxu0 0.0
    %1742 = vmatpush1.msra.mxu0 0.0
    %1743 = vmatprep.subr.mxu0 0.0
    %1744 = vmatpush1.msra.mxu0 0.0
    %1745 = vmatprep.subr.mxu0 0.0
    %1746 = vmatpush1.msra.mxu0 0.0
    %1747 = vmatprep.subr.mxu0 0.0
    %1748 = vmatpush1.msra.mxu0 0.0
    %1749 = vmatprep.subr.mxu0 0.0
    %1750 = vmatpush1.msra.mxu0 0.0
    %1751 = vmatprep.subr.mxu0 0.0
    %1752 = vmatpush1.msra.mxu0 0.0
    %1753 = vmatprep.subr.mxu0 0.0
    %1754 = vmatpush1.msra.mxu0 0.0
    %1755 = vmatprep.subr.mxu0 0.0
    %1756 = vmatpush1.msra.mxu0 0.0
    %1757 = vmatprep.subr.mxu0 0.0
    %1758 = vmatpush1.msra.mxu0 0.0
    %1759 = vmatprep.subr.mxu0 0.0
    %1760 = vmatpush1.msra.mxu0 0.0
    %1761 = vmatprep.subr.mxu0 0.0
    %1762 = vmatpush1.msra.mxu0 0.0
    %1763 = vmatprep.subr.mxu0 0.0
    %1764 = vmatpush1.msra.mxu0 0.0
    %1765 = vmatprep.subr.mxu0 0.0
    %1766 = vmatpush1.msra.mxu0 0.0
    %1767 = vmatprep.subr.mxu0 0.0
    %1768 = vmatpush1.msra.mxu0 0.0
    %1769 = vmatprep.subr.mxu0 0.0
    %1770 = vmatpush1.msra.mxu0 0.0
    %1771 = vmatprep.mubr.f32.mxu0 0.0
    %1772 = vmatmul.mubr.f32.gmra.mrb[0].mxu0 %v92
    %v1773 = vpop.f32.mrb[0].mxu0
    %v1774 = vadd.f32 %v1705, %v1773
    %v1775 = vpop.f32.mrb[0].mxu0
    %1776 = vmatprep.mubr.f32.mxu0 0.0
    %1777 = vmatmul.mubr.f32.gmra.mrb[0].mxu0 %v95
    %v1778 = vpop.f32.mrb[0].mxu0
    %v1779 = vadd.f32 %v1705, %v1778
    %v1780 = vpop.f32.mrb[0].mxu0
    %1781 = vdwg.mxu0
    %s1782 = scalar_lea.vmem %s4, 96
    %v1783 = vld [vmem:[%s1782] sm:$0xff]
    %v1784 = vld [vmem:[%s1782 + $0x8] sm:$0xff]
    %v1785 = vld [vmem:[%s1782 + $0x10] sm:$0xff]
    %v1786 = vld [vmem:[%s1782 + $0x18] sm:$0xff]
    %s1787 = scalar_lea.vmem %s5, 3
    %v1788 = vld [vmem:[%s1787] sm:$0x1]
    %v1790 = vlaneseq
    %v1791 = vshrl.u32 %v1790, 7
    %v1792 = vsub.s32 0, %v1791
    %v1793 = vrot.slane %v1788, %v1792
    %1795 = vmatprep.subr.mxu0 0.0
    %1796 = vmatpush1.msra.mxu0 %v1783
    %1797 = vmatprep.subr.mxu0 0.0
    %1798 = vmatpush1.msra.mxu0 %v1784
    %1799 = vmatprep.subr.mxu0 0.0
    %1800 = vmatpush1.msra.mxu0 %v1785
    %1801 = vmatprep.subr.mxu0 0.0
    %1802 = vmatpush1.msra.mxu0 %v1786
    %1803 = vmatprep.subr.mxu0 0.0
    %1804 = vmatpush1.msra.mxu0 0.0
    %1805 = vmatprep.subr.mxu0 0.0
    %1806 = vmatpush1.msra.mxu0 0.0
    %1807 = vmatprep.subr.mxu0 0.0
    %1808 = vmatpush1.msra.mxu0 0.0
    %1809 = vmatprep.subr.mxu0 0.0
    %1810 = vmatpush1.msra.mxu0 0.0
    %1811 = vmatprep.subr.mxu0 0.0
    %1812 = vmatpush1.msra.mxu0 0.0
    %1813 = vmatprep.subr.mxu0 0.0
    %1814 = vmatpush1.msra.mxu0 0.0
    %1815 = vmatprep.subr.mxu0 0.0
    %1816 = vmatpush1.msra.mxu0 0.0
    %1817 = vmatprep.subr.mxu0 0.0
    %1818 = vmatpush1.msra.mxu0 0.0
    %1819 = vmatprep.subr.mxu0 0.0
    %1820 = vmatpush1.msra.mxu0 0.0
    %1821 = vmatprep.subr.mxu0 0.0
    %1822 = vmatpush1.msra.mxu0 0.0
    %1823 = vmatprep.subr.mxu0 0.0
    %1824 = vmatpush1.msra.mxu0 0.0
    %1825 = vmatprep.subr.mxu0 0.0
    %1826 = vmatpush1.msra.mxu0 0.0
    %1827 = vmatprep.subr.mxu0 0.0
    %1828 = vmatpush1.msra.mxu0 0.0
    %1829 = vmatprep.subr.mxu0 0.0
    %1830 = vmatpush1.msra.mxu0 0.0
    %1831 = vmatprep.subr.mxu0 0.0
    %1832 = vmatpush1.msra.mxu0 0.0
    %1833 = vmatprep.subr.mxu0 0.0
    %1834 = vmatpush1.msra.mxu0 0.0
    %1835 = vmatprep.subr.mxu0 0.0
    %1836 = vmatpush1.msra.mxu0 0.0
    %1837 = vmatprep.subr.mxu0 0.0
    %1838 = vmatpush1.msra.mxu0 0.0
    %1839 = vmatprep.subr.mxu0 0.0
    %1840 = vmatpush1.msra.mxu0 0.0
    %1841 = vmatprep.subr.mxu0 0.0
    %1842 = vmatpush1.msra.mxu0 0.0
    %1843 = vmatprep.subr.mxu0 0.0
    %1844 = vmatpush1.msra.mxu0 0.0
    %1845 = vmatprep.subr.mxu0 0.0
    %1846 = vmatpush1.msra.mxu0 0.0
    %1847 = vmatprep.subr.mxu0 0.0
    %1848 = vmatpush1.msra.mxu0 0.0
    %1849 = vmatprep.subr.mxu0 0.0
    %1850 = vmatpush1.msra.mxu0 0.0
    %1851 = vmatprep.subr.mxu0 0.0
    %1852 = vmatpush1.msra.mxu0 0.0
    %1853 = vmatprep.subr.mxu0 0.0
    %1854 = vmatpush1.msra.mxu0 0.0
    %1855 = vmatprep.subr.mxu0 0.0
    %1856 = vmatpush1.msra.mxu0 0.0
    %1857 = vmatprep.subr.mxu0 0.0
    %1858 = vmatpush1.msra.mxu0 0.0
    %1859 = vmatprep.mubr.f32.mxu0 0.0
    %1860 = vmatmul.mubr.f32.gmra.mrb[0].mxu0 %v92
    %v1861 = vpop.f32.mrb[0].mxu0
    %v1862 = vadd.f32 %v1793, %v1861
    %v1863 = vpop.f32.mrb[0].mxu0
    %1864 = vmatprep.mubr.f32.mxu0 0.0
    %1865 = vmatmul.mubr.f32.gmra.mrb[0].mxu0 %v95
    %v1866 = vpop.f32.mrb[0].mxu0
    %v1867 = vadd.f32 %v1793, %v1866
    %v1868 = vpop.f32.mrb[0].mxu0
    %1869 = vdwg.mxu0
    %s1870 = scalar_lea.vmem %s6, 96
    %v1871 = vld [vmem:[%s1870] sm:$0xff]
    %v1872 = vld [vmem:[%s1870 + $0x8] sm:$0xff]
    %v1873 = vld [vmem:[%s1870 + $0x10] sm:$0xff]
    %v1874 = vld [vmem:[%s1870 + $0x18] sm:$0xff]
    %s1875 = scalar_lea.vmem %s7, 3
    %v1876 = vld [vmem:[%s1875] sm:$0x1]
    %v1878 = vlaneseq
    %v1879 = vshrl.u32 %v1878, 7
    %v1880 = vsub.s32 0, %v1879
    %v1881 = vrot.slane %v1876, %v1880
    %1883 = vmatprep.subr.mxu0 0.0
    %1884 = vmatpush1.msra.mxu0 %v1871
    %1885 = vmatprep.subr.mxu0 0.0
    %1886 = vmatpush1.msra.mxu0 %v1872
    %1887 = vmatprep.subr.mxu0 0.0
    %1888 = vmatpush1.msra.mxu0 %v1873
    %1889 = vmatprep.subr.mxu0 0.0
    %1890 = vmatpush1.msra.mxu0 %v1874
    %1891 = vmatprep.subr.mxu0 0.0
    %1892 = vmatpush1.msra.mxu0 0.0
    %1893 = vmatprep.subr.mxu0 0.0
    %1894 = vmatpush1.msra.mxu0 0.0
    %1895 = vmatprep.subr.mxu0 0.0
    %1896 = vmatpush1.msra.mxu0 0.0
    %1897 = vmatprep.subr.mxu0 0.0
    %1898 = vmatpush1.msra.mxu0 0.0
    %1899 = vmatprep.subr.mxu0 0.0
    %1900 = vmatpush1.msra.mxu0 0.0
    %1901 = vmatprep.subr.mxu0 0.0
    %1902 = vmatpush1.msra.mxu0 0.0
    %1903 = vmatprep.subr.mxu0 0.0
    %1904 = vmatpush1.msra.mxu0 0.0
    %1905 = vmatprep.subr.mxu0 0.0
    %1906 = vmatpush1.msra.mxu0 0.0
    %1907 = vmatprep.subr.mxu0 0.0
    %1908 = vmatpush1.msra.mxu0 0.0
    %1909 = vmatprep.subr.mxu0 0.0
    %1910 = vmatpush1.msra.mxu0 0.0
    %1911 = vmatprep.subr.mxu0 0.0
    %1912 = vmatpush1.msra.mxu0 0.0
    %1913 = vmatprep.subr.mxu0 0.0
    %1914 = vmatpush1.msra.mxu0 0.0
    %1915 = vmatprep.subr.mxu0 0.0
    %1916 = vmatpush1.msra.mxu0 0.0
    %1917 = vmatprep.subr.mxu0 0.0
    %1918 = vmatpush1.msra.mxu0 0.0
    %1919 = vmatprep.subr.mxu0 0.0
    %1920 = vmatpush1.msra.mxu0 0.0
    %1921 = vmatprep.subr.mxu0 0.0
    %1922 = vmatpush1.msra.mxu0 0.0
    %1923 = vmatprep.subr.mxu0 0.0
    %1924 = vmatpush1.msra.mxu0 0.0
    %1925 = vmatprep.subr.mxu0 0.0
    %1926 = vmatpush1.msra.mxu0 0.0
    %1927 = vmatprep.subr.mxu0 0.0
    %1928 = vmatpush1.msra.mxu0 0.0
    %1929 = vmatprep.subr.mxu0 0.0
    %1930 = vmatpush1.msra.mxu0 0.0
    %1931 = vmatprep.subr.mxu0 0.0
    %1932 = vmatpush1.msra.mxu0 0.0
    %1933 = vmatprep.subr.mxu0 0.0
    %1934 = vmatpush1.msra.mxu0 0.0
    %1935 = vmatprep.subr.mxu0 0.0
    %1936 = vmatpush1.msra.mxu0 0.0
    %1937 = vmatprep.subr.mxu0 0.0
    %1938 = vmatpush1.msra.mxu0 0.0
    %1939 = vmatprep.subr.mxu0 0.0
    %1940 = vmatpush1.msra.mxu0 0.0
    %1941 = vmatprep.subr.mxu0 0.0
    %1942 = vmatpush1.msra.mxu0 0.0
    %1943 = vmatprep.subr.mxu0 0.0
    %1944 = vmatpush1.msra.mxu0 0.0
    %1945 = vmatprep.subr.mxu0 0.0
    %1946 = vmatpush1.msra.mxu0 0.0
    %1947 = vmatprep.mubr.f32.mxu0 0.0
    %1948 = vmatmul.mubr.f32.gmra.mrb[0].mxu0 %v92
    %v1949 = vpop.f32.mrb[0].mxu0
    %v1950 = vadd.f32 %v1881, %v1949
    %v1951 = vpop.f32.mrb[0].mxu0
    %1952 = vmatprep.mubr.f32.mxu0 0.0
    %1953 = vmatmul.mubr.f32.gmra.mrb[0].mxu0 %v95
    %v1954 = vpop.f32.mrb[0].mxu0
    %v1955 = vadd.f32 %v1881, %v1954
    %v1956 = vpop.f32.mrb[0].mxu0
    %1957 = vdwg.mxu0
    %v1959 = vsel %vm344, %v1774, 0
    %v1962 = vsel %vm344, %v1779, 0
    %v1965 = vsel %vm344, %v1862, 0
    %v1968 = vsel %vm344, %v1867, 0
    %1970 = vmatprep.subr.mxu0 0.0
    %1971 = vmatpush1.xpose.msra.mxu0 %v1965
    %1972 = vmatprep.subr.mxu0 0.0
    %1973 = vmatpush1.xpose.msra.mxu0 %v1968
    %1974 = vmatprep.subr.mxu0 0.0
    %1975 = vmatpush1.xpose.msra.mxu0 0.0
    %1976 = vmatprep.subr.mxu0 0.0
    %1977 = vmatpush1.xpose.msra.mxu0 0.0
    %1978 = vmatprep.subr.mxu0 0.0
    %1979 = vmatpush1.xpose.msra.mxu0 0.0
    %1980 = vmatprep.subr.mxu0 0.0
    %1981 = vmatpush1.xpose.msra.mxu0 0.0
    %1982 = vmatprep.subr.mxu0 0.0
    %1983 = vmatpush1.xpose.msra.mxu0 0.0
    %1984 = vmatprep.subr.mxu0 0.0
    %1985 = vmatpush1.xpose.msra.mxu0 0.0
    %1986 = vmatprep.subr.mxu0 0.0
    %1987 = vmatpush1.xpose.msra.mxu0 0.0
    %1988 = vmatprep.subr.mxu0 0.0
    %1989 = vmatpush1.xpose.msra.mxu0 0.0
    %1990 = vmatprep.subr.mxu0 0.0
    %1991 = vmatpush1.xpose.msra.mxu0 0.0
    %1992 = vmatprep.subr.mxu0 0.0
    %1993 = vmatpush1.xpose.msra.mxu0 0.0
    %1994 = vmatprep.subr.mxu0 0.0
    %1995 = vmatpush1.xpose.msra.mxu0 0.0
    %1996 = vmatprep.subr.mxu0 0.0
    %1997 = vmatpush1.xpose.msra.mxu0 0.0
    %1998 = vmatprep.subr.mxu0 0.0
    %1999 = vmatpush1.xpose.msra.mxu0 0.0
    %2000 = vmatprep.subr.mxu0 0.0
    %2001 = vmatpush1.xpose.msra.mxu0 0.0
    %2002 = vmatprep.subr.mxu0 0.0
    %2003 = vmatpush1.xpose.msra.mxu0 0.0
    %2004 = vmatprep.subr.mxu0 0.0
    %2005 = vmatpush1.xpose.msra.mxu0 0.0
    %2006 = vmatprep.subr.mxu0 0.0
    %2007 = vmatpush1.xpose.msra.mxu0 0.0
    %2008 = vmatprep.subr.mxu0 0.0
    %2009 = vmatpush1.xpose.msra.mxu0 0.0
    %2010 = vmatprep.subr.mxu0 0.0
    %2011 = vmatpush1.xpose.msra.mxu0 0.0
    %2012 = vmatprep.subr.mxu0 0.0
    %2013 = vmatpush1.xpose.msra.mxu0 0.0
    %2014 = vmatprep.subr.mxu0 0.0
    %2015 = vmatpush1.xpose.msra.mxu0 0.0
    %2016 = vmatprep.subr.mxu0 0.0
    %2017 = vmatpush1.xpose.msra.mxu0 0.0
    %2018 = vmatprep.subr.mxu0 0.0
    %2019 = vmatpush1.xpose.msra.mxu0 0.0
    %2020 = vmatprep.subr.mxu0 0.0
    %2021 = vmatpush1.xpose.msra.mxu0 0.0
    %2022 = vmatprep.subr.mxu0 0.0
    %2023 = vmatpush1.xpose.msra.mxu0 0.0
    %2024 = vmatprep.subr.mxu0 0.0
    %2025 = vmatpush1.xpose.msra.mxu0 0.0
    %2026 = vmatprep.subr.mxu0 0.0
    %2027 = vmatpush1.xpose.msra.mxu0 0.0
    %2028 = vmatprep.subr.mxu0 0.0
    %2029 = vmatpush1.xpose.msra.mxu0 0.0
    %2030 = vmatprep.subr.mxu0 0.0
    %2031 = vmatpush1.xpose.msra.mxu0 0.0
    %2032 = vmatprep.subr.mxu0 0.0
    %2033 = vmatpush1.xpose.msra.mxu0 0.0
    %2034 = vmatprep.mubr.f32.mxu0 0.0
    %2035 = vmatmul.mubr.f32.gmra.mrb[0].mxu0 %v1959
    %v2036 = vpop.f32.mrb[0].mxu0
    %v2037 = vadd.f32 %v77, %v2036
    %v2038 = vpop.f32.mrb[0].mxu0
    %2039 = vmatprep.mubr.f32.mxu0 0.0
    %2040 = vmatmul.mubr.f32.gmra.mrb[0].mxu0 %v1962
    %v2041 = vpop.f32.mrb[0].mxu0
    %v2042 = vadd.f32 %v78, %v2041
    %v2043 = vpop.f32.mrb[0].mxu0
    %2044 = vdwg.mxu0
    %v2045 = vsel %vm432, %v2037, -inf
    %2046 = vmax.xlane.f32.xlu0 %v2045
    %v2047 = vpop.xlane.xlu0 %2046
    %v2048 = vsel %vm432, %v2042, -inf
    %2049 = vmax.xlane.f32.xlu0 %v2048
    %v2050 = vpop.xlane.xlu0 %2049
    %v2051 = vsub.f32 %v2037, %v2047
    %v2052 = vsub.f32 %v2042, %v2050
    %v2053 = vmul.f32 %v2051, 1.442695
    %v2054 = vpow.pop %v2053
    %v2055 = vmul.f32 %v2052, 1.442695
    %v2056 = vpow.pop %v2055
    %v2057 = vsel %vm432, %v2054, 0.0
    %2058 = vadd.xlane.f32.xlu0 %v2057
    %v2059 = vpop.xlane.xlu0 %2058
    %v2060 = vsel %vm432, %v2056, 0.0
    %2061 = vadd.xlane.f32.xlu0 %v2060
    %v2062 = vpop.xlane.xlu0 %2061
    %v2063 = vrcp.pop %v2059
    %v2064 = vrcp.pop %v2062
    %v2065 = vmul.f32 %v2054, %v2063
    %v2066 = vmul.f32 %v2056, %v2064
    %v2068 = vsel %vm432, %v2065, 0
    %v2071 = vsel %vm432, %v2066, 0
    %2073 = vmatprep.subr.mxu0 0.0
    %2074 = vmatpush1.msra.mxu0 %v1950
    %2075 = vmatprep.subr.mxu0 0.0
    %2076 = vmatpush1.msra.mxu0 %v1955
    %2077 = vmatprep.subr.mxu0 0.0
    %2078 = vmatpush1.msra.mxu0 0.0
    %2079 = vmatprep.subr.mxu0 0.0
    %2080 = vmatpush1.msra.mxu0 0.0
    %2081 = vmatprep.subr.mxu0 0.0
    %2082 = vmatpush1.msra.mxu0 0.0
    %2083 = vmatprep.subr.mxu0 0.0
    %2084 = vmatpush1.msra.mxu0 0.0
    %2085 = vmatprep.subr.mxu0 0.0
    %2086 = vmatpush1.msra.mxu0 0.0
    %2087 = vmatprep.subr.mxu0 0.0
    %2088 = vmatpush1.msra.mxu0 0.0
    %2089 = vmatprep.subr.mxu0 0.0
    %2090 = vmatpush1.msra.mxu0 0.0
    %2091 = vmatprep.subr.mxu0 0.0
    %2092 = vmatpush1.msra.mxu0 0.0
    %2093 = vmatprep.subr.mxu0 0.0
    %2094 = vmatpush1.msra.mxu0 0.0
    %2095 = vmatprep.subr.mxu0 0.0
    %2096 = vmatpush1.msra.mxu0 0.0
    %2097 = vmatprep.subr.mxu0 0.0
    %2098 = vmatpush1.msra.mxu0 0.0
    %2099 = vmatprep.subr.mxu0 0.0
    %2100 = vmatpush1.msra.mxu0 0.0
    %2101 = vmatprep.subr.mxu0 0.0
    %2102 = vmatpush1.msra.mxu0 0.0
    %2103 = vmatprep.subr.mxu0 0.0
    %2104 = vmatpush1.msra.mxu0 0.0
    %2105 = vmatprep.subr.mxu0 0.0
    %2106 = vmatpush1.msra.mxu0 0.0
    %2107 = vmatprep.subr.mxu0 0.0
    %2108 = vmatpush1.msra.mxu0 0.0
    %2109 = vmatprep.subr.mxu0 0.0
    %2110 = vmatpush1.msra.mxu0 0.0
    %2111 = vmatprep.subr.mxu0 0.0
    %2112 = vmatpush1.msra.mxu0 0.0
    %2113 = vmatprep.subr.mxu0 0.0
    %2114 = vmatpush1.msra.mxu0 0.0
    %2115 = vmatprep.subr.mxu0 0.0
    %2116 = vmatpush1.msra.mxu0 0.0
    %2117 = vmatprep.subr.mxu0 0.0
    %2118 = vmatpush1.msra.mxu0 0.0
    %2119 = vmatprep.subr.mxu0 0.0
    %2120 = vmatpush1.msra.mxu0 0.0
    %2121 = vmatprep.subr.mxu0 0.0
    %2122 = vmatpush1.msra.mxu0 0.0
    %2123 = vmatprep.subr.mxu0 0.0
    %2124 = vmatpush1.msra.mxu0 0.0
    %2125 = vmatprep.subr.mxu0 0.0
    %2126 = vmatpush1.msra.mxu0 0.0
    %2127 = vmatprep.subr.mxu0 0.0
    %2128 = vmatpush1.msra.mxu0 0.0
    %2129 = vmatprep.subr.mxu0 0.0
    %2130 = vmatpush1.msra.mxu0 0.0
    %2131 = vmatprep.subr.mxu0 0.0
    %2132 = vmatpush1.msra.mxu0 0.0
    %2133 = vmatprep.subr.mxu0 0.0
    %2134 = vmatpush1.msra.mxu0 0.0
    %2135 = vmatprep.subr.mxu0 0.0
    %2136 = vmatpush1.msra.mxu0 0.0
    %2137 = vmatprep.mubr.f32.mxu0 0.0
    %2138 = vmatmul.mubr.f32.gmra.mrb[0].mxu0 %v2068
    %v2139 = vpop.f32.mrb[0].mxu0
    %v2140 = vadd.f32 0.0, %v2139
    %v2141 = vpop.f32.mrb[0].mxu0
    %2142 = vmatprep.mubr.f32.mxu0 0.0
    %2143 = vmatmul.mubr.f32.gmra.mrb[0].mxu0 %v2071
    %v2144 = vpop.f32.mrb[0].mxu0
    %v2145 = vadd.f32 0.0, %v2144
    %v2146 = vpop.f32.mrb[0].mxu0
    %2147 = vdwg.mxu0
    %s2148 = scalar_lea.vmem %s8, 24
    %v2149 = vld [vmem:[%s2148] sm:$0xff]
    %v2151 = vsel %vm344, %v2140, 0
    %v2154 = vsel %vm344, %v2145, 0
    %2156 = vmatprep.subr.mxu0 0.0
    %2157 = vmatpush1.msra.mxu0 %v2149
    %2158 = vmatprep.subr.mxu0 0.0
    %2159 = vmatpush1.msra.mxu0 0.0
    %2160 = vmatprep.subr.mxu0 0.0
    %2161 = vmatpush1.msra.mxu0 0.0
    %2162 = vmatprep.subr.mxu0 0.0
    %2163 = vmatpush1.msra.mxu0 0.0
    %2164 = vmatprep.subr.mxu0 0.0
    %2165 = vmatpush1.msra.mxu0 0.0
    %2166 = vmatprep.subr.mxu0 0.0
    %2167 = vmatpush1.msra.mxu0 0.0
    %2168 = vmatprep.subr.mxu0 0.0
    %2169 = vmatpush1.msra.mxu0 0.0
    %2170 = vmatprep.subr.mxu0 0.0
    %2171 = vmatpush1.msra.mxu0 0.0
    %2172 = vmatprep.subr.mxu0 0.0
    %2173 = vmatpush1.msra.mxu0 0.0
    %2174 = vmatprep.subr.mxu0 0.0
    %2175 = vmatpush1.msra.mxu0 0.0
    %2176 = vmatprep.subr.mxu0 0.0
    %2177 = vmatpush1.msra.mxu0 0.0
    %2178 = vmatprep.subr.mxu0 0.0
    %2179 = vmatpush1.msra.mxu0 0.0
    %2180 = vmatprep.subr.mxu0 0.0
    %2181 = vmatpush1.msra.mxu0 0.0
    %2182 = vmatprep.subr.mxu0 0.0
    %2183 = vmatpush1.msra.mxu0 0.0
    %2184 = vmatprep.subr.mxu0 0.0
    %2185 = vmatpush1.msra.mxu0 0.0
    %2186 = vmatprep.subr.mxu0 0.0
    %2187 = vmatpush1.msra.mxu0 0.0
    %2188 = vmatprep.subr.mxu0 0.0
    %2189 = vmatpush1.msra.mxu0 0.0
    %2190 = vmatprep.subr.mxu0 0.0
    %2191 = vmatpush1.msra.mxu0 0.0
    %2192 = vmatprep.subr.mxu0 0.0
    %2193 = vmatpush1.msra.mxu0 0.0
    %2194 = vmatprep.subr.mxu0 0.0
    %2195 = vmatpush1.msra.mxu0 0.0
    %2196 = vmatprep.subr.mxu0 0.0
    %2197 = vmatpush1.msra.mxu0 0.0
    %2198 = vmatprep.subr.mxu0 0.0
    %2199 = vmatpush1.msra.mxu0 0.0
    %2200 = vmatprep.subr.mxu0 0.0
    %2201 = vmatpush1.msra.mxu0 0.0
    %2202 = vmatprep.subr.mxu0 0.0
    %2203 = vmatpush1.msra.mxu0 0.0
    %2204 = vmatprep.subr.mxu0 0.0
    %2205 = vmatpush1.msra.mxu0 0.0
    %2206 = vmatprep.subr.mxu0 0.0
    %2207 = vmatpush1.msra.mxu0 0.0
    %2208 = vmatprep.subr.mxu0 0.0
    %2209 = vmatpush1.msra.mxu0 0.0
    %2210 = vmatprep.subr.mxu0 0.0
    %2211 = vmatpush1.msra.mxu0 0.0
    %2212 = vmatprep.subr.mxu0 0.0
    %2213 = vmatpush1.msra.mxu0 0.0
    %2214 = vmatprep.subr.mxu0 0.0
    %2215 = vmatpush1.msra.mxu0 0.0
    %2216 = vmatprep.subr.mxu0 0.0
    %2217 = vmatpush1.msra.mxu0 0.0
    %2218 = vmatprep.subr.mxu0 0.0
    %2219 = vmatpush1.msra.mxu0 0.0
    %2220 = vmatprep.mubr.f32.mxu0 0.0
    %2221 = vmatmul.mubr.f32.gmra.mrb[0].mxu0 %v2151
    %v2222 = vpop.f32.mrb[0].mxu0
    %v2223 = vadd.f32 0.0, %v2222
    %v2224 = vpop.f32.mrb[0].mxu0
    %2225 = vmatprep.mubr.f32.mxu0 0.0
    %2226 = vmatmul.mubr.f32.gmra.mrb[0].mxu0 %v2154
    %v2227 = vpop.f32.mrb[0].mxu0
    %v2228 = vadd.f32 0.0, %v2227
    %v2229 = vpop.f32.mrb[0].mxu0
    %2230 = vdwg.mxu0
    %v2231 = vadd.f32 %v1692, %v2223
    %v2232 = vadd.f32 %v1693, %v2228
    %v2233 = vld [vmem:[%s9] sm:$0x1]
    %v2235 = vlaneseq
    %v2236 = vshrl.u32 %v2235, 7
    %v2237 = vsub.s32 0, %v2236
    %v2238 = vrot.slane %v2233, %v2237
    %v2240 = vadd.f32 %v2231, %v2238
    %v2241 = vadd.f32 %v2232, %v2238
    %v2242 = vadd.f32 %v75, %v2240
    %v2243 = vadd.f32 %v76, %v2241
    %v2244 = vld [vmem:[%s14] sm:$0x1]
    %v2245 = vld [vmem:[%s15] sm:$0x1]
    %v2246 = vsel %vm90, %v2242, 0.0
    %2247 = vadd.xlane.f32.xlu0 %v2246
    %v2248 = vpop.xlane.xlu0 %2247
    %v2249 = vsel %vm90, %v2243, 0.0
    %2250 = vadd.xlane.f32.xlu0 %v2249
    %v2251 = vpop.xlane.xlu0 %2250
    %v2252 = vrcp.pop 32.0
    %v2253 = vmul.f32 %v2248, %v2252
    %v2254 = vmul.f32 %v2251, %v2252
    %v2255 = vsub.f32 %v2242, %v2253
    %v2256 = vsub.f32 %v2243, %v2254
    %v2257 = vmul.f32 %v2255, %v2255
    %v2258 = vmul.f32 %v2256, %v2256
    %v2259 = vsel %vm90, %v2257, 0.0
    %2260 = vadd.xlane.f32.xlu0 %v2259
    %v2261 = vpop.xlane.xlu0 %2260
    %v2262 = vsel %vm90, %v2258, 0.0
    %2263 = vadd.xlane.f32.xlu0 %v2262
    %v2264 = vpop.xlane.xlu0 %2263
    %v2265 = vmul.f32 %v2261, %v2252
    %v2266 = vmul.f32 %v2264, %v2252
    %v2267 = vadd.f32 %v2265, 1e-05
    %v2268 = vadd.f32 %v2266, 1e-05
    %v2269 = vrsqrt.pop %v2267
    %v2270 = vrsqrt.pop %v2268
    %v2271 = vmul.f32 %v2255, %v2269
    %v2272 = vmul.f32 %v2256, %v2270
    %v2274 = vlaneseq
    %v2275 = vshrl.u32 %v2274, 7
    %v2276 = vsub.s32 0, %v2275
    %v2277 = vrot.slane %v2244, %v2276
    %v2279 = vmul.f32 %v2271, %v2277
    %v2280 = vmul.f32 %v2272, %v2277
    %v2282 = vlaneseq
    %v2283 = vshrl.u32 %v2282, 7
    %v2284 = vsub.s32 0, %v2283
    %v2285 = vrot.slane %v2245, %v2284
    %v2287 = vadd.f32 %v2279, %v2285
    %v2288 = vadd.f32 %v2280, %v2285
    %v2289 = vpack.c.bf16 %v2288, %v2287
    %v2290 = vld [vmem:[%s10] sm:$0xff]
    %v2291 = vld [vmem:[%s10 + $0x8] sm:$0xff]
    %v2292 = vld [vmem:[%s10 + $0x10] sm:$0xff]
    %v2293 = vld [vmem:[%s10 + $0x18] sm:$0xff]
    %v2294 = vld [vmem:[%s10 + $0x20] sm:$0xff]
    %v2295 = vld [vmem:[%s10 + $0x28] sm:$0xff]
    %v2296 = vld [vmem:[%s10 + $0x30] sm:$0xff]
    %v2297 = vld [vmem:[%s10 + $0x38] sm:$0xff]
    %v2298 = vld [vmem:[%s10 + $0x40] sm:$0xff]
    %v2299 = vld [vmem:[%s10 + $0x48] sm:$0xff]
    %v2300 = vld [vmem:[%s10 + $0x50] sm:$0xff]
    %v2301 = vld [vmem:[%s10 + $0x58] sm:$0xff]
    %v2302 = vld [vmem:[%s10 + $0x60] sm:$0xff]
    %v2303 = vld [vmem:[%s10 + $0x68] sm:$0xff]
    %v2304 = vld [vmem:[%s10 + $0x70] sm:$0xff]
    %v2305 = vld [vmem:[%s10 + $0x78] sm:$0xff]
    %v2306 = vld [vmem:[%s10 + $0x80] sm:$0xff]
    %v2307 = vld [vmem:[%s10 + $0x88] sm:$0xff]
    %v2308 = vld [vmem:[%s10 + $0x90] sm:$0xff]
    %v2309 = vld [vmem:[%s10 + $0x98] sm:$0xff]
    %v2310 = vld [vmem:[%s10 + $0xa0] sm:$0xff]
    %v2311 = vld [vmem:[%s10 + $0xa8] sm:$0xff]
    %v2312 = vld [vmem:[%s10 + $0xb0] sm:$0xff]
    %v2313 = vld [vmem:[%s10 + $0xb8] sm:$0xff]
    %v2314 = vld [vmem:[%s10 + $0xc0] sm:$0xff]
    %v2315 = vld [vmem:[%s10 + $0xc8] sm:$0xff]
    %v2316 = vld [vmem:[%s10 + $0xd0] sm:$0xff]
    %v2317 = vld [vmem:[%s10 + $0xd8] sm:$0xff]
    %v2318 = vld [vmem:[%s10 + $0xe0] sm:$0xff]
    %v2319 = vld [vmem:[%s10 + $0xe8] sm:$0xff]
    %v2320 = vld [vmem:[%s10 + $0xf0] sm:$0xff]
    %v2321 = vld [vmem:[%s10 + $0xf8] sm:$0xff]
    %v2322 = vld [vmem:[%s11] sm:$0xff]
    %v2323 = vld [vmem:[%s11 + $0x8] sm:$0xff]
    %v2326 = vlaneseq
    %v2327 = vshrl.u32 %v2326, 7
    %v2328 = vsub.s32 0, %v2327
    %v2329 = vrot.slane %v2322, %v2328
    %v2330 = vlaneseq
    %v2331 = vshrl.u32 %v2330, 7
    %v2332 = vsub.s32 1, %v2331
    %v2333 = vrot.slane %v2322, %v2332
    %v2334 = vlaneseq
    %v2335 = vshrl.u32 %v2334, 7
    %v2336 = vsub.s32 2, %v2335
    %v2337 = vrot.slane %v2322, %v2336
    %v2338 = vlaneseq
    %v2339 = vshrl.u32 %v2338, 7
    %v2340 = vsub.s32 3, %v2339
    %v2341 = vrot.slane %v2322, %v2340
    %v2342 = vlaneseq
    %v2343 = vshrl.u32 %v2342, 7
    %v2344 = vsub.s32 4, %v2343
    %v2345 = vrot.slane %v2322, %v2344
    %v2346 = vlaneseq
    %v2347 = vshrl.u32 %v2346, 7
    %v2348 = vsub.s32 5, %v2347
    %v2349 = vrot.slane %v2322, %v2348
    %v2350 = vlaneseq
    %v2351 = vshrl.u32 %v2350, 7
    %v2352 = vsub.s32 6, %v2351
    %v2353 = vrot.slane %v2322, %v2352
    %v2354 = vlaneseq
    %v2355 = vshrl.u32 %v2354, 7
    %v2356 = vsub.s32 7, %v2355
    %v2357 = vrot.slane %v2322, %v2356
    %v2358 = vlaneseq
    %v2359 = vshrl.u32 %v2358, 7
    %v2360 = vsub.s32 0, %v2359
    %v2361 = vrot.slane %v2323, %v2360
    %v2362 = vlaneseq
    %v2363 = vshrl.u32 %v2362, 7
    %v2364 = vsub.s32 1, %v2363
    %v2365 = vrot.slane %v2323, %v2364
    %v2366 = vlaneseq
    %v2367 = vshrl.u32 %v2366, 7
    %v2368 = vsub.s32 2, %v2367
    %v2369 = vrot.slane %v2323, %v2368
    %v2370 = vlaneseq
    %v2371 = vshrl.u32 %v2370, 7
    %v2372 = vsub.s32 3, %v2371
    %v2373 = vrot.slane %v2323, %v2372
    %v2374 = vlaneseq
    %v2375 = vshrl.u32 %v2374, 7
    %v2376 = vsub.s32 4, %v2375
    %v2377 = vrot.slane %v2323, %v2376
    %v2378 = vlaneseq
    %v2379 = vshrl.u32 %v2378, 7
    %v2380 = vsub.s32 5, %v2379
    %v2381 = vrot.slane %v2323, %v2380
    %v2382 = vlaneseq
    %v2383 = vshrl.u32 %v2382, 7
    %v2384 = vsub.s32 6, %v2383
    %v2385 = vrot.slane %v2323, %v2384
    %v2386 = vlaneseq
    %v2387 = vshrl.u32 %v2386, 7
    %v2388 = vsub.s32 7, %v2387
    %v2389 = vrot.slane %v2323, %v2388
    %v2438 = vunpack.c.l.b16 %v2290
    %v2439 = vunpack.c.h.b16 %v2290
    %v2440 = vunpack.c.l.b16 %v2291
    %v2441 = vunpack.c.h.b16 %v2291
    %v2442 = vunpack.c.l.b16 %v2292
    %v2443 = vunpack.c.h.b16 %v2292
    %v2444 = vunpack.c.l.b16 %v2293
    %v2445 = vunpack.c.h.b16 %v2293
    %v2446 = vunpack.c.l.b16 %v2294
    %v2447 = vunpack.c.h.b16 %v2294
    %v2448 = vunpack.c.l.b16 %v2295
    %v2449 = vunpack.c.h.b16 %v2295
    %v2450 = vunpack.c.l.b16 %v2296
    %v2451 = vunpack.c.h.b16 %v2296
    %v2452 = vunpack.c.l.b16 %v2297
    %v2453 = vunpack.c.h.b16 %v2297
    %v2454 = vunpack.c.l.b16 %v2298
    %v2455 = vunpack.c.h.b16 %v2298
    %v2456 = vunpack.c.l.b16 %v2299
    %v2457 = vunpack.c.h.b16 %v2299
    %v2458 = vunpack.c.l.b16 %v2300
    %v2459 = vunpack.c.h.b16 %v2300
    %v2460 = vunpack.c.l.b16 %v2301
    %v2461 = vunpack.c.h.b16 %v2301
    %v2462 = vunpack.c.l.b16 %v2302
    %v2463 = vunpack.c.h.b16 %v2302
    %v2464 = vunpack.c.l.b16 %v2303
    %v2465 = vunpack.c.h.b16 %v2303
    %v2466 = vunpack.c.l.b16 %v2304
    %v2467 = vunpack.c.h.b16 %v2304
    %v2468 = vunpack.c.l.b16 %v2305
    %v2469 = vunpack.c.h.b16 %v2305
    %v2470 = vunpack.c.l.b16 %v2306
    %v2471 = vunpack.c.h.b16 %v2306
    %v2472 = vunpack.c.l.b16 %v2307
    %v2473 = vunpack.c.h.b16 %v2307
    %v2474 = vunpack.c.l.b16 %v2308
    %v2475 = vunpack.c.h.b16 %v2308
    %v2476 = vunpack.c.l.b16 %v2309
    %v2477 = vunpack.c.h.b16 %v2309
    %v2478 = vunpack.c.l.b16 %v2310
    %v2479 = vunpack.c.h.b16 %v2310
    %v2480 = vunpack.c.l.b16 %v2311
    %v2481 = vunpack.c.h.b16 %v2311
    %v2482 = vunpack.c.l.b16 %v2312
    %v2483 = vunpack.c.h.b16 %v2312
    %v2484 = vunpack.c.l.b16 %v2313
    %v2485 = vunpack.c.h.b16 %v2313
    %v2486 = vunpack.c.l.b16 %v2314
    %v2487 = vunpack.c.h.b16 %v2314
    %v2488 = vunpack.c.l.b16 %v2315
    %v2489 = vunpack.c.h.b16 %v2315
    %v2490 = vunpack.c.l.b16 %v2316
    %v2491 = vunpack.c.h.b16 %v2316
    %v2492 = vunpack.c.l.b16 %v2317
    %v2493 = vunpack.c.h.b16 %v2317
    %v2494 = vunpack.c.l.b16 %v2318
    %v2495 = vunpack.c.h.b16 %v2318
    %v2496 = vunpack.c.l.b16 %v2319
    %v2497 = vunpack.c.h.b16 %v2319
    %v2498 = vunpack.c.l.b16 %v2320
    %v2499 = vunpack.c.h.b16 %v2320
    %v2500 = vunpack.c.l.b16 %v2321
    %v2501 = vunpack.c.h.b16 %v2321
    %v2502 = vpack.c.b16 %v2454, %v2438
    %v2503 = vpack.c.b16 %v2455, %v2439
    %v2504 = vpack.c.b16 %v2456, %v2440
    %v2505 = vpack.c.b16 %v2457, %v2441
    %v2506 = vpack.c.b16 %v2458, %v2442
    %v2507 = vpack.c.b16 %v2459, %v2443
    %v2508 = vpack.c.b16 %v2460, %v2444
    %v2509 = vpack.c.b16 %v2461, %v2445
    %v2510 = vpack.c.b16 %v2462, %v2446
    %v2511 = vpack.c.b16 %v2463, %v2447
    %v2512 = vpack.c.b16 %v2464, %v2448
    %v2513 = vpack.c.b16 %v2465, %v2449
    %v2514 = vpack.c.b16 %v2466, %v2450
    %v2515 = vpack.c.b16 %v2467, %v2451
    %v2516 = vpack.c.b16 %v2468, %v2452
    %v2517 = vpack.c.b16 %v2469, %v2453
    %v2518 = vpack.c.b16 %v2486, %v2470
    %v2519 = vpack.c.b16 %v2487, %v2471
    %v2520 = vpack.c.b16 %v2488, %v2472
    %v2521 = vpack.c.b16 %v2489, %v2473
    %v2522 = vpack.c.b16 %v2490, %v2474
    %v2523 = vpack.c.b16 %v2491, %v2475
    %v2524 = vpack.c.b16 %v2492, %v2476
    %v2525 = vpack.c.b16 %v2493, %v2477
    %v2526 = vpack.c.b16 %v2494, %v2478
    %v2527 = vpack.c.b16 %v2495, %v2479
    %v2528 = vpack.c.b16 %v2496, %v2480
    %v2529 = vpack.c.b16 %v2497, %v2481
    %v2530 = vpack.c.b16 %v2498, %v2482
    %v2531 = vpack.c.b16 %v2499, %v2483
    %v2532 = vpack.c.b16 %v2500, %v2484
    %v2533 = vpack.c.b16 %v2501, %v2485
    %v2567 = vsel %vm90, %v2289, 0
    %2569 = vmatprep.subr.bf16.mxu0 %v2503
    %2570 = vmatpush1.bf16.msra.mxu0 %v2502
    %2571 = vmatprep.subr.bf16.mxu0 %v2519
    %2572 = vmatpush1.bf16.msra.mxu0 %v2518
    %2573 = vmatprep.subr.bf16.mxu0 0
    %2574 = vmatpush1.bf16.msra.mxu0 0
    %2575 = vmatprep.subr.bf16.mxu0 0
    %2576 = vmatpush1.bf16.msra.mxu0 0
    %2577 = vmatprep.subr.bf16.mxu0 0
    %2578 = vmatpush1.bf16.msra.mxu0 0
    %2579 = vmatprep.subr.bf16.mxu0 0
    %2580 = vmatpush1.bf16.msra.mxu0 0
    %2581 = vmatprep.subr.bf16.mxu0 0
    %2582 = vmatpush1.bf16.msra.mxu0 0
    %2583 = vmatprep.subr.bf16.mxu0 0
    %2584 = vmatpush1.bf16.msra.mxu0 0
    %2585 = vmatprep.subr.bf16.mxu0 0
    %2586 = vmatpush1.bf16.msra.mxu0 0
    %2587 = vmatprep.subr.bf16.mxu0 0
    %2588 = vmatpush1.bf16.msra.mxu0 0
    %2589 = vmatprep.subr.bf16.mxu0 0
    %2590 = vmatpush1.bf16.msra.mxu0 0
    %2591 = vmatprep.subr.bf16.mxu0 0
    %2592 = vmatpush1.bf16.msra.mxu0 0
    %2593 = vmatprep.subr.bf16.mxu0 0
    %2594 = vmatpush1.bf16.msra.mxu0 0
    %2595 = vmatprep.subr.bf16.mxu0 0
    %2596 = vmatpush1.bf16.msra.mxu0 0
    %2597 = vmatprep.subr.bf16.mxu0 0
    %2598 = vmatpush1.bf16.msra.mxu0 0
    %2599 = vmatprep.subr.bf16.mxu0 0
    %2600 = vmatpush1.bf16.msra.mxu0 0
    %2601 = vmatprep.mubr.bf16.mxu0 0
    %2602 = vmatmul.mubr.bf16.gmra.mrb[0].mxu0 %v2567
    %v2603 = vpop.f32.mrb[0].mxu0
    %v2604 = vadd.f32 %v2329, %v2603
    %v2605 = vpop.f32.mrb[0].mxu0
    %v2606 = vadd.f32 %v2333, %v2605
    %v2607 = vpop.f32.mrb[0].mxu0
    %v2608 = vadd.f32 %v2329, %v2607
    %v2609 = vpop.f32.mrb[0].mxu0
    %v2610 = vadd.f32 %v2333, %v2609
    %2611 = vdwg.mxu0
    %2612 = vmatprep.subr.bf16.mxu0 %v2505
    %2613 = vmatpush1.bf16.msra.mxu0 %v2504
    %2614 = vmatprep.subr.bf16.mxu0 %v2521
    %2615 = vmatpush1.bf16.msra.mxu0 %v2520
    %2616 = vmatprep.subr.bf16.mxu0 0
    %2617 = vmatpush1.bf16.msra.mxu0 0
    %2618 = vmatprep.subr.bf16.mxu0 0
    %2619 = vmatpush1.bf16.msra.mxu0 0
    %2620 = vmatprep.subr.bf16.mxu0 0
    %2621 = vmatpush1.bf16.msra.mxu0 0
    %2622 = vmatprep.subr.bf16.mxu0 0
    %2623 = vmatpush1.bf16.msra.mxu0 0
    %2624 = vmatprep.subr.bf16.mxu0 0
    %2625 = vmatpush1.bf16.msra.mxu0 0
    %2626 = vmatprep.subr.bf16.mxu0 0
    %2627 = vmatpush1.bf16.msra.mxu0 0
    %2628 = vmatprep.subr.bf16.mxu0 0
    %2629 = vmatpush1.bf16.msra.mxu0 0
    %2630 = vmatprep.subr.bf16.mxu0 0
    %2631 = vmatpush1.bf16.msra.mxu0 0
    %2632 = vmatprep.subr.bf16.mxu0 0
    %2633 = vmatpush1.bf16.msra.mxu0 0
    %2634 = vmatprep.subr.bf16.mxu0 0
    %2635 = vmatpush1.bf16.msra.mxu0 0
    %2636 = vmatprep.subr.bf16.mxu0 0
    %2637 = vmatpush1.bf16.msra.mxu0 0
    %2638 = vmatprep.subr.bf16.mxu0 0
    %2639 = vmatpush1.bf16.msra.mxu0 0
    %2640 = vmatprep.subr.bf16.mxu0 0
    %2641 = vmatpush1.bf16.msra.mxu0 0
    %2642 = vmatprep.subr.bf16.mxu0 0
    %2643 = vmatpush1.bf16.msra.mxu0 0
    %2644 = vmatprep.mubr.bf16.mxu0 0
    %2645 = vmatmul.mubr.bf16.gmra.mrb[0].mxu0 %v2567
    %v2646 = vpop.f32.mrb[0].mxu0
    %v2647 = vadd.f32 %v2337, %v2646
    %v2648 = vpop.f32.mrb[0].mxu0
    %v2649 = vadd.f32 %v2341, %v2648
    %v2650 = vpop.f32.mrb[0].mxu0
    %v2651 = vadd.f32 %v2337, %v2650
    %v2652 = vpop.f32.mrb[0].mxu0
    %v2653 = vadd.f32 %v2341, %v2652
    %2654 = vdwg.mxu0
    %2655 = vmatprep.subr.bf16.mxu0 %v2507
    %2656 = vmatpush1.bf16.msra.mxu0 %v2506
    %2657 = vmatprep.subr.bf16.mxu0 %v2523
    %2658 = vmatpush1.bf16.msra.mxu0 %v2522
    %2659 = vmatprep.subr.bf16.mxu0 0
    %2660 = vmatpush1.bf16.msra.mxu0 0
    %2661 = vmatprep.subr.bf16.mxu0 0
    %2662 = vmatpush1.bf16.msra.mxu0 0
    %2663 = vmatprep.subr.bf16.mxu0 0
    %2664 = vmatpush1.bf16.msra.mxu0 0
    %2665 = vmatprep.subr.bf16.mxu0 0
    %2666 = vmatpush1.bf16.msra.mxu0 0
    %2667 = vmatprep.subr.bf16.mxu0 0
    %2668 = vmatpush1.bf16.msra.mxu0 0
    %2669 = vmatprep.subr.bf16.mxu0 0
    %2670 = vmatpush1.bf16.msra.mxu0 0
    %2671 = vmatprep.subr.bf16.mxu0 0
    %2672 = vmatpush1.bf16.msra.mxu0 0
    %2673 = vmatprep.subr.bf16.mxu0 0
    %2674 = vmatpush1.bf16.msra.mxu0 0
    %2675 = vmatprep.subr.bf16.mxu0 0
    %2676 = vmatpush1.bf16.msra.mxu0 0
    %2677 = vmatprep.subr.bf16.mxu0 0
    %2678 = vmatpush1.bf16.msra.mxu0 0
    %2679 = vmatprep.subr.bf16.mxu0 0
    %2680 = vmatpush1.bf16.msra.mxu0 0
    %2681 = vmatprep.subr.bf16.mxu0 0
    %2682 = vmatpush1.bf16.msra.mxu0 0
    %2683 = vmatprep.subr.bf16.mxu0 0
    %2684 = vmatpush1.bf16.msra.mxu0 0
    %2685 = vmatprep.subr.bf16.mxu0 0
    %2686 = vmatpush1.bf16.msra.mxu0 0
    %2687 = vmatprep.mubr.bf16.mxu0 0
    %2688 = vmatmul.mubr.bf16.gmra.mrb[0].mxu0 %v2567
    %v2689 = vpop.f32.mrb[0].mxu0
    %v2690 = vadd.f32 %v2345, %v2689
    %v2691 = vpop.f32.mrb[0].mxu0
    %v2692 = vadd.f32 %v2349, %v2691
    %v2693 = vpop.f32.mrb[0].mxu0
    %v2694 = vadd.f32 %v2345, %v2693
    %v2695 = vpop.f32.mrb[0].mxu0
    %v2696 = vadd.f32 %v2349, %v2695
    %2697 = vdwg.mxu0
    %2698 = vmatprep.subr.bf16.mxu0 %v2509
    %2699 = vmatpush1.bf16.msra.mxu0 %v2508
    %2700 = vmatprep.subr.bf16.mxu0 %v2525
    %2701 = vmatpush1.bf16.msra.mxu0 %v2524
    %2702 = vmatprep.subr.bf16.mxu0 0
    %2703 = vmatpush1.bf16.msra.mxu0 0
    %2704 = vmatprep.subr.bf16.mxu0 0
    %2705 = vmatpush1.bf16.msra.mxu0 0
    %2706 = vmatprep.subr.bf16.mxu0 0
    %2707 = vmatpush1.bf16.msra.mxu0 0
    %2708 = vmatprep.subr.bf16.mxu0 0
    %2709 = vmatpush1.bf16.msra.mxu0 0
    %2710 = vmatprep.subr.bf16.mxu0 0
    %2711 = vmatpush1.bf16.msra.mxu0 0
    %2712 = vmatprep.subr.bf16.mxu0 0
    %2713 = vmatpush1.bf16.msra.mxu0 0
    %2714 = vmatprep.subr.bf16.mxu0 0
    %2715 = vmatpush1.bf16.msra.mxu0 0
    %2716 = vmatprep.subr.bf16.mxu0 0
    %2717 = vmatpush1.bf16.msra.mxu0 0
    %2718 = vmatprep.subr.bf16.mxu0 0
    %2719 = vmatpush1.bf16.msra.mxu0 0
    %2720 = vmatprep.subr.bf16.mxu0 0
    %2721 = vmatpush1.bf16.msra.mxu0 0
    %2722 = vmatprep.subr.bf16.mxu0 0
    %2723 = vmatpush1.bf16.msra.mxu0 0
    %2724 = vmatprep.subr.bf16.mxu0 0
    %2725 = vmatpush1.bf16.msra.mxu0 0
    %2726 = vmatprep.subr.bf16.mxu0 0
    %2727 = vmatpush1.bf16.msra.mxu0 0
    %2728 = vmatprep.subr.bf16.mxu0 0
    %2729 = vmatpush1.bf16.msra.mxu0 0
    %2730 = vmatprep.mubr.bf16.mxu0 0
    %2731 = vmatmul.mubr.bf16.gmra.mrb[0].mxu0 %v2567
    %v2732 = vpop.f32.mrb[0].mxu0
    %v2733 = vadd.f32 %v2353, %v2732
    %v2734 = vpop.f32.mrb[0].mxu0
    %v2735 = vadd.f32 %v2357, %v2734
    %v2736 = vpop.f32.mrb[0].mxu0
    %v2737 = vadd.f32 %v2353, %v2736
    %v2738 = vpop.f32.mrb[0].mxu0
    %v2739 = vadd.f32 %v2357, %v2738
    %2740 = vdwg.mxu0
    %2741 = vmatprep.subr.bf16.mxu0 %v2511
    %2742 = vmatpush1.bf16.msra.mxu0 %v2510
    %2743 = vmatprep.subr.bf16.mxu0 %v2527
    %2744 = vmatpush1.bf16.msra.mxu0 %v2526
    %2745 = vmatprep.subr.bf16.mxu0 0
    %2746 = vmatpush1.bf16.msra.mxu0 0
    %2747 = vmatprep.subr.bf16.mxu0 0
    %2748 = vmatpush1.bf16.msra.mxu0 0
    %2749 = vmatprep.subr.bf16.mxu0 0
    %2750 = vmatpush1.bf16.msra.mxu0 0
    %2751 = vmatprep.subr.bf16.mxu0 0
    %2752 = vmatpush1.bf16.msra.mxu0 0
    %2753 = vmatprep.subr.bf16.mxu0 0
    %2754 = vmatpush1.bf16.msra.mxu0 0
    %2755 = vmatprep.subr.bf16.mxu0 0
    %2756 = vmatpush1.bf16.msra.mxu0 0
    %2757 = vmatprep.subr.bf16.mxu0 0
    %2758 = vmatpush1.bf16.msra.mxu0 0
    %2759 = vmatprep.subr.bf16.mxu0 0
    %2760 = vmatpush1.bf16.msra.mxu0 0
    %2761 = vmatprep.subr.bf16.mxu0 0
    %2762 = vmatpush1.bf16.msra.mxu0 0
    %2763 = vmatprep.subr.bf16.mxu0 0
    %2764 = vmatpush1.bf16.msra.mxu0 0
    %2765 = vmatprep.subr.bf16.mxu0 0
    %2766 = vmatpush1.bf16.msra.mxu0 0
    %2767 = vmatprep.subr.bf16.mxu0 0
    %2768 = vmatpush1.bf16.msra.mxu0 0
    %2769 = vmatprep.subr.bf16.mxu0 0
    %2770 = vmatpush1.bf16.msra.mxu0 0
    %2771 = vmatprep.subr.bf16.mxu0 0
    %2772 = vmatpush1.bf16.msra.mxu0 0
    %2773 = vmatprep.mubr.bf16.mxu0 0
    %2774 = vmatmul.mubr.bf16.gmra.mrb[0].mxu0 %v2567
    %v2775 = vpop.f32.mrb[0].mxu0
    %v2776 = vadd.f32 %v2361, %v2775
    %v2777 = vpop.f32.mrb[0].mxu0
    %v2778 = vadd.f32 %v2365, %v2777
    %v2779 = vpop.f32.mrb[0].mxu0
    %v2780 = vadd.f32 %v2361, %v2779
    %v2781 = vpop.f32.mrb[0].mxu0
    %v2782 = vadd.f32 %v2365, %v2781
    %2783 = vdwg.mxu0
    %2784 = vmatprep.subr.bf16.mxu0 %v2513
    %2785 = vmatpush1.bf16.msra.mxu0 %v2512
    %2786 = vmatprep.subr.bf16.mxu0 %v2529
    %2787 = vmatpush1.bf16.msra.mxu0 %v2528
    %2788 = vmatprep.subr.bf16.mxu0 0
    %2789 = vmatpush1.bf16.msra.mxu0 0
    %2790 = vmatprep.subr.bf16.mxu0 0
    %2791 = vmatpush1.bf16.msra.mxu0 0
    %2792 = vmatprep.subr.bf16.mxu0 0
    %2793 = vmatpush1.bf16.msra.mxu0 0
    %2794 = vmatprep.subr.bf16.mxu0 0
    %2795 = vmatpush1.bf16.msra.mxu0 0
    %2796 = vmatprep.subr.bf16.mxu0 0
    %2797 = vmatpush1.bf16.msra.mxu0 0
    %2798 = vmatprep.subr.bf16.mxu0 0
    %2799 = vmatpush1.bf16.msra.mxu0 0
    %2800 = vmatprep.subr.bf16.mxu0 0
    %2801 = vmatpush1.bf16.msra.mxu0 0
    %2802 = vmatprep.subr.bf16.mxu0 0
    %2803 = vmatpush1.bf16.msra.mxu0 0
    %2804 = vmatprep.subr.bf16.mxu0 0
    %2805 = vmatpush1.bf16.msra.mxu0 0
    %2806 = vmatprep.subr.bf16.mxu0 0
    %2807 = vmatpush1.bf16.msra.mxu0 0
    %2808 = vmatprep.subr.bf16.mxu0 0
    %2809 = vmatpush1.bf16.msra.mxu0 0
    %2810 = vmatprep.subr.bf16.mxu0 0
    %2811 = vmatpush1.bf16.msra.mxu0 0
    %2812 = vmatprep.subr.bf16.mxu0 0
    %2813 = vmatpush1.bf16.msra.mxu0 0
    %2814 = vmatprep.subr.bf16.mxu0 0
    %2815 = vmatpush1.bf16.msra.mxu0 0
    %2816 = vmatprep.mubr.bf16.mxu0 0
    %2817 = vmatmul.mubr.bf16.gmra.mrb[0].mxu0 %v2567
    %v2818 = vpop.f32.mrb[0].mxu0
    %v2819 = vadd.f32 %v2369, %v2818
    %v2820 = vpop.f32.mrb[0].mxu0
    %v2821 = vadd.f32 %v2373, %v2820
    %v2822 = vpop.f32.mrb[0].mxu0
    %v2823 = vadd.f32 %v2369, %v2822
    %v2824 = vpop.f32.mrb[0].mxu0
    %v2825 = vadd.f32 %v2373, %v2824
    %2826 = vdwg.mxu0
    %2827 = vmatprep.subr.bf16.mxu0 %v2515
    %2828 = vmatpush1.bf16.msra.mxu0 %v2514
    %2829 = vmatprep.subr.bf16.mxu0 %v2531
    %2830 = vmatpush1.bf16.msra.mxu0 %v2530
    %2831 = vmatprep.subr.bf16.mxu0 0
    %2832 = vmatpush1.bf16.msra.mxu0 0
    %2833 = vmatprep.subr.bf16.mxu0 0
    %2834 = vmatpush1.bf16.msra.mxu0 0
    %2835 = vmatprep.subr.bf16.mxu0 0
    %2836 = vmatpush1.bf16.msra.mxu0 0
    %2837 = vmatprep.subr.bf16.mxu0 0
    %2838 = vmatpush1.bf16.msra.mxu0 0
    %2839 = vmatprep.subr.bf16.mxu0 0
    %2840 = vmatpush1.bf16.msra.mxu0 0
    %2841 = vmatprep.subr.bf16.mxu0 0
    %2842 = vmatpush1.bf16.msra.mxu0 0
    %2843 = vmatprep.subr.bf16.mxu0 0
    %2844 = vmatpush1.bf16.msra.mxu0 0
    %2845 = vmatprep.subr.bf16.mxu0 0
    %2846 = vmatpush1.bf16.msra.mxu0 0
    %2847 = vmatprep.subr.bf16.mxu0 0
    %2848 = vmatpush1.bf16.msra.mxu0 0
    %2849 = vmatprep.subr.bf16.mxu0 0
    %2850 = vmatpush1.bf16.msra.mxu0 0
    %2851 = vmatprep.subr.bf16.mxu0 0
    %2852 = vmatpush1.bf16.msra.mxu0 0
    %2853 = vmatprep.subr.bf16.mxu0 0
    %2854 = vmatpush1.bf16.msra.mxu0 0
    %2855 = vmatprep.subr.bf16.mxu0 0
    %2856 = vmatpush1.bf16.msra.mxu0 0
    %2857 = vmatprep.subr.bf16.mxu0 0
    %2858 = vmatpush1.bf16.msra.mxu0 0
    %2859 = vmatprep.mubr.bf16.mxu0 0
    %2860 = vmatmul.mubr.bf16.gmra.mrb[0].mxu0 %v2567
    %v2861 = vpop.f32.mrb[0].mxu0
    %v2862 = vadd.f32 %v2377, %v2861
    %v2863 = vpop.f32.mrb[0].mxu0
    %v2864 = vadd.f32 %v2381, %v2863
    %v2865 = vpop.f32.mrb[0].mxu0
    %v2866 = vadd.f32 %v2377, %v2865
    %v2867 = vpop.f32.mrb[0].mxu0
    %v2868 = vadd.f32 %v2381, %v2867
    %2869 = vdwg.mxu0
    %2870 = vmatprep.subr.bf16.mxu0 %v2517
    %2871 = vmatpush1.bf16.msra.mxu0 %v2516
    %2872 = vmatprep.subr.bf16.mxu0 %v2533
    %2873 = vmatpush1.bf16.msra.mxu0 %v2532
    %2874 = vmatprep.subr.bf16.mxu0 0
    %2875 = vmatpush1.bf16.msra.mxu0 0
    %2876 = vmatprep.subr.bf16.mxu0 0
    %2877 = vmatpush1.bf16.msra.mxu0 0
    %2878 = vmatprep.subr.bf16.mxu0 0
    %2879 = vmatpush1.bf16.msra.mxu0 0
    %2880 = vmatprep.subr.bf16.mxu0 0
    %2881 = vmatpush1.bf16.msra.mxu0 0
    %2882 = vmatprep.subr.bf16.mxu0 0
    %2883 = vmatpush1.bf16.msra.mxu0 0
    %2884 = vmatprep.subr.bf16.mxu0 0
    %2885 = vmatpush1.bf16.msra.mxu0 0
    %2886 = vmatprep.subr.bf16.mxu0 0
    %2887 = vmatpush1.bf16.msra.mxu0 0
    %2888 = vmatprep.subr.bf16.mxu0 0
    %2889 = vmatpush1.bf16.msra.mxu0 0
    %2890 = vmatprep.subr.bf16.mxu0 0
    %2891 = vmatpush1.bf16.msra.mxu0 0
    %2892 = vmatprep.subr.bf16.mxu0 0
    %2893 = vmatpush1.bf16.msra.mxu0 0
    %2894 = vmatprep.subr.bf16.mxu0 0
    %2895 = vmatpush1.bf16.msra.mxu0 0
    %2896 = vmatprep.subr.bf16.mxu0 0
    %2897 = vmatpush1.bf16.msra.mxu0 0
    %2898 = vmatprep.subr.bf16.mxu0 0
    %2899 = vmatpush1.bf16.msra.mxu0 0
    %2900 = vmatprep.subr.bf16.mxu0 0
    %2901 = vmatpush1.bf16.msra.mxu0 0
    %2902 = vmatprep.mubr.bf16.mxu0 0
    %2903 = vmatmul.mubr.bf16.gmra.mrb[0].mxu0 %v2567
    %v2904 = vpop.f32.mrb[0].mxu0
    %v2905 = vadd.f32 %v2385, %v2904
    %v2906 = vpop.f32.mrb[0].mxu0
    %v2907 = vadd.f32 %v2389, %v2906
    %v2908 = vpop.f32.mrb[0].mxu0
    %v2909 = vadd.f32 %v2385, %v2908
    %v2910 = vpop.f32.mrb[0].mxu0
    %v2911 = vadd.f32 %v2389, %v2910
    %2912 = vdwg.mxu0
    %v2913 = vmax.f32 %v2604, 0.0
    %v2914 = vmax.f32 %v2606, 0.0
    %v2915 = vmax.f32 %v2647, 0.0
    %v2916 = vmax.f32 %v2649, 0.0
    %v2917 = vmax.f32 %v2690, 0.0
    %v2918 = vmax.f32 %v2692, 0.0
    %v2919 = vmax.f32 %v2733, 0.0
    %v2920 = vmax.f32 %v2735, 0.0
    %v2921 = vmax.f32 %v2776, 0.0
    %v2922 = vmax.f32 %v2778, 0.0
    %v2923 = vmax.f32 %v2819, 0.0
    %v2924 = vmax.f32 %v2821, 0.0
    %v2925 = vmax.f32 %v2862, 0.0
    %v2926 = vmax.f32 %v2864, 0.0
    %v2927 = vmax.f32 %v2905, 0.0
    %v2928 = vmax.f32 %v2907, 0.0
    %v2929 = vmax.f32 %v2608, 0.0
    %v2930 = vmax.f32 %v2610, 0.0
    %v2931 = vmax.f32 %v2651, 0.0
    %v2932 = vmax.f32 %v2653, 0.0
    %v2933 = vmax.f32 %v2694, 0.0
    %v2934 = vmax.f32 %v2696, 0.0
    %v2935 = vmax.f32 %v2737, 0.0
    %v2936 = vmax.f32 %v2739, 0.0
    %v2937 = vmax.f32 %v2780, 0.0
    %v2938 = vmax.f32 %v2782, 0.0
    %v2939 = vmax.f32 %v2823, 0.0
    %v2940 = vmax.f32 %v2825, 0.0
    %v2941 = vmax.f32 %v2866, 0.0
    %v2942 = vmax.f32 %v2868, 0.0
    %v2943 = vmax.f32 %v2909, 0.0
    %v2944 = vmax.f32 %v2911, 0.0
    %v2945 = vpack.c.bf16 %v2929, %v2913
    %v2946 = vpack.c.bf16 %v2930, %v2914
    %v2947 = vpack.c.bf16 %v2931, %v2915
    %v2948 = vpack.c.bf16 %v2932, %v2916
    %v2949 = vpack.c.bf16 %v2933, %v2917
    %v2950 = vpack.c.bf16 %v2934, %v2918
    %v2951 = vpack.c.bf16 %v2935, %v2919
    %v2952 = vpack.c.bf16 %v2936, %v2920
    %v2953 = vpack.c.bf16 %v2937, %v2921
    %v2954 = vpack.c.bf16 %v2938, %v2922
    %v2955 = vpack.c.bf16 %v2939, %v2923
    %v2956 = vpack.c.bf16 %v2940, %v2924
    %v2957 = vpack.c.bf16 %v2941, %v2925
    %v2958 = vpack.c.bf16 %v2942, %v2926
    %v2959 = vpack.c.bf16 %v2943, %v2927
    %v2960 = vpack.c.bf16 %v2944, %v2928
    %v2961 = vld [vmem:[%s12] sm:$0xf]
    %v2962 = vld [vmem:[%s12 + $0x4] sm:$0xf]
    %v2963 = vld [vmem:[%s12 + $0x8] sm:$0xf]
    %v2964 = vld [vmem:[%s12 + $0xc] sm:$0xf]
    %v2965 = vld [vmem:[%s12 + $0x10] sm:$0xf]
    %v2966 = vld [vmem:[%s12 + $0x14] sm:$0xf]
    %v2967 = vld [vmem:[%s12 + $0x18] sm:$0xf]
    %v2968 = vld [vmem:[%s12 + $0x1c] sm:$0xf]
    %v2969 = vld [vmem:[%s12 + $0x20] sm:$0xf]
    %v2970 = vld [vmem:[%s12 + $0x24] sm:$0xf]
    %v2971 = vld [vmem:[%s12 + $0x28] sm:$0xf]
    %v2972 = vld [vmem:[%s12 + $0x2c] sm:$0xf]
    %v2973 = vld [vmem:[%s12 + $0x30] sm:$0xf]
    %v2974 = vld [vmem:[%s12 + $0x34] sm:$0xf]
    %v2975 = vld [vmem:[%s12 + $0x38] sm:$0xf]
    %v2976 = vld [vmem:[%s12 + $0x3c] sm:$0xf]
    %v2977 = vld [vmem:[%s12 + $0x40] sm:$0xf]
    %v2978 = vld [vmem:[%s12 + $0x44] sm:$0xf]
    %v2979 = vld [vmem:[%s12 + $0x48] sm:$0xf]
    %v2980 = vld [vmem:[%s12 + $0x4c] sm:$0xf]
    %v2981 = vld [vmem:[%s12 + $0x50] sm:$0xf]
    %v2982 = vld [vmem:[%s12 + $0x54] sm:$0xf]
    %v2983 = vld [vmem:[%s12 + $0x58] sm:$0xf]
    %v2984 = vld [vmem:[%s12 + $0x5c] sm:$0xf]
    %v2985 = vld [vmem:[%s12 + $0x60] sm:$0xf]
    %v2986 = vld [vmem:[%s12 + $0x64] sm:$0xf]
    %v2987 = vld [vmem:[%s12 + $0x68] sm:$0xf]
    %v2988 = vld [vmem:[%s12 + $0x6c] sm:$0xf]
    %v2989 = vld [vmem:[%s12 + $0x70] sm:$0xf]
    %v2990 = vld [vmem:[%s12 + $0x74] sm:$0xf]
    %v2991 = vld [vmem:[%s12 + $0x78] sm:$0xf]
    %v2992 = vld [vmem:[%s12 + $0x7c] sm:$0xf]
    %v2993 = vld [vmem:[%s12 + $0x80] sm:$0xf]
    %v2994 = vld [vmem:[%s12 + $0x84] sm:$0xf]
    %v2995 = vld [vmem:[%s12 + $0x88] sm:$0xf]
    %v2996 = vld [vmem:[%s12 + $0x8c] sm:$0xf]
    %v2997 = vld [vmem:[%s12 + $0x90] sm:$0xf]
    %v2998 = vld [vmem:[%s12 + $0x94] sm:$0xf]
    %v2999 = vld [vmem:[%s12 + $0x98] sm:$0xf]
    %v3000 = vld [vmem:[%s12 + $0x9c] sm:$0xf]
    %v3001 = vld [vmem:[%s12 + $0xa0] sm:$0xf]
    %v3002 = vld [vmem:[%s12 + $0xa4] sm:$0xf]
    %v3003 = vld [vmem:[%s12 + $0xa8] sm:$0xf]
    %v3004 = vld [vmem:[%s12 + $0xac] sm:$0xf]
    %v3005 = vld [vmem:[%s12 + $0xb0] sm:$0xf]
    %v3006 = vld [vmem:[%s12 + $0xb4] sm:$0xf]
    %v3007 = vld [vmem:[%s12 + $0xb8] sm:$0xf]
    %v3008 = vld [vmem:[%s12 + $0xbc] sm:$0xf]
    %v3009 = vld [vmem:[%s12 + $0xc0] sm:$0xf]
    %v3010 = vld [vmem:[%s12 + $0xc4] sm:$0xf]
    %v3011 = vld [vmem:[%s12 + $0xc8] sm:$0xf]
    %v3012 = vld [vmem:[%s12 + $0xcc] sm:$0xf]
    %v3013 = vld [vmem:[%s12 + $0xd0] sm:$0xf]
    %v3014 = vld [vmem:[%s12 + $0xd4] sm:$0xf]
    %v3015 = vld [vmem:[%s12 + $0xd8] sm:$0xf]
    %v3016 = vld [vmem:[%s12 + $0xdc] sm:$0xf]
    %v3017 = vld [vmem:[%s12 + $0xe0] sm:$0xf]
    %v3018 = vld [vmem:[%s12 + $0xe4] sm:$0xf]
    %v3019 = vld [vmem:[%s12 + $0xe8] sm:$0xf]
    %v3020 = vld [vmem:[%s12 + $0xec] sm:$0xf]
    %v3021 = vld [vmem:[%s12 + $0xf0] sm:$0xf]
    %v3022 = vld [vmem:[%s12 + $0xf4] sm:$0xf]
    %v3023 = vld [vmem:[%s12 + $0xf8] sm:$0xf]
    %v3024 = vld [vmem:[%s12 + $0xfc] sm:$0xf]
    %v3025 = vld [vmem:[%s12 + $0x100] sm:$0xf]
    %v3026 = vld [vmem:[%s12 + $0x104] sm:$0xf]
    %v3027 = vld [vmem:[%s12 + $0x108] sm:$0xf]
    %v3028 = vld [vmem:[%s12 + $0x10c] sm:$0xf]
    %v3029 = vld [vmem:[%s12 + $0x110] sm:$0xf]
    %v3030 = vld [vmem:[%s12 + $0x114] sm:$0xf]
    %v3031 = vld [vmem:[%s12 + $0x118] sm:$0xf]
    %v3032 = vld [vmem:[%s12 + $0x11c] sm:$0xf]
    %v3033 = vld [vmem:[%s12 + $0x120] sm:$0xf]
    %v3034 = vld [vmem:[%s12 + $0x124] sm:$0xf]
    %v3035 = vld [vmem:[%s12 + $0x128] sm:$0xf]
    %v3036 = vld [vmem:[%s12 + $0x12c] sm:$0xf]
    %v3037 = vld [vmem:[%s12 + $0x130] sm:$0xf]
    %v3038 = vld [vmem:[%s12 + $0x134] sm:$0xf]
    %v3039 = vld [vmem:[%s12 + $0x138] sm:$0xf]
    %v3040 = vld [vmem:[%s12 + $0x13c] sm:$0xf]
    %v3041 = vld [vmem:[%s12 + $0x140] sm:$0xf]
    %v3042 = vld [vmem:[%s12 + $0x144] sm:$0xf]
    %v3043 = vld [vmem:[%s12 + $0x148] sm:$0xf]
    %v3044 = vld [vmem:[%s12 + $0x14c] sm:$0xf]
    %v3045 = vld [vmem:[%s12 + $0x150] sm:$0xf]
    %v3046 = vld [vmem:[%s12 + $0x154] sm:$0xf]
    %v3047 = vld [vmem:[%s12 + $0x158] sm:$0xf]
    %v3048 = vld [vmem:[%s12 + $0x15c] sm:$0xf]
    %v3049 = vld [vmem:[%s12 + $0x160] sm:$0xf]
    %v3050 = vld [vmem:[%s12 + $0x164] sm:$0xf]
    %v3051 = vld [vmem:[%s12 + $0x168] sm:$0xf]
    %v3052 = vld [vmem:[%s12 + $0x16c] sm:$0xf]
    %v3053 = vld [vmem:[%s12 + $0x170] sm:$0xf]
    %v3054 = vld [vmem:[%s12 + $0x174] sm:$0xf]
    %v3055 = vld [vmem:[%s12 + $0x178] sm:$0xf]
    %v3056 = vld [vmem:[%s12 + $0x17c] sm:$0xf]
    %v3057 = vld [vmem:[%s12 + $0x180] sm:$0xf]
    %v3058 = vld [vmem:[%s12 + $0x184] sm:$0xf]
    %v3059 = vld [vmem:[%s12 + $0x188] sm:$0xf]
    %v3060 = vld [vmem:[%s12 + $0x18c] sm:$0xf]
    %v3061 = vld [vmem:[%s12 + $0x190] sm:$0xf]
    %v3062 = vld [vmem:[%s12 + $0x194] sm:$0xf]
    %v3063 = vld [vmem:[%s12 + $0x198] sm:$0xf]
    %v3064 = vld [vmem:[%s12 + $0x19c] sm:$0xf]
    %v3065 = vld [vmem:[%s12 + $0x1a0] sm:$0xf]
    %v3066 = vld [vmem:[%s12 + $0x1a4] sm:$0xf]
    %v3067 = vld [vmem:[%s12 + $0x1a8] sm:$0xf]
    %v3068 = vld [vmem:[%s12 + $0x1ac] sm:$0xf]
    %v3069 = vld [vmem:[%s12 + $0x1b0] sm:$0xf]
    %v3070 = vld [vmem:[%s12 + $0x1b4] sm:$0xf]
    %v3071 = vld [vmem:[%s12 + $0x1b8] sm:$0xf]
    %v3072 = vld [vmem:[%s12 + $0x1bc] sm:$0xf]
    %v3073 = vld [vmem:[%s12 + $0x1c0] sm:$0xf]
    %v3074 = vld [vmem:[%s12 + $0x1c4] sm:$0xf]
    %v3075 = vld [vmem:[%s12 + $0x1c8] sm:$0xf]
    %v3076 = vld [vmem:[%s12 + $0x1cc] sm:$0xf]
    %v3077 = vld [vmem:[%s12 + $0x1d0] sm:$0xf]
    %v3078 = vld [vmem:[%s12 + $0x1d4] sm:$0xf]
    %v3079 = vld [vmem:[%s12 + $0x1d8] sm:$0xf]
    %v3080 = vld [vmem:[%s12 + $0x1dc] sm:$0xf]
    %v3081 = vld [vmem:[%s12 + $0x1e0] sm:$0xf]
    %v3082 = vld [vmem:[%s12 + $0x1e4] sm:$0xf]
    %v3083 = vld [vmem:[%s12 + $0x1e8] sm:$0xf]
    %v3084 = vld [vmem:[%s12 + $0x1ec] sm:$0xf]
    %v3085 = vld [vmem:[%s12 + $0x1f0] sm:$0xf]
    %v3086 = vld [vmem:[%s12 + $0x1f4] sm:$0xf]
    %v3087 = vld [vmem:[%s12 + $0x1f8] sm:$0xf]
    %v3088 = vld [vmem:[%s12 + $0x1fc] sm:$0xf]
    %v3089 = vld [vmem:[%s12 + $0x200] sm:$0xf]
    %v3090 = vld [vmem:[%s12 + $0x204] sm:$0xf]
    %v3091 = vld [vmem:[%s12 + $0x208] sm:$0xf]
    %v3092 = vld [vmem:[%s12 + $0x20c] sm:$0xf]
    %v3093 = vld [vmem:[%s12 + $0x210] sm:$0xf]
    %v3094 = vld [vmem:[%s12 + $0x214] sm:$0xf]
    %v3095 = vld [vmem:[%s12 + $0x218] sm:$0xf]
    %v3096 = vld [vmem:[%s12 + $0x21c] sm:$0xf]
    %v3097 = vld [vmem:[%s12 + $0x220] sm:$0xf]
    %v3098 = vld [vmem:[%s12 + $0x224] sm:$0xf]
    %v3099 = vld [vmem:[%s12 + $0x228] sm:$0xf]
    %v3100 = vld [vmem:[%s12 + $0x22c] sm:$0xf]
    %v3101 = vld [vmem:[%s12 + $0x230] sm:$0xf]
    %v3102 = vld [vmem:[%s12 + $0x234] sm:$0xf]
    %v3103 = vld [vmem:[%s12 + $0x238] sm:$0xf]
    %v3104 = vld [vmem:[%s12 + $0x23c] sm:$0xf]
    %v3105 = vld [vmem:[%s12 + $0x240] sm:$0xf]
    %v3106 = vld [vmem:[%s12 + $0x244] sm:$0xf]
    %v3107 = vld [vmem:[%s12 + $0x248] sm:$0xf]
    %v3108 = vld [vmem:[%s12 + $0x24c] sm:$0xf]
    %v3109 = vld [vmem:[%s12 + $0x250] sm:$0xf]
    %v3110 = vld [vmem:[%s12 + $0x254] sm:$0xf]
    %v3111 = vld [vmem:[%s12 + $0x258] sm:$0xf]
    %v3112 = vld [vmem:[%s12 + $0x25c] sm:$0xf]
    %v3113 = vld [vmem:[%s12 + $0x260] sm:$0xf]
    %v3114 = vld [vmem:[%s12 + $0x264] sm:$0xf]
    %v3115 = vld [vmem:[%s12 + $0x268] sm:$0xf]
    %v3116 = vld [vmem:[%s12 + $0x26c] sm:$0xf]
    %v3117 = vld [vmem:[%s12 + $0x270] sm:$0xf]
    %v3118 = vld [vmem:[%s12 + $0x274] sm:$0xf]
    %v3119 = vld [vmem:[%s12 + $0x278] sm:$0xf]
    %v3120 = vld [vmem:[%s12 + $0x27c] sm:$0xf]
    %v3121 = vld [vmem:[%s12 + $0x280] sm:$0xf]
    %v3122 = vld [vmem:[%s12 + $0x284] sm:$0xf]
    %v3123 = vld [vmem:[%s12 + $0x288] sm:$0xf]
    %v3124 = vld [vmem:[%s12 + $0x28c] sm:$0xf]
    %v3125 = vld [vmem:[%s12 + $0x290] sm:$0xf]
    %v3126 = vld [vmem:[%s12 + $0x294] sm:$0xf]
    %v3127 = vld [vmem:[%s12 + $0x298] sm:$0xf]
    %v3128 = vld [vmem:[%s12 + $0x29c] sm:$0xf]
    %v3129 = vld [vmem:[%s12 + $0x2a0] sm:$0xf]
    %v3130 = vld [vmem:[%s12 + $0x2a4] sm:$0xf]
    %v3131 = vld [vmem:[%s12 + $0x2a8] sm:$0xf]
    %v3132 = vld [vmem:[%s12 + $0x2ac] sm:$0xf]
    %v3133 = vld [vmem:[%s12 + $0x2b0] sm:$0xf]
    %v3134 = vld [vmem:[%s12 + $0x2b4] sm:$0xf]
    %v3135 = vld [vmem:[%s12 + $0x2b8] sm:$0xf]
    %v3136 = vld [vmem:[%s12 + $0x2bc] sm:$0xf]
    %v3137 = vld [vmem:[%s12 + $0x2c0] sm:$0xf]
    %v3138 = vld [vmem:[%s12 + $0x2c4] sm:$0xf]
    %v3139 = vld [vmem:[%s12 + $0x2c8] sm:$0xf]
    %v3140 = vld [vmem:[%s12 + $0x2cc] sm:$0xf]
    %v3141 = vld [vmem:[%s12 + $0x2d0] sm:$0xf]
    %v3142 = vld [vmem:[%s12 + $0x2d4] sm:$0xf]
    %v3143 = vld [vmem:[%s12 + $0x2d8] sm:$0xf]
    %v3144 = vld [vmem:[%s12 + $0x2dc] sm:$0xf]
    %v3145 = vld [vmem:[%s12 + $0x2e0] sm:$0xf]
    %v3146 = vld [vmem:[%s12 + $0x2e4] sm:$0xf]
    %v3147 = vld [vmem:[%s12 + $0x2e8] sm:$0xf]
    %v3148 = vld [vmem:[%s12 + $0x2ec] sm:$0xf]
    %v3149 = vld [vmem:[%s12 + $0x2f0] sm:$0xf]
    %v3150 = vld [vmem:[%s12 + $0x2f4] sm:$0xf]
    %v3151 = vld [vmem:[%s12 + $0x2f8] sm:$0xf]
    %v3152 = vld [vmem:[%s12 + $0x2fc] sm:$0xf]
    %v3153 = vld [vmem:[%s12 + $0x300] sm:$0xf]
    %v3154 = vld [vmem:[%s12 + $0x304] sm:$0xf]
    %v3155 = vld [vmem:[%s12 + $0x308] sm:$0xf]
    %v3156 = vld [vmem:[%s12 + $0x30c] sm:$0xf]
    %v3157 = vld [vmem:[%s12 + $0x310] sm:$0xf]
    %v3158 = vld [vmem:[%s12 + $0x314] sm:$0xf]
    %v3159 = vld [vmem:[%s12 + $0x318] sm:$0xf]
    %v3160 = vld [vmem:[%s12 + $0x31c] sm:$0xf]
    %v3161 = vld [vmem:[%s12 + $0x320] sm:$0xf]
    %v3162 = vld [vmem:[%s12 + $0x324] sm:$0xf]
    %v3163 = vld [vmem:[%s12 + $0x328] sm:$0xf]
    %v3164 = vld [vmem:[%s12 + $0x32c] sm:$0xf]
    %v3165 = vld [vmem:[%s12 + $0x330] sm:$0xf]
    %v3166 = vld [vmem:[%s12 + $0x334] sm:$0xf]
    %v3167 = vld [vmem:[%s12 + $0x338] sm:$0xf]
    %v3168 = vld [vmem:[%s12 + $0x33c] sm:$0xf]
    %v3169 = vld [vmem:[%s12 + $0x340] sm:$0xf]
    %v3170 = vld [vmem:[%s12 + $0x344] sm:$0xf]
    %v3171 = vld [vmem:[%s12 + $0x348] sm:$0xf]
    %v3172 = vld [vmem:[%s12 + $0x34c] sm:$0xf]
    %v3173 = vld [vmem:[%s12 + $0x350] sm:$0xf]
    %v3174 = vld [vmem:[%s12 + $0x354] sm:$0xf]
    %v3175 = vld [vmem:[%s12 + $0x358] sm:$0xf]
    %v3176 = vld [vmem:[%s12 + $0x35c] sm:$0xf]
    %v3177 = vld [vmem:[%s12 + $0x360] sm:$0xf]
    %v3178 = vld [vmem:[%s12 + $0x364] sm:$0xf]
    %v3179 = vld [vmem:[%s12 + $0x368] sm:$0xf]
    %v3180 = vld [vmem:[%s12 + $0x36c] sm:$0xf]
    %v3181 = vld [vmem:[%s12 + $0x370] sm:$0xf]
    %v3182 = vld [vmem:[%s12 + $0x374] sm:$0xf]
    %v3183 = vld [vmem:[%s12 + $0x378] sm:$0xf]
    %v3184 = vld [vmem:[%s12 + $0x37c] sm:$0xf]
    %v3185 = vld [vmem:[%s12 + $0x380] sm:$0xf]
    %v3186 = vld [vmem:[%s12 + $0x384] sm:$0xf]
    %v3187 = vld [vmem:[%s12 + $0x388] sm:$0xf]
    %v3188 = vld [vmem:[%s12 + $0x38c] sm:$0xf]
    %v3189 = vld [vmem:[%s12 + $0x390] sm:$0xf]
    %v3190 = vld [vmem:[%s12 + $0x394] sm:$0xf]
    %v3191 = vld [vmem:[%s12 + $0x398] sm:$0xf]
    %v3192 = vld [vmem:[%s12 + $0x39c] sm:$0xf]
    %v3193 = vld [vmem:[%s12 + $0x3a0] sm:$0xf]
    %v3194 = vld [vmem:[%s12 + $0x3a4] sm:$0xf]
    %v3195 = vld [vmem:[%s12 + $0x3a8] sm:$0xf]
    %v3196 = vld [vmem:[%s12 + $0x3ac] sm:$0xf]
    %v3197 = vld [vmem:[%s12 + $0x3b0] sm:$0xf]
    %v3198 = vld [vmem:[%s12 + $0x3b4] sm:$0xf]
    %v3199 = vld [vmem:[%s12 + $0x3b8] sm:$0xf]
    %v3200 = vld [vmem:[%s12 + $0x3bc] sm:$0xf]
    %v3201 = vld [vmem:[%s12 + $0x3c0] sm:$0xf]
    %v3202 = vld [vmem:[%s12 + $0x3c4] sm:$0xf]
    %v3203 = vld [vmem:[%s12 + $0x3c8] sm:$0xf]
    %v3204 = vld [vmem:[%s12 + $0x3cc] sm:$0xf]
    %v3205 = vld [vmem:[%s12 + $0x3d0] sm:$0xf]
    %v3206 = vld [vmem:[%s12 + $0x3d4] sm:$0xf]
    %v3207 = vld [vmem:[%s12 + $0x3d8] sm:$0xf]
    %v3208 = vld [vmem:[%s12 + $0x3dc] sm:$0xf]
    %v3209 = vld [vmem:[%s12 + $0x3e0] sm:$0xf]
    %v3210 = vld [vmem:[%s12 + $0x3e4] sm:$0xf]
    %v3211 = vld [vmem:[%s12 + $0x3e8] sm:$0xf]
    %v3212 = vld [vmem:[%s12 + $0x3ec] sm:$0xf]
    %v3213 = vld [vmem:[%s12 + $0x3f0] sm:$0xf]
    %v3214 = vld [vmem:[%s12 + $0x3f4] sm:$0xf]
    %v3215 = vld [vmem:[%s12 + $0x3f8] sm:$0xf]
    %v3216 = vld [vmem:[%s12 + $0x3fc] sm:$0xf]
    %v3217 = vld [vmem:[%s13] sm:$0x1]
    %v3219 = vlaneseq
    %v3220 = vshrl.u32 %v3219, 7
    %v3221 = vsub.s32 0, %v3220
    %v3222 = vrot.slane %v3217, %v3221
    %v3480 = vunpack.c.l.b16 %v2961
    %v3481 = vunpack.c.l.b16 %v2962
    %v3482 = vunpack.c.l.b16 %v2963
    %v3483 = vunpack.c.l.b16 %v2964
    %v3484 = vunpack.c.l.b16 %v2965
    %v3485 = vunpack.c.l.b16 %v2966
    %v3486 = vunpack.c.l.b16 %v2967
    %v3487 = vunpack.c.l.b16 %v2968
    %v3488 = vunpack.c.l.b16 %v2969
    %v3489 = vunpack.c.l.b16 %v2970
    %v3490 = vunpack.c.l.b16 %v2971
    %v3491 = vunpack.c.l.b16 %v2972
    %v3492 = vunpack.c.l.b16 %v2973
    %v3493 = vunpack.c.l.b16 %v2974
    %v3494 = vunpack.c.l.b16 %v2975
    %v3495 = vunpack.c.l.b16 %v2976
    %v3496 = vunpack.c.l.b16 %v2977
    %v3497 = vunpack.c.l.b16 %v2978
    %v3498 = vunpack.c.l.b16 %v2979
    %v3499 = vunpack.c.l.b16 %v2980
    %v3500 = vunpack.c.l.b16 %v2981
    %v3501 = vunpack.c.l.b16 %v2982
    %v3502 = vunpack.c.l.b16 %v2983
    %v3503 = vunpack.c.l.b16 %v2984
    %v3504 = vunpack.c.l.b16 %v2985
    %v3505 = vunpack.c.l.b16 %v2986
    %v3506 = vunpack.c.l.b16 %v2987
    %v3507 = vunpack.c.l.b16 %v2988
    %v3508 = vunpack.c.l.b16 %v2989
    %v3509 = vunpack.c.l.b16 %v2990
    %v3510 = vunpack.c.l.b16 %v2991
    %v3511 = vunpack.c.l.b16 %v2992
    %v3512 = vunpack.c.l.b16 %v2993
    %v3513 = vunpack.c.l.b16 %v2994
    %v3514 = vunpack.c.l.b16 %v2995
    %v3515 = vunpack.c.l.b16 %v2996
    %v3516 = vunpack.c.l.b16 %v2997
    %v3517 = vunpack.c.l.b16 %v2998
    %v3518 = vunpack.c.l.b16 %v2999
    %v3519 = vunpack.c.l.b16 %v3000
    %v3520 = vunpack.c.l.b16 %v3001
    %v3521 = vunpack.c.l.b16 %v3002
    %v3522 = vunpack.c.l.b16 %v3003
    %v3523 = vunpack.c.l.b16 %v3004
    %v3524 = vunpack.c.l.b16 %v3005
    %v3525 = vunpack.c.l.b16 %v3006
    %v3526 = vunpack.c.l.b16 %v3007
    %v3527 = vunpack.c.l.b16 %v3008
    %v3528 = vunpack.c.l.b16 %v3009
    %v3529 = vunpack.c.l.b16 %v3010
    %v3530 = vunpack.c.l.b16 %v3011
    %v3531 = vunpack.c.l.b16 %v3012
    %v3532 = vunpack.c.l.b16 %v3013
    %v3533 = vunpack.c.l.b16 %v3014
    %v3534 = vunpack.c.l.b16 %v3015
    %v3535 = vunpack.c.l.b16 %v3016
    %v3536 = vunpack.c.l.b16 %v3017
    %v3537 = vunpack.c.l.b16 %v3018
    %v3538 = vunpack.c.l.b16 %v3019
    %v3539 = vunpack.c.l.b16 %v3020
    %v3540 = vunpack.c.l.b16 %v3021
    %v3541 = vunpack.c.l.b16 %v3022
    %v3542 = vunpack.c.l.b16 %v3023
    %v3543 = vunpack.c.l.b16 %v3024
    %v3544 = vunpack.c.l.b16 %v3025
    %v3545 = vunpack.c.l.b16 %v3026
    %v3546 = vunpack.c.l.b16 %v3027
    %v3547 = vunpack.c.l.b16 %v3028
    %v3548 = vunpack.c.l.b16 %v3029
    %v3549 = vunpack.c.l.b16 %v3030
    %v3550 = vunpack.c.l.b16 %v3031
    %v3551 = vunpack.c.l.b16 %v3032
    %v3552 = vunpack.c.l.b16 %v3033
    %v3553 = vunpack.c.l.b16 %v3034
    %v3554 = vunpack.c.l.b16 %v3035
    %v3555 = vunpack.c.l.b16 %v3036
    %v3556 = vunpack.c.l.b16 %v3037
    %v3557 = vunpack.c.l.b16 %v3038
    %v3558 = vunpack.c.l.b16 %v3039
    %v3559 = vunpack.c.l.b16 %v3040
    %v3560 = vunpack.c.l.b16 %v3041
    %v3561 = vunpack.c.l.b16 %v3042
    %v3562 = vunpack.c.l.b16 %v3043
    %v3563 = vunpack.c.l.b16 %v3044
    %v3564 = vunpack.c.l.b16 %v3045
    %v3565 = vunpack.c.l.b16 %v3046
    %v3566 = vunpack.c.l.b16 %v3047
    %v3567 = vunpack.c.l.b16 %v3048
    %v3568 = vunpack.c.l.b16 %v3049
    %v3569 = vunpack.c.l.b16 %v3050
    %v3570 = vunpack.c.l.b16 %v3051
    %v3571 = vunpack.c.l.b16 %v3052
    %v3572 = vunpack.c.l.b16 %v3053
    %v3573 = vunpack.c.l.b16 %v3054
    %v3574 = vunpack.c.l.b16 %v3055
    %v3575 = vunpack.c.l.b16 %v3056
    %v3576 = vunpack.c.l.b16 %v3057
    %v3577 = vunpack.c.l.b16 %v3058
    %v3578 = vunpack.c.l.b16 %v3059
    %v3579 = vunpack.c.l.b16 %v3060
    %v3580 = vunpack.c.l.b16 %v3061
    %v3581 = vunpack.c.l.b16 %v3062
    %v3582 = vunpack.c.l.b16 %v3063
    %v3583 = vunpack.c.l.b16 %v3064
    %v3584 = vunpack.c.l.b16 %v3065
    %v3585 = vunpack.c.l.b16 %v3066
    %v3586 = vunpack.c.l.b16 %v3067
    %v3587 = vunpack.c.l.b16 %v3068
    %v3588 = vunpack.c.l.b16 %v3069
    %v3589 = vunpack.c.l.b16 %v3070
    %v3590 = vunpack.c.l.b16 %v3071
    %v3591 = vunpack.c.l.b16 %v3072
    %v3592 = vunpack.c.l.b16 %v3073
    %v3593 = vunpack.c.l.b16 %v3074
    %v3594 = vunpack.c.l.b16 %v3075
    %v3595 = vunpack.c.l.b16 %v3076
    %v3596 = vunpack.c.l.b16 %v3077
    %v3597 = vunpack.c.l.b16 %v3078
    %v3598 = vunpack.c.l.b16 %v3079
    %v3599 = vunpack.c.l.b16 %v3080
    %v3600 = vunpack.c.l.b16 %v3081
    %v3601 = vunpack.c.l.b16 %v3082
    %v3602 = vunpack.c.l.b16 %v3083
    %v3603 = vunpack.c.l.b16 %v3084
    %v3604 = vunpack.c.l.b16 %v3085
    %v3605 = vunpack.c.l.b16 %v3086
    %v3606 = vunpack.c.l.b16 %v3087
    %v3607 = vunpack.c.l.b16 %v3088
    %v3608 = vunpack.c.l.b16 %v3089
    %v3609 = vunpack.c.l.b16 %v3090
    %v3610 = vunpack.c.l.b16 %v3091
    %v3611 = vunpack.c.l.b16 %v3092
    %v3612 = vunpack.c.l.b16 %v3093
    %v3613 = vunpack.c.l.b16 %v3094
    %v3614 = vunpack.c.l.b16 %v3095
    %v3615 = vunpack.c.l.b16 %v3096
    %v3616 = vunpack.c.l.b16 %v3097
    %v3617 = vunpack.c.l.b16 %v3098
    %v3618 = vunpack.c.l.b16 %v3099
    %v3619 = vunpack.c.l.b16 %v3100
    %v3620 = vunpack.c.l.b16 %v3101
    %v3621 = vunpack.c.l.b16 %v3102
    %v3622 = vunpack.c.l.b16 %v3103
    %v3623 = vunpack.c.l.b16 %v3104
    %v3624 = vunpack.c.l.b16 %v3105
    %v3625 = vunpack.c.l.b16 %v3106
    %v3626 = vunpack.c.l.b16 %v3107
    %v3627 = vunpack.c.l.b16 %v3108
    %v3628 = vunpack.c.l.b16 %v3109
    %v3629 = vunpack.c.l.b16 %v3110
    %v3630 = vunpack.c.l.b16 %v3111
    %v3631 = vunpack.c.l.b16 %v3112
    %v3632 = vunpack.c.l.b16 %v3113
    %v3633 = vunpack.c.l.b16 %v3114
    %v3634 = vunpack.c.l.b16 %v3115
    %v3635 = vunpack.c.l.b16 %v3116
    %v3636 = vunpack.c.l.b16 %v3117
    %v3637 = vunpack.c.l.b16 %v3118
    %v3638 = vunpack.c.l.b16 %v3119
    %v3639 = vunpack.c.l.b16 %v3120
    %v3640 = vunpack.c.l.b16 %v3121
    %v3641 = vunpack.c.l.b16 %v3122
    %v3642 = vunpack.c.l.b16 %v3123
    %v3643 = vunpack.c.l.b16 %v3124
    %v3644 = vunpack.c.l.b16 %v3125
    %v3645 = vunpack.c.l.b16 %v3126
    %v3646 = vunpack.c.l.b16 %v3127
    %v3647 = vunpack.c.l.b16 %v3128
    %v3648 = vunpack.c.l.b16 %v3129
    %v3649 = vunpack.c.l.b16 %v3130
    %v3650 = vunpack.c.l.b16 %v3131
    %v3651 = vunpack.c.l.b16 %v3132
    %v3652 = vunpack.c.l.b16 %v3133
    %v3653 = vunpack.c.l.b16 %v3134
    %v3654 = vunpack.c.l.b16 %v3135
    %v3655 = vunpack.c.l.b16 %v3136
    %v3656 = vunpack.c.l.b16 %v3137
    %v3657 = vunpack.c.l.b16 %v3138
    %v3658 = vunpack.c.l.b16 %v3139
    %v3659 = vunpack.c.l.b16 %v3140
    %v3660 = vunpack.c.l.b16 %v3141
    %v3661 = vunpack.c.l.b16 %v3142
    %v3662 = vunpack.c.l.b16 %v3143
    %v3663 = vunpack.c.l.b16 %v3144
    %v3664 = vunpack.c.l.b16 %v3145
    %v3665 = vunpack.c.l.b16 %v3146
    %v3666 = vunpack.c.l.b16 %v3147
    %v3667 = vunpack.c.l.b16 %v3148
    %v3668 = vunpack.c.l.b16 %v3149
    %v3669 = vunpack.c.l.b16 %v3150
    %v3670 = vunpack.c.l.b16 %v3151
    %v3671 = vunpack.c.l.b16 %v3152
    %v3672 = vunpack.c.l.b16 %v3153
    %v3673 = vunpack.c.l.b16 %v3154
    %v3674 = vunpack.c.l.b16 %v3155
    %v3675 = vunpack.c.l.b16 %v3156
    %v3676 = vunpack.c.l.b16 %v3157
    %v3677 = vunpack.c.l.b16 %v3158
    %v3678 = vunpack.c.l.b16 %v3159
    %v3679 = vunpack.c.l.b16 %v3160
    %v3680 = vunpack.c.l.b16 %v3161
    %v3681 = vunpack.c.l.b16 %v3162
    %v3682 = vunpack.c.l.b16 %v3163
    %v3683 = vunpack.c.l.b16 %v3164
    %v3684 = vunpack.c.l.b16 %v3165
    %v3685 = vunpack.c.l.b16 %v3166
    %v3686 = vunpack.c.l.b16 %v3167
    %v3687 = vunpack.c.l.b16 %v3168
    %v3688 = vunpack.c.l.b16 %v3169
    %v3689 = vunpack.c.l.b16 %v3170
    %v3690 = vunpack.c.l.b16 %v3171
    %v3691 = vunpack.c.l.b16 %v3172
    %v3692 = vunpack.c.l.b16 %v3173
    %v3693 = vunpack.c.l.b16 %v3174
    %v3694 = vunpack.c.l.b16 %v3175
    %v3695 = vunpack.c.l.b16 %v3176
    %v3696 = vunpack.c.l.b16 %v3177
    %v3697 = vunpack.c.l.b16 %v3178
    %v3698 = vunpack.c.l.b16 %v3179
    %v3699 = vunpack.c.l.b16 %v3180
    %v3700 = vunpack.c.l.b16 %v3181
    %v3701 = vunpack.c.l.b16 %v3182
    %v3702 = vunpack.c.l.b16 %v3183
    %v3703 = vunpack.c.l.b16 %v3184
    %v3704 = vunpack.c.l.b16 %v3185
    %v3705 = vunpack.c.l.b16 %v3186
    %v3706 = vunpack.c.l.b16 %v3187
    %v3707 = vunpack.c.l.b16 %v3188
    %v3708 = vunpack.c.l.b16 %v3189
    %v3709 = vunpack.c.l.b16 %v3190
    %v3710 = vunpack.c.l.b16 %v3191
    %v3711 = vunpack.c.l.b16 %v3192
    %v3712 = vunpack.c.l.b16 %v3193
    %v3713 = vunpack.c.l.b16 %v3194
    %v3714 = vunpack.c.l.b16 %v3195
    %v3715 = vunpack.c.l.b16 %v3196
    %v3716 = vunpack.c.l.b16 %v3197
    %v3717 = vunpack.c.l.b16 %v3198
    %v3718 = vunpack.c.l.b16 %v3199
    %v3719 = vunpack.c.l.b16 %v3200
    %v3720 = vunpack.c.l.b16 %v3201
    %v3721 = vunpack.c.l.b16 %v3202
    %v3722 = vunpack.c.l.b16 %v3203
    %v3723 = vunpack.c.l.b16 %v3204
    %v3724 = vunpack.c.l.b16 %v3205
    %v3725 = vunpack.c.l.b16 %v3206
    %v3726 = vunpack.c.l.b16 %v3207
    %v3727 = vunpack.c.l.b16 %v3208
    %v3728 = vunpack.c.l.b16 %v3209
    %v3729 = vunpack.c.l.b16 %v3210
    %v3730 = vunpack.c.l.b16 %v3211
    %v3731 = vunpack.c.l.b16 %v3212
    %v3732 = vunpack.c.l.b16 %v3213
    %v3733 = vunpack.c.l.b16 %v3214
    %v3734 = vunpack.c.l.b16 %v3215
    %v3735 = vunpack.c.l.b16 %v3216
    %v3736 = vpack.c.b16 %v3481, %v3480
    %v3737 = vpack.c.b16 %v3483, %v3482
    %v3738 = vpack.c.b16 %v3485, %v3484
    %v3739 = vpack.c.b16 %v3487, %v3486
    %v3740 = vpack.c.b16 %v3489, %v3488
    %v3741 = vpack.c.b16 %v3491, %v3490
    %v3742 = vpack.c.b16 %v3493, %v3492
    %v3743 = vpack.c.b16 %v3495, %v3494
    %v3744 = vpack.c.b16 %v3497, %v3496
    %v3745 = vpack.c.b16 %v3499, %v3498
    %v3746 = vpack.c.b16 %v3501, %v3500
    %v3747 = vpack.c.b16 %v3503, %v3502
    %v3748 = vpack.c.b16 %v3505, %v3504
    %v3749 = vpack.c.b16 %v3507, %v3506
    %v3750 = vpack.c.b16 %v3509, %v3508
    %v3751 = vpack.c.b16 %v3511, %v3510
    %v3752 = vpack.c.b16 %v3513, %v3512
    %v3753 = vpack.c.b16 %v3515, %v3514
    %v3754 = vpack.c.b16 %v3517, %v3516
    %v3755 = vpack.c.b16 %v3519, %v3518
    %v3756 = vpack.c.b16 %v3521, %v3520
    %v3757 = vpack.c.b16 %v3523, %v3522
    %v3758 = vpack.c.b16 %v3525, %v3524
    %v3759 = vpack.c.b16 %v3527, %v3526
    %v3760 = vpack.c.b16 %v3529, %v3528
    %v3761 = vpack.c.b16 %v3531, %v3530
    %v3762 = vpack.c.b16 %v3533, %v3532
    %v3763 = vpack.c.b16 %v3535, %v3534
    %v3764 = vpack.c.b16 %v3537, %v3536
    %v3765 = vpack.c.b16 %v3539, %v3538
    %v3766 = vpack.c.b16 %v3541, %v3540
    %v3767 = vpack.c.b16 %v3543, %v3542
    %v3768 = vpack.c.b16 %v3545, %v3544
    %v3769 = vpack.c.b16 %v3547, %v3546
    %v3770 = vpack.c.b16 %v3549, %v3548
    %v3771 = vpack.c.b16 %v3551, %v3550
    %v3772 = vpack.c.b16 %v3553, %v3552
    %v3773 = vpack.c.b16 %v3555, %v3554
    %v3774 = vpack.c.b16 %v3557, %v3556
    %v3775 = vpack.c.b16 %v3559, %v3558
    %v3776 = vpack.c.b16 %v3561, %v3560
    %v3777 = vpack.c.b16 %v3563, %v3562
    %v3778 = vpack.c.b16 %v3565, %v3564
    %v3779 = vpack.c.b16 %v3567, %v3566
    %v3780 = vpack.c.b16 %v3569, %v3568
    %v3781 = vpack.c.b16 %v3571, %v3570
    %v3782 = vpack.c.b16 %v3573, %v3572
    %v3783 = vpack.c.b16 %v3575, %v3574
    %v3784 = vpack.c.b16 %v3577, %v3576
    %v3785 = vpack.c.b16 %v3579, %v3578
    %v3786 = vpack.c.b16 %v3581, %v3580
    %v3787 = vpack.c.b16 %v3583, %v3582
    %v3788 = vpack.c.b16 %v3585, %v3584
    %v3789 = vpack.c.b16 %v3587, %v3586
    %v3790 = vpack.c.b16 %v3589, %v3588
    %v3791 = vpack.c.b16 %v3591, %v3590
    %v3792 = vpack.c.b16 %v3593, %v3592
    %v3793 = vpack.c.b16 %v3595, %v3594
    %v3794 = vpack.c.b16 %v3597, %v3596
    %v3795 = vpack.c.b16 %v3599, %v3598
    %v3796 = vpack.c.b16 %v3601, %v3600
    %v3797 = vpack.c.b16 %v3603, %v3602
    %v3798 = vpack.c.b16 %v3605, %v3604
    %v3799 = vpack.c.b16 %v3607, %v3606
    %v3800 = vpack.c.b16 %v3609, %v3608
    %v3801 = vpack.c.b16 %v3611, %v3610
    %v3802 = vpack.c.b16 %v3613, %v3612
    %v3803 = vpack.c.b16 %v3615, %v3614
    %v3804 = vpack.c.b16 %v3617, %v3616
    %v3805 = vpack.c.b16 %v3619, %v3618
    %v3806 = vpack.c.b16 %v3621, %v3620
    %v3807 = vpack.c.b16 %v3623, %v3622
    %v3808 = vpack.c.b16 %v3625, %v3624
    %v3809 = vpack.c.b16 %v3627, %v3626
    %v3810 = vpack.c.b16 %v3629, %v3628
    %v3811 = vpack.c.b16 %v3631, %v3630
    %v3812 = vpack.c.b16 %v3633, %v3632
    %v3813 = vpack.c.b16 %v3635, %v3634
    %v3814 = vpack.c.b16 %v3637, %v3636
    %v3815 = vpack.c.b16 %v3639, %v3638
    %v3816 = vpack.c.b16 %v3641, %v3640
    %v3817 = vpack.c.b16 %v3643, %v3642
    %v3818 = vpack.c.b16 %v3645, %v3644
    %v3819 = vpack.c.b16 %v3647, %v3646
    %v3820 = vpack.c.b16 %v3649, %v3648
    %v3821 = vpack.c.b16 %v3651, %v3650
    %v3822 = vpack.c.b16 %v3653, %v3652
    %v3823 = vpack.c.b16 %v3655, %v3654
    %v3824 = vpack.c.b16 %v3657, %v3656
    %v3825 = vpack.c.b16 %v3659, %v3658
    %v3826 = vpack.c.b16 %v3661, %v3660
    %v3827 = vpack.c.b16 %v3663, %v3662
    %v3828 = vpack.c.b16 %v3665, %v3664
    %v3829 = vpack.c.b16 %v3667, %v3666
    %v3830 = vpack.c.b16 %v3669, %v3668
    %v3831 = vpack.c.b16 %v3671, %v3670
    %v3832 = vpack.c.b16 %v3673, %v3672
    %v3833 = vpack.c.b16 %v3675, %v3674
    %v3834 = vpack.c.b16 %v3677, %v3676
    %v3835 = vpack.c.b16 %v3679, %v3678
    %v3836 = vpack.c.b16 %v3681, %v3680
    %v3837 = vpack.c.b16 %v3683, %v3682
    %v3838 = vpack.c.b16 %v3685, %v3684
    %v3839 = vpack.c.b16 %v3687, %v3686
    %v3840 = vpack.c.b16 %v3689, %v3688
    %v3841 = vpack.c.b16 %v3691, %v3690
    %v3842 = vpack.c.b16 %v3693, %v3692
    %v3843 = vpack.c.b16 %v3695, %v3694
    %v3844 = vpack.c.b16 %v3697, %v3696
    %v3845 = vpack.c.b16 %v3699, %v3698
    %v3846 = vpack.c.b16 %v3701, %v3700
    %v3847 = vpack.c.b16 %v3703, %v3702
    %v3848 = vpack.c.b16 %v3705, %v3704
    %v3849 = vpack.c.b16 %v3707, %v3706
    %v3850 = vpack.c.b16 %v3709, %v3708
    %v3851 = vpack.c.b16 %v3711, %v3710
    %v3852 = vpack.c.b16 %v3713, %v3712
    %v3853 = vpack.c.b16 %v3715, %v3714
    %v3854 = vpack.c.b16 %v3717, %v3716
    %v3855 = vpack.c.b16 %v3719, %v3718
    %v3856 = vpack.c.b16 %v3721, %v3720
    %v3857 = vpack.c.b16 %v3723, %v3722
    %v3858 = vpack.c.b16 %v3725, %v3724
    %v3859 = vpack.c.b16 %v3727, %v3726
    %v3860 = vpack.c.b16 %v3729, %v3728
    %v3861 = vpack.c.b16 %v3731, %v3730
    %v3862 = vpack.c.b16 %v3733, %v3732
    %v3863 = vpack.c.b16 %v3735, %v3734
    %3992 = vmatprep.subr.bf16.mxu0 0
    %3993 = vmatpush1.bf16.msra.mxu0 %v3736
    %3994 = vmatprep.subr.bf16.mxu0 0
    %3995 = vmatpush1.bf16.msra.mxu0 %v3737
    %3996 = vmatprep.subr.bf16.mxu0 0
    %3997 = vmatpush1.bf16.msra.mxu0 %v3738
    %3998 = vmatprep.subr.bf16.mxu0 0
    %3999 = vmatpush1.bf16.msra.mxu0 %v3739
    %4000 = vmatprep.subr.bf16.mxu0 0
    %4001 = vmatpush1.bf16.msra.mxu0 %v3740
    %4002 = vmatprep.subr.bf16.mxu0 0
    %4003 = vmatpush1.bf16.msra.mxu0 %v3741
    %4004 = vmatprep.subr.bf16.mxu0 0
    %4005 = vmatpush1.bf16.msra.mxu0 %v3742
    %4006 = vmatprep.subr.bf16.mxu0 0
    %4007 = vmatpush1.bf16.msra.mxu0 %v3743
    %4008 = vmatprep.subr.bf16.mxu0 0
    %4009 = vmatpush1.bf16.msra.mxu0 %v3744
    %4010 = vmatprep.subr.bf16.mxu0 0
    %4011 = vmatpush1.bf16.msra.mxu0 %v3745
    %4012 = vmatprep.subr.bf16.mxu0 0
    %4013 = vmatpush1.bf16.msra.mxu0 %v3746
    %4014 = vmatprep.subr.bf16.mxu0 0
    %4015 = vmatpush1.bf16.msra.mxu0 %v3747
    %4016 = vmatprep.subr.bf16.mxu0 0
    %4017 = vmatpush1.bf16.msra.mxu0 %v3748
    %4018 = vmatprep.subr.bf16.mxu0 0
    %4019 = vmatpush1.bf16.msra.mxu0 %v3749
    %4020 = vmatprep.subr.bf16.mxu0 0
    %4021 = vmatpush1.bf16.msra.mxu0 %v3750
    %4022 = vmatprep.subr.bf16.mxu0 0
    %4023 = vmatpush1.bf16.msra.mxu0 %v3751
    %4024 = vmatprep.mubr.bf16.mxu0 %v2946
    %4025 = vmatmul.mubr.bf16.gmra.mrb[0].mxu0 %v2945
    %v4026 = vpop.f32.mrb[0].mxu0
    %v4027 = vadd.f32 %v3222, %v4026
    %v4028 = vpop.f32.mrb[0].mxu0
    %v4029 = vpop.f32.mrb[0].mxu0
    %v4030 = vadd.f32 %v3222, %v4029
    %v4031 = vpop.f32.mrb[0].mxu0
    %4032 = vdwg.mxu0
    %4033 = vmatprep.subr.bf16.mxu0 0
    %4034 = vmatpush1.bf16.msra.mxu0 %v3752
    %4035 = vmatprep.subr.bf16.mxu0 0
    %4036 = vmatpush1.bf16.msra.mxu0 %v3753
    %4037 = vmatprep.subr.bf16.mxu0 0
    %4038 = vmatpush1.bf16.msra.mxu0 %v3754
    %4039 = vmatprep.subr.bf16.mxu0 0
    %4040 = vmatpush1.bf16.msra.mxu0 %v3755
    %4041 = vmatprep.subr.bf16.mxu0 0
    %4042 = vmatpush1.bf16.msra.mxu0 %v3756
    %4043 = vmatprep.subr.bf16.mxu0 0
    %4044 = vmatpush1.bf16.msra.mxu0 %v3757
    %4045 = vmatprep.subr.bf16.mxu0 0
    %4046 = vmatpush1.bf16.msra.mxu0 %v3758
    %4047 = vmatprep.subr.bf16.mxu0 0
    %4048 = vmatpush1.bf16.msra.mxu0 %v3759
    %4049 = vmatprep.subr.bf16.mxu0 0
    %4050 = vmatpush1.bf16.msra.mxu0 %v3760
    %4051 = vmatprep.subr.bf16.mxu0 0
    %4052 = vmatpush1.bf16.msra.mxu0 %v3761
    %4053 = vmatprep.subr.bf16.mxu0 0
    %4054 = vmatpush1.bf16.msra.mxu0 %v3762
    %4055 = vmatprep.subr.bf16.mxu0 0
    %4056 = vmatpush1.bf16.msra.mxu0 %v3763
    %4057 = vmatprep.subr.bf16.mxu0 0
    %4058 = vmatpush1.bf16.msra.mxu0 %v3764
    %4059 = vmatprep.subr.bf16.mxu0 0
    %4060 = vmatpush1.bf16.msra.mxu0 %v3765
    %4061 = vmatprep.subr.bf16.mxu0 0
    %4062 = vmatpush1.bf16.msra.mxu0 %v3766
    %4063 = vmatprep.subr.bf16.mxu0 0
    %4064 = vmatpush1.bf16.msra.mxu0 %v3767
    %4065 = vmatprep.mubr.bf16.mxu0 %v2948
    %4066 = vmatmul.mubr.bf16.gmra.mrb[0].mxu0 %v2947
    %v4067 = vpop.f32.mrb[0].mxu0
    %v4068 = vadd.f32 %v4027, %v4067
    %v4069 = vpop.f32.mrb[0].mxu0
    %v4070 = vpop.f32.mrb[0].mxu0
    %v4071 = vadd.f32 %v4030, %v4070
    %v4072 = vpop.f32.mrb[0].mxu0
    %4073 = vdwg.mxu0
    %4074 = vmatprep.subr.bf16.mxu0 0
    %4075 = vmatpush1.bf16.msra.mxu0 %v3768
    %4076 = vmatprep.subr.bf16.mxu0 0
    %4077 = vmatpush1.bf16.msra.mxu0 %v3769
    %4078 = vmatprep.subr.bf16.mxu0 0
    %4079 = vmatpush1.bf16.msra.mxu0 %v3770
    %4080 = vmatprep.subr.bf16.mxu0 0
    %4081 = vmatpush1.bf16.msra.mxu0 %v3771
    %4082 = vmatprep.subr.bf16.mxu0 0
    %4083 = vmatpush1.bf16.msra.mxu0 %v3772
    %4084 = vmatprep.subr.bf16.mxu0 0
    %4085 = vmatpush1.bf16.msra.mxu0 %v3773
    %4086 = vmatprep.subr.bf16.mxu0 0
    %4087 = vmatpush1.bf16.msra.mxu0 %v3774
    %4088 = vmatprep.subr.bf16.mxu0 0
    %4089 = vmatpush1.bf16.msra.mxu0 %v3775
    %4090 = vmatprep.subr.bf16.mxu0 0
    %4091 = vmatpush1.bf16.msra.mxu0 %v3776
    %4092 = vmatprep.subr.bf16.mxu0 0
    %4093 = vmatpush1.bf16.msra.mxu0 %v3777
    %4094 = vmatprep.subr.bf16.mxu0 0
    %4095 = vmatpush1.bf16.msra.mxu0 %v3778
    %4096 = vmatprep.subr.bf16.mxu0 0
    %4097 = vmatpush1.bf16.msra.mxu0 %v3779
    %4098 = vmatprep.subr.bf16.mxu0 0
    %4099 = vmatpush1.bf16.msra.mxu0 %v3780
    %4100 = vmatprep.subr.bf16.mxu0 0
    %4101 = vmatpush1.bf16.msra.mxu0 %v3781
    %4102 = vmatprep.subr.bf16.mxu0 0
    %4103 = vmatpush1.bf16.msra.mxu0 %v3782
    %4104 = vmatprep.subr.bf16.mxu0 0
    %4105 = vmatpush1.bf16.msra.mxu0 %v3783
    %4106 = vmatprep.mubr.bf16.mxu0 %v2950
    %4107 = vmatmul.mubr.bf16.gmra.mrb[0].mxu0 %v2949
    %v4108 = vpop.f32.mrb[0].mxu0
    %v4109 = vadd.f32 %v4068, %v4108
    %v4110 = vpop.f32.mrb[0].mxu0
    %v4111 = vpop.f32.mrb[0].mxu0
    %v4112 = vadd.f32 %v4071, %v4111
    %v4113 = vpop.f32.mrb[0].mxu0
    %4114 = vdwg.mxu0
    %4115 = vmatprep.subr.bf16.mxu0 0
    %4116 = vmatpush1.bf16.msra.mxu0 %v3784
    %4117 = vmatprep.subr.bf16.mxu0 0
    %4118 = vmatpush1.bf16.msra.mxu0 %v3785
    %4119 = vmatprep.subr.bf16.mxu0 0
    %4120 = vmatpush1.bf16.msra.mxu0 %v3786
    %4121 = vmatprep.subr.bf16.mxu0 0
    %4122 = vmatpush1.bf16.msra.mxu0 %v3787
    %4123 = vmatprep.subr.bf16.mxu0 0
    %4124 = vmatpush1.bf16.msra.mxu0 %v3788
    %4125 = vmatprep.subr.bf16.mxu0 0
    %4126 = vmatpush1.bf16.msra.mxu0 %v3789
    %4127 = vmatprep.subr.bf16.mxu0 0
    %4128 = vmatpush1.bf16.msra.mxu0 %v3790
    %4129 = vmatprep.subr.bf16.mxu0 0
    %4130 = vmatpush1.bf16.msra.mxu0 %v3791
    %4131 = vmatprep.subr.bf16.mxu0 0
    %4132 = vmatpush1.bf16.msra.mxu0 %v3792
    %4133 = vmatprep.subr.bf16.mxu0 0
    %4134 = vmatpush1.bf16.msra.mxu0 %v3793
    %4135 = vmatprep.subr.bf16.mxu0 0
    %4136 = vmatpush1.bf16.msra.mxu0 %v3794
    %4137 = vmatprep.subr.bf16.mxu0 0
    %4138 = vmatpush1.bf16.msra.mxu0 %v3795
    %4139 = vmatprep.subr.bf16.mxu0 0
    %4140 = vmatpush1.bf16.msra.mxu0 %v3796
    %4141 = vmatprep.subr.bf16.mxu0 0
    %4142 = vmatpush1.bf16.msra.mxu0 %v3797
    %4143 = vmatprep.subr.bf16.mxu0 0
    %4144 = vmatpush1.bf16.msra.mxu0 %v3798
    %4145 = vmatprep.subr.bf16.mxu0 0
    %4146 = vmatpush1.bf16.msra.mxu0 %v3799
    %4147 = vmatprep.mubr.bf16.mxu0 %v2952
    %4148 = vmatmul.mubr.bf16.gmra.mrb[0].mxu0 %v2951
    %v4149 = vpop.f32.mrb[0].mxu0
    %v4150 = vadd.f32 %v4109, %v4149
    %v4151 = vpop.f32.mrb[0].mxu0
    %v4152 = vpop.f32.mrb[0].mxu0
    %v4153 = vadd.f32 %v4112, %v4152
    %v4154 = vpop.f32.mrb[0].mxu0
    %4155 = vdwg.mxu0
    %4156 = vmatprep.subr.bf16.mxu0 0
    %4157 = vmatpush1.bf16.msra.mxu0 %v3800
    %4158 = vmatprep.subr.bf16.mxu0 0
    %4159 = vmatpush1.bf16.msra.mxu0 %v3801
    %4160 = vmatprep.subr.bf16.mxu0 0
    %4161 = vmatpush1.bf16.msra.mxu0 %v3802
    %4162 = vmatprep.subr.bf16.mxu0 0
    %4163 = vmatpush1.bf16.msra.mxu0 %v3803
    %4164 = vmatprep.subr.bf16.mxu0 0
    %4165 = vmatpush1.bf16.msra.mxu0 %v3804
    %4166 = vmatprep.subr.bf16.mxu0 0
    %4167 = vmatpush1.bf16.msra.mxu0 %v3805
    %4168 = vmatprep.subr.bf16.mxu0 0
    %4169 = vmatpush1.bf16.msra.mxu0 %v3806
    %4170 = vmatprep.subr.bf16.mxu0 0
    %4171 = vmatpush1.bf16.msra.mxu0 %v3807
    %4172 = vmatprep.subr.bf16.mxu0 0
    %4173 = vmatpush1.bf16.msra.mxu0 %v3808
    %4174 = vmatprep.subr.bf16.mxu0 0
    %4175 = vmatpush1.bf16.msra.mxu0 %v3809
    %4176 = vmatprep.subr.bf16.mxu0 0
    %4177 = vmatpush1.bf16.msra.mxu0 %v3810
    %4178 = vmatprep.subr.bf16.mxu0 0
    %4179 = vmatpush1.bf16.msra.mxu0 %v3811
    %4180 = vmatprep.subr.bf16.mxu0 0
    %4181 = vmatpush1.bf16.msra.mxu0 %v3812
    %4182 = vmatprep.subr.bf16.mxu0 0
    %4183 = vmatpush1.bf16.msra.mxu0 %v3813
    %4184 = vmatprep.subr.bf16.mxu0 0
    %4185 = vmatpush1.bf16.msra.mxu0 %v3814
    %4186 = vmatprep.subr.bf16.mxu0 0
    %4187 = vmatpush1.bf16.msra.mxu0 %v3815
    %4188 = vmatprep.mubr.bf16.mxu0 %v2954
    %4189 = vmatmul.mubr.bf16.gmra.mrb[0].mxu0 %v2953
    %v4190 = vpop.f32.mrb[0].mxu0
    %v4191 = vadd.f32 %v4150, %v4190
    %v4192 = vpop.f32.mrb[0].mxu0
    %v4193 = vpop.f32.mrb[0].mxu0
    %v4194 = vadd.f32 %v4153, %v4193
    %v4195 = vpop.f32.mrb[0].mxu0
    %4196 = vdwg.mxu0
    %4197 = vmatprep.subr.bf16.mxu0 0
    %4198 = vmatpush1.bf16.msra.mxu0 %v3816
    %4199 = vmatprep.subr.bf16.mxu0 0
    %4200 = vmatpush1.bf16.msra.mxu0 %v3817
    %4201 = vmatprep.subr.bf16.mxu0 0
    %4202 = vmatpush1.bf16.msra.mxu0 %v3818
    %4203 = vmatprep.subr.bf16.mxu0 0
    %4204 = vmatpush1.bf16.msra.mxu0 %v3819
    %4205 = vmatprep.subr.bf16.mxu0 0
    %4206 = vmatpush1.bf16.msra.mxu0 %v3820
    %4207 = vmatprep.subr.bf16.mxu0 0
    %4208 = vmatpush1.bf16.msra.mxu0 %v3821
    %4209 = vmatprep.subr.bf16.mxu0 0
    %4210 = vmatpush1.bf16.msra.mxu0 %v3822
    %4211 = vmatprep.subr.bf16.mxu0 0
    %4212 = vmatpush1.bf16.msra.mxu0 %v3823
    %4213 = vmatprep.subr.bf16.mxu0 0
    %4214 = vmatpush1.bf16.msra.mxu0 %v3824
    %4215 = vmatprep.subr.bf16.mxu0 0
    %4216 = vmatpush1.bf16.msra.mxu0 %v3825
    %4217 = vmatprep.subr.bf16.mxu0 0
    %4218 = vmatpush1.bf16.msra.mxu0 %v3826
    %4219 = vmatprep.subr.bf16.mxu0 0
    %4220 = vmatpush1.bf16.msra.mxu0 %v3827
    %4221 = vmatprep.subr.bf16.mxu0 0
    %4222 = vmatpush1.bf16.msra.mxu0 %v3828
    %4223 = vmatprep.subr.bf16.mxu0 0
    %4224 = vmatpush1.bf16.msra.mxu0 %v3829
    %4225 = vmatprep.subr.bf16.mxu0 0
    %4226 = vmatpush1.bf16.msra.mxu0 %v3830
    %4227 = vmatprep.subr.bf16.mxu0 0
    %4228 = vmatpush1.bf16.msra.mxu0 %v3831
    %4229 = vmatprep.mubr.bf16.mxu0 %v2956
    %4230 = vmatmul.mubr.bf16.gmra.mrb[0].mxu0 %v2955
    %v4231 = vpop.f32.mrb[0].mxu0
    %v4232 = vadd.f32 %v4191, %v4231
    %v4233 = vpop.f32.mrb[0].mxu0
    %v4234 = vpop.f32.mrb[0].mxu0
    %v4235 = vadd.f32 %v4194, %v4234
    %v4236 = vpop.f32.mrb[0].mxu0
    %4237 = vdwg.mxu0
    %4238 = vmatprep.subr.bf16.mxu0 0
    %4239 = vmatpush1.bf16.msra.mxu0 %v3832
    %4240 = vmatprep.subr.bf16.mxu0 0
    %4241 = vmatpush1.bf16.msra.mxu0 %v3833
    %4242 = vmatprep.subr.bf16.mxu0 0
    %4243 = vmatpush1.bf16.msra.mxu0 %v3834
    %4244 = vmatprep.subr.bf16.mxu0 0
    %4245 = vmatpush1.bf16.msra.mxu0 %v3835
    %4246 = vmatprep.subr.bf16.mxu0 0
    %4247 = vmatpush1.bf16.msra.mxu0 %v3836
    %4248 = vmatprep.subr.bf16.mxu0 0
    %4249 = vmatpush1.bf16.msra.mxu0 %v3837
    %4250 = vmatprep.subr.bf16.mxu0 0
    %4251 = vmatpush1.bf16.msra.mxu0 %v3838
    %4252 = vmatprep.subr.bf16.mxu0 0
    %4253 = vmatpush1.bf16.msra.mxu0 %v3839
    %4254 = vmatprep.subr.bf16.mxu0 0
    %4255 = vmatpush1.bf16.msra.mxu0 %v3840
    %4256 = vmatprep.subr.bf16.mxu0 0
    %4257 = vmatpush1.bf16.msra.mxu0 %v3841
    %4258 = vmatprep.subr.bf16.mxu0 0
    %4259 = vmatpush1.bf16.msra.mxu0 %v3842
    %4260 = vmatprep.subr.bf16.mxu0 0
    %4261 = vmatpush1.bf16.msra.mxu0 %v3843
    %4262 = vmatprep.subr.bf16.mxu0 0
    %4263 = vmatpush1.bf16.msra.mxu0 %v3844
    %4264 = vmatprep.subr.bf16.mxu0 0
    %4265 = vmatpush1.bf16.msra.mxu0 %v3845
    %4266 = vmatprep.subr.bf16.mxu0 0
    %4267 = vmatpush1.bf16.msra.mxu0 %v3846
    %4268 = vmatprep.subr.bf16.mxu0 0
    %4269 = vmatpush1.bf16.msra.mxu0 %v3847
    %4270 = vmatprep.mubr.bf16.mxu0 %v2958
    %4271 = vmatmul.mubr.bf16.gmra.mrb[0].mxu0 %v2957
    %v4272 = vpop.f32.mrb[0].mxu0
    %v4273 = vadd.f32 %v4232, %v4272
    %v4274 = vpop.f32.mrb[0].mxu0
    %v4275 = vpop.f32.mrb[0].mxu0
    %v4276 = vadd.f32 %v4235, %v4275
    %v4277 = vpop.f32.mrb[0].mxu0
    %4278 = vdwg.mxu0
    %4279 = vmatprep.subr.bf16.mxu0 0
    %4280 = vmatpush1.bf16.msra.mxu0 %v3848
    %4281 = vmatprep.subr.bf16.mxu0 0
    %4282 = vmatpush1.bf16.msra.mxu0 %v3849
    %4283 = vmatprep.subr.bf16.mxu0 0
    %4284 = vmatpush1.bf16.msra.mxu0 %v3850
    %4285 = vmatprep.subr.bf16.mxu0 0
    %4286 = vmatpush1.bf16.msra.mxu0 %v3851
    %4287 = vmatprep.subr.bf16.mxu0 0
    %4288 = vmatpush1.bf16.msra.mxu0 %v3852
    %4289 = vmatprep.subr.bf16.mxu0 0
    %4290 = vmatpush1.bf16.msra.mxu0 %v3853
    %4291 = vmatprep.subr.bf16.mxu0 0
    %4292 = vmatpush1.bf16.msra.mxu0 %v3854
    %4293 = vmatprep.subr.bf16.mxu0 0
    %4294 = vmatpush1.bf16.msra.mxu0 %v3855
    %4295 = vmatprep.subr.bf16.mxu0 0
    %4296 = vmatpush1.bf16.msra.mxu0 %v3856
    %4297 = vmatprep.subr.bf16.mxu0 0
    %4298 = vmatpush1.bf16.msra.mxu0 %v3857
    %4299 = vmatprep.subr.bf16.mxu0 0
    %4300 = vmatpush1.bf16.msra.mxu0 %v3858
    %4301 = vmatprep.subr.bf16.mxu0 0
    %4302 = vmatpush1.bf16.msra.mxu0 %v3859
    %4303 = vmatprep.subr.bf16.mxu0 0
    %4304 = vmatpush1.bf16.msra.mxu0 %v3860
    %4305 = vmatprep.subr.bf16.mxu0 0
    %4306 = vmatpush1.bf16.msra.mxu0 %v3861
    %4307 = vmatprep.subr.bf16.mxu0 0
    %4308 = vmatpush1.bf16.msra.mxu0 %v3862
    %4309 = vmatprep.subr.bf16.mxu0 0
    %4310 = vmatpush1.bf16.msra.mxu0 %v3863
    %4311 = vmatprep.mubr.bf16.mxu0 %v2960
    %4312 = vmatmul.mubr.bf16.gmra.mrb[0].mxu0 %v2959
    %v4313 = vpop.f32.mrb[0].mxu0
    %v4314 = vadd.f32 %v4273, %v4313
    %v4315 = vpop.f32.mrb[0].mxu0
    %v4316 = vpop.f32.mrb[0].mxu0
    %v4317 = vadd.f32 %v4276, %v4316
    %v4318 = vpop.f32.mrb[0].mxu0
    %4319 = vdwg.mxu0
    %v4320 = vadd.f32 %v2287, %v4314
    %v4321 = vadd.f32 %v2288, %v4317
    %v4322 = vld [vmem:[%s16] sm:$0x1]
    %v4323 = vld [vmem:[%s17] sm:$0x1]
    %v4324 = vsel %vm90, %v4320, 0.0
    %4325 = vadd.xlane.f32.xlu0 %v4324
    %v4326 = vpop.xlane.xlu0 %4325
    %v4327 = vsel %vm90, %v4321, 0.0
    %4328 = vadd.xlane.f32.xlu0 %v4327
    %v4329 = vpop.xlane.xlu0 %4328
    %v4330 = vmul.f32 %v4326, %v2252
    %v4331 = vmul.f32 %v4329, %v2252
    %v4332 = vsub.f32 %v4320, %v4330
    %v4333 = vsub.f32 %v4321, %v4331
    %v4334 = vmul.f32 %v4332, %v4332
    %v4335 = vmul.f32 %v4333, %v4333
    %v4336 = vsel %vm90, %v4334, 0.0
    %4337 = vadd.xlane.f32.xlu0 %v4336
    %v4338 = vpop.xlane.xlu0 %4337
    %v4339 = vsel %vm90, %v4335, 0.0
    %4340 = vadd.xlane.f32.xlu0 %v4339
    %v4341 = vpop.xlane.xlu0 %4340
    %v4342 = vmul.f32 %v4338, %v2252
    %v4343 = vmul.f32 %v4341, %v2252
    %v4344 = vadd.f32 %v4342, 1e-05
    %v4345 = vadd.f32 %v4343, 1e-05
    %v4346 = vrsqrt.pop %v4344
    %v4347 = vrsqrt.pop %v4345
    %v4348 = vmul.f32 %v4332, %v4346
    %v4349 = vmul.f32 %v4333, %v4347
    %v4351 = vlaneseq
    %v4352 = vshrl.u32 %v4351, 7
    %v4353 = vsub.s32 0, %v4352
    %v4354 = vrot.slane %v4322, %v4353
    %v4356 = vmul.f32 %v4348, %v4354
    %v4357 = vmul.f32 %v4349, %v4354
    %v4359 = vlaneseq
    %v4360 = vshrl.u32 %v4359, 7
    %v4361 = vsub.s32 0, %v4360
    %v4362 = vrot.slane %v4323, %v4361
    %v4364 = vadd.f32 %v4356, %v4362
    %v4365 = vadd.f32 %v4357, %v4362
    %s4366 = scalar_lea.vmem %s2, 128
    %v4367 = vld [vmem:[%s4366] sm:$0xff]
    %v4368 = vld [vmem:[%s4366 + $0x8] sm:$0xff]
    %v4369 = vld [vmem:[%s4366 + $0x10] sm:$0xff]
    %v4370 = vld [vmem:[%s4366 + $0x18] sm:$0xff]
    %s4371 = scalar_lea.vmem %s3, 4
    %v4372 = vld [vmem:[%s4371] sm:$0x1]
    %v4374 = vlaneseq
    %v4375 = vshrl.u32 %v4374, 7
    %v4376 = vsub.s32 0, %v4375
    %v4377 = vrot.slane %v4372, %v4376
    %v4380 = vsel %vm90, %v4364, 0
    %v4383 = vsel %vm90, %v4365, 0
    %4385 = vmatprep.subr.mxu0 0.0
    %4386 = vmatpush1.msra.mxu0 %v4367
    %4387 = vmatprep.subr.mxu0 0.0
    %4388 = vmatpush1.msra.mxu0 %v4368
    %4389 = vmatprep.subr.mxu0 0.0
    %4390 = vmatpush1.msra.mxu0 %v4369
    %4391 = vmatprep.subr.mxu0 0.0
    %4392 = vmatpush1.msra.mxu0 %v4370
    %4393 = vmatprep.subr.mxu0 0.0
    %4394 = vmatpush1.msra.mxu0 0.0
    %4395 = vmatprep.subr.mxu0 0.0
    %4396 = vmatpush1.msra.mxu0 0.0
    %4397 = vmatprep.subr.mxu0 0.0
    %4398 = vmatpush1.msra.mxu0 0.0
    %4399 = vmatprep.subr.mxu0 0.0
    %4400 = vmatpush1.msra.mxu0 0.0
    %4401 = vmatprep.subr.mxu0 0.0
    %4402 = vmatpush1.msra.mxu0 0.0
    %4403 = vmatprep.subr.mxu0 0.0
    %4404 = vmatpush1.msra.mxu0 0.0
    %4405 = vmatprep.subr.mxu0 0.0
    %4406 = vmatpush1.msra.mxu0 0.0
    %4407 = vmatprep.subr.mxu0 0.0
    %4408 = vmatpush1.msra.mxu0 0.0
    %4409 = vmatprep.subr.mxu0 0.0
    %4410 = vmatpush1.msra.mxu0 0.0
    %4411 = vmatprep.subr.mxu0 0.0
    %4412 = vmatpush1.msra.mxu0 0.0
    %4413 = vmatprep.subr.mxu0 0.0
    %4414 = vmatpush1.msra.mxu0 0.0
    %4415 = vmatprep.subr.mxu0 0.0
    %4416 = vmatpush1.msra.mxu0 0.0
    %4417 = vmatprep.subr.mxu0 0.0
    %4418 = vmatpush1.msra.mxu0 0.0
    %4419 = vmatprep.subr.mxu0 0.0
    %4420 = vmatpush1.msra.mxu0 0.0
    %4421 = vmatprep.subr.mxu0 0.0
    %4422 = vmatpush1.msra.mxu0 0.0
    %4423 = vmatprep.subr.mxu0 0.0
    %4424 = vmatpush1.msra.mxu0 0.0
    %4425 = vmatprep.subr.mxu0 0.0
    %4426 = vmatpush1.msra.mxu0 0.0
    %4427 = vmatprep.subr.mxu0 0.0
    %4428 = vmatpush1.msra.mxu0 0.0
    %4429 = vmatprep.subr.mxu0 0.0
    %4430 = vmatpush1.msra.mxu0 0.0
    %4431 = vmatprep.subr.mxu0 0.0
    %4432 = vmatpush1.msra.mxu0 0.0
    %4433 = vmatprep.subr.mxu0 0.0
    %4434 = vmatpush1.msra.mxu0 0.0
    %4435 = vmatprep.subr.mxu0 0.0
    %4436 = vmatpush1.msra.mxu0 0.0
    %4437 = vmatprep.subr.mxu0 0.0
    %4438 = vmatpush1.msra.mxu0 0.0
    %4439 = vmatprep.subr.mxu0 0.0
    %4440 = vmatpush1.msra.mxu0 0.0
    %4441 = vmatprep.subr.mxu0 0.0
    %4442 = vmatpush1.msra.mxu0 0.0
    %4443 = vmatprep.subr.mxu0 0.0
    %4444 = vmatpush1.msra.mxu0 0.0
    %4445 = vmatprep.subr.mxu0 0.0
    %4446 = vmatpush1.msra.mxu0 0.0
    %4447 = vmatprep.subr.mxu0 0.0
    %4448 = vmatpush1.msra.mxu0 0.0
    %4449 = vmatprep.mubr.f32.mxu0 0.0
    %4450 = vmatmul.mubr.f32.gmra.mrb[0].mxu0 %v4380
    %v4451 = vpop.f32.mrb[0].mxu0
    %v4452 = vadd.f32 %v4377, %v4451
    %v4453 = vpop.f32.mrb[0].mxu0
    %4454 = vmatprep.mubr.f32.mxu0 0.0
    %4455 = vmatmul.mubr.f32.gmra.mrb[0].mxu0 %v4383
    %v4456 = vpop.f32.mrb[0].mxu0
    %v4457 = vadd.f32 %v4377, %v4456
    %v4458 = vpop.f32.mrb[0].mxu0
    %4459 = vdwg.mxu0
    %s4460 = scalar_lea.vmem %s4, 128
    %v4461 = vld [vmem:[%s4460] sm:$0xff]
    %v4462 = vld [vmem:[%s4460 + $0x8] sm:$0xff]
    %v4463 = vld [vmem:[%s4460 + $0x10] sm:$0xff]
    %v4464 = vld [vmem:[%s4460 + $0x18] sm:$0xff]
    %s4465 = scalar_lea.vmem %s5, 4
    %v4466 = vld [vmem:[%s4465] sm:$0x1]
    %v4468 = vlaneseq
    %v4469 = vshrl.u32 %v4468, 7
    %v4470 = vsub.s32 0, %v4469
    %v4471 = vrot.slane %v4466, %v4470
    %4473 = vmatprep.subr.mxu0 0.0
    %4474 = vmatpush1.msra.mxu0 %v4461
    %4475 = vmatprep.subr.mxu0 0.0
    %4476 = vmatpush1.msra.mxu0 %v4462
    %4477 = vmatprep.subr.mxu0 0.0
    %4478 = vmatpush1.msra.mxu0 %v4463
    %4479 = vmatprep.subr.mxu0 0.0
    %4480 = vmatpush1.msra.mxu0 %v4464
    %4481 = vmatprep.subr.mxu0 0.0
    %4482 = vmatpush1.msra.mxu0 0.0
    %4483 = vmatprep.subr.mxu0 0.0
    %4484 = vmatpush1.msra.mxu0 0.0
    %4485 = vmatprep.subr.mxu0 0.0
    %4486 = vmatpush1.msra.mxu0 0.0
    %4487 = vmatprep.subr.mxu0 0.0
    %4488 = vmatpush1.msra.mxu0 0.0
    %4489 = vmatprep.subr.mxu0 0.0
    %4490 = vmatpush1.msra.mxu0 0.0
    %4491 = vmatprep.subr.mxu0 0.0
    %4492 = vmatpush1.msra.mxu0 0.0
    %4493 = vmatprep.subr.mxu0 0.0
    %4494 = vmatpush1.msra.mxu0 0.0
    %4495 = vmatprep.subr.mxu0 0.0
    %4496 = vmatpush1.msra.mxu0 0.0
    %4497 = vmatprep.subr.mxu0 0.0
    %4498 = vmatpush1.msra.mxu0 0.0
    %4499 = vmatprep.subr.mxu0 0.0
    %4500 = vmatpush1.msra.mxu0 0.0
    %4501 = vmatprep.subr.mxu0 0.0
    %4502 = vmatpush1.msra.mxu0 0.0
    %4503 = vmatprep.subr.mxu0 0.0
    %4504 = vmatpush1.msra.mxu0 0.0
    %4505 = vmatprep.subr.mxu0 0.0
    %4506 = vmatpush1.msra.mxu0 0.0
    %4507 = vmatprep.subr.mxu0 0.0
    %4508 = vmatpush1.msra.mxu0 0.0
    %4509 = vmatprep.subr.mxu0 0.0
    %4510 = vmatpush1.msra.mxu0 0.0
    %4511 = vmatprep.subr.mxu0 0.0
    %4512 = vmatpush1.msra.mxu0 0.0
    %4513 = vmatprep.subr.mxu0 0.0
    %4514 = vmatpush1.msra.mxu0 0.0
    %4515 = vmatprep.subr.mxu0 0.0
    %4516 = vmatpush1.msra.mxu0 0.0
    %4517 = vmatprep.subr.mxu0 0.0
    %4518 = vmatpush1.msra.mxu0 0.0
    %4519 = vmatprep.subr.mxu0 0.0
    %4520 = vmatpush1.msra.mxu0 0.0
    %4521 = vmatprep.subr.mxu0 0.0
    %4522 = vmatpush1.msra.mxu0 0.0
    %4523 = vmatprep.subr.mxu0 0.0
    %4524 = vmatpush1.msra.mxu0 0.0
    %4525 = vmatprep.subr.mxu0 0.0
    %4526 = vmatpush1.msra.mxu0 0.0
    %4527 = vmatprep.subr.mxu0 0.0
    %4528 = vmatpush1.msra.mxu0 0.0
    %4529 = vmatprep.subr.mxu0 0.0
    %4530 = vmatpush1.msra.mxu0 0.0
    %4531 = vmatprep.subr.mxu0 0.0
    %4532 = vmatpush1.msra.mxu0 0.0
    %4533 = vmatprep.subr.mxu0 0.0
    %4534 = vmatpush1.msra.mxu0 0.0
    %4535 = vmatprep.subr.mxu0 0.0
    %4536 = vmatpush1.msra.mxu0 0.0
    %4537 = vmatprep.mubr.f32.mxu0 0.0
    %4538 = vmatmul.mubr.f32.gmra.mrb[0].mxu0 %v4380
    %v4539 = vpop.f32.mrb[0].mxu0
    %v4540 = vadd.f32 %v4471, %v4539
    %v4541 = vpop.f32.mrb[0].mxu0
    %4542 = vmatprep.mubr.f32.mxu0 0.0
    %4543 = vmatmul.mubr.f32.gmra.mrb[0].mxu0 %v4383
    %v4544 = vpop.f32.mrb[0].mxu0
    %v4545 = vadd.f32 %v4471, %v4544
    %v4546 = vpop.f32.mrb[0].mxu0
    %4547 = vdwg.mxu0
    %s4548 = scalar_lea.vmem %s6, 128
    %v4549 = vld [vmem:[%s4548] sm:$0xff]
    %v4550 = vld [vmem:[%s4548 + $0x8] sm:$0xff]
    %v4551 = vld [vmem:[%s4548 + $0x10] sm:$0xff]
    %v4552 = vld [vmem:[%s4548 + $0x18] sm:$0xff]
    %s4553 = scalar_lea.vmem %s7, 4
    %v4554 = vld [vmem:[%s4553] sm:$0x1]
    %v4556 = vlaneseq
    %v4557 = vshrl.u32 %v4556, 7
    %v4558 = vsub.s32 0, %v4557
    %v4559 = vrot.slane %v4554, %v4558
    %4561 = vmatprep.subr.mxu0 0.0
    %4562 = vmatpush1.msra.mxu0 %v4549
    %4563 = vmatprep.subr.mxu0 0.0
    %4564 = vmatpush1.msra.mxu0 %v4550
    %4565 = vmatprep.subr.mxu0 0.0
    %4566 = vmatpush1.msra.mxu0 %v4551
    %4567 = vmatprep.subr.mxu0 0.0
    %4568 = vmatpush1.msra.mxu0 %v4552
    %4569 = vmatprep.subr.mxu0 0.0
    %4570 = vmatpush1.msra.mxu0 0.0
    %4571 = vmatprep.subr.mxu0 0.0
    %4572 = vmatpush1.msra.mxu0 0.0
    %4573 = vmatprep.subr.mxu0 0.0
    %4574 = vmatpush1.msra.mxu0 0.0
    %4575 = vmatprep.subr.mxu0 0.0
    %4576 = vmatpush1.msra.mxu0 0.0
    %4577 = vmatprep.subr.mxu0 0.0
    %4578 = vmatpush1.msra.mxu0 0.0
    %4579 = vmatprep.subr.mxu0 0.0
    %4580 = vmatpush1.msra.mxu0 0.0
    %4581 = vmatprep.subr.mxu0 0.0
    %4582 = vmatpush1.msra.mxu0 0.0
    %4583 = vmatprep.subr.mxu0 0.0
    %4584 = vmatpush1.msra.mxu0 0.0
    %4585 = vmatprep.subr.mxu0 0.0
    %4586 = vmatpush1.msra.mxu0 0.0
    %4587 = vmatprep.subr.mxu0 0.0
    %4588 = vmatpush1.msra.mxu0 0.0
    %4589 = vmatprep.subr.mxu0 0.0
    %4590 = vmatpush1.msra.mxu0 0.0
    %4591 = vmatprep.subr.mxu0 0.0
    %4592 = vmatpush1.msra.mxu0 0.0
    %4593 = vmatprep.subr.mxu0 0.0
    %4594 = vmatpush1.msra.mxu0 0.0
    %4595 = vmatprep.subr.mxu0 0.0
    %4596 = vmatpush1.msra.mxu0 0.0
    %4597 = vmatprep.subr.mxu0 0.0
    %4598 = vmatpush1.msra.mxu0 0.0
    %4599 = vmatprep.subr.mxu0 0.0
    %4600 = vmatpush1.msra.mxu0 0.0
    %4601 = vmatprep.subr.mxu0 0.0
    %4602 = vmatpush1.msra.mxu0 0.0
    %4603 = vmatprep.subr.mxu0 0.0
    %4604 = vmatpush1.msra.mxu0 0.0
    %4605 = vmatprep.subr.mxu0 0.0
    %4606 = vmatpush1.msra.mxu0 0.0
    %4607 = vmatprep.subr.mxu0 0.0
    %4608 = vmatpush1.msra.mxu0 0.0
    %4609 = vmatprep.subr.mxu0 0.0
    %4610 = vmatpush1.msra.mxu0 0.0
    %4611 = vmatprep.subr.mxu0 0.0
    %4612 = vmatpush1.msra.mxu0 0.0
    %4613 = vmatprep.subr.mxu0 0.0
    %4614 = vmatpush1.msra.mxu0 0.0
    %4615 = vmatprep.subr.mxu0 0.0
    %4616 = vmatpush1.msra.mxu0 0.0
    %4617 = vmatprep.subr.mxu0 0.0
    %4618 = vmatpush1.msra.mxu0 0.0
    %4619 = vmatprep.subr.mxu0 0.0
    %4620 = vmatpush1.msra.mxu0 0.0
    %4621 = vmatprep.subr.mxu0 0.0
    %4622 = vmatpush1.msra.mxu0 0.0
    %4623 = vmatprep.subr.mxu0 0.0
    %4624 = vmatpush1.msra.mxu0 0.0
    %4625 = vmatprep.mubr.f32.mxu0 0.0
    %4626 = vmatmul.mubr.f32.gmra.mrb[0].mxu0 %v4380
    %v4627 = vpop.f32.mrb[0].mxu0
    %v4628 = vadd.f32 %v4559, %v4627
    %v4629 = vpop.f32.mrb[0].mxu0
    %4630 = vmatprep.mubr.f32.mxu0 0.0
    %4631 = vmatmul.mubr.f32.gmra.mrb[0].mxu0 %v4383
    %v4632 = vpop.f32.mrb[0].mxu0
    %v4633 = vadd.f32 %v4559, %v4632
    %v4634 = vpop.f32.mrb[0].mxu0
    %4635 = vdwg.mxu0
    %v4637 = vsel %vm344, %v4452, 0
    %v4640 = vsel %vm344, %v4457, 0
    %v4643 = vsel %vm344, %v4540, 0
    %v4646 = vsel %vm344, %v4545, 0
    %4648 = vmatprep.subr.mxu0 0.0
    %4649 = vmatpush1.xpose.msra.mxu0 %v4643
    %4650 = vmatprep.subr.mxu0 0.0
    %4651 = vmatpush1.xpose.msra.mxu0 %v4646
    %4652 = vmatprep.subr.mxu0 0.0
    %4653 = vmatpush1.xpose.msra.mxu0 0.0
    %4654 = vmatprep.subr.mxu0 0.0
    %4655 = vmatpush1.xpose.msra.mxu0 0.0
    %4656 = vmatprep.subr.mxu0 0.0
    %4657 = vmatpush1.xpose.msra.mxu0 0.0
    %4658 = vmatprep.subr.mxu0 0.0
    %4659 = vmatpush1.xpose.msra.mxu0 0.0
    %4660 = vmatprep.subr.mxu0 0.0
    %4661 = vmatpush1.xpose.msra.mxu0 0.0
    %4662 = vmatprep.subr.mxu0 0.0
    %4663 = vmatpush1.xpose.msra.mxu0 0.0
    %4664 = vmatprep.subr.mxu0 0.0
    %4665 = vmatpush1.xpose.msra.mxu0 0.0
    %4666 = vmatprep.subr.mxu0 0.0
    %4667 = vmatpush1.xpose.msra.mxu0 0.0
    %4668 = vmatprep.subr.mxu0 0.0
    %4669 = vmatpush1.xpose.msra.mxu0 0.0
    %4670 = vmatprep.subr.mxu0 0.0
    %4671 = vmatpush1.xpose.msra.mxu0 0.0
    %4672 = vmatprep.subr.mxu0 0.0
    %4673 = vmatpush1.xpose.msra.mxu0 0.0
    %4674 = vmatprep.subr.mxu0 0.0
    %4675 = vmatpush1.xpose.msra.mxu0 0.0
    %4676 = vmatprep.subr.mxu0 0.0
    %4677 = vmatpush1.xpose.msra.mxu0 0.0
    %4678 = vmatprep.subr.mxu0 0.0
    %4679 = vmatpush1.xpose.msra.mxu0 0.0
    %4680 = vmatprep.subr.mxu0 0.0
    %4681 = vmatpush1.xpose.msra.mxu0 0.0
    %4682 = vmatprep.subr.mxu0 0.0
    %4683 = vmatpush1.xpose.msra.mxu0 0.0
    %4684 = vmatprep.subr.mxu0 0.0
    %4685 = vmatpush1.xpose.msra.mxu0 0.0
    %4686 = vmatprep.subr.mxu0 0.0
    %4687 = vmatpush1.xpose.msra.mxu0 0.0
    %4688 = vmatprep.subr.mxu0 0.0
    %4689 = vmatpush1.xpose.msra.mxu0 0.0
    %4690 = vmatprep.subr.mxu0 0.0
    %4691 = vmatpush1.xpose.msra.mxu0 0.0
    %4692 = vmatprep.subr.mxu0 0.0
    %4693 = vmatpush1.xpose.msra.mxu0 0.0
    %4694 = vmatprep.subr.mxu0 0.0
    %4695 = vmatpush1.xpose.msra.mxu0 0.0
    %4696 = vmatprep.subr.mxu0 0.0
    %4697 = vmatpush1.xpose.msra.mxu0 0.0
    %4698 = vmatprep.subr.mxu0 0.0
    %4699 = vmatpush1.xpose.msra.mxu0 0.0
    %4700 = vmatprep.subr.mxu0 0.0
    %4701 = vmatpush1.xpose.msra.mxu0 0.0
    %4702 = vmatprep.subr.mxu0 0.0
    %4703 = vmatpush1.xpose.msra.mxu0 0.0
    %4704 = vmatprep.subr.mxu0 0.0
    %4705 = vmatpush1.xpose.msra.mxu0 0.0
    %4706 = vmatprep.subr.mxu0 0.0
    %4707 = vmatpush1.xpose.msra.mxu0 0.0
    %4708 = vmatprep.subr.mxu0 0.0
    %4709 = vmatpush1.xpose.msra.mxu0 0.0
    %4710 = vmatprep.subr.mxu0 0.0
    %4711 = vmatpush1.xpose.msra.mxu0 0.0
    %4712 = vmatprep.mubr.f32.mxu0 0.0
    %4713 = vmatmul.mubr.f32.gmra.mrb[0].mxu0 %v4637
    %v4714 = vpop.f32.mrb[0].mxu0
    %v4715 = vadd.f32 %v77, %v4714
    %v4716 = vpop.f32.mrb[0].mxu0
    %4717 = vmatprep.mubr.f32.mxu0 0.0
    %4718 = vmatmul.mubr.f32.gmra.mrb[0].mxu0 %v4640
    %v4719 = vpop.f32.mrb[0].mxu0
    %v4720 = vadd.f32 %v78, %v4719
    %v4721 = vpop.f32.mrb[0].mxu0
    %4722 = vdwg.mxu0
    %v4723 = vsel %vm432, %v4715, -inf
    %4724 = vmax.xlane.f32.xlu0 %v4723
    %v4725 = vpop.xlane.xlu0 %4724
    %v4726 = vsel %vm432, %v4720, -inf
    %4727 = vmax.xlane.f32.xlu0 %v4726
    %v4728 = vpop.xlane.xlu0 %4727
    %v4729 = vsub.f32 %v4715, %v4725
    %v4730 = vsub.f32 %v4720, %v4728
    %v4731 = vmul.f32 %v4729, 1.442695
    %v4732 = vpow.pop %v4731
    %v4733 = vmul.f32 %v4730, 1.442695
    %v4734 = vpow.pop %v4733
    %v4735 = vsel %vm432, %v4732, 0.0
    %4736 = vadd.xlane.f32.xlu0 %v4735
    %v4737 = vpop.xlane.xlu0 %4736
    %v4738 = vsel %vm432, %v4734, 0.0
    %4739 = vadd.xlane.f32.xlu0 %v4738
    %v4740 = vpop.xlane.xlu0 %4739
    %v4741 = vrcp.pop %v4737
    %v4742 = vrcp.pop %v4740
    %v4743 = vmul.f32 %v4732, %v4741
    %v4744 = vmul.f32 %v4734, %v4742
    %v4746 = vsel %vm432, %v4743, 0
    %v4749 = vsel %vm432, %v4744, 0
    %4751 = vmatprep.subr.mxu0 0.0
    %4752 = vmatpush1.msra.mxu0 %v4628
    %4753 = vmatprep.subr.mxu0 0.0
    %4754 = vmatpush1.msra.mxu0 %v4633
    %4755 = vmatprep.subr.mxu0 0.0
    %4756 = vmatpush1.msra.mxu0 0.0
    %4757 = vmatprep.subr.mxu0 0.0
    %4758 = vmatpush1.msra.mxu0 0.0
    %4759 = vmatprep.subr.mxu0 0.0
    %4760 = vmatpush1.msra.mxu0 0.0
    %4761 = vmatprep.subr.mxu0 0.0
    %4762 = vmatpush1.msra.mxu0 0.0
    %4763 = vmatprep.subr.mxu0 0.0
    %4764 = vmatpush1.msra.mxu0 0.0
    %4765 = vmatprep.subr.mxu0 0.0
    %4766 = vmatpush1.msra.mxu0 0.0
    %4767 = vmatprep.subr.mxu0 0.0
    %4768 = vmatpush1.msra.mxu0 0.0
    %4769 = vmatprep.subr.mxu0 0.0
    %4770 = vmatpush1.msra.mxu0 0.0
    %4771 = vmatprep.subr.mxu0 0.0
    %4772 = vmatpush1.msra.mxu0 0.0
    %4773 = vmatprep.subr.mxu0 0.0
    %4774 = vmatpush1.msra.mxu0 0.0
    %4775 = vmatprep.subr.mxu0 0.0
    %4776 = vmatpush1.msra.mxu0 0.0
    %4777 = vmatprep.subr.mxu0 0.0
    %4778 = vmatpush1.msra.mxu0 0.0
    %4779 = vmatprep.subr.mxu0 0.0
    %4780 = vmatpush1.msra.mxu0 0.0
    %4781 = vmatprep.subr.mxu0 0.0
    %4782 = vmatpush1.msra.mxu0 0.0
    %4783 = vmatprep.subr.mxu0 0.0
    %4784 = vmatpush1.msra.mxu0 0.0
    %4785 = vmatprep.subr.mxu0 0.0
    %4786 = vmatpush1.msra.mxu0 0.0
    %4787 = vmatprep.subr.mxu0 0.0
    %4788 = vmatpush1.msra.mxu0 0.0
    %4789 = vmatprep.subr.mxu0 0.0
    %4790 = vmatpush1.msra.mxu0 0.0
    %4791 = vmatprep.subr.mxu0 0.0
    %4792 = vmatpush1.msra.mxu0 0.0
    %4793 = vmatprep.subr.mxu0 0.0
    %4794 = vmatpush1.msra.mxu0 0.0
    %4795 = vmatprep.subr.mxu0 0.0
    %4796 = vmatpush1.msra.mxu0 0.0
    %4797 = vmatprep.subr.mxu0 0.0
    %4798 = vmatpush1.msra.mxu0 0.0
    %4799 = vmatprep.subr.mxu0 0.0
    %4800 = vmatpush1.msra.mxu0 0.0
    %4801 = vmatprep.subr.mxu0 0.0
    %4802 = vmatpush1.msra.mxu0 0.0
    %4803 = vmatprep.subr.mxu0 0.0
    %4804 = vmatpush1.msra.mxu0 0.0
    %4805 = vmatprep.subr.mxu0 0.0
    %4806 = vmatpush1.msra.mxu0 0.0
    %4807 = vmatprep.subr.mxu0 0.0
    %4808 = vmatpush1.msra.mxu0 0.0
    %4809 = vmatprep.subr.mxu0 0.0
    %4810 = vmatpush1.msra.mxu0 0.0
    %4811 = vmatprep.subr.mxu0 0.0
    %4812 = vmatpush1.msra.mxu0 0.0
    %4813 = vmatprep.subr.mxu0 0.0
    %4814 = vmatpush1.msra.mxu0 0.0
    %4815 = vmatprep.mubr.f32.mxu0 0.0
    %4816 = vmatmul.mubr.f32.gmra.mrb[0].mxu0 %v4746
    %v4817 = vpop.f32.mrb[0].mxu0
    %v4818 = vadd.f32 0.0, %v4817
    %v4819 = vpop.f32.mrb[0].mxu0
    %4820 = vmatprep.mubr.f32.mxu0 0.0
    %4821 = vmatmul.mubr.f32.gmra.mrb[0].mxu0 %v4749
    %v4822 = vpop.f32.mrb[0].mxu0
    %v4823 = vadd.f32 0.0, %v4822
    %v4824 = vpop.f32.mrb[0].mxu0
    %4825 = vdwg.mxu0
    %s4826 = scalar_lea.vmem %s8, 32
    %v4827 = vld [vmem:[%s4826] sm:$0xff]
    %s4828 = scalar_lea.vmem %s2, 160
    %v4829 = vld [vmem:[%s4828] sm:$0xff]
    %v4830 = vld [vmem:[%s4828 + $0x8] sm:$0xff]
    %v4831 = vld [vmem:[%s4828 + $0x10] sm:$0xff]
    %v4832 = vld [vmem:[%s4828 + $0x18] sm:$0xff]
    %s4833 = scalar_lea.vmem %s3, 5
    %v4834 = vld [vmem:[%s4833] sm:$0x1]
    %v4836 = vlaneseq
    %v4837 = vshrl.u32 %v4836, 7
    %v4838 = vsub.s32 0, %v4837
    %v4839 = vrot.slane %v4834, %v4838
    %4841 = vmatprep.subr.mxu0 0.0
    %4842 = vmatpush1.msra.mxu0 %v4829
    %4843 = vmatprep.subr.mxu0 0.0
    %4844 = vmatpush1.msra.mxu0 %v4830
    %4845 = vmatprep.subr.mxu0 0.0
    %4846 = vmatpush1.msra.mxu0 %v4831
    %4847 = vmatprep.subr.mxu0 0.0
    %4848 = vmatpush1.msra.mxu0 %v4832
    %4849 = vmatprep.subr.mxu0 0.0
    %4850 = vmatpush1.msra.mxu0 0.0
    %4851 = vmatprep.subr.mxu0 0.0
    %4852 = vmatpush1.msra.mxu0 0.0
    %4853 = vmatprep.subr.mxu0 0.0
    %4854 = vmatpush1.msra.mxu0 0.0
    %4855 = vmatprep.subr.mxu0 0.0
    %4856 = vmatpush1.msra.mxu0 0.0
    %4857 = vmatprep.subr.mxu0 0.0
    %4858 = vmatpush1.msra.mxu0 0.0
    %4859 = vmatprep.subr.mxu0 0.0
    %4860 = vmatpush1.msra.mxu0 0.0
    %4861 = vmatprep.subr.mxu0 0.0
    %4862 = vmatpush1.msra.mxu0 0.0
    %4863 = vmatprep.subr.mxu0 0.0
    %4864 = vmatpush1.msra.mxu0 0.0
    %4865 = vmatprep.subr.mxu0 0.0
    %4866 = vmatpush1.msra.mxu0 0.0
    %4867 = vmatprep.subr.mxu0 0.0
    %4868 = vmatpush1.msra.mxu0 0.0
    %4869 = vmatprep.subr.mxu0 0.0
    %4870 = vmatpush1.msra.mxu0 0.0
    %4871 = vmatprep.subr.mxu0 0.0
    %4872 = vmatpush1.msra.mxu0 0.0
    %4873 = vmatprep.subr.mxu0 0.0
    %4874 = vmatpush1.msra.mxu0 0.0
    %4875 = vmatprep.subr.mxu0 0.0
    %4876 = vmatpush1.msra.mxu0 0.0
    %4877 = vmatprep.subr.mxu0 0.0
    %4878 = vmatpush1.msra.mxu0 0.0
    %4879 = vmatprep.subr.mxu0 0.0
    %4880 = vmatpush1.msra.mxu0 0.0
    %4881 = vmatprep.subr.mxu0 0.0
    %4882 = vmatpush1.msra.mxu0 0.0
    %4883 = vmatprep.subr.mxu0 0.0
    %4884 = vmatpush1.msra.mxu0 0.0
    %4885 = vmatprep.subr.mxu0 0.0
    %4886 = vmatpush1.msra.mxu0 0.0
    %4887 = vmatprep.subr.mxu0 0.0
    %4888 = vmatpush1.msra.mxu0 0.0
    %4889 = vmatprep.subr.mxu0 0.0
    %4890 = vmatpush1.msra.mxu0 0.0
    %4891 = vmatprep.subr.mxu0 0.0
    %4892 = vmatpush1.msra.mxu0 0.0
    %4893 = vmatprep.subr.mxu0 0.0
    %4894 = vmatpush1.msra.mxu0 0.0
    %4895 = vmatprep.subr.mxu0 0.0
    %4896 = vmatpush1.msra.mxu0 0.0
    %4897 = vmatprep.subr.mxu0 0.0
    %4898 = vmatpush1.msra.mxu0 0.0
    %4899 = vmatprep.subr.mxu0 0.0
    %4900 = vmatpush1.msra.mxu0 0.0
    %4901 = vmatprep.subr.mxu0 0.0
    %4902 = vmatpush1.msra.mxu0 0.0
    %4903 = vmatprep.subr.mxu0 0.0
    %4904 = vmatpush1.msra.mxu0 0.0
    %4905 = vmatprep.mubr.f32.mxu0 0.0
    %4906 = vmatmul.mubr.f32.gmra.mrb[0].mxu0 %v4380
    %v4907 = vpop.f32.mrb[0].mxu0
    %v4908 = vadd.f32 %v4839, %v4907
    %v4909 = vpop.f32.mrb[0].mxu0
    %4910 = vmatprep.mubr.f32.mxu0 0.0
    %4911 = vmatmul.mubr.f32.gmra.mrb[0].mxu0 %v4383
    %v4912 = vpop.f32.mrb[0].mxu0
    %v4913 = vadd.f32 %v4839, %v4912
    %v4914 = vpop.f32.mrb[0].mxu0
    %4915 = vdwg.mxu0
    %s4916 = scalar_lea.vmem %s4, 160
    %v4917 = vld [vmem:[%s4916] sm:$0xff]
    %v4918 = vld [vmem:[%s4916 + $0x8] sm:$0xff]
    %v4919 = vld [vmem:[%s4916 + $0x10] sm:$0xff]
    %v4920 = vld [vmem:[%s4916 + $0x18] sm:$0xff]
    %s4921 = scalar_lea.vmem %s5, 5
    %v4922 = vld [vmem:[%s4921] sm:$0x1]
    %v4924 = vlaneseq
    %v4925 = vshrl.u32 %v4924, 7
    %v4926 = vsub.s32 0, %v4925
    %v4927 = vrot.slane %v4922, %v4926
    %4929 = vmatprep.subr.mxu0 0.0
    %4930 = vmatpush1.msra.mxu0 %v4917
    %4931 = vmatprep.subr.mxu0 0.0
    %4932 = vmatpush1.msra.mxu0 %v4918
    %4933 = vmatprep.subr.mxu0 0.0
    %4934 = vmatpush1.msra.mxu0 %v4919
    %4935 = vmatprep.subr.mxu0 0.0
    %4936 = vmatpush1.msra.mxu0 %v4920
    %4937 = vmatprep.subr.mxu0 0.0
    %4938 = vmatpush1.msra.mxu0 0.0
    %4939 = vmatprep.subr.mxu0 0.0
    %4940 = vmatpush1.msra.mxu0 0.0
    %4941 = vmatprep.subr.mxu0 0.0
    %4942 = vmatpush1.msra.mxu0 0.0
    %4943 = vmatprep.subr.mxu0 0.0
    %4944 = vmatpush1.msra.mxu0 0.0
    %4945 = vmatprep.subr.mxu0 0.0
    %4946 = vmatpush1.msra.mxu0 0.0
    %4947 = vmatprep.subr.mxu0 0.0
    %4948 = vmatpush1.msra.mxu0 0.0
    %4949 = vmatprep.subr.mxu0 0.0
    %4950 = vmatpush1.msra.mxu0 0.0
    %4951 = vmatprep.subr.mxu0 0.0
    %4952 = vmatpush1.msra.mxu0 0.0
    %4953 = vmatprep.subr.mxu0 0.0
    %4954 = vmatpush1.msra.mxu0 0.0
    %4955 = vmatprep.subr.mxu0 0.0
    %4956 = vmatpush1.msra.mxu0 0.0
    %4957 = vmatprep.subr.mxu0 0.0
    %4958 = vmatpush1.msra.mxu0 0.0
    %4959 = vmatprep.subr.mxu0 0.0
    %4960 = vmatpush1.msra.mxu0 0.0
    %4961 = vmatprep.subr.mxu0 0.0
    %4962 = vmatpush1.msra.mxu0 0.0
    %4963 = vmatprep.subr.mxu0 0.0
    %4964 = vmatpush1.msra.mxu0 0.0
    %4965 = vmatprep.subr.mxu0 0.0
    %4966 = vmatpush1.msra.mxu0 0.0
    %4967 = vmatprep.subr.mxu0 0.0
    %4968 = vmatpush1.msra.mxu0 0.0
    %4969 = vmatprep.subr.mxu0 0.0
    %4970 = vmatpush1.msra.mxu0 0.0
    %4971 = vmatprep.subr.mxu0 0.0
    %4972 = vmatpush1.msra.mxu0 0.0
    %4973 = vmatprep.subr.mxu0 0.0
    %4974 = vmatpush1.msra.mxu0 0.0
    %4975 = vmatprep.subr.mxu0 0.0
    %4976 = vmatpush1.msra.mxu0 0.0
    %4977 = vmatprep.subr.mxu0 0.0
    %4978 = vmatpush1.msra.mxu0 0.0
    %4979 = vmatprep.subr.mxu0 0.0
    %4980 = vmatpush1.msra.mxu0 0.0
    %4981 = vmatprep.subr.mxu0 0.0
    %4982 = vmatpush1.msra.mxu0 0.0
    %4983 = vmatprep.subr.mxu0 0.0
    %4984 = vmatpush1.msra.mxu0 0.0
    %4985 = vmatprep.subr.mxu0 0.0
    %4986 = vmatpush1.msra.mxu0 0.0
    %4987 = vmatprep.subr.mxu0 0.0
    %4988 = vmatpush1.msra.mxu0 0.0
    %4989 = vmatprep.subr.mxu0 0.0
    %4990 = vmatpush1.msra.mxu0 0.0
    %4991 = vmatprep.subr.mxu0 0.0
    %4992 = vmatpush1.msra.mxu0 0.0
    %4993 = vmatprep.mubr.f32.mxu0 0.0
    %4994 = vmatmul.mubr.f32.gmra.mrb[0].mxu0 %v4380
    %v4995 = vpop.f32.mrb[0].mxu0
    %v4996 = vadd.f32 %v4927, %v4995
    %v4997 = vpop.f32.mrb[0].mxu0
    %4998 = vmatprep.mubr.f32.mxu0 0.0
    %4999 = vmatmul.mubr.f32.gmra.mrb[0].mxu0 %v4383
    %v5000 = vpop.f32.mrb[0].mxu0
    %v5001 = vadd.f32 %v4927, %v5000
    %v5002 = vpop.f32.mrb[0].mxu0
    %5003 = vdwg.mxu0
    %s5004 = scalar_lea.vmem %s6, 160
    %v5005 = vld [vmem:[%s5004] sm:$0xff]
    %v5006 = vld [vmem:[%s5004 + $0x8] sm:$0xff]
    %v5007 = vld [vmem:[%s5004 + $0x10] sm:$0xff]
    %v5008 = vld [vmem:[%s5004 + $0x18] sm:$0xff]
    %s5009 = scalar_lea.vmem %s7, 5
    %v5010 = vld [vmem:[%s5009] sm:$0x1]
    %v5012 = vlaneseq
    %v5013 = vshrl.u32 %v5012, 7
    %v5014 = vsub.s32 0, %v5013
    %v5015 = vrot.slane %v5010, %v5014
    %5017 = vmatprep.subr.mxu0 0.0
    %5018 = vmatpush1.msra.mxu0 %v5005
    %5019 = vmatprep.subr.mxu0 0.0
    %5020 = vmatpush1.msra.mxu0 %v5006
    %5021 = vmatprep.subr.mxu0 0.0
    %5022 = vmatpush1.msra.mxu0 %v5007
    %5023 = vmatprep.subr.mxu0 0.0
    %5024 = vmatpush1.msra.mxu0 %v5008
    %5025 = vmatprep.subr.mxu0 0.0
    %5026 = vmatpush1.msra.mxu0 0.0
    %5027 = vmatprep.subr.mxu0 0.0
    %5028 = vmatpush1.msra.mxu0 0.0
    %5029 = vmatprep.subr.mxu0 0.0
    %5030 = vmatpush1.msra.mxu0 0.0
    %5031 = vmatprep.subr.mxu0 0.0
    %5032 = vmatpush1.msra.mxu0 0.0
    %5033 = vmatprep.subr.mxu0 0.0
    %5034 = vmatpush1.msra.mxu0 0.0
    %5035 = vmatprep.subr.mxu0 0.0
    %5036 = vmatpush1.msra.mxu0 0.0
    %5037 = vmatprep.subr.mxu0 0.0
    %5038 = vmatpush1.msra.mxu0 0.0
    %5039 = vmatprep.subr.mxu0 0.0
    %5040 = vmatpush1.msra.mxu0 0.0
    %5041 = vmatprep.subr.mxu0 0.0
    %5042 = vmatpush1.msra.mxu0 0.0
    %5043 = vmatprep.subr.mxu0 0.0
    %5044 = vmatpush1.msra.mxu0 0.0
    %5045 = vmatprep.subr.mxu0 0.0
    %5046 = vmatpush1.msra.mxu0 0.0
    %5047 = vmatprep.subr.mxu0 0.0
    %5048 = vmatpush1.msra.mxu0 0.0
    %5049 = vmatprep.subr.mxu0 0.0
    %5050 = vmatpush1.msra.mxu0 0.0
    %5051 = vmatprep.subr.mxu0 0.0
    %5052 = vmatpush1.msra.mxu0 0.0
    %5053 = vmatprep.subr.mxu0 0.0
    %5054 = vmatpush1.msra.mxu0 0.0
    %5055 = vmatprep.subr.mxu0 0.0
    %5056 = vmatpush1.msra.mxu0 0.0
    %5057 = vmatprep.subr.mxu0 0.0
    %5058 = vmatpush1.msra.mxu0 0.0
    %5059 = vmatprep.subr.mxu0 0.0
    %5060 = vmatpush1.msra.mxu0 0.0
    %5061 = vmatprep.subr.mxu0 0.0
    %5062 = vmatpush1.msra.mxu0 0.0
    %5063 = vmatprep.subr.mxu0 0.0
    %5064 = vmatpush1.msra.mxu0 0.0
    %5065 = vmatprep.subr.mxu0 0.0
    %5066 = vmatpush1.msra.mxu0 0.0
    %5067 = vmatprep.subr.mxu0 0.0
    %5068 = vmatpush1.msra.mxu0 0.0
    %5069 = vmatprep.subr.mxu0 0.0
    %5070 = vmatpush1.msra.mxu0 0.0
    %5071 = vmatprep.subr.mxu0 0.0
    %5072 = vmatpush1.msra.mxu0 0.0
    %5073 = vmatprep.subr.mxu0 0.0
    %5074 = vmatpush1.msra.mxu0 0.0
    %5075 = vmatprep.subr.mxu0 0.0
    %5076 = vmatpush1.msra.mxu0 0.0
    %5077 = vmatprep.subr.mxu0 0.0
    %5078 = vmatpush1.msra.mxu0 0.0
    %5079 = vmatprep.subr.mxu0 0.0
    %5080 = vmatpush1.msra.mxu0 0.0
    %5081 = vmatprep.mubr.f32.mxu0 0.0
    %5082 = vmatmul.mubr.f32.gmra.mrb[0].mxu0 %v4380
    %v5083 = vpop.f32.mrb[0].mxu0
    %v5084 = vadd.f32 %v5015, %v5083
    %v5085 = vpop.f32.mrb[0].mxu0
    %5086 = vmatprep.mubr.f32.mxu0 0.0
    %5087 = vmatmul.mubr.f32.gmra.mrb[0].mxu0 %v4383
    %v5088 = vpop.f32.mrb[0].mxu0
    %v5089 = vadd.f32 %v5015, %v5088
    %v5090 = vpop.f32.mrb[0].mxu0
    %5091 = vdwg.mxu0
    %v5093 = vsel %vm344, %v4908, 0
    %v5096 = vsel %vm344, %v4913, 0
    %v5099 = vsel %vm344, %v4996, 0
    %v5102 = vsel %vm344, %v5001, 0
    %5104 = vmatprep.subr.mxu0 0.0
    %5105 = vmatpush1.xpose.msra.mxu0 %v5099
    %5106 = vmatprep.subr.mxu0 0.0
    %5107 = vmatpush1.xpose.msra.mxu0 %v5102
    %5108 = vmatprep.subr.mxu0 0.0
    %5109 = vmatpush1.xpose.msra.mxu0 0.0
    %5110 = vmatprep.subr.mxu0 0.0
    %5111 = vmatpush1.xpose.msra.mxu0 0.0
    %5112 = vmatprep.subr.mxu0 0.0
    %5113 = vmatpush1.xpose.msra.mxu0 0.0
    %5114 = vmatprep.subr.mxu0 0.0
    %5115 = vmatpush1.xpose.msra.mxu0 0.0
    %5116 = vmatprep.subr.mxu0 0.0
    %5117 = vmatpush1.xpose.msra.mxu0 0.0
    %5118 = vmatprep.subr.mxu0 0.0
    %5119 = vmatpush1.xpose.msra.mxu0 0.0
    %5120 = vmatprep.subr.mxu0 0.0
    %5121 = vmatpush1.xpose.msra.mxu0 0.0
    %5122 = vmatprep.subr.mxu0 0.0
    %5123 = vmatpush1.xpose.msra.mxu0 0.0
    %5124 = vmatprep.subr.mxu0 0.0
    %5125 = vmatpush1.xpose.msra.mxu0 0.0
    %5126 = vmatprep.subr.mxu0 0.0
    %5127 = vmatpush1.xpose.msra.mxu0 0.0
    %5128 = vmatprep.subr.mxu0 0.0
    %5129 = vmatpush1.xpose.msra.mxu0 0.0
    %5130 = vmatprep.subr.mxu0 0.0
    %5131 = vmatpush1.xpose.msra.mxu0 0.0
    %5132 = vmatprep.subr.mxu0 0.0
    %5133 = vmatpush1.xpose.msra.mxu0 0.0
    %5134 = vmatprep.subr.mxu0 0.0
    %5135 = vmatpush1.xpose.msra.mxu0 0.0
    %5136 = vmatprep.subr.mxu0 0.0
    %5137 = vmatpush1.xpose.msra.mxu0 0.0
    %5138 = vmatprep.subr.mxu0 0.0
    %5139 = vmatpush1.xpose.msra.mxu0 0.0
    %5140 = vmatprep.subr.mxu0 0.0
    %5141 = vmatpush1.xpose.msra.mxu0 0.0
    %5142 = vmatprep.subr.mxu0 0.0
    %5143 = vmatpush1.xpose.msra.mxu0 0.0
    %5144 = vmatprep.subr.mxu0 0.0
    %5145 = vmatpush1.xpose.msra.mxu0 0.0
    %5146 = vmatprep.subr.mxu0 0.0
    %5147 = vmatpush1.xpose.msra.mxu0 0.0
    %5148 = vmatprep.subr.mxu0 0.0
    %5149 = vmatpush1.xpose.msra.mxu0 0.0
    %5150 = vmatprep.subr.mxu0 0.0
    %5151 = vmatpush1.xpose.msra.mxu0 0.0
    %5152 = vmatprep.subr.mxu0 0.0
    %5153 = vmatpush1.xpose.msra.mxu0 0.0
    %5154 = vmatprep.subr.mxu0 0.0
    %5155 = vmatpush1.xpose.msra.mxu0 0.0
    %5156 = vmatprep.subr.mxu0 0.0
    %5157 = vmatpush1.xpose.msra.mxu0 0.0
    %5158 = vmatprep.subr.mxu0 0.0
    %5159 = vmatpush1.xpose.msra.mxu0 0.0
    %5160 = vmatprep.subr.mxu0 0.0
    %5161 = vmatpush1.xpose.msra.mxu0 0.0
    %5162 = vmatprep.subr.mxu0 0.0
    %5163 = vmatpush1.xpose.msra.mxu0 0.0
    %5164 = vmatprep.subr.mxu0 0.0
    %5165 = vmatpush1.xpose.msra.mxu0 0.0
    %5166 = vmatprep.subr.mxu0 0.0
    %5167 = vmatpush1.xpose.msra.mxu0 0.0
    %5168 = vmatprep.mubr.f32.mxu0 0.0
    %5169 = vmatmul.mubr.f32.gmra.mrb[0].mxu0 %v5093
    %v5170 = vpop.f32.mrb[0].mxu0
    %v5171 = vadd.f32 %v77, %v5170
    %v5172 = vpop.f32.mrb[0].mxu0
    %5173 = vmatprep.mubr.f32.mxu0 0.0
    %5174 = vmatmul.mubr.f32.gmra.mrb[0].mxu0 %v5096
    %v5175 = vpop.f32.mrb[0].mxu0
    %v5176 = vadd.f32 %v78, %v5175
    %v5177 = vpop.f32.mrb[0].mxu0
    %5178 = vdwg.mxu0
    %v5179 = vsel %vm432, %v5171, -inf
    %5180 = vmax.xlane.f32.xlu0 %v5179
    %v5181 = vpop.xlane.xlu0 %5180
    %v5182 = vsel %vm432, %v5176, -inf
    %5183 = vmax.xlane.f32.xlu0 %v5182
    %v5184 = vpop.xlane.xlu0 %5183
    %v5185 = vsub.f32 %v5171, %v5181
    %v5186 = vsub.f32 %v5176, %v5184
    %v5187 = vmul.f32 %v5185, 1.442695
    %v5188 = vpow.pop %v5187
    %v5189 = vmul.f32 %v5186, 1.442695
    %v5190 = vpow.pop %v5189
    %v5191 = vsel %vm432, %v5188, 0.0
    %5192 = vadd.xlane.f32.xlu0 %v5191
    %v5193 = vpop.xlane.xlu0 %5192
    %v5194 = vsel %vm432, %v5190, 0.0
    %5195 = vadd.xlane.f32.xlu0 %v5194
    %v5196 = vpop.xlane.xlu0 %5195
    %v5197 = vrcp.pop %v5193
    %v5198 = vrcp.pop %v5196
    %v5199 = vmul.f32 %v5188, %v5197
    %v5200 = vmul.f32 %v5190, %v5198
    %v5202 = vsel %vm432, %v5199, 0
    %v5205 = vsel %vm432, %v5200, 0
    %5207 = vmatprep.subr.mxu0 0.0
    %5208 = vmatpush1.msra.mxu0 %v5084
    %5209 = vmatprep.subr.mxu0 0.0
    %5210 = vmatpush1.msra.mxu0 %v5089
    %5211 = vmatprep.subr.mxu0 0.0
    %5212 = vmatpush1.msra.mxu0 0.0
    %5213 = vmatprep.subr.mxu0 0.0
    %5214 = vmatpush1.msra.mxu0 0.0
    %5215 = vmatprep.subr.mxu0 0.0
    %5216 = vmatpush1.msra.mxu0 0.0
    %5217 = vmatprep.subr.mxu0 0.0
    %5218 = vmatpush1.msra.mxu0 0.0
    %5219 = vmatprep.subr.mxu0 0.0
    %5220 = vmatpush1.msra.mxu0 0.0
    %5221 = vmatprep.subr.mxu0 0.0
    %5222 = vmatpush1.msra.mxu0 0.0
    %5223 = vmatprep.subr.mxu0 0.0
    %5224 = vmatpush1.msra.mxu0 0.0
    %5225 = vmatprep.subr.mxu0 0.0
    %5226 = vmatpush1.msra.mxu0 0.0
    %5227 = vmatprep.subr.mxu0 0.0
    %5228 = vmatpush1.msra.mxu0 0.0
    %5229 = vmatprep.subr.mxu0 0.0
    %5230 = vmatpush1.msra.mxu0 0.0
    %5231 = vmatprep.subr.mxu0 0.0
    %5232 = vmatpush1.msra.mxu0 0.0
    %5233 = vmatprep.subr.mxu0 0.0
    %5234 = vmatpush1.msra.mxu0 0.0
    %5235 = vmatprep.subr.mxu0 0.0
    %5236 = vmatpush1.msra.mxu0 0.0
    %5237 = vmatprep.subr.mxu0 0.0
    %5238 = vmatpush1.msra.mxu0 0.0
    %5239 = vmatprep.subr.mxu0 0.0
    %5240 = vmatpush1.msra.mxu0 0.0
    %5241 = vmatprep.subr.mxu0 0.0
    %5242 = vmatpush1.msra.mxu0 0.0
    %5243 = vmatprep.subr.mxu0 0.0
    %5244 = vmatpush1.msra.mxu0 0.0
    %5245 = vmatprep.subr.mxu0 0.0
    %5246 = vmatpush1.msra.mxu0 0.0
    %5247 = vmatprep.subr.mxu0 0.0
    %5248 = vmatpush1.msra.mxu0 0.0
    %5249 = vmatprep.subr.mxu0 0.0
    %5250 = vmatpush1.msra.mxu0 0.0
    %5251 = vmatprep.subr.mxu0 0.0
    %5252 = vmatpush1.msra.mxu0 0.0
    %5253 = vmatprep.subr.mxu0 0.0
    %5254 = vmatpush1.msra.mxu0 0.0
    %5255 = vmatprep.subr.mxu0 0.0
    %5256 = vmatpush1.msra.mxu0 0.0
    %5257 = vmatprep.subr.mxu0 0.0
    %5258 = vmatpush1.msra.mxu0 0.0
    %5259 = vmatprep.subr.mxu0 0.0
    %5260 = vmatpush1.msra.mxu0 0.0
    %5261 = vmatprep.subr.mxu0 0.0
    %5262 = vmatpush1.msra.mxu0 0.0
    %5263 = vmatprep.subr.mxu0 0.0
    %5264 = vmatpush1.msra.mxu0 0.0
    %5265 = vmatprep.subr.mxu0 0.0
    %5266 = vmatpush1.msra.mxu0 0.0
    %5267 = vmatprep.subr.mxu0 0.0
    %5268 = vmatpush1.msra.mxu0 0.0
    %5269 = vmatprep.subr.mxu0 0.0
    %5270 = vmatpush1.msra.mxu0 0.0
    %5271 = vmatprep.mubr.f32.mxu0 0.0
    %5272 = vmatmul.mubr.f32.gmra.mrb[0].mxu0 %v5202
    %v5273 = vpop.f32.mrb[0].mxu0
    %v5274 = vadd.f32 0.0, %v5273
    %v5275 = vpop.f32.mrb[0].mxu0
    %5276 = vmatprep.mubr.f32.mxu0 0.0
    %5277 = vmatmul.mubr.f32.gmra.mrb[0].mxu0 %v5205
    %v5278 = vpop.f32.mrb[0].mxu0
    %v5279 = vadd.f32 0.0, %v5278
    %v5280 = vpop.f32.mrb[0].mxu0
    %5281 = vdwg.mxu0
    %s5282 = scalar_lea.vmem %s8, 40
    %v5283 = vld [vmem:[%s5282] sm:$0xff]
    %v5285 = vsel %vm344, %v5274, 0
    %v5288 = vsel %vm344, %v5279, 0
    %5290 = vmatprep.subr.mxu0 0.0
    %5291 = vmatpush1.msra.mxu0 %v5283
    %5292 = vmatprep.subr.mxu0 0.0
    %5293 = vmatpush1.msra.mxu0 0.0
    %5294 = vmatprep.subr.mxu0 0.0
    %5295 = vmatpush1.msra.mxu0 0.0
    %5296 = vmatprep.subr.mxu0 0.0
    %5297 = vmatpush1.msra.mxu0 0.0
    %5298 = vmatprep.subr.mxu0 0.0
    %5299 = vmatpush1.msra.mxu0 0.0
    %5300 = vmatprep.subr.mxu0 0.0
    %5301 = vmatpush1.msra.mxu0 0.0
    %5302 = vmatprep.subr.mxu0 0.0
    %5303 = vmatpush1.msra.mxu0 0.0
    %5304 = vmatprep.subr.mxu0 0.0
    %5305 = vmatpush1.msra.mxu0 0.0
    %5306 = vmatprep.subr.mxu0 0.0
    %5307 = vmatpush1.msra.mxu0 0.0
    %5308 = vmatprep.subr.mxu0 0.0
    %5309 = vmatpush1.msra.mxu0 0.0
    %5310 = vmatprep.subr.mxu0 0.0
    %5311 = vmatpush1.msra.mxu0 0.0
    %5312 = vmatprep.subr.mxu0 0.0
    %5313 = vmatpush1.msra.mxu0 0.0
    %5314 = vmatprep.subr.mxu0 0.0
    %5315 = vmatpush1.msra.mxu0 0.0
    %5316 = vmatprep.subr.mxu0 0.0
    %5317 = vmatpush1.msra.mxu0 0.0
    %5318 = vmatprep.subr.mxu0 0.0
    %5319 = vmatpush1.msra.mxu0 0.0
    %5320 = vmatprep.subr.mxu0 0.0
    %5321 = vmatpush1.msra.mxu0 0.0
    %5322 = vmatprep.subr.mxu0 0.0
    %5323 = vmatpush1.msra.mxu0 0.0
    %5324 = vmatprep.subr.mxu0 0.0
    %5325 = vmatpush1.msra.mxu0 0.0
    %5326 = vmatprep.subr.mxu0 0.0
    %5327 = vmatpush1.msra.mxu0 0.0
    %5328 = vmatprep.subr.mxu0 0.0
    %5329 = vmatpush1.msra.mxu0 0.0
    %5330 = vmatprep.subr.mxu0 0.0
    %5331 = vmatpush1.msra.mxu0 0.0
    %5332 = vmatprep.subr.mxu0 0.0
    %5333 = vmatpush1.msra.mxu0 0.0
    %5334 = vmatprep.subr.mxu0 0.0
    %5335 = vmatpush1.msra.mxu0 0.0
    %5336 = vmatprep.subr.mxu0 0.0
    %5337 = vmatpush1.msra.mxu0 0.0
    %5338 = vmatprep.subr.mxu0 0.0
    %5339 = vmatpush1.msra.mxu0 0.0
    %5340 = vmatprep.subr.mxu0 0.0
    %5341 = vmatpush1.msra.mxu0 0.0
    %5342 = vmatprep.subr.mxu0 0.0
    %5343 = vmatpush1.msra.mxu0 0.0
    %5344 = vmatprep.subr.mxu0 0.0
    %5345 = vmatpush1.msra.mxu0 0.0
    %5346 = vmatprep.subr.mxu0 0.0
    %5347 = vmatpush1.msra.mxu0 0.0
    %5348 = vmatprep.subr.mxu0 0.0
    %5349 = vmatpush1.msra.mxu0 0.0
    %5350 = vmatprep.subr.mxu0 0.0
    %5351 = vmatpush1.msra.mxu0 0.0
    %5352 = vmatprep.subr.mxu0 0.0
    %5353 = vmatpush1.msra.mxu0 0.0
    %5354 = vmatprep.mubr.f32.mxu0 0.0
    %5355 = vmatmul.mubr.f32.gmra.mrb[0].mxu0 %v5285
    %v5356 = vpop.f32.mrb[0].mxu0
    %v5357 = vadd.f32 0.0, %v5356
    %v5358 = vpop.f32.mrb[0].mxu0
    %5359 = vmatprep.mubr.f32.mxu0 0.0
    %5360 = vmatmul.mubr.f32.gmra.mrb[0].mxu0 %v5288
    %v5361 = vpop.f32.mrb[0].mxu0
    %v5362 = vadd.f32 0.0, %v5361
    %v5363 = vpop.f32.mrb[0].mxu0
    %5364 = vdwg.mxu0
    %v5366 = vsel %vm344, %v4818, 0
    %v5369 = vsel %vm344, %v4823, 0
    %5371 = vmatprep.subr.mxu0 0.0
    %5372 = vmatpush1.msra.mxu0 %v4827
    %5373 = vmatprep.subr.mxu0 0.0
    %5374 = vmatpush1.msra.mxu0 0.0
    %5375 = vmatprep.subr.mxu0 0.0
    %5376 = vmatpush1.msra.mxu0 0.0
    %5377 = vmatprep.subr.mxu0 0.0
    %5378 = vmatpush1.msra.mxu0 0.0
    %5379 = vmatprep.subr.mxu0 0.0
    %5380 = vmatpush1.msra.mxu0 0.0
    %5381 = vmatprep.subr.mxu0 0.0
    %5382 = vmatpush1.msra.mxu0 0.0
    %5383 = vmatprep.subr.mxu0 0.0
    %5384 = vmatpush1.msra.mxu0 0.0
    %5385 = vmatprep.subr.mxu0 0.0
    %5386 = vmatpush1.msra.mxu0 0.0
    %5387 = vmatprep.subr.mxu0 0.0
    %5388 = vmatpush1.msra.mxu0 0.0
    %5389 = vmatprep.subr.mxu0 0.0
    %5390 = vmatpush1.msra.mxu0 0.0
    %5391 = vmatprep.subr.mxu0 0.0
    %5392 = vmatpush1.msra.mxu0 0.0
    %5393 = vmatprep.subr.mxu0 0.0
    %5394 = vmatpush1.msra.mxu0 0.0
    %5395 = vmatprep.subr.mxu0 0.0
    %5396 = vmatpush1.msra.mxu0 0.0
    %5397 = vmatprep.subr.mxu0 0.0
    %5398 = vmatpush1.msra.mxu0 0.0
    %5399 = vmatprep.subr.mxu0 0.0
    %5400 = vmatpush1.msra.mxu0 0.0
    %5401 = vmatprep.subr.mxu0 0.0
    %5402 = vmatpush1.msra.mxu0 0.0
    %5403 = vmatprep.subr.mxu0 0.0
    %5404 = vmatpush1.msra.mxu0 0.0
    %5405 = vmatprep.subr.mxu0 0.0
    %5406 = vmatpush1.msra.mxu0 0.0
    %5407 = vmatprep.subr.mxu0 0.0
    %5408 = vmatpush1.msra.mxu0 0.0
    %5409 = vmatprep.subr.mxu0 0.0
    %5410 = vmatpush1.msra.mxu0 0.0
    %5411 = vmatprep.subr.mxu0 0.0
    %5412 = vmatpush1.msra.mxu0 0.0
    %5413 = vmatprep.subr.mxu0 0.0
    %5414 = vmatpush1.msra.mxu0 0.0
    %5415 = vmatprep.subr.mxu0 0.0
    %5416 = vmatpush1.msra.mxu0 0.0
    %5417 = vmatprep.subr.mxu0 0.0
    %5418 = vmatpush1.msra.mxu0 0.0
    %5419 = vmatprep.subr.mxu0 0.0
    %5420 = vmatpush1.msra.mxu0 0.0
    %5421 = vmatprep.subr.mxu0 0.0
    %5422 = vmatpush1.msra.mxu0 0.0
    %5423 = vmatprep.subr.mxu0 0.0
    %5424 = vmatpush1.msra.mxu0 0.0
    %5425 = vmatprep.subr.mxu0 0.0
    %5426 = vmatpush1.msra.mxu0 0.0
    %5427 = vmatprep.subr.mxu0 0.0
    %5428 = vmatpush1.msra.mxu0 0.0
    %5429 = vmatprep.subr.mxu0 0.0
    %5430 = vmatpush1.msra.mxu0 0.0
    %5431 = vmatprep.subr.mxu0 0.0
    %5432 = vmatpush1.msra.mxu0 0.0
    %5433 = vmatprep.subr.mxu0 0.0
    %5434 = vmatpush1.msra.mxu0 0.0
    %5435 = vmatprep.mubr.f32.mxu0 0.0
    %5436 = vmatmul.mubr.f32.gmra.mrb[0].mxu0 %v5366
    %v5437 = vpop.f32.mrb[0].mxu0
    %v5438 = vadd.f32 %v5357, %v5437
    %v5439 = vpop.f32.mrb[0].mxu0
    %5440 = vmatprep.mubr.f32.mxu0 0.0
    %5441 = vmatmul.mubr.f32.gmra.mrb[0].mxu0 %v5369
    %v5442 = vpop.f32.mrb[0].mxu0
    %v5443 = vadd.f32 %v5362, %v5442
    %v5444 = vpop.f32.mrb[0].mxu0
    %5445 = vdwg.mxu0
    %s5446 = scalar_lea.vmem %s2, 192
    %v5447 = vld [vmem:[%s5446] sm:$0xff]
    %v5448 = vld [vmem:[%s5446 + $0x8] sm:$0xff]
    %v5449 = vld [vmem:[%s5446 + $0x10] sm:$0xff]
    %v5450 = vld [vmem:[%s5446 + $0x18] sm:$0xff]
    %s5451 = scalar_lea.vmem %s3, 6
    %v5452 = vld [vmem:[%s5451] sm:$0x1]
    %v5454 = vlaneseq
    %v5455 = vshrl.u32 %v5454, 7
    %v5456 = vsub.s32 0, %v5455
    %v5457 = vrot.slane %v5452, %v5456
    %5459 = vmatprep.subr.mxu0 0.0
    %5460 = vmatpush1.msra.mxu0 %v5447
    %5461 = vmatprep.subr.mxu0 0.0
    %5462 = vmatpush1.msra.mxu0 %v5448
    %5463 = vmatprep.subr.mxu0 0.0
    %5464 = vmatpush1.msra.mxu0 %v5449
    %5465 = vmatprep.subr.mxu0 0.0
    %5466 = vmatpush1.msra.mxu0 %v5450
    %5467 = vmatprep.subr.mxu0 0.0
    %5468 = vmatpush1.msra.mxu0 0.0
    %5469 = vmatprep.subr.mxu0 0.0
    %5470 = vmatpush1.msra.mxu0 0.0
    %5471 = vmatprep.subr.mxu0 0.0
    %5472 = vmatpush1.msra.mxu0 0.0
    %5473 = vmatprep.subr.mxu0 0.0
    %5474 = vmatpush1.msra.mxu0 0.0
    %5475 = vmatprep.subr.mxu0 0.0
    %5476 = vmatpush1.msra.mxu0 0.0
    %5477 = vmatprep.subr.mxu0 0.0
    %5478 = vmatpush1.msra.mxu0 0.0
    %5479 = vmatprep.subr.mxu0 0.0
    %5480 = vmatpush1.msra.mxu0 0.0
    %5481 = vmatprep.subr.mxu0 0.0
    %5482 = vmatpush1.msra.mxu0 0.0
    %5483 = vmatprep.subr.mxu0 0.0
    %5484 = vmatpush1.msra.mxu0 0.0
    %5485 = vmatprep.subr.mxu0 0.0
    %5486 = vmatpush1.msra.mxu0 0.0
    %5487 = vmatprep.subr.mxu0 0.0
    %5488 = vmatpush1.msra.mxu0 0.0
    %5489 = vmatprep.subr.mxu0 0.0
    %5490 = vmatpush1.msra.mxu0 0.0
    %5491 = vmatprep.subr.mxu0 0.0
    %5492 = vmatpush1.msra.mxu0 0.0
    %5493 = vmatprep.subr.mxu0 0.0
    %5494 = vmatpush1.msra.mxu0 0.0
    %5495 = vmatprep.subr.mxu0 0.0
    %5496 = vmatpush1.msra.mxu0 0.0
    %5497 = vmatprep.subr.mxu0 0.0
    %5498 = vmatpush1.msra.mxu0 0.0
    %5499 = vmatprep.subr.mxu0 0.0
    %5500 = vmatpush1.msra.mxu0 0.0
    %5501 = vmatprep.subr.mxu0 0.0
    %5502 = vmatpush1.msra.mxu0 0.0
    %5503 = vmatprep.subr.mxu0 0.0
    %5504 = vmatpush1.msra.mxu0 0.0
    %5505 = vmatprep.subr.mxu0 0.0
    %5506 = vmatpush1.msra.mxu0 0.0
    %5507 = vmatprep.subr.mxu0 0.0
    %5508 = vmatpush1.msra.mxu0 0.0
    %5509 = vmatprep.subr.mxu0 0.0
    %5510 = vmatpush1.msra.mxu0 0.0
    %5511 = vmatprep.subr.mxu0 0.0
    %5512 = vmatpush1.msra.mxu0 0.0
    %5513 = vmatprep.subr.mxu0 0.0
    %5514 = vmatpush1.msra.mxu0 0.0
    %5515 = vmatprep.subr.mxu0 0.0
    %5516 = vmatpush1.msra.mxu0 0.0
    %5517 = vmatprep.subr.mxu0 0.0
    %5518 = vmatpush1.msra.mxu0 0.0
    %5519 = vmatprep.subr.mxu0 0.0
    %5520 = vmatpush1.msra.mxu0 0.0
    %5521 = vmatprep.subr.mxu0 0.0
    %5522 = vmatpush1.msra.mxu0 0.0
    %5523 = vmatprep.mubr.f32.mxu0 0.0
    %5524 = vmatmul.mubr.f32.gmra.mrb[0].mxu0 %v4380
    %v5525 = vpop.f32.mrb[0].mxu0
    %v5526 = vadd.f32 %v5457, %v5525
    %v5527 = vpop.f32.mrb[0].mxu0
    %5528 = vmatprep.mubr.f32.mxu0 0.0
    %5529 = vmatmul.mubr.f32.gmra.mrb[0].mxu0 %v4383
    %v5530 = vpop.f32.mrb[0].mxu0
    %v5531 = vadd.f32 %v5457, %v5530
    %v5532 = vpop.f32.mrb[0].mxu0
    %5533 = vdwg.mxu0
    %s5534 = scalar_lea.vmem %s4, 192
    %v5535 = vld [vmem:[%s5534] sm:$0xff]
    %v5536 = vld [vmem:[%s5534 + $0x8] sm:$0xff]
    %v5537 = vld [vmem:[%s5534 + $0x10] sm:$0xff]
    %v5538 = vld [vmem:[%s5534 + $0x18] sm:$0xff]
    %s5539 = scalar_lea.vmem %s5, 6
    %v5540 = vld [vmem:[%s5539] sm:$0x1]
    %v5542 = vlaneseq
    %v5543 = vshrl.u32 %v5542, 7
    %v5544 = vsub.s32 0, %v5543
    %v5545 = vrot.slane %v5540, %v5544
    %5547 = vmatprep.subr.mxu0 0.0
    %5548 = vmatpush1.msra.mxu0 %v5535
    %5549 = vmatprep.subr.mxu0 0.0
    %5550 = vmatpush1.msra.mxu0 %v5536
    %5551 = vmatprep.subr.mxu0 0.0
    %5552 = vmatpush1.msra.mxu0 %v5537
    %5553 = vmatprep.subr.mxu0 0.0
    %5554 = vmatpush1.msra.mxu0 %v5538
    %5555 = vmatprep.subr.mxu0 0.0
    %5556 = vmatpush1.msra.mxu0 0.0
    %5557 = vmatprep.subr.mxu0 0.0
    %5558 = vmatpush1.msra.mxu0 0.0
    %5559 = vmatprep.subr.mxu0 0.0
    %5560 = vmatpush1.msra.mxu0 0.0
    %5561 = vmatprep.subr.mxu0 0.0
    %5562 = vmatpush1.msra.mxu0 0.0
    %5563 = vmatprep.subr.mxu0 0.0
    %5564 = vmatpush1.msra.mxu0 0.0
    %5565 = vmatprep.subr.mxu0 0.0
    %5566 = vmatpush1.msra.mxu0 0.0
    %5567 = vmatprep.subr.mxu0 0.0
    %5568 = vmatpush1.msra.mxu0 0.0
    %5569 = vmatprep.subr.mxu0 0.0
    %5570 = vmatpush1.msra.mxu0 0.0
    %5571 = vmatprep.subr.mxu0 0.0
    %5572 = vmatpush1.msra.mxu0 0.0
    %5573 = vmatprep.subr.mxu0 0.0
    %5574 = vmatpush1.msra.mxu0 0.0
    %5575 = vmatprep.subr.mxu0 0.0
    %5576 = vmatpush1.msra.mxu0 0.0
    %5577 = vmatprep.subr.mxu0 0.0
    %5578 = vmatpush1.msra.mxu0 0.0
    %5579 = vmatprep.subr.mxu0 0.0
    %5580 = vmatpush1.msra.mxu0 0.0
    %5581 = vmatprep.subr.mxu0 0.0
    %5582 = vmatpush1.msra.mxu0 0.0
    %5583 = vmatprep.subr.mxu0 0.0
    %5584 = vmatpush1.msra.mxu0 0.0
    %5585 = vmatprep.subr.mxu0 0.0
    %5586 = vmatpush1.msra.mxu0 0.0
    %5587 = vmatprep.subr.mxu0 0.0
    %5588 = vmatpush1.msra.mxu0 0.0
    %5589 = vmatprep.subr.mxu0 0.0
    %5590 = vmatpush1.msra.mxu0 0.0
    %5591 = vmatprep.subr.mxu0 0.0
    %5592 = vmatpush1.msra.mxu0 0.0
    %5593 = vmatprep.subr.mxu0 0.0
    %5594 = vmatpush1.msra.mxu0 0.0
    %5595 = vmatprep.subr.mxu0 0.0
    %5596 = vmatpush1.msra.mxu0 0.0
    %5597 = vmatprep.subr.mxu0 0.0
    %5598 = vmatpush1.msra.mxu0 0.0
    %5599 = vmatprep.subr.mxu0 0.0
    %5600 = vmatpush1.msra.mxu0 0.0
    %5601 = vmatprep.subr.mxu0 0.0
    %5602 = vmatpush1.msra.mxu0 0.0
    %5603 = vmatprep.subr.mxu0 0.0
    %5604 = vmatpush1.msra.mxu0 0.0
    %5605 = vmatprep.subr.mxu0 0.0
    %5606 = vmatpush1.msra.mxu0 0.0
    %5607 = vmatprep.subr.mxu0 0.0
    %5608 = vmatpush1.msra.mxu0 0.0
    %5609 = vmatprep.subr.mxu0 0.0
    %5610 = vmatpush1.msra.mxu0 0.0
    %5611 = vmatprep.mubr.f32.mxu0 0.0
    %5612 = vmatmul.mubr.f32.gmra.mrb[0].mxu0 %v4380
    %v5613 = vpop.f32.mrb[0].mxu0
    %v5614 = vadd.f32 %v5545, %v5613
    %v5615 = vpop.f32.mrb[0].mxu0
    %5616 = vmatprep.mubr.f32.mxu0 0.0
    %5617 = vmatmul.mubr.f32.gmra.mrb[0].mxu0 %v4383
    %v5618 = vpop.f32.mrb[0].mxu0
    %v5619 = vadd.f32 %v5545, %v5618
    %v5620 = vpop.f32.mrb[0].mxu0
    %5621 = vdwg.mxu0
    %s5622 = scalar_lea.vmem %s6, 192
    %v5623 = vld [vmem:[%s5622] sm:$0xff]
    %v5624 = vld [vmem:[%s5622 + $0x8] sm:$0xff]
    %v5625 = vld [vmem:[%s5622 + $0x10] sm:$0xff]
    %v5626 = vld [vmem:[%s5622 + $0x18] sm:$0xff]
    %s5627 = scalar_lea.vmem %s7, 6
    %v5628 = vld [vmem:[%s5627] sm:$0x1]
    %v5630 = vlaneseq
    %v5631 = vshrl.u32 %v5630, 7
    %v5632 = vsub.s32 0, %v5631
    %v5633 = vrot.slane %v5628, %v5632
    %5635 = vmatprep.subr.mxu0 0.0
    %5636 = vmatpush1.msra.mxu0 %v5623
    %5637 = vmatprep.subr.mxu0 0.0
    %5638 = vmatpush1.msra.mxu0 %v5624
    %5639 = vmatprep.subr.mxu0 0.0
    %5640 = vmatpush1.msra.mxu0 %v5625
    %5641 = vmatprep.subr.mxu0 0.0
    %5642 = vmatpush1.msra.mxu0 %v5626
    %5643 = vmatprep.subr.mxu0 0.0
    %5644 = vmatpush1.msra.mxu0 0.0
    %5645 = vmatprep.subr.mxu0 0.0
    %5646 = vmatpush1.msra.mxu0 0.0
    %5647 = vmatprep.subr.mxu0 0.0
    %5648 = vmatpush1.msra.mxu0 0.0
    %5649 = vmatprep.subr.mxu0 0.0
    %5650 = vmatpush1.msra.mxu0 0.0
    %5651 = vmatprep.subr.mxu0 0.0
    %5652 = vmatpush1.msra.mxu0 0.0
    %5653 = vmatprep.subr.mxu0 0.0
    %5654 = vmatpush1.msra.mxu0 0.0
    %5655 = vmatprep.subr.mxu0 0.0
    %5656 = vmatpush1.msra.mxu0 0.0
    %5657 = vmatprep.subr.mxu0 0.0
    %5658 = vmatpush1.msra.mxu0 0.0
    %5659 = vmatprep.subr.mxu0 0.0
    %5660 = vmatpush1.msra.mxu0 0.0
    %5661 = vmatprep.subr.mxu0 0.0
    %5662 = vmatpush1.msra.mxu0 0.0
    %5663 = vmatprep.subr.mxu0 0.0
    %5664 = vmatpush1.msra.mxu0 0.0
    %5665 = vmatprep.subr.mxu0 0.0
    %5666 = vmatpush1.msra.mxu0 0.0
    %5667 = vmatprep.subr.mxu0 0.0
    %5668 = vmatpush1.msra.mxu0 0.0
    %5669 = vmatprep.subr.mxu0 0.0
    %5670 = vmatpush1.msra.mxu0 0.0
    %5671 = vmatprep.subr.mxu0 0.0
    %5672 = vmatpush1.msra.mxu0 0.0
    %5673 = vmatprep.subr.mxu0 0.0
    %5674 = vmatpush1.msra.mxu0 0.0
    %5675 = vmatprep.subr.mxu0 0.0
    %5676 = vmatpush1.msra.mxu0 0.0
    %5677 = vmatprep.subr.mxu0 0.0
    %5678 = vmatpush1.msra.mxu0 0.0
    %5679 = vmatprep.subr.mxu0 0.0
    %5680 = vmatpush1.msra.mxu0 0.0
    %5681 = vmatprep.subr.mxu0 0.0
    %5682 = vmatpush1.msra.mxu0 0.0
    %5683 = vmatprep.subr.mxu0 0.0
    %5684 = vmatpush1.msra.mxu0 0.0
    %5685 = vmatprep.subr.mxu0 0.0
    %5686 = vmatpush1.msra.mxu0 0.0
    %5687 = vmatprep.subr.mxu0 0.0
    %5688 = vmatpush1.msra.mxu0 0.0
    %5689 = vmatprep.subr.mxu0 0.0
    %5690 = vmatpush1.msra.mxu0 0.0
    %5691 = vmatprep.subr.mxu0 0.0
    %5692 = vmatpush1.msra.mxu0 0.0
    %5693 = vmatprep.subr.mxu0 0.0
    %5694 = vmatpush1.msra.mxu0 0.0
    %5695 = vmatprep.subr.mxu0 0.0
    %5696 = vmatpush1.msra.mxu0 0.0
    %5697 = vmatprep.subr.mxu0 0.0
    %5698 = vmatpush1.msra.mxu0 0.0
    %5699 = vmatprep.mubr.f32.mxu0 0.0
    %5700 = vmatmul.mubr.f32.gmra.mrb[0].mxu0 %v4380
    %v5701 = vpop.f32.mrb[0].mxu0
    %v5702 = vadd.f32 %v5633, %v5701
    %v5703 = vpop.f32.mrb[0].mxu0
    %5704 = vmatprep.mubr.f32.mxu0 0.0
    %5705 = vmatmul.mubr.f32.gmra.mrb[0].mxu0 %v4383
    %v5706 = vpop.f32.mrb[0].mxu0
    %v5707 = vadd.f32 %v5633, %v5706
    %v5708 = vpop.f32.mrb[0].mxu0
    %5709 = vdwg.mxu0
    %v5711 = vsel %vm344, %v5526, 0
    %v5714 = vsel %vm344, %v5531, 0
    %v5717 = vsel %vm344, %v5614, 0
    %v5720 = vsel %vm344, %v5619, 0
    %5722 = vmatprep.subr.mxu0 0.0
    %5723 = vmatpush1.xpose.msra.mxu0 %v5717
    %5724 = vmatprep.subr.mxu0 0.0
    %5725 = vmatpush1.xpose.msra.mxu0 %v5720
    %5726 = vmatprep.subr.mxu0 0.0
    %5727 = vmatpush1.xpose.msra.mxu0 0.0
    %5728 = vmatprep.subr.mxu0 0.0
    %5729 = vmatpush1.xpose.msra.mxu0 0.0
    %5730 = vmatprep.subr.mxu0 0.0
    %5731 = vmatpush1.xpose.msra.mxu0 0.0
    %5732 = vmatprep.subr.mxu0 0.0
    %5733 = vmatpush1.xpose.msra.mxu0 0.0
    %5734 = vmatprep.subr.mxu0 0.0
    %5735 = vmatpush1.xpose.msra.mxu0 0.0
    %5736 = vmatprep.subr.mxu0 0.0
    %5737 = vmatpush1.xpose.msra.mxu0 0.0
    %5738 = vmatprep.subr.mxu0 0.0
    %5739 = vmatpush1.xpose.msra.mxu0 0.0
    %5740 = vmatprep.subr.mxu0 0.0
    %5741 = vmatpush1.xpose.msra.mxu0 0.0
    %5742 = vmatprep.subr.mxu0 0.0
    %5743 = vmatpush1.xpose.msra.mxu0 0.0
    %5744 = vmatprep.subr.mxu0 0.0
    %5745 = vmatpush1.xpose.msra.mxu0 0.0
    %5746 = vmatprep.subr.mxu0 0.0
    %5747 = vmatpush1.xpose.msra.mxu0 0.0
    %5748 = vmatprep.subr.mxu0 0.0
    %5749 = vmatpush1.xpose.msra.mxu0 0.0
    %5750 = vmatprep.subr.mxu0 0.0
    %5751 = vmatpush1.xpose.msra.mxu0 0.0
    %5752 = vmatprep.subr.mxu0 0.0
    %5753 = vmatpush1.xpose.msra.mxu0 0.0
    %5754 = vmatprep.subr.mxu0 0.0
    %5755 = vmatpush1.xpose.msra.mxu0 0.0
    %5756 = vmatprep.subr.mxu0 0.0
    %5757 = vmatpush1.xpose.msra.mxu0 0.0
    %5758 = vmatprep.subr.mxu0 0.0
    %5759 = vmatpush1.xpose.msra.mxu0 0.0
    %5760 = vmatprep.subr.mxu0 0.0
    %5761 = vmatpush1.xpose.msra.mxu0 0.0
    %5762 = vmatprep.subr.mxu0 0.0
    %5763 = vmatpush1.xpose.msra.mxu0 0.0
    %5764 = vmatprep.subr.mxu0 0.0
    %5765 = vmatpush1.xpose.msra.mxu0 0.0
    %5766 = vmatprep.subr.mxu0 0.0
    %5767 = vmatpush1.xpose.msra.mxu0 0.0
    %5768 = vmatprep.subr.mxu0 0.0
    %5769 = vmatpush1.xpose.msra.mxu0 0.0
    %5770 = vmatprep.subr.mxu0 0.0
    %5771 = vmatpush1.xpose.msra.mxu0 0.0
    %5772 = vmatprep.subr.mxu0 0.0
    %5773 = vmatpush1.xpose.msra.mxu0 0.0
    %5774 = vmatprep.subr.mxu0 0.0
    %5775 = vmatpush1.xpose.msra.mxu0 0.0
    %5776 = vmatprep.subr.mxu0 0.0
    %5777 = vmatpush1.xpose.msra.mxu0 0.0
    %5778 = vmatprep.subr.mxu0 0.0
    %5779 = vmatpush1.xpose.msra.mxu0 0.0
    %5780 = vmatprep.subr.mxu0 0.0
    %5781 = vmatpush1.xpose.msra.mxu0 0.0
    %5782 = vmatprep.subr.mxu0 0.0
    %5783 = vmatpush1.xpose.msra.mxu0 0.0
    %5784 = vmatprep.subr.mxu0 0.0
    %5785 = vmatpush1.xpose.msra.mxu0 0.0
    %5786 = vmatprep.mubr.f32.mxu0 0.0
    %5787 = vmatmul.mubr.f32.gmra.mrb[0].mxu0 %v5711
    %v5788 = vpop.f32.mrb[0].mxu0
    %v5789 = vadd.f32 %v77, %v5788
    %v5790 = vpop.f32.mrb[0].mxu0
    %5791 = vmatprep.mubr.f32.mxu0 0.0
    %5792 = vmatmul.mubr.f32.gmra.mrb[0].mxu0 %v5714
    %v5793 = vpop.f32.mrb[0].mxu0
    %v5794 = vadd.f32 %v78, %v5793
    %v5795 = vpop.f32.mrb[0].mxu0
    %5796 = vdwg.mxu0
    %v5797 = vsel %vm432, %v5789, -inf
    %5798 = vmax.xlane.f32.xlu0 %v5797
    %v5799 = vpop.xlane.xlu0 %5798
    %v5800 = vsel %vm432, %v5794, -inf
    %5801 = vmax.xlane.f32.xlu0 %v5800
    %v5802 = vpop.xlane.xlu0 %5801
    %v5803 = vsub.f32 %v5789, %v5799
    %v5804 = vsub.f32 %v5794, %v5802
    %v5805 = vmul.f32 %v5803, 1.442695
    %v5806 = vpow.pop %v5805
    %v5807 = vmul.f32 %v5804, 1.442695
    %v5808 = vpow.pop %v5807
    %v5809 = vsel %vm432, %v5806, 0.0
    %5810 = vadd.xlane.f32.xlu0 %v5809
    %v5811 = vpop.xlane.xlu0 %5810
    %v5812 = vsel %vm432, %v5808, 0.0
    %5813 = vadd.xlane.f32.xlu0 %v5812
    %v5814 = vpop.xlane.xlu0 %5813
    %v5815 = vrcp.pop %v5811
    %v5816 = vrcp.pop %v5814
    %v5817 = vmul.f32 %v5806, %v5815
    %v5818 = vmul.f32 %v5808, %v5816
    %v5820 = vsel %vm432, %v5817, 0
    %v5823 = vsel %vm432, %v5818, 0
    %5825 = vmatprep.subr.mxu0 0.0
    %5826 = vmatpush1.msra.mxu0 %v5702
    %5827 = vmatprep.subr.mxu0 0.0
    %5828 = vmatpush1.msra.mxu0 %v5707
    %5829 = vmatprep.subr.mxu0 0.0
    %5830 = vmatpush1.msra.mxu0 0.0
    %5831 = vmatprep.subr.mxu0 0.0
    %5832 = vmatpush1.msra.mxu0 0.0
    %5833 = vmatprep.subr.mxu0 0.0
    %5834 = vmatpush1.msra.mxu0 0.0
    %5835 = vmatprep.subr.mxu0 0.0
    %5836 = vmatpush1.msra.mxu0 0.0
    %5837 = vmatprep.subr.mxu0 0.0
    %5838 = vmatpush1.msra.mxu0 0.0
    %5839 = vmatprep.subr.mxu0 0.0
    %5840 = vmatpush1.msra.mxu0 0.0
    %5841 = vmatprep.subr.mxu0 0.0
    %5842 = vmatpush1.msra.mxu0 0.0
    %5843 = vmatprep.subr.mxu0 0.0
    %5844 = vmatpush1.msra.mxu0 0.0
    %5845 = vmatprep.subr.mxu0 0.0
    %5846 = vmatpush1.msra.mxu0 0.0
    %5847 = vmatprep.subr.mxu0 0.0
    %5848 = vmatpush1.msra.mxu0 0.0
    %5849 = vmatprep.subr.mxu0 0.0
    %5850 = vmatpush1.msra.mxu0 0.0
    %5851 = vmatprep.subr.mxu0 0.0
    %5852 = vmatpush1.msra.mxu0 0.0
    %5853 = vmatprep.subr.mxu0 0.0
    %5854 = vmatpush1.msra.mxu0 0.0
    %5855 = vmatprep.subr.mxu0 0.0
    %5856 = vmatpush1.msra.mxu0 0.0
    %5857 = vmatprep.subr.mxu0 0.0
    %5858 = vmatpush1.msra.mxu0 0.0
    %5859 = vmatprep.subr.mxu0 0.0
    %5860 = vmatpush1.msra.mxu0 0.0
    %5861 = vmatprep.subr.mxu0 0.0
    %5862 = vmatpush1.msra.mxu0 0.0
    %5863 = vmatprep.subr.mxu0 0.0
    %5864 = vmatpush1.msra.mxu0 0.0
    %5865 = vmatprep.subr.mxu0 0.0
    %5866 = vmatpush1.msra.mxu0 0.0
    %5867 = vmatprep.subr.mxu0 0.0
    %5868 = vmatpush1.msra.mxu0 0.0
    %5869 = vmatprep.subr.mxu0 0.0
    %5870 = vmatpush1.msra.mxu0 0.0
    %5871 = vmatprep.subr.mxu0 0.0
    %5872 = vmatpush1.msra.mxu0 0.0
    %5873 = vmatprep.subr.mxu0 0.0
    %5874 = vmatpush1.msra.mxu0 0.0
    %5875 = vmatprep.subr.mxu0 0.0
    %5876 = vmatpush1.msra.mxu0 0.0
    %5877 = vmatprep.subr.mxu0 0.0
    %5878 = vmatpush1.msra.mxu0 0.0
    %5879 = vmatprep.subr.mxu0 0.0
    %5880 = vmatpush1.msra.mxu0 0.0
    %5881 = vmatprep.subr.mxu0 0.0
    %5882 = vmatpush1.msra.mxu0 0.0
    %5883 = vmatprep.subr.mxu0 0.0
    %5884 = vmatpush1.msra.mxu0 0.0
    %5885 = vmatprep.subr.mxu0 0.0
    %5886 = vmatpush1.msra.mxu0 0.0
    %5887 = vmatprep.subr.mxu0 0.0
    %5888 = vmatpush1.msra.mxu0 0.0
    %5889 = vmatprep.mubr.f32.mxu0 0.0
    %5890 = vmatmul.mubr.f32.gmra.mrb[0].mxu0 %v5820
    %v5891 = vpop.f32.mrb[0].mxu0
    %v5892 = vadd.f32 0.0, %v5891
    %v5893 = vpop.f32.mrb[0].mxu0
    %5894 = vmatprep.mubr.f32.mxu0 0.0
    %5895 = vmatmul.mubr.f32.gmra.mrb[0].mxu0 %v5823
    %v5896 = vpop.f32.mrb[0].mxu0
    %v5897 = vadd.f32 0.0, %v5896
    %v5898 = vpop.f32.mrb[0].mxu0
    %5899 = vdwg.mxu0
    %s5900 = scalar_lea.vmem %s8, 48
    %v5901 = vld [vmem:[%s5900] sm:$0xff]
    %v5903 = vsel %vm344, %v5892, 0
    %v5906 = vsel %vm344, %v5897, 0
    %5908 = vmatprep.subr.mxu0 0.0
    %5909 = vmatpush1.msra.mxu0 %v5901
    %5910 = vmatprep.subr.mxu0 0.0
    %5911 = vmatpush1.msra.mxu0 0.0
    %5912 = vmatprep.subr.mxu0 0.0
    %5913 = vmatpush1.msra.mxu0 0.0
    %5914 = vmatprep.subr.mxu0 0.0
    %5915 = vmatpush1.msra.mxu0 0.0
    %5916 = vmatprep.subr.mxu0 0.0
    %5917 = vmatpush1.msra.mxu0 0.0
    %5918 = vmatprep.subr.mxu0 0.0
    %5919 = vmatpush1.msra.mxu0 0.0
    %5920 = vmatprep.subr.mxu0 0.0
    %5921 = vmatpush1.msra.mxu0 0.0
    %5922 = vmatprep.subr.mxu0 0.0
    %5923 = vmatpush1.msra.mxu0 0.0
    %5924 = vmatprep.subr.mxu0 0.0
    %5925 = vmatpush1.msra.mxu0 0.0
    %5926 = vmatprep.subr.mxu0 0.0
    %5927 = vmatpush1.msra.mxu0 0.0
    %5928 = vmatprep.subr.mxu0 0.0
    %5929 = vmatpush1.msra.mxu0 0.0
    %5930 = vmatprep.subr.mxu0 0.0
    %5931 = vmatpush1.msra.mxu0 0.0
    %5932 = vmatprep.subr.mxu0 0.0
    %5933 = vmatpush1.msra.mxu0 0.0
    %5934 = vmatprep.subr.mxu0 0.0
    %5935 = vmatpush1.msra.mxu0 0.0
    %5936 = vmatprep.subr.mxu0 0.0
    %5937 = vmatpush1.msra.mxu0 0.0
    %5938 = vmatprep.subr.mxu0 0.0
    %5939 = vmatpush1.msra.mxu0 0.0
    %5940 = vmatprep.subr.mxu0 0.0
    %5941 = vmatpush1.msra.mxu0 0.0
    %5942 = vmatprep.subr.mxu0 0.0
    %5943 = vmatpush1.msra.mxu0 0.0
    %5944 = vmatprep.subr.mxu0 0.0
    %5945 = vmatpush1.msra.mxu0 0.0
    %5946 = vmatprep.subr.mxu0 0.0
    %5947 = vmatpush1.msra.mxu0 0.0
    %5948 = vmatprep.subr.mxu0 0.0
    %5949 = vmatpush1.msra.mxu0 0.0
    %5950 = vmatprep.subr.mxu0 0.0
    %5951 = vmatpush1.msra.mxu0 0.0
    %5952 = vmatprep.subr.mxu0 0.0
    %5953 = vmatpush1.msra.mxu0 0.0
    %5954 = vmatprep.subr.mxu0 0.0
    %5955 = vmatpush1.msra.mxu0 0.0
    %5956 = vmatprep.subr.mxu0 0.0
    %5957 = vmatpush1.msra.mxu0 0.0
    %5958 = vmatprep.subr.mxu0 0.0
    %5959 = vmatpush1.msra.mxu0 0.0
    %5960 = vmatprep.subr.mxu0 0.0
    %5961 = vmatpush1.msra.mxu0 0.0
    %5962 = vmatprep.subr.mxu0 0.0
    %5963 = vmatpush1.msra.mxu0 0.0
    %5964 = vmatprep.subr.mxu0 0.0
    %5965 = vmatpush1.msra.mxu0 0.0
    %5966 = vmatprep.subr.mxu0 0.0
    %5967 = vmatpush1.msra.mxu0 0.0
    %5968 = vmatprep.subr.mxu0 0.0
    %5969 = vmatpush1.msra.mxu0 0.0
    %5970 = vmatprep.subr.mxu0 0.0
    %5971 = vmatpush1.msra.mxu0 0.0
    %5972 = vmatprep.mubr.f32.mxu0 0.0
    %5973 = vmatmul.mubr.f32.gmra.mrb[0].mxu0 %v5903
    %v5974 = vpop.f32.mrb[0].mxu0
    %v5975 = vadd.f32 0.0, %v5974
    %v5976 = vpop.f32.mrb[0].mxu0
    %5977 = vmatprep.mubr.f32.mxu0 0.0
    %5978 = vmatmul.mubr.f32.gmra.mrb[0].mxu0 %v5906
    %v5979 = vpop.f32.mrb[0].mxu0
    %v5980 = vadd.f32 0.0, %v5979
    %v5981 = vpop.f32.mrb[0].mxu0
    %5982 = vdwg.mxu0
    %v5983 = vadd.f32 %v5438, %v5975
    %v5984 = vadd.f32 %v5443, %v5980
    %s5985 = scalar_lea.vmem %s2, 224
    %v5986 = vld [vmem:[%s5985] sm:$0xff]
    %v5987 = vld [vmem:[%s5985 + $0x8] sm:$0xff]
    %v5988 = vld [vmem:[%s5985 + $0x10] sm:$0xff]
    %v5989 = vld [vmem:[%s5985 + $0x18] sm:$0xff]
    %s5990 = scalar_lea.vmem %s3, 7
    %v5991 = vld [vmem:[%s5990] sm:$0x1]
    %v5993 = vlaneseq
    %v5994 = vshrl.u32 %v5993, 7
    %v5995 = vsub.s32 0, %v5994
    %v5996 = vrot.slane %v5991, %v5995
    %5998 = vmatprep.subr.mxu0 0.0
    %5999 = vmatpush1.msra.mxu0 %v5986
    %6000 = vmatprep.subr.mxu0 0.0
    %6001 = vmatpush1.msra.mxu0 %v5987
    %6002 = vmatprep.subr.mxu0 0.0
    %6003 = vmatpush1.msra.mxu0 %v5988
    %6004 = vmatprep.subr.mxu0 0.0
    %6005 = vmatpush1.msra.mxu0 %v5989
    %6006 = vmatprep.subr.mxu0 0.0
    %6007 = vmatpush1.msra.mxu0 0.0
    %6008 = vmatprep.subr.mxu0 0.0
    %6009 = vmatpush1.msra.mxu0 0.0
    %6010 = vmatprep.subr.mxu0 0.0
    %6011 = vmatpush1.msra.mxu0 0.0
    %6012 = vmatprep.subr.mxu0 0.0
    %6013 = vmatpush1.msra.mxu0 0.0
    %6014 = vmatprep.subr.mxu0 0.0
    %6015 = vmatpush1.msra.mxu0 0.0
    %6016 = vmatprep.subr.mxu0 0.0
    %6017 = vmatpush1.msra.mxu0 0.0
    %6018 = vmatprep.subr.mxu0 0.0
    %6019 = vmatpush1.msra.mxu0 0.0
    %6020 = vmatprep.subr.mxu0 0.0
    %6021 = vmatpush1.msra.mxu0 0.0
    %6022 = vmatprep.subr.mxu0 0.0
    %6023 = vmatpush1.msra.mxu0 0.0
    %6024 = vmatprep.subr.mxu0 0.0
    %6025 = vmatpush1.msra.mxu0 0.0
    %6026 = vmatprep.subr.mxu0 0.0
    %6027 = vmatpush1.msra.mxu0 0.0
    %6028 = vmatprep.subr.mxu0 0.0
    %6029 = vmatpush1.msra.mxu0 0.0
    %6030 = vmatprep.subr.mxu0 0.0
    %6031 = vmatpush1.msra.mxu0 0.0
    %6032 = vmatprep.subr.mxu0 0.0
    %6033 = vmatpush1.msra.mxu0 0.0
    %6034 = vmatprep.subr.mxu0 0.0
    %6035 = vmatpush1.msra.mxu0 0.0
    %6036 = vmatprep.subr.mxu0 0.0
    %6037 = vmatpush1.msra.mxu0 0.0
    %6038 = vmatprep.subr.mxu0 0.0
    %6039 = vmatpush1.msra.mxu0 0.0
    %6040 = vmatprep.subr.mxu0 0.0
    %6041 = vmatpush1.msra.mxu0 0.0
    %6042 = vmatprep.subr.mxu0 0.0
    %6043 = vmatpush1.msra.mxu0 0.0
    %6044 = vmatprep.subr.mxu0 0.0
    %6045 = vmatpush1.msra.mxu0 0.0
    %6046 = vmatprep.subr.mxu0 0.0
    %6047 = vmatpush1.msra.mxu0 0.0
    %6048 = vmatprep.subr.mxu0 0.0
    %6049 = vmatpush1.msra.mxu0 0.0
    %6050 = vmatprep.subr.mxu0 0.0
    %6051 = vmatpush1.msra.mxu0 0.0
    %6052 = vmatprep.subr.mxu0 0.0
    %6053 = vmatpush1.msra.mxu0 0.0
    %6054 = vmatprep.subr.mxu0 0.0
    %6055 = vmatpush1.msra.mxu0 0.0
    %6056 = vmatprep.subr.mxu0 0.0
    %6057 = vmatpush1.msra.mxu0 0.0
    %6058 = vmatprep.subr.mxu0 0.0
    %6059 = vmatpush1.msra.mxu0 0.0
    %6060 = vmatprep.subr.mxu0 0.0
    %6061 = vmatpush1.msra.mxu0 0.0
    %6062 = vmatprep.mubr.f32.mxu0 0.0
    %6063 = vmatmul.mubr.f32.gmra.mrb[0].mxu0 %v4380
    %v6064 = vpop.f32.mrb[0].mxu0
    %v6065 = vadd.f32 %v5996, %v6064
    %v6066 = vpop.f32.mrb[0].mxu0
    %6067 = vmatprep.mubr.f32.mxu0 0.0
    %6068 = vmatmul.mubr.f32.gmra.mrb[0].mxu0 %v4383
    %v6069 = vpop.f32.mrb[0].mxu0
    %v6070 = vadd.f32 %v5996, %v6069
    %v6071 = vpop.f32.mrb[0].mxu0
    %6072 = vdwg.mxu0
    %s6073 = scalar_lea.vmem %s4, 224
    %v6074 = vld [vmem:[%s6073] sm:$0xff]
    %v6075 = vld [vmem:[%s6073 + $0x8] sm:$0xff]
    %v6076 = vld [vmem:[%s6073 + $0x10] sm:$0xff]
    %v6077 = vld [vmem:[%s6073 + $0x18] sm:$0xff]
    %s6078 = scalar_lea.vmem %s5, 7
    %v6079 = vld [vmem:[%s6078] sm:$0x1]
    %v6081 = vlaneseq
    %v6082 = vshrl.u32 %v6081, 7
    %v6083 = vsub.s32 0, %v6082
    %v6084 = vrot.slane %v6079, %v6083
    %6086 = vmatprep.subr.mxu0 0.0
    %6087 = vmatpush1.msra.mxu0 %v6074
    %6088 = vmatprep.subr.mxu0 0.0
    %6089 = vmatpush1.msra.mxu0 %v6075
    %6090 = vmatprep.subr.mxu0 0.0
    %6091 = vmatpush1.msra.mxu0 %v6076
    %6092 = vmatprep.subr.mxu0 0.0
    %6093 = vmatpush1.msra.mxu0 %v6077
    %6094 = vmatprep.subr.mxu0 0.0
    %6095 = vmatpush1.msra.mxu0 0.0
    %6096 = vmatprep.subr.mxu0 0.0
    %6097 = vmatpush1.msra.mxu0 0.0
    %6098 = vmatprep.subr.mxu0 0.0
    %6099 = vmatpush1.msra.mxu0 0.0
    %6100 = vmatprep.subr.mxu0 0.0
    %6101 = vmatpush1.msra.mxu0 0.0
    %6102 = vmatprep.subr.mxu0 0.0
    %6103 = vmatpush1.msra.mxu0 0.0
    %6104 = vmatprep.subr.mxu0 0.0
    %6105 = vmatpush1.msra.mxu0 0.0
    %6106 = vmatprep.subr.mxu0 0.0
    %6107 = vmatpush1.msra.mxu0 0.0
    %6108 = vmatprep.subr.mxu0 0.0
    %6109 = vmatpush1.msra.mxu0 0.0
    %6110 = vmatprep.subr.mxu0 0.0
    %6111 = vmatpush1.msra.mxu0 0.0
    %6112 = vmatprep.subr.mxu0 0.0
    %6113 = vmatpush1.msra.mxu0 0.0
    %6114 = vmatprep.subr.mxu0 0.0
    %6115 = vmatpush1.msra.mxu0 0.0
    %6116 = vmatprep.subr.mxu0 0.0
    %6117 = vmatpush1.msra.mxu0 0.0
    %6118 = vmatprep.subr.mxu0 0.0
    %6119 = vmatpush1.msra.mxu0 0.0
    %6120 = vmatprep.subr.mxu0 0.0
    %6121 = vmatpush1.msra.mxu0 0.0
    %6122 = vmatprep.subr.mxu0 0.0
    %6123 = vmatpush1.msra.mxu0 0.0
    %6124 = vmatprep.subr.mxu0 0.0
    %6125 = vmatpush1.msra.mxu0 0.0
    %6126 = vmatprep.subr.mxu0 0.0
    %6127 = vmatpush1.msra.mxu0 0.0
    %6128 = vmatprep.subr.mxu0 0.0
    %6129 = vmatpush1.msra.mxu0 0.0
    %6130 = vmatprep.subr.mxu0 0.0
    %6131 = vmatpush1.msra.mxu0 0.0
    %6132 = vmatprep.subr.mxu0 0.0
    %6133 = vmatpush1.msra.mxu0 0.0
    %6134 = vmatprep.subr.mxu0 0.0
    %6135 = vmatpush1.msra.mxu0 0.0
    %6136 = vmatprep.subr.mxu0 0.0
    %6137 = vmatpush1.msra.mxu0 0.0
    %6138 = vmatprep.subr.mxu0 0.0
    %6139 = vmatpush1.msra.mxu0 0.0
    %6140 = vmatprep.subr.mxu0 0.0
    %6141 = vmatpush1.msra.mxu0 0.0
    %6142 = vmatprep.subr.mxu0 0.0
    %6143 = vmatpush1.msra.mxu0 0.0
    %6144 = vmatprep.subr.mxu0 0.0
    %6145 = vmatpush1.msra.mxu0 0.0
    %6146 = vmatprep.subr.mxu0 0.0
    %6147 = vmatpush1.msra.mxu0 0.0
    %6148 = vmatprep.subr.mxu0 0.0
    %6149 = vmatpush1.msra.mxu0 0.0
    %6150 = vmatprep.mubr.f32.mxu0 0.0
    %6151 = vmatmul.mubr.f32.gmra.mrb[0].mxu0 %v4380
    %v6152 = vpop.f32.mrb[0].mxu0
    %v6153 = vadd.f32 %v6084, %v6152
    %v6154 = vpop.f32.mrb[0].mxu0
    %6155 = vmatprep.mubr.f32.mxu0 0.0
    %6156 = vmatmul.mubr.f32.gmra.mrb[0].mxu0 %v4383
    %v6157 = vpop.f32.mrb[0].mxu0
    %v6158 = vadd.f32 %v6084, %v6157
    %v6159 = vpop.f32.mrb[0].mxu0
    %6160 = vdwg.mxu0
    %s6161 = scalar_lea.vmem %s6, 224
    %v6162 = vld [vmem:[%s6161] sm:$0xff]
    %v6163 = vld [vmem:[%s6161 + $0x8] sm:$0xff]
    %v6164 = vld [vmem:[%s6161 + $0x10] sm:$0xff]
    %v6165 = vld [vmem:[%s6161 + $0x18] sm:$0xff]
    %s6166 = scalar_lea.vmem %s7, 7
    %v6167 = vld [vmem:[%s6166] sm:$0x1]
    %v6169 = vlaneseq
    %v6170 = vshrl.u32 %v6169, 7
    %v6171 = vsub.s32 0, %v6170
    %v6172 = vrot.slane %v6167, %v6171
    %6174 = vmatprep.subr.mxu0 0.0
    %6175 = vmatpush1.msra.mxu0 %v6162
    %6176 = vmatprep.subr.mxu0 0.0
    %6177 = vmatpush1.msra.mxu0 %v6163
    %6178 = vmatprep.subr.mxu0 0.0
    %6179 = vmatpush1.msra.mxu0 %v6164
    %6180 = vmatprep.subr.mxu0 0.0
    %6181 = vmatpush1.msra.mxu0 %v6165
    %6182 = vmatprep.subr.mxu0 0.0
    %6183 = vmatpush1.msra.mxu0 0.0
    %6184 = vmatprep.subr.mxu0 0.0
    %6185 = vmatpush1.msra.mxu0 0.0
    %6186 = vmatprep.subr.mxu0 0.0
    %6187 = vmatpush1.msra.mxu0 0.0
    %6188 = vmatprep.subr.mxu0 0.0
    %6189 = vmatpush1.msra.mxu0 0.0
    %6190 = vmatprep.subr.mxu0 0.0
    %6191 = vmatpush1.msra.mxu0 0.0
    %6192 = vmatprep.subr.mxu0 0.0
    %6193 = vmatpush1.msra.mxu0 0.0
    %6194 = vmatprep.subr.mxu0 0.0
    %6195 = vmatpush1.msra.mxu0 0.0
    %6196 = vmatprep.subr.mxu0 0.0
    %6197 = vmatpush1.msra.mxu0 0.0
    %6198 = vmatprep.subr.mxu0 0.0
    %6199 = vmatpush1.msra.mxu0 0.0
    %6200 = vmatprep.subr.mxu0 0.0
    %6201 = vmatpush1.msra.mxu0 0.0
    %6202 = vmatprep.subr.mxu0 0.0
    %6203 = vmatpush1.msra.mxu0 0.0
    %6204 = vmatprep.subr.mxu0 0.0
    %6205 = vmatpush1.msra.mxu0 0.0
    %6206 = vmatprep.subr.mxu0 0.0
    %6207 = vmatpush1.msra.mxu0 0.0
    %6208 = vmatprep.subr.mxu0 0.0
    %6209 = vmatpush1.msra.mxu0 0.0
    %6210 = vmatprep.subr.mxu0 0.0
    %6211 = vmatpush1.msra.mxu0 0.0
    %6212 = vmatprep.subr.mxu0 0.0
    %6213 = vmatpush1.msra.mxu0 0.0
    %6214 = vmatprep.subr.mxu0 0.0
    %6215 = vmatpush1.msra.mxu0 0.0
    %6216 = vmatprep.subr.mxu0 0.0
    %6217 = vmatpush1.msra.mxu0 0.0
    %6218 = vmatprep.subr.mxu0 0.0
    %6219 = vmatpush1.msra.mxu0 0.0
    %6220 = vmatprep.subr.mxu0 0.0
    %6221 = vmatpush1.msra.mxu0 0.0
    %6222 = vmatprep.subr.mxu0 0.0
    %6223 = vmatpush1.msra.mxu0 0.0
    %6224 = vmatprep.subr.mxu0 0.0
    %6225 = vmatpush1.msra.mxu0 0.0
    %6226 = vmatprep.subr.mxu0 0.0
    %6227 = vmatpush1.msra.mxu0 0.0
    %6228 = vmatprep.subr.mxu0 0.0
    %6229 = vmatpush1.msra.mxu0 0.0
    %6230 = vmatprep.subr.mxu0 0.0
    %6231 = vmatpush1.msra.mxu0 0.0
    %6232 = vmatprep.subr.mxu0 0.0
    %6233 = vmatpush1.msra.mxu0 0.0
    %6234 = vmatprep.subr.mxu0 0.0
    %6235 = vmatpush1.msra.mxu0 0.0
    %6236 = vmatprep.subr.mxu0 0.0
    %6237 = vmatpush1.msra.mxu0 0.0
    %6238 = vmatprep.mubr.f32.mxu0 0.0
    %6239 = vmatmul.mubr.f32.gmra.mrb[0].mxu0 %v4380
    %v6240 = vpop.f32.mrb[0].mxu0
    %v6241 = vadd.f32 %v6172, %v6240
    %v6242 = vpop.f32.mrb[0].mxu0
    %6243 = vmatprep.mubr.f32.mxu0 0.0
    %6244 = vmatmul.mubr.f32.gmra.mrb[0].mxu0 %v4383
    %v6245 = vpop.f32.mrb[0].mxu0
    %v6246 = vadd.f32 %v6172, %v6245
    %v6247 = vpop.f32.mrb[0].mxu0
    %6248 = vdwg.mxu0
    %v6250 = vsel %vm344, %v6065, 0
    %v6253 = vsel %vm344, %v6070, 0
    %v6256 = vsel %vm344, %v6153, 0
    %v6259 = vsel %vm344, %v6158, 0
    %6261 = vmatprep.subr.mxu0 0.0
    %6262 = vmatpush1.xpose.msra.mxu0 %v6256
    %6263 = vmatprep.subr.mxu0 0.0
    %6264 = vmatpush1.xpose.msra.mxu0 %v6259
    %6265 = vmatprep.subr.mxu0 0.0
    %6266 = vmatpush1.xpose.msra.mxu0 0.0
    %6267 = vmatprep.subr.mxu0 0.0
    %6268 = vmatpush1.xpose.msra.mxu0 0.0
    %6269 = vmatprep.subr.mxu0 0.0
    %6270 = vmatpush1.xpose.msra.mxu0 0.0
    %6271 = vmatprep.subr.mxu0 0.0
    %6272 = vmatpush1.xpose.msra.mxu0 0.0
    %6273 = vmatprep.subr.mxu0 0.0
    %6274 = vmatpush1.xpose.msra.mxu0 0.0
    %6275 = vmatprep.subr.mxu0 0.0
    %6276 = vmatpush1.xpose.msra.mxu0 0.0
    %6277 = vmatprep.subr.mxu0 0.0
    %6278 = vmatpush1.xpose.msra.mxu0 0.0
    %6279 = vmatprep.subr.mxu0 0.0
    %6280 = vmatpush1.xpose.msra.mxu0 0.0
    %6281 = vmatprep.subr.mxu0 0.0
    %6282 = vmatpush1.xpose.msra.mxu0 0.0
    %6283 = vmatprep.subr.mxu0 0.0
    %6284 = vmatpush1.xpose.msra.mxu0 0.0
    %6285 = vmatprep.subr.mxu0 0.0
    %6286 = vmatpush1.xpose.msra.mxu0 0.0
    %6287 = vmatprep.subr.mxu0 0.0
    %6288 = vmatpush1.xpose.msra.mxu0 0.0
    %6289 = vmatprep.subr.mxu0 0.0
    %6290 = vmatpush1.xpose.msra.mxu0 0.0
    %6291 = vmatprep.subr.mxu0 0.0
    %6292 = vmatpush1.xpose.msra.mxu0 0.0
    %6293 = vmatprep.subr.mxu0 0.0
    %6294 = vmatpush1.xpose.msra.mxu0 0.0
    %6295 = vmatprep.subr.mxu0 0.0
    %6296 = vmatpush1.xpose.msra.mxu0 0.0
    %6297 = vmatprep.subr.mxu0 0.0
    %6298 = vmatpush1.xpose.msra.mxu0 0.0
    %6299 = vmatprep.subr.mxu0 0.0
    %6300 = vmatpush1.xpose.msra.mxu0 0.0
    %6301 = vmatprep.subr.mxu0 0.0
    %6302 = vmatpush1.xpose.msra.mxu0 0.0
    %6303 = vmatprep.subr.mxu0 0.0
    %6304 = vmatpush1.xpose.msra.mxu0 0.0
    %6305 = vmatprep.subr.mxu0 0.0
    %6306 = vmatpush1.xpose.msra.mxu0 0.0
    %6307 = vmatprep.subr.mxu0 0.0
    %6308 = vmatpush1.xpose.msra.mxu0 0.0
    %6309 = vmatprep.subr.mxu0 0.0
    %6310 = vmatpush1.xpose.msra.mxu0 0.0
    %6311 = vmatprep.subr.mxu0 0.0
    %6312 = vmatpush1.xpose.msra.mxu0 0.0
    %6313 = vmatprep.subr.mxu0 0.0
    %6314 = vmatpush1.xpose.msra.mxu0 0.0
    %6315 = vmatprep.subr.mxu0 0.0
    %6316 = vmatpush1.xpose.msra.mxu0 0.0
    %6317 = vmatprep.subr.mxu0 0.0
    %6318 = vmatpush1.xpose.msra.mxu0 0.0
    %6319 = vmatprep.subr.mxu0 0.0
    %6320 = vmatpush1.xpose.msra.mxu0 0.0
    %6321 = vmatprep.subr.mxu0 0.0
    %6322 = vmatpush1.xpose.msra.mxu0 0.0
    %6323 = vmatprep.subr.mxu0 0.0
    %6324 = vmatpush1.xpose.msra.mxu0 0.0
    %6325 = vmatprep.mubr.f32.mxu0 0.0
    %6326 = vmatmul.mubr.f32.gmra.mrb[0].mxu0 %v6250
    %v6327 = vpop.f32.mrb[0].mxu0
    %v6328 = vadd.f32 %v77, %v6327
    %v6329 = vpop.f32.mrb[0].mxu0
    %6330 = vmatprep.mubr.f32.mxu0 0.0
    %6331 = vmatmul.mubr.f32.gmra.mrb[0].mxu0 %v6253
    %v6332 = vpop.f32.mrb[0].mxu0
    %v6333 = vadd.f32 %v78, %v6332
    %v6334 = vpop.f32.mrb[0].mxu0
    %6335 = vdwg.mxu0
    %v6336 = vsel %vm432, %v6328, -inf
    %6337 = vmax.xlane.f32.xlu0 %v6336
    %v6338 = vpop.xlane.xlu0 %6337
    %v6339 = vsel %vm432, %v6333, -inf
    %6340 = vmax.xlane.f32.xlu0 %v6339
    %v6341 = vpop.xlane.xlu0 %6340
    %v6342 = vsub.f32 %v6328, %v6338
    %v6343 = vsub.f32 %v6333, %v6341
    %v6344 = vmul.f32 %v6342, 1.442695
    %v6345 = vpow.pop %v6344
    %v6346 = vmul.f32 %v6343, 1.442695
    %v6347 = vpow.pop %v6346
    %v6348 = vsel %vm432, %v6345, 0.0
    %6349 = vadd.xlane.f32.xlu0 %v6348
    %v6350 = vpop.xlane.xlu0 %6349
    %v6351 = vsel %vm432, %v6347, 0.0
    %6352 = vadd.xlane.f32.xlu0 %v6351
    %v6353 = vpop.xlane.xlu0 %6352
    %v6354 = vrcp.pop %v6350
    %v6355 = vrcp.pop %v6353
    %v6356 = vmul.f32 %v6345, %v6354
    %v6357 = vmul.f32 %v6347, %v6355
    %v6359 = vsel %vm432, %v6356, 0
    %v6362 = vsel %vm432, %v6357, 0
    %6364 = vmatprep.subr.mxu0 0.0
    %6365 = vmatpush1.msra.mxu0 %v6241
    %6366 = vmatprep.subr.mxu0 0.0
    %6367 = vmatpush1.msra.mxu0 %v6246
    %6368 = vmatprep.subr.mxu0 0.0
    %6369 = vmatpush1.msra.mxu0 0.0
    %6370 = vmatprep.subr.mxu0 0.0
    %6371 = vmatpush1.msra.mxu0 0.0
    %6372 = vmatprep.subr.mxu0 0.0
    %6373 = vmatpush1.msra.mxu0 0.0
    %6374 = vmatprep.subr.mxu0 0.0
    %6375 = vmatpush1.msra.mxu0 0.0
    %6376 = vmatprep.subr.mxu0 0.0
    %6377 = vmatpush1.msra.mxu0 0.0
    %6378 = vmatprep.subr.mxu0 0.0
    %6379 = vmatpush1.msra.mxu0 0.0
    %6380 = vmatprep.subr.mxu0 0.0
    %6381 = vmatpush1.msra.mxu0 0.0
    %6382 = vmatprep.subr.mxu0 0.0
    %6383 = vmatpush1.msra.mxu0 0.0
    %6384 = vmatprep.subr.mxu0 0.0
    %6385 = vmatpush1.msra.mxu0 0.0
    %6386 = vmatprep.subr.mxu0 0.0
    %6387 = vmatpush1.msra.mxu0 0.0
    %6388 = vmatprep.subr.mxu0 0.0
    %6389 = vmatpush1.msra.mxu0 0.0
    %6390 = vmatprep.subr.mxu0 0.0
    %6391 = vmatpush1.msra.mxu0 0.0
    %6392 = vmatprep.subr.mxu0 0.0
    %6393 = vmatpush1.msra.mxu0 0.0
    %6394 = vmatprep.subr.mxu0 0.0
    %6395 = vmatpush1.msra.mxu0 0.0
    %6396 = vmatprep.subr.mxu0 0.0
    %6397 = vmatpush1.msra.mxu0 0.0
    %6398 = vmatprep.subr.mxu0 0.0
    %6399 = vmatpush1.msra.mxu0 0.0
    %6400 = vmatprep.subr.mxu0 0.0
    %6401 = vmatpush1.msra.mxu0 0.0
    %6402 = vmatprep.subr.mxu0 0.0
    %6403 = vmatpush1.msra.mxu0 0.0
    %6404 = vmatprep.subr.mxu0 0.0
    %6405 = vmatpush1.msra.mxu0 0.0
    %6406 = vmatprep.subr.mxu0 0.0
    %6407 = vmatpush1.msra.mxu0 0.0
    %6408 = vmatprep.subr.mxu0 0.0
    %6409 = vmatpush1.msra.mxu0 0.0
    %6410 = vmatprep.subr.mxu0 0.0
    %6411 = vmatpush1.msra.mxu0 0.0
    %6412 = vmatprep.subr.mxu0 0.0
    %6413 = vmatpush1.msra.mxu0 0.0
    %6414 = vmatprep.subr.mxu0 0.0
    %6415 = vmatpush1.msra.mxu0 0.0
    %6416 = vmatprep.subr.mxu0 0.0
    %6417 = vmatpush1.msra.mxu0 0.0
    %6418 = vmatprep.subr.mxu0 0.0
    %6419 = vmatpush1.msra.mxu0 0.0
    %6420 = vmatprep.subr.mxu0 0.0
    %6421 = vmatpush1.msra.mxu0 0.0
    %6422 = vmatprep.subr.mxu0 0.0
    %6423 = vmatpush1.msra.mxu0 0.0
    %6424 = vmatprep.subr.mxu0 0.0
    %6425 = vmatpush1.msra.mxu0 0.0
    %6426 = vmatprep.subr.mxu0 0.0
    %6427 = vmatpush1.msra.mxu0 0.0
    %6428 = vmatprep.mubr.f32.mxu0 0.0
    %6429 = vmatmul.mubr.f32.gmra.mrb[0].mxu0 %v6359
    %v6430 = vpop.f32.mrb[0].mxu0
    %v6431 = vadd.f32 0.0, %v6430
    %v6432 = vpop.f32.mrb[0].mxu0
    %6433 = vmatprep.mubr.f32.mxu0 0.0
    %6434 = vmatmul.mubr.f32.gmra.mrb[0].mxu0 %v6362
    %v6435 = vpop.f32.mrb[0].mxu0
    %v6436 = vadd.f32 0.0, %v6435
    %v6437 = vpop.f32.mrb[0].mxu0
    %6438 = vdwg.mxu0
    %s6439 = scalar_lea.vmem %s8, 56
    %v6440 = vld [vmem:[%s6439] sm:$0xff]
    %v6442 = vsel %vm344, %v6431, 0
    %v6445 = vsel %vm344, %v6436, 0
    %6447 = vmatprep.subr.mxu0 0.0
    %6448 = vmatpush1.msra.mxu0 %v6440
    %6449 = vmatprep.subr.mxu0 0.0
    %6450 = vmatpush1.msra.mxu0 0.0
    %6451 = vmatprep.subr.mxu0 0.0
    %6452 = vmatpush1.msra.mxu0 0.0
    %6453 = vmatprep.subr.mxu0 0.0
    %6454 = vmatpush1.msra.mxu0 0.0
    %6455 = vmatprep.subr.mxu0 0.0
    %6456 = vmatpush1.msra.mxu0 0.0
    %6457 = vmatprep.subr.mxu0 0.0
    %6458 = vmatpush1.msra.mxu0 0.0
    %6459 = vmatprep.subr.mxu0 0.0
    %6460 = vmatpush1.msra.mxu0 0.0
    %6461 = vmatprep.subr.mxu0 0.0
    %6462 = vmatpush1.msra.mxu0 0.0
    %6463 = vmatprep.subr.mxu0 0.0
    %6464 = vmatpush1.msra.mxu0 0.0
    %6465 = vmatprep.subr.mxu0 0.0
    %6466 = vmatpush1.msra.mxu0 0.0
    %6467 = vmatprep.subr.mxu0 0.0
    %6468 = vmatpush1.msra.mxu0 0.0
    %6469 = vmatprep.subr.mxu0 0.0
    %6470 = vmatpush1.msra.mxu0 0.0
    %6471 = vmatprep.subr.mxu0 0.0
    %6472 = vmatpush1.msra.mxu0 0.0
    %6473 = vmatprep.subr.mxu0 0.0
    %6474 = vmatpush1.msra.mxu0 0.0
    %6475 = vmatprep.subr.mxu0 0.0
    %6476 = vmatpush1.msra.mxu0 0.0
    %6477 = vmatprep.subr.mxu0 0.0
    %6478 = vmatpush1.msra.mxu0 0.0
    %6479 = vmatprep.subr.mxu0 0.0
    %6480 = vmatpush1.msra.mxu0 0.0
    %6481 = vmatprep.subr.mxu0 0.0
    %6482 = vmatpush1.msra.mxu0 0.0
    %6483 = vmatprep.subr.mxu0 0.0
    %6484 = vmatpush1.msra.mxu0 0.0
    %6485 = vmatprep.subr.mxu0 0.0
    %6486 = vmatpush1.msra.mxu0 0.0
    %6487 = vmatprep.subr.mxu0 0.0
    %6488 = vmatpush1.msra.mxu0 0.0
    %6489 = vmatprep.subr.mxu0 0.0
    %6490 = vmatpush1.msra.mxu0 0.0
    %6491 = vmatprep.subr.mxu0 0.0
    %6492 = vmatpush1.msra.mxu0 0.0
    %6493 = vmatprep.subr.mxu0 0.0
    %6494 = vmatpush1.msra.mxu0 0.0
    %6495 = vmatprep.subr.mxu0 0.0
    %6496 = vmatpush1.msra.mxu0 0.0
    %6497 = vmatprep.subr.mxu0 0.0
    %6498 = vmatpush1.msra.mxu0 0.0
    %6499 = vmatprep.subr.mxu0 0.0
    %6500 = vmatpush1.msra.mxu0 0.0
    %6501 = vmatprep.subr.mxu0 0.0
    %6502 = vmatpush1.msra.mxu0 0.0
    %6503 = vmatprep.subr.mxu0 0.0
    %6504 = vmatpush1.msra.mxu0 0.0
    %6505 = vmatprep.subr.mxu0 0.0
    %6506 = vmatpush1.msra.mxu0 0.0
    %6507 = vmatprep.subr.mxu0 0.0
    %6508 = vmatpush1.msra.mxu0 0.0
    %6509 = vmatprep.subr.mxu0 0.0
    %6510 = vmatpush1.msra.mxu0 0.0
    %6511 = vmatprep.mubr.f32.mxu0 0.0
    %6512 = vmatmul.mubr.f32.gmra.mrb[0].mxu0 %v6442
    %v6513 = vpop.f32.mrb[0].mxu0
    %v6514 = vadd.f32 0.0, %v6513
    %v6515 = vpop.f32.mrb[0].mxu0
    %6516 = vmatprep.mubr.f32.mxu0 0.0
    %6517 = vmatmul.mubr.f32.gmra.mrb[0].mxu0 %v6445
    %v6518 = vpop.f32.mrb[0].mxu0
    %v6519 = vadd.f32 0.0, %v6518
    %v6520 = vpop.f32.mrb[0].mxu0
    %6521 = vdwg.mxu0
    %v6522 = vadd.f32 %v5983, %v6514
    %v6523 = vadd.f32 %v5984, %v6519
    %s6524 = scalar_lea.vmem %s9, 1
    %v6525 = vld [vmem:[%s6524] sm:$0x1]
    %v6527 = vlaneseq
    %v6528 = vshrl.u32 %v6527, 7
    %v6529 = vsub.s32 0, %v6528
    %v6530 = vrot.slane %v6525, %v6529
    %v6532 = vadd.f32 %v6522, %v6530
    %v6533 = vadd.f32 %v6523, %v6530
    %v6534 = vadd.f32 %v4364, %v6532
    %v6535 = vadd.f32 %v4365, %v6533
    %s6536 = scalar_lea.vmem %s14, 1
    %v6537 = vld [vmem:[%s6536] sm:$0x1]
    %s6538 = scalar_lea.vmem %s15, 1
    %v6539 = vld [vmem:[%s6538] sm:$0x1]
    %v6540 = vsel %vm90, %v6534, 0.0
    %6541 = vadd.xlane.f32.xlu0 %v6540
    %v6542 = vpop.xlane.xlu0 %6541
    %v6543 = vsel %vm90, %v6535, 0.0
    %6544 = vadd.xlane.f32.xlu0 %v6543
    %v6545 = vpop.xlane.xlu0 %6544
    %v6546 = vmul.f32 %v6542, %v2252
    %v6547 = vmul.f32 %v6545, %v2252
    %v6548 = vsub.f32 %v6534, %v6546
    %v6549 = vsub.f32 %v6535, %v6547
    %v6550 = vmul.f32 %v6548, %v6548
    %v6551 = vmul.f32 %v6549, %v6549
    %v6552 = vsel %vm90, %v6550, 0.0
    %6553 = vadd.xlane.f32.xlu0 %v6552
    %v6554 = vpop.xlane.xlu0 %6553
    %v6555 = vsel %vm90, %v6551, 0.0
    %6556 = vadd.xlane.f32.xlu0 %v6555
    %v6557 = vpop.xlane.xlu0 %6556
    %v6558 = vmul.f32 %v6554, %v2252
    %v6559 = vmul.f32 %v6557, %v2252
    %v6560 = vadd.f32 %v6558, 1e-05
    %v6561 = vadd.f32 %v6559, 1e-05
    %v6562 = vrsqrt.pop %v6560
    %v6563 = vrsqrt.pop %v6561
    %v6564 = vmul.f32 %v6548, %v6562
    %v6565 = vmul.f32 %v6549, %v6563
    %v6567 = vlaneseq
    %v6568 = vshrl.u32 %v6567, 7
    %v6569 = vsub.s32 0, %v6568
    %v6570 = vrot.slane %v6537, %v6569
    %v6572 = vmul.f32 %v6564, %v6570
    %v6573 = vmul.f32 %v6565, %v6570
    %v6575 = vlaneseq
    %v6576 = vshrl.u32 %v6575, 7
    %v6577 = vsub.s32 0, %v6576
    %v6578 = vrot.slane %v6539, %v6577
    %v6580 = vadd.f32 %v6572, %v6578
    %v6581 = vadd.f32 %v6573, %v6578
    %v6582 = vpack.c.bf16 %v6581, %v6580
    %s6583 = scalar_lea.vmem %s10, 256
    %v6584 = vld [vmem:[%s6583] sm:$0xff]
    %v6585 = vld [vmem:[%s6583 + $0x8] sm:$0xff]
    %v6586 = vld [vmem:[%s6583 + $0x10] sm:$0xff]
    %v6587 = vld [vmem:[%s6583 + $0x18] sm:$0xff]
    %v6588 = vld [vmem:[%s6583 + $0x20] sm:$0xff]
    %v6589 = vld [vmem:[%s6583 + $0x28] sm:$0xff]
    %v6590 = vld [vmem:[%s6583 + $0x30] sm:$0xff]
    %v6591 = vld [vmem:[%s6583 + $0x38] sm:$0xff]
    %v6592 = vld [vmem:[%s6583 + $0x40] sm:$0xff]
    %v6593 = vld [vmem:[%s6583 + $0x48] sm:$0xff]
    %v6594 = vld [vmem:[%s6583 + $0x50] sm:$0xff]
    %v6595 = vld [vmem:[%s6583 + $0x58] sm:$0xff]
    %v6596 = vld [vmem:[%s6583 + $0x60] sm:$0xff]
    %v6597 = vld [vmem:[%s6583 + $0x68] sm:$0xff]
    %v6598 = vld [vmem:[%s6583 + $0x70] sm:$0xff]
    %v6599 = vld [vmem:[%s6583 + $0x78] sm:$0xff]
    %v6600 = vld [vmem:[%s6583 + $0x80] sm:$0xff]
    %v6601 = vld [vmem:[%s6583 + $0x88] sm:$0xff]
    %v6602 = vld [vmem:[%s6583 + $0x90] sm:$0xff]
    %v6603 = vld [vmem:[%s6583 + $0x98] sm:$0xff]
    %v6604 = vld [vmem:[%s6583 + $0xa0] sm:$0xff]
    %v6605 = vld [vmem:[%s6583 + $0xa8] sm:$0xff]
    %v6606 = vld [vmem:[%s6583 + $0xb0] sm:$0xff]
    %v6607 = vld [vmem:[%s6583 + $0xb8] sm:$0xff]
    %v6608 = vld [vmem:[%s6583 + $0xc0] sm:$0xff]
    %v6609 = vld [vmem:[%s6583 + $0xc8] sm:$0xff]
    %v6610 = vld [vmem:[%s6583 + $0xd0] sm:$0xff]
    %v6611 = vld [vmem:[%s6583 + $0xd8] sm:$0xff]
    %v6612 = vld [vmem:[%s6583 + $0xe0] sm:$0xff]
    %v6613 = vld [vmem:[%s6583 + $0xe8] sm:$0xff]
    %v6614 = vld [vmem:[%s6583 + $0xf0] sm:$0xff]
    %v6615 = vld [vmem:[%s6583 + $0xf8] sm:$0xff]
    %s6616 = scalar_lea.vmem %s11, 16
    %v6617 = vld [vmem:[%s6616] sm:$0xff]
    %v6618 = vld [vmem:[%s6616 + $0x8] sm:$0xff]
    %v6621 = vlaneseq
    %v6622 = vshrl.u32 %v6621, 7
    %v6623 = vsub.s32 0, %v6622
    %v6624 = vrot.slane %v6617, %v6623
    %v6625 = vlaneseq
    %v6626 = vshrl.u32 %v6625, 7
    %v6627 = vsub.s32 1, %v6626
    %v6628 = vrot.slane %v6617, %v6627
    %v6629 = vlaneseq
    %v6630 = vshrl.u32 %v6629, 7
    %v6631 = vsub.s32 2, %v6630
    %v6632 = vrot.slane %v6617, %v6631
    %v6633 = vlaneseq
    %v6634 = vshrl.u32 %v6633, 7
    %v6635 = vsub.s32 3, %v6634
    %v6636 = vrot.slane %v6617, %v6635
    %v6637 = vlaneseq
    %v6638 = vshrl.u32 %v6637, 7
    %v6639 = vsub.s32 4, %v6638
    %v6640 = vrot.slane %v6617, %v6639
    %v6641 = vlaneseq
    %v6642 = vshrl.u32 %v6641, 7
    %v6643 = vsub.s32 5, %v6642
    %v6644 = vrot.slane %v6617, %v6643
    %v6645 = vlaneseq
    %v6646 = vshrl.u32 %v6645, 7
    %v6647 = vsub.s32 6, %v6646
    %v6648 = vrot.slane %v6617, %v6647
    %v6649 = vlaneseq
    %v6650 = vshrl.u32 %v6649, 7
    %v6651 = vsub.s32 7, %v6650
    %v6652 = vrot.slane %v6617, %v6651
    %v6653 = vlaneseq
    %v6654 = vshrl.u32 %v6653, 7
    %v6655 = vsub.s32 0, %v6654
    %v6656 = vrot.slane %v6618, %v6655
    %v6657 = vlaneseq
    %v6658 = vshrl.u32 %v6657, 7
    %v6659 = vsub.s32 1, %v6658
    %v6660 = vrot.slane %v6618, %v6659
    %v6661 = vlaneseq
    %v6662 = vshrl.u32 %v6661, 7
    %v6663 = vsub.s32 2, %v6662
    %v6664 = vrot.slane %v6618, %v6663
    %v6665 = vlaneseq
    %v6666 = vshrl.u32 %v6665, 7
    %v6667 = vsub.s32 3, %v6666
    %v6668 = vrot.slane %v6618, %v6667
    %v6669 = vlaneseq
    %v6670 = vshrl.u32 %v6669, 7
    %v6671 = vsub.s32 4, %v6670
    %v6672 = vrot.slane %v6618, %v6671
    %v6673 = vlaneseq
    %v6674 = vshrl.u32 %v6673, 7
    %v6675 = vsub.s32 5, %v6674
    %v6676 = vrot.slane %v6618, %v6675
    %v6677 = vlaneseq
    %v6678 = vshrl.u32 %v6677, 7
    %v6679 = vsub.s32 6, %v6678
    %v6680 = vrot.slane %v6618, %v6679
    %v6681 = vlaneseq
    %v6682 = vshrl.u32 %v6681, 7
    %v6683 = vsub.s32 7, %v6682
    %v6684 = vrot.slane %v6618, %v6683
    %v6733 = vunpack.c.l.b16 %v6584
    %v6734 = vunpack.c.h.b16 %v6584
    %v6735 = vunpack.c.l.b16 %v6585
    %v6736 = vunpack.c.h.b16 %v6585
    %v6737 = vunpack.c.l.b16 %v6586
    %v6738 = vunpack.c.h.b16 %v6586
    %v6739 = vunpack.c.l.b16 %v6587
    %v6740 = vunpack.c.h.b16 %v6587
    %v6741 = vunpack.c.l.b16 %v6588
    %v6742 = vunpack.c.h.b16 %v6588
    %v6743 = vunpack.c.l.b16 %v6589
    %v6744 = vunpack.c.h.b16 %v6589
    %v6745 = vunpack.c.l.b16 %v6590
    %v6746 = vunpack.c.h.b16 %v6590
    %v6747 = vunpack.c.l.b16 %v6591
    %v6748 = vunpack.c.h.b16 %v6591
    %v6749 = vunpack.c.l.b16 %v6592
    %v6750 = vunpack.c.h.b16 %v6592
    %v6751 = vunpack.c.l.b16 %v6593
    %v6752 = vunpack.c.h.b16 %v6593
    %v6753 = vunpack.c.l.b16 %v6594
    %v6754 = vunpack.c.h.b16 %v6594
    %v6755 = vunpack.c.l.b16 %v6595
    %v6756 = vunpack.c.h.b16 %v6595
    %v6757 = vunpack.c.l.b16 %v6596
    %v6758 = vunpack.c.h.b16 %v6596
    %v6759 = vunpack.c.l.b16 %v6597
    %v6760 = vunpack.c.h.b16 %v6597
    %v6761 = vunpack.c.l.b16 %v6598
    %v6762 = vunpack.c.h.b16 %v6598
    %v6763 = vunpack.c.l.b16 %v6599
    %v6764 = vunpack.c.h.b16 %v6599
    %v6765 = vunpack.c.l.b16 %v6600
    %v6766 = vunpack.c.h.b16 %v6600
    %v6767 = vunpack.c.l.b16 %v6601
    %v6768 = vunpack.c.h.b16 %v6601
    %v6769 = vunpack.c.l.b16 %v6602
    %v6770 = vunpack.c.h.b16 %v6602
    %v6771 = vunpack.c.l.b16 %v6603
    %v6772 = vunpack.c.h.b16 %v6603
    %v6773 = vunpack.c.l.b16 %v6604
    %v6774 = vunpack.c.h.b16 %v6604
    %v6775 = vunpack.c.l.b16 %v6605
    %v6776 = vunpack.c.h.b16 %v6605
    %v6777 = vunpack.c.l.b16 %v6606
    %v6778 = vunpack.c.h.b16 %v6606
    %v6779 = vunpack.c.l.b16 %v6607
    %v6780 = vunpack.c.h.b16 %v6607
    %v6781 = vunpack.c.l.b16 %v6608
    %v6782 = vunpack.c.h.b16 %v6608
    %v6783 = vunpack.c.l.b16 %v6609
    %v6784 = vunpack.c.h.b16 %v6609
    %v6785 = vunpack.c.l.b16 %v6610
    %v6786 = vunpack.c.h.b16 %v6610
    %v6787 = vunpack.c.l.b16 %v6611
    %v6788 = vunpack.c.h.b16 %v6611
    %v6789 = vunpack.c.l.b16 %v6612
    %v6790 = vunpack.c.h.b16 %v6612
    %v6791 = vunpack.c.l.b16 %v6613
    %v6792 = vunpack.c.h.b16 %v6613
    %v6793 = vunpack.c.l.b16 %v6614
    %v6794 = vunpack.c.h.b16 %v6614
    %v6795 = vunpack.c.l.b16 %v6615
    %v6796 = vunpack.c.h.b16 %v6615
    %v6797 = vpack.c.b16 %v6749, %v6733
    %v6798 = vpack.c.b16 %v6750, %v6734
    %v6799 = vpack.c.b16 %v6751, %v6735
    %v6800 = vpack.c.b16 %v6752, %v6736
    %v6801 = vpack.c.b16 %v6753, %v6737
    %v6802 = vpack.c.b16 %v6754, %v6738
    %v6803 = vpack.c.b16 %v6755, %v6739
    %v6804 = vpack.c.b16 %v6756, %v6740
    %v6805 = vpack.c.b16 %v6757, %v6741
    %v6806 = vpack.c.b16 %v6758, %v6742
    %v6807 = vpack.c.b16 %v6759, %v6743
    %v6808 = vpack.c.b16 %v6760, %v6744
    %v6809 = vpack.c.b16 %v6761, %v6745
    %v6810 = vpack.c.b16 %v6762, %v6746
    %v6811 = vpack.c.b16 %v6763, %v6747
    %v6812 = vpack.c.b16 %v6764, %v6748
    %v6813 = vpack.c.b16 %v6781, %v6765
    %v6814 = vpack.c.b16 %v6782, %v6766
    %v6815 = vpack.c.b16 %v6783, %v6767
    %v6816 = vpack.c.b16 %v6784, %v6768
    %v6817 = vpack.c.b16 %v6785, %v6769
    %v6818 = vpack.c.b16 %v6786, %v6770
    %v6819 = vpack.c.b16 %v6787, %v6771
    %v6820 = vpack.c.b16 %v6788, %v6772
    %v6821 = vpack.c.b16 %v6789, %v6773
    %v6822 = vpack.c.b16 %v6790, %v6774
    %v6823 = vpack.c.b16 %v6791, %v6775
    %v6824 = vpack.c.b16 %v6792, %v6776
    %v6825 = vpack.c.b16 %v6793, %v6777
    %v6826 = vpack.c.b16 %v6794, %v6778
    %v6827 = vpack.c.b16 %v6795, %v6779
    %v6828 = vpack.c.b16 %v6796, %v6780
    %v6862 = vsel %vm90, %v6582, 0
    %6864 = vmatprep.subr.bf16.mxu0 %v6798
    %6865 = vmatpush1.bf16.msra.mxu0 %v6797
    %6866 = vmatprep.subr.bf16.mxu0 %v6814
    %6867 = vmatpush1.bf16.msra.mxu0 %v6813
    %6868 = vmatprep.subr.bf16.mxu0 0
    %6869 = vmatpush1.bf16.msra.mxu0 0
    %6870 = vmatprep.subr.bf16.mxu0 0
    %6871 = vmatpush1.bf16.msra.mxu0 0
    %6872 = vmatprep.subr.bf16.mxu0 0
    %6873 = vmatpush1.bf16.msra.mxu0 0
    %6874 = vmatprep.subr.bf16.mxu0 0
    %6875 = vmatpush1.bf16.msra.mxu0 0
    %6876 = vmatprep.subr.bf16.mxu0 0
    %6877 = vmatpush1.bf16.msra.mxu0 0
    %6878 = vmatprep.subr.bf16.mxu0 0
    %6879 = vmatpush1.bf16.msra.mxu0 0
    %6880 = vmatprep.subr.bf16.mxu0 0
    %6881 = vmatpush1.bf16.msra.mxu0 0
    %6882 = vmatprep.subr.bf16.mxu0 0
    %6883 = vmatpush1.bf16.msra.mxu0 0
    %6884 = vmatprep.subr.bf16.mxu0 0
    %6885 = vmatpush1.bf16.msra.mxu0 0
    %6886 = vmatprep.subr.bf16.mxu0 0
    %6887 = vmatpush1.bf16.msra.mxu0 0
    %6888 = vmatprep.subr.bf16.mxu0 0
    %6889 = vmatpush1.bf16.msra.mxu0 0
    %6890 = vmatprep.subr.bf16.mxu0 0
    %6891 = vmatpush1.bf16.msra.mxu0 0
    %6892 = vmatprep.subr.bf16.mxu0 0
    %6893 = vmatpush1.bf16.msra.mxu0 0
    %6894 = vmatprep.subr.bf16.mxu0 0
    %6895 = vmatpush1.bf16.msra.mxu0 0
    %6896 = vmatprep.mubr.bf16.mxu0 0
    %6897 = vmatmul.mubr.bf16.gmra.mrb[0].mxu0 %v6862
    %v6898 = vpop.f32.mrb[0].mxu0
    %v6899 = vadd.f32 %v6624, %v6898
    %v6900 = vpop.f32.mrb[0].mxu0
    %v6901 = vadd.f32 %v6628, %v6900
    %v6902 = vpop.f32.mrb[0].mxu0
    %v6903 = vadd.f32 %v6624, %v6902
    %v6904 = vpop.f32.mrb[0].mxu0
    %v6905 = vadd.f32 %v6628, %v6904
    %6906 = vdwg.mxu0
    %6907 = vmatprep.subr.bf16.mxu0 %v6800
    %6908 = vmatpush1.bf16.msra.mxu0 %v6799
    %6909 = vmatprep.subr.bf16.mxu0 %v6816
    %6910 = vmatpush1.bf16.msra.mxu0 %v6815
    %6911 = vmatprep.subr.bf16.mxu0 0
    %6912 = vmatpush1.bf16.msra.mxu0 0
    %6913 = vmatprep.subr.bf16.mxu0 0
    %6914 = vmatpush1.bf16.msra.mxu0 0
    %6915 = vmatprep.subr.bf16.mxu0 0
    %6916 = vmatpush1.bf16.msra.mxu0 0
    %6917 = vmatprep.subr.bf16.mxu0 0
    %6918 = vmatpush1.bf16.msra.mxu0 0
    %6919 = vmatprep.subr.bf16.mxu0 0
    %6920 = vmatpush1.bf16.msra.mxu0 0
    %6921 = vmatprep.subr.bf16.mxu0 0
    %6922 = vmatpush1.bf16.msra.mxu0 0
    %6923 = vmatprep.subr.bf16.mxu0 0
    %6924 = vmatpush1.bf16.msra.mxu0 0
    %6925 = vmatprep.subr.bf16.mxu0 0
    %6926 = vmatpush1.bf16.msra.mxu0 0
    %6927 = vmatprep.subr.bf16.mxu0 0
    %6928 = vmatpush1.bf16.msra.mxu0 0
    %6929 = vmatprep.subr.bf16.mxu0 0
    %6930 = vmatpush1.bf16.msra.mxu0 0
    %6931 = vmatprep.subr.bf16.mxu0 0
    %6932 = vmatpush1.bf16.msra.mxu0 0
    %6933 = vmatprep.subr.bf16.mxu0 0
    %6934 = vmatpush1.bf16.msra.mxu0 0
    %6935 = vmatprep.subr.bf16.mxu0 0
    %6936 = vmatpush1.bf16.msra.mxu0 0
    %6937 = vmatprep.subr.bf16.mxu0 0
    %6938 = vmatpush1.bf16.msra.mxu0 0
    %6939 = vmatprep.mubr.bf16.mxu0 0
    %6940 = vmatmul.mubr.bf16.gmra.mrb[0].mxu0 %v6862
    %v6941 = vpop.f32.mrb[0].mxu0
    %v6942 = vadd.f32 %v6632, %v6941
    %v6943 = vpop.f32.mrb[0].mxu0
    %v6944 = vadd.f32 %v6636, %v6943
    %v6945 = vpop.f32.mrb[0].mxu0
    %v6946 = vadd.f32 %v6632, %v6945
    %v6947 = vpop.f32.mrb[0].mxu0
    %v6948 = vadd.f32 %v6636, %v6947
    %6949 = vdwg.mxu0
    %6950 = vmatprep.subr.bf16.mxu0 %v6802
    %6951 = vmatpush1.bf16.msra.mxu0 %v6801
    %6952 = vmatprep.subr.bf16.mxu0 %v6818
    %6953 = vmatpush1.bf16.msra.mxu0 %v6817
    %6954 = vmatprep.subr.bf16.mxu0 0
    %6955 = vmatpush1.bf16.msra.mxu0 0
    %6956 = vmatprep.subr.bf16.mxu0 0
    %6957 = vmatpush1.bf16.msra.mxu0 0
    %6958 = vmatprep.subr.bf16.mxu0 0
    %6959 = vmatpush1.bf16.msra.mxu0 0
    %6960 = vmatprep.subr.bf16.mxu0 0
    %6961 = vmatpush1.bf16.msra.mxu0 0
    %6962 = vmatprep.subr.bf16.mxu0 0
    %6963 = vmatpush1.bf16.msra.mxu0 0
    %6964 = vmatprep.subr.bf16.mxu0 0
    %6965 = vmatpush1.bf16.msra.mxu0 0
    %6966 = vmatprep.subr.bf16.mxu0 0
    %6967 = vmatpush1.bf16.msra.mxu0 0
    %6968 = vmatprep.subr.bf16.mxu0 0
    %6969 = vmatpush1.bf16.msra.mxu0 0
    %6970 = vmatprep.subr.bf16.mxu0 0
    %6971 = vmatpush1.bf16.msra.mxu0 0
    %6972 = vmatprep.subr.bf16.mxu0 0
    %6973 = vmatpush1.bf16.msra.mxu0 0
    %6974 = vmatprep.subr.bf16.mxu0 0
    %6975 = vmatpush1.bf16.msra.mxu0 0
    %6976 = vmatprep.subr.bf16.mxu0 0
    %6977 = vmatpush1.bf16.msra.mxu0 0
    %6978 = vmatprep.subr.bf16.mxu0 0
    %6979 = vmatpush1.bf16.msra.mxu0 0
    %6980 = vmatprep.subr.bf16.mxu0 0
    %6981 = vmatpush1.bf16.msra.mxu0 0
    %6982 = vmatprep.mubr.bf16.mxu0 0
    %6983 = vmatmul.mubr.bf16.gmra.mrb[0].mxu0 %v6862
    %v6984 = vpop.f32.mrb[0].mxu0
    %v6985 = vadd.f32 %v6640, %v6984
    %v6986 = vpop.f32.mrb[0].mxu0
    %v6987 = vadd.f32 %v6644, %v6986
    %v6988 = vpop.f32.mrb[0].mxu0
    %v6989 = vadd.f32 %v6640, %v6988
    %v6990 = vpop.f32.mrb[0].mxu0
    %v6991 = vadd.f32 %v6644, %v6990
    %6992 = vdwg.mxu0
    %6993 = vmatprep.subr.bf16.mxu0 %v6804
    %6994 = vmatpush1.bf16.msra.mxu0 %v6803
    %6995 = vmatprep.subr.bf16.mxu0 %v6820
    %6996 = vmatpush1.bf16.msra.mxu0 %v6819
    %6997 = vmatprep.subr.bf16.mxu0 0
    %6998 = vmatpush1.bf16.msra.mxu0 0
    %6999 = vmatprep.subr.bf16.mxu0 0
    %7000 = vmatpush1.bf16.msra.mxu0 0
    %7001 = vmatprep.subr.bf16.mxu0 0
    %7002 = vmatpush1.bf16.msra.mxu0 0
    %7003 = vmatprep.subr.bf16.mxu0 0
    %7004 = vmatpush1.bf16.msra.mxu0 0
    %7005 = vmatprep.subr.bf16.mxu0 0
    %7006 = vmatpush1.bf16.msra.mxu0 0
    %7007 = vmatprep.subr.bf16.mxu0 0
    %7008 = vmatpush1.bf16.msra.mxu0 0
    %7009 = vmatprep.subr.bf16.mxu0 0
    %7010 = vmatpush1.bf16.msra.mxu0 0
    %7011 = vmatprep.subr.bf16.mxu0 0
    %7012 = vmatpush1.bf16.msra.mxu0 0
    %7013 = vmatprep.subr.bf16.mxu0 0
    %7014 = vmatpush1.bf16.msra.mxu0 0
    %7015 = vmatprep.subr.bf16.mxu0 0
    %7016 = vmatpush1.bf16.msra.mxu0 0
    %7017 = vmatprep.subr.bf16.mxu0 0
    %7018 = vmatpush1.bf16.msra.mxu0 0
    %7019 = vmatprep.subr.bf16.mxu0 0
    %7020 = vmatpush1.bf16.msra.mxu0 0
    %7021 = vmatprep.subr.bf16.mxu0 0
    %7022 = vmatpush1.bf16.msra.mxu0 0
    %7023 = vmatprep.subr.bf16.mxu0 0
    %7024 = vmatpush1.bf16.msra.mxu0 0
    %7025 = vmatprep.mubr.bf16.mxu0 0
    %7026 = vmatmul.mubr.bf16.gmra.mrb[0].mxu0 %v6862
    %v7027 = vpop.f32.mrb[0].mxu0
    %v7028 = vadd.f32 %v6648, %v7027
    %v7029 = vpop.f32.mrb[0].mxu0
    %v7030 = vadd.f32 %v6652, %v7029
    %v7031 = vpop.f32.mrb[0].mxu0
    %v7032 = vadd.f32 %v6648, %v7031
    %v7033 = vpop.f32.mrb[0].mxu0
    %v7034 = vadd.f32 %v6652, %v7033
    %7035 = vdwg.mxu0
    %7036 = vmatprep.subr.bf16.mxu0 %v6806
    %7037 = vmatpush1.bf16.msra.mxu0 %v6805
    %7038 = vmatprep.subr.bf16.mxu0 %v6822
    %7039 = vmatpush1.bf16.msra.mxu0 %v6821
    %7040 = vmatprep.subr.bf16.mxu0 0
    %7041 = vmatpush1.bf16.msra.mxu0 0
    %7042 = vmatprep.subr.bf16.mxu0 0
    %7043 = vmatpush1.bf16.msra.mxu0 0
    %7044 = vmatprep.subr.bf16.mxu0 0
    %7045 = vmatpush1.bf16.msra.mxu0 0
    %7046 = vmatprep.subr.bf16.mxu0 0
    %7047 = vmatpush1.bf16.msra.mxu0 0
    %7048 = vmatprep.subr.bf16.mxu0 0
    %7049 = vmatpush1.bf16.msra.mxu0 0
    %7050 = vmatprep.subr.bf16.mxu0 0
    %7051 = vmatpush1.bf16.msra.mxu0 0
    %7052 = vmatprep.subr.bf16.mxu0 0
    %7053 = vmatpush1.bf16.msra.mxu0 0
    %7054 = vmatprep.subr.bf16.mxu0 0
    %7055 = vmatpush1.bf16.msra.mxu0 0
    %7056 = vmatprep.subr.bf16.mxu0 0
    %7057 = vmatpush1.bf16.msra.mxu0 0
    %7058 = vmatprep.subr.bf16.mxu0 0
    %7059 = vmatpush1.bf16.msra.mxu0 0
    %7060 = vmatprep.subr.bf16.mxu0 0
    %7061 = vmatpush1.bf16.msra.mxu0 0
    %7062 = vmatprep.subr.bf16.mxu0 0
    %7063 = vmatpush1.bf16.msra.mxu0 0
    %7064 = vmatprep.subr.bf16.mxu0 0
    %7065 = vmatpush1.bf16.msra.mxu0 0
    %7066 = vmatprep.subr.bf16.mxu0 0
    %7067 = vmatpush1.bf16.msra.mxu0 0
    %7068 = vmatprep.mubr.bf16.mxu0 0
    %7069 = vmatmul.mubr.bf16.gmra.mrb[0].mxu0 %v6862
    %v7070 = vpop.f32.mrb[0].mxu0
    %v7071 = vadd.f32 %v6656, %v7070
    %v7072 = vpop.f32.mrb[0].mxu0
    %v7073 = vadd.f32 %v6660, %v7072
    %v7074 = vpop.f32.mrb[0].mxu0
    %v7075 = vadd.f32 %v6656, %v7074
    %v7076 = vpop.f32.mrb[0].mxu0
    %v7077 = vadd.f32 %v6660, %v7076
    %7078 = vdwg.mxu0
    %7079 = vmatprep.subr.bf16.mxu0 %v6808
    %7080 = vmatpush1.bf16.msra.mxu0 %v6807
    %7081 = vmatprep.subr.bf16.mxu0 %v6824
    %7082 = vmatpush1.bf16.msra.mxu0 %v6823
    %7083 = vmatprep.subr.bf16.mxu0 0
    %7084 = vmatpush1.bf16.msra.mxu0 0
    %7085 = vmatprep.subr.bf16.mxu0 0
    %7086 = vmatpush1.bf16.msra.mxu0 0
    %7087 = vmatprep.subr.bf16.mxu0 0
    %7088 = vmatpush1.bf16.msra.mxu0 0
    %7089 = vmatprep.subr.bf16.mxu0 0
    %7090 = vmatpush1.bf16.msra.mxu0 0
    %7091 = vmatprep.subr.bf16.mxu0 0
    %7092 = vmatpush1.bf16.msra.mxu0 0
    %7093 = vmatprep.subr.bf16.mxu0 0
    %7094 = vmatpush1.bf16.msra.mxu0 0
    %7095 = vmatprep.subr.bf16.mxu0 0
    %7096 = vmatpush1.bf16.msra.mxu0 0
    %7097 = vmatprep.subr.bf16.mxu0 0
    %7098 = vmatpush1.bf16.msra.mxu0 0
    %7099 = vmatprep.subr.bf16.mxu0 0
    %7100 = vmatpush1.bf16.msra.mxu0 0
    %7101 = vmatprep.subr.bf16.mxu0 0
    %7102 = vmatpush1.bf16.msra.mxu0 0
    %7103 = vmatprep.subr.bf16.mxu0 0
    %7104 = vmatpush1.bf16.msra.mxu0 0
    %7105 = vmatprep.subr.bf16.mxu0 0
    %7106 = vmatpush1.bf16.msra.mxu0 0
    %7107 = vmatprep.subr.bf16.mxu0 0
    %7108 = vmatpush1.bf16.msra.mxu0 0
    %7109 = vmatprep.subr.bf16.mxu0 0
    %7110 = vmatpush1.bf16.msra.mxu0 0
    %7111 = vmatprep.mubr.bf16.mxu0 0
    %7112 = vmatmul.mubr.bf16.gmra.mrb[0].mxu0 %v6862
    %v7113 = vpop.f32.mrb[0].mxu0
    %v7114 = vadd.f32 %v6664, %v7113
    %v7115 = vpop.f32.mrb[0].mxu0
    %v7116 = vadd.f32 %v6668, %v7115
    %v7117 = vpop.f32.mrb[0].mxu0
    %v7118 = vadd.f32 %v6664, %v7117
    %v7119 = vpop.f32.mrb[0].mxu0
    %v7120 = vadd.f32 %v6668, %v7119
    %7121 = vdwg.mxu0
    %7122 = vmatprep.subr.bf16.mxu0 %v6810
    %7123 = vmatpush1.bf16.msra.mxu0 %v6809
    %7124 = vmatprep.subr.bf16.mxu0 %v6826
    %7125 = vmatpush1.bf16.msra.mxu0 %v6825
    %7126 = vmatprep.subr.bf16.mxu0 0
    %7127 = vmatpush1.bf16.msra.mxu0 0
    %7128 = vmatprep.subr.bf16.mxu0 0
    %7129 = vmatpush1.bf16.msra.mxu0 0
    %7130 = vmatprep.subr.bf16.mxu0 0
    %7131 = vmatpush1.bf16.msra.mxu0 0
    %7132 = vmatprep.subr.bf16.mxu0 0
    %7133 = vmatpush1.bf16.msra.mxu0 0
    %7134 = vmatprep.subr.bf16.mxu0 0
    %7135 = vmatpush1.bf16.msra.mxu0 0
    %7136 = vmatprep.subr.bf16.mxu0 0
    %7137 = vmatpush1.bf16.msra.mxu0 0
    %7138 = vmatprep.subr.bf16.mxu0 0
    %7139 = vmatpush1.bf16.msra.mxu0 0
    %7140 = vmatprep.subr.bf16.mxu0 0
    %7141 = vmatpush1.bf16.msra.mxu0 0
    %7142 = vmatprep.subr.bf16.mxu0 0
    %7143 = vmatpush1.bf16.msra.mxu0 0
    %7144 = vmatprep.subr.bf16.mxu0 0
    %7145 = vmatpush1.bf16.msra.mxu0 0
    %7146 = vmatprep.subr.bf16.mxu0 0
    %7147 = vmatpush1.bf16.msra.mxu0 0
    %7148 = vmatprep.subr.bf16.mxu0 0
    %7149 = vmatpush1.bf16.msra.mxu0 0
    %7150 = vmatprep.subr.bf16.mxu0 0
    %7151 = vmatpush1.bf16.msra.mxu0 0
    %7152 = vmatprep.subr.bf16.mxu0 0
    %7153 = vmatpush1.bf16.msra.mxu0 0
    %7154 = vmatprep.mubr.bf16.mxu0 0
    %7155 = vmatmul.mubr.bf16.gmra.mrb[0].mxu0 %v6862
    %v7156 = vpop.f32.mrb[0].mxu0
    %v7157 = vadd.f32 %v6672, %v7156
    %v7158 = vpop.f32.mrb[0].mxu0
    %v7159 = vadd.f32 %v6676, %v7158
    %v7160 = vpop.f32.mrb[0].mxu0
    %v7161 = vadd.f32 %v6672, %v7160
    %v7162 = vpop.f32.mrb[0].mxu0
    %v7163 = vadd.f32 %v6676, %v7162
    %7164 = vdwg.mxu0
    %7165 = vmatprep.subr.bf16.mxu0 %v6812
    %7166 = vmatpush1.bf16.msra.mxu0 %v6811
    %7167 = vmatprep.subr.bf16.mxu0 %v6828
    %7168 = vmatpush1.bf16.msra.mxu0 %v6827
    %7169 = vmatprep.subr.bf16.mxu0 0
    %7170 = vmatpush1.bf16.msra.mxu0 0
    %7171 = vmatprep.subr.bf16.mxu0 0
    %7172 = vmatpush1.bf16.msra.mxu0 0
    %7173 = vmatprep.subr.bf16.mxu0 0
    %7174 = vmatpush1.bf16.msra.mxu0 0
    %7175 = vmatprep.subr.bf16.mxu0 0
    %7176 = vmatpush1.bf16.msra.mxu0 0
    %7177 = vmatprep.subr.bf16.mxu0 0
    %7178 = vmatpush1.bf16.msra.mxu0 0
    %7179 = vmatprep.subr.bf16.mxu0 0
    %7180 = vmatpush1.bf16.msra.mxu0 0
    %7181 = vmatprep.subr.bf16.mxu0 0
    %7182 = vmatpush1.bf16.msra.mxu0 0
    %7183 = vmatprep.subr.bf16.mxu0 0
    %7184 = vmatpush1.bf16.msra.mxu0 0
    %7185 = vmatprep.subr.bf16.mxu0 0
    %7186 = vmatpush1.bf16.msra.mxu0 0
    %7187 = vmatprep.subr.bf16.mxu0 0
    %7188 = vmatpush1.bf16.msra.mxu0 0
    %7189 = vmatprep.subr.bf16.mxu0 0
    %7190 = vmatpush1.bf16.msra.mxu0 0
    %7191 = vmatprep.subr.bf16.mxu0 0
    %7192 = vmatpush1.bf16.msra.mxu0 0
    %7193 = vmatprep.subr.bf16.mxu0 0
    %7194 = vmatpush1.bf16.msra.mxu0 0
    %7195 = vmatprep.subr.bf16.mxu0 0
    %7196 = vmatpush1.bf16.msra.mxu0 0
    %7197 = vmatprep.mubr.bf16.mxu0 0
    %7198 = vmatmul.mubr.bf16.gmra.mrb[0].mxu0 %v6862
    %v7199 = vpop.f32.mrb[0].mxu0
    %v7200 = vadd.f32 %v6680, %v7199
    %v7201 = vpop.f32.mrb[0].mxu0
    %v7202 = vadd.f32 %v6684, %v7201
    %v7203 = vpop.f32.mrb[0].mxu0
    %v7204 = vadd.f32 %v6680, %v7203
    %v7205 = vpop.f32.mrb[0].mxu0
    %v7206 = vadd.f32 %v6684, %v7205
    %7207 = vdwg.mxu0
    %v7208 = vmax.f32 %v6899, 0.0
    %v7209 = vmax.f32 %v6901, 0.0
    %v7210 = vmax.f32 %v6942, 0.0
    %v7211 = vmax.f32 %v6944, 0.0
    %v7212 = vmax.f32 %v6985, 0.0
    %v7213 = vmax.f32 %v6987, 0.0
    %v7214 = vmax.f32 %v7028, 0.0
    %v7215 = vmax.f32 %v7030, 0.0
    %v7216 = vmax.f32 %v7071, 0.0
    %v7217 = vmax.f32 %v7073, 0.0
    %v7218 = vmax.f32 %v7114, 0.0
    %v7219 = vmax.f32 %v7116, 0.0
    %v7220 = vmax.f32 %v7157, 0.0
    %v7221 = vmax.f32 %v7159, 0.0
    %v7222 = vmax.f32 %v7200, 0.0
    %v7223 = vmax.f32 %v7202, 0.0
    %v7224 = vmax.f32 %v6903, 0.0
    %v7225 = vmax.f32 %v6905, 0.0
    %v7226 = vmax.f32 %v6946, 0.0
    %v7227 = vmax.f32 %v6948, 0.0
    %v7228 = vmax.f32 %v6989, 0.0
    %v7229 = vmax.f32 %v6991, 0.0
    %v7230 = vmax.f32 %v7032, 0.0
    %v7231 = vmax.f32 %v7034, 0.0
    %v7232 = vmax.f32 %v7075, 0.0
    %v7233 = vmax.f32 %v7077, 0.0
    %v7234 = vmax.f32 %v7118, 0.0
    %v7235 = vmax.f32 %v7120, 0.0
    %v7236 = vmax.f32 %v7161, 0.0
    %v7237 = vmax.f32 %v7163, 0.0
    %v7238 = vmax.f32 %v7204, 0.0
    %v7239 = vmax.f32 %v7206, 0.0
    %v7240 = vpack.c.bf16 %v7224, %v7208
    %v7241 = vpack.c.bf16 %v7225, %v7209
    %v7242 = vpack.c.bf16 %v7226, %v7210
    %v7243 = vpack.c.bf16 %v7227, %v7211
    %v7244 = vpack.c.bf16 %v7228, %v7212
    %v7245 = vpack.c.bf16 %v7229, %v7213
    %v7246 = vpack.c.bf16 %v7230, %v7214
    %v7247 = vpack.c.bf16 %v7231, %v7215
    %v7248 = vpack.c.bf16 %v7232, %v7216
    %v7249 = vpack.c.bf16 %v7233, %v7217
    %v7250 = vpack.c.bf16 %v7234, %v7218
    %v7251 = vpack.c.bf16 %v7235, %v7219
    %v7252 = vpack.c.bf16 %v7236, %v7220
    %v7253 = vpack.c.bf16 %v7237, %v7221
    %v7254 = vpack.c.bf16 %v7238, %v7222
    %v7255 = vpack.c.bf16 %v7239, %v7223
    %s7256 = scalar_lea.vmem %s12, 1024
    %v7257 = vld [vmem:[%s7256] sm:$0xf]
    %v7258 = vld [vmem:[%s7256 + $0x4] sm:$0xf]
    %v7259 = vld [vmem:[%s7256 + $0x8] sm:$0xf]
    %v7260 = vld [vmem:[%s7256 + $0xc] sm:$0xf]
    %v7261 = vld [vmem:[%s7256 + $0x10] sm:$0xf]
    %v7262 = vld [vmem:[%s7256 + $0x14] sm:$0xf]
    %v7263 = vld [vmem:[%s7256 + $0x18] sm:$0xf]
    %v7264 = vld [vmem:[%s7256 + $0x1c] sm:$0xf]
    %v7265 = vld [vmem:[%s7256 + $0x20] sm:$0xf]
    %v7266 = vld [vmem:[%s7256 + $0x24] sm:$0xf]
    %v7267 = vld [vmem:[%s7256 + $0x28] sm:$0xf]
    %v7268 = vld [vmem:[%s7256 + $0x2c] sm:$0xf]
    %v7269 = vld [vmem:[%s7256 + $0x30] sm:$0xf]
    %v7270 = vld [vmem:[%s7256 + $0x34] sm:$0xf]
    %v7271 = vld [vmem:[%s7256 + $0x38] sm:$0xf]
    %v7272 = vld [vmem:[%s7256 + $0x3c] sm:$0xf]
    %v7273 = vld [vmem:[%s7256 + $0x40] sm:$0xf]
    %v7274 = vld [vmem:[%s7256 + $0x44] sm:$0xf]
    %v7275 = vld [vmem:[%s7256 + $0x48] sm:$0xf]
    %v7276 = vld [vmem:[%s7256 + $0x4c] sm:$0xf]
    %v7277 = vld [vmem:[%s7256 + $0x50] sm:$0xf]
    %v7278 = vld [vmem:[%s7256 + $0x54] sm:$0xf]
    %v7279 = vld [vmem:[%s7256 + $0x58] sm:$0xf]
    %v7280 = vld [vmem:[%s7256 + $0x5c] sm:$0xf]
    %v7281 = vld [vmem:[%s7256 + $0x60] sm:$0xf]
    %v7282 = vld [vmem:[%s7256 + $0x64] sm:$0xf]
    %v7283 = vld [vmem:[%s7256 + $0x68] sm:$0xf]
    %v7284 = vld [vmem:[%s7256 + $0x6c] sm:$0xf]
    %v7285 = vld [vmem:[%s7256 + $0x70] sm:$0xf]
    %v7286 = vld [vmem:[%s7256 + $0x74] sm:$0xf]
    %v7287 = vld [vmem:[%s7256 + $0x78] sm:$0xf]
    %v7288 = vld [vmem:[%s7256 + $0x7c] sm:$0xf]
    %v7289 = vld [vmem:[%s7256 + $0x80] sm:$0xf]
    %v7290 = vld [vmem:[%s7256 + $0x84] sm:$0xf]
    %v7291 = vld [vmem:[%s7256 + $0x88] sm:$0xf]
    %v7292 = vld [vmem:[%s7256 + $0x8c] sm:$0xf]
    %v7293 = vld [vmem:[%s7256 + $0x90] sm:$0xf]
    %v7294 = vld [vmem:[%s7256 + $0x94] sm:$0xf]
    %v7295 = vld [vmem:[%s7256 + $0x98] sm:$0xf]
    %v7296 = vld [vmem:[%s7256 + $0x9c] sm:$0xf]
    %v7297 = vld [vmem:[%s7256 + $0xa0] sm:$0xf]
    %v7298 = vld [vmem:[%s7256 + $0xa4] sm:$0xf]
    %v7299 = vld [vmem:[%s7256 + $0xa8] sm:$0xf]
    %v7300 = vld [vmem:[%s7256 + $0xac] sm:$0xf]
    %v7301 = vld [vmem:[%s7256 + $0xb0] sm:$0xf]
    %v7302 = vld [vmem:[%s7256 + $0xb4] sm:$0xf]
    %v7303 = vld [vmem:[%s7256 + $0xb8] sm:$0xf]
    %v7304 = vld [vmem:[%s7256 + $0xbc] sm:$0xf]
    %v7305 = vld [vmem:[%s7256 + $0xc0] sm:$0xf]
    %v7306 = vld [vmem:[%s7256 + $0xc4] sm:$0xf]
    %v7307 = vld [vmem:[%s7256 + $0xc8] sm:$0xf]
    %v7308 = vld [vmem:[%s7256 + $0xcc] sm:$0xf]
    %v7309 = vld [vmem:[%s7256 + $0xd0] sm:$0xf]
    %v7310 = vld [vmem:[%s7256 + $0xd4] sm:$0xf]
    %v7311 = vld [vmem:[%s7256 + $0xd8] sm:$0xf]
    %v7312 = vld [vmem:[%s7256 + $0xdc] sm:$0xf]
    %v7313 = vld [vmem:[%s7256 + $0xe0] sm:$0xf]
    %v7314 = vld [vmem:[%s7256 + $0xe4] sm:$0xf]
    %v7315 = vld [vmem:[%s7256 + $0xe8] sm:$0xf]
    %v7316 = vld [vmem:[%s7256 + $0xec] sm:$0xf]
    %v7317 = vld [vmem:[%s7256 + $0xf0] sm:$0xf]
    %v7318 = vld [vmem:[%s7256 + $0xf4] sm:$0xf]
    %v7319 = vld [vmem:[%s7256 + $0xf8] sm:$0xf]
    %v7320 = vld [vmem:[%s7256 + $0xfc] sm:$0xf]
    %v7321 = vld [vmem:[%s7256 + $0x100] sm:$0xf]
    %v7322 = vld [vmem:[%s7256 + $0x104] sm:$0xf]
    %v7323 = vld [vmem:[%s7256 + $0x108] sm:$0xf]
    %v7324 = vld [vmem:[%s7256 + $0x10c] sm:$0xf]
    %v7325 = vld [vmem:[%s7256 + $0x110] sm:$0xf]
    %v7326 = vld [vmem:[%s7256 + $0x114] sm:$0xf]
    %v7327 = vld [vmem:[%s7256 + $0x118] sm:$0xf]
    %v7328 = vld [vmem:[%s7256 + $0x11c] sm:$0xf]
    %v7329 = vld [vmem:[%s7256 + $0x120] sm:$0xf]
    %v7330 = vld [vmem:[%s7256 + $0x124] sm:$0xf]
    %v7331 = vld [vmem:[%s7256 + $0x128] sm:$0xf]
    %v7332 = vld [vmem:[%s7256 + $0x12c] sm:$0xf]
    %v7333 = vld [vmem:[%s7256 + $0x130] sm:$0xf]
    %v7334 = vld [vmem:[%s7256 + $0x134] sm:$0xf]
    %v7335 = vld [vmem:[%s7256 + $0x138] sm:$0xf]
    %v7336 = vld [vmem:[%s7256 + $0x13c] sm:$0xf]
    %v7337 = vld [vmem:[%s7256 + $0x140] sm:$0xf]
    %v7338 = vld [vmem:[%s7256 + $0x144] sm:$0xf]
    %v7339 = vld [vmem:[%s7256 + $0x148] sm:$0xf]
    %v7340 = vld [vmem:[%s7256 + $0x14c] sm:$0xf]
    %v7341 = vld [vmem:[%s7256 + $0x150] sm:$0xf]
    %v7342 = vld [vmem:[%s7256 + $0x154] sm:$0xf]
    %v7343 = vld [vmem:[%s7256 + $0x158] sm:$0xf]
    %v7344 = vld [vmem:[%s7256 + $0x15c] sm:$0xf]
    %v7345 = vld [vmem:[%s7256 + $0x160] sm:$0xf]
    %v7346 = vld [vmem:[%s7256 + $0x164] sm:$0xf]
    %v7347 = vld [vmem:[%s7256 + $0x168] sm:$0xf]
    %v7348 = vld [vmem:[%s7256 + $0x16c] sm:$0xf]
    %v7349 = vld [vmem:[%s7256 + $0x170] sm:$0xf]
    %v7350 = vld [vmem:[%s7256 + $0x174] sm:$0xf]
    %v7351 = vld [vmem:[%s7256 + $0x178] sm:$0xf]
    %v7352 = vld [vmem:[%s7256 + $0x17c] sm:$0xf]
    %v7353 = vld [vmem:[%s7256 + $0x180] sm:$0xf]
    %v7354 = vld [vmem:[%s7256 + $0x184] sm:$0xf]
    %v7355 = vld [vmem:[%s7256 + $0x188] sm:$0xf]
    %v7356 = vld [vmem:[%s7256 + $0x18c] sm:$0xf]
    %v7357 = vld [vmem:[%s7256 + $0x190] sm:$0xf]
    %v7358 = vld [vmem:[%s7256 + $0x194] sm:$0xf]
    %v7359 = vld [vmem:[%s7256 + $0x198] sm:$0xf]
    %v7360 = vld [vmem:[%s7256 + $0x19c] sm:$0xf]
    %v7361 = vld [vmem:[%s7256 + $0x1a0] sm:$0xf]
    %v7362 = vld [vmem:[%s7256 + $0x1a4] sm:$0xf]
    %v7363 = vld [vmem:[%s7256 + $0x1a8] sm:$0xf]
    %v7364 = vld [vmem:[%s7256 + $0x1ac] sm:$0xf]
    %v7365 = vld [vmem:[%s7256 + $0x1b0] sm:$0xf]
    %v7366 = vld [vmem:[%s7256 + $0x1b4] sm:$0xf]
    %v7367 = vld [vmem:[%s7256 + $0x1b8] sm:$0xf]
    %v7368 = vld [vmem:[%s7256 + $0x1bc] sm:$0xf]
    %v7369 = vld [vmem:[%s7256 + $0x1c0] sm:$0xf]
    %v7370 = vld [vmem:[%s7256 + $0x1c4] sm:$0xf]
    %v7371 = vld [vmem:[%s7256 + $0x1c8] sm:$0xf]
    %v7372 = vld [vmem:[%s7256 + $0x1cc] sm:$0xf]
    %v7373 = vld [vmem:[%s7256 + $0x1d0] sm:$0xf]
    %v7374 = vld [vmem:[%s7256 + $0x1d4] sm:$0xf]
    %v7375 = vld [vmem:[%s7256 + $0x1d8] sm:$0xf]
    %v7376 = vld [vmem:[%s7256 + $0x1dc] sm:$0xf]
    %v7377 = vld [vmem:[%s7256 + $0x1e0] sm:$0xf]
    %v7378 = vld [vmem:[%s7256 + $0x1e4] sm:$0xf]
    %v7379 = vld [vmem:[%s7256 + $0x1e8] sm:$0xf]
    %v7380 = vld [vmem:[%s7256 + $0x1ec] sm:$0xf]
    %v7381 = vld [vmem:[%s7256 + $0x1f0] sm:$0xf]
    %v7382 = vld [vmem:[%s7256 + $0x1f4] sm:$0xf]
    %v7383 = vld [vmem:[%s7256 + $0x1f8] sm:$0xf]
    %v7384 = vld [vmem:[%s7256 + $0x1fc] sm:$0xf]
    %v7385 = vld [vmem:[%s7256 + $0x200] sm:$0xf]
    %v7386 = vld [vmem:[%s7256 + $0x204] sm:$0xf]
    %v7387 = vld [vmem:[%s7256 + $0x208] sm:$0xf]
    %v7388 = vld [vmem:[%s7256 + $0x20c] sm:$0xf]
    %v7389 = vld [vmem:[%s7256 + $0x210] sm:$0xf]
    %v7390 = vld [vmem:[%s7256 + $0x214] sm:$0xf]
    %v7391 = vld [vmem:[%s7256 + $0x218] sm:$0xf]
    %v7392 = vld [vmem:[%s7256 + $0x21c] sm:$0xf]
    %v7393 = vld [vmem:[%s7256 + $0x220] sm:$0xf]
    %v7394 = vld [vmem:[%s7256 + $0x224] sm:$0xf]
    %v7395 = vld [vmem:[%s7256 + $0x228] sm:$0xf]
    %v7396 = vld [vmem:[%s7256 + $0x22c] sm:$0xf]
    %v7397 = vld [vmem:[%s7256 + $0x230] sm:$0xf]
    %v7398 = vld [vmem:[%s7256 + $0x234] sm:$0xf]
    %v7399 = vld [vmem:[%s7256 + $0x238] sm:$0xf]
    %v7400 = vld [vmem:[%s7256 + $0x23c] sm:$0xf]
    %v7401 = vld [vmem:[%s7256 + $0x240] sm:$0xf]
    %v7402 = vld [vmem:[%s7256 + $0x244] sm:$0xf]
    %v7403 = vld [vmem:[%s7256 + $0x248] sm:$0xf]
    %v7404 = vld [vmem:[%s7256 + $0x24c] sm:$0xf]
    %v7405 = vld [vmem:[%s7256 + $0x250] sm:$0xf]
    %v7406 = vld [vmem:[%s7256 + $0x254] sm:$0xf]
    %v7407 = vld [vmem:[%s7256 + $0x258] sm:$0xf]
    %v7408 = vld [vmem:[%s7256 + $0x25c] sm:$0xf]
    %v7409 = vld [vmem:[%s7256 + $0x260] sm:$0xf]
    %v7410 = vld [vmem:[%s7256 + $0x264] sm:$0xf]
    %v7411 = vld [vmem:[%s7256 + $0x268] sm:$0xf]
    %v7412 = vld [vmem:[%s7256 + $0x26c] sm:$0xf]
    %v7413 = vld [vmem:[%s7256 + $0x270] sm:$0xf]
    %v7414 = vld [vmem:[%s7256 + $0x274] sm:$0xf]
    %v7415 = vld [vmem:[%s7256 + $0x278] sm:$0xf]
    %v7416 = vld [vmem:[%s7256 + $0x27c] sm:$0xf]
    %v7417 = vld [vmem:[%s7256 + $0x280] sm:$0xf]
    %v7418 = vld [vmem:[%s7256 + $0x284] sm:$0xf]
    %v7419 = vld [vmem:[%s7256 + $0x288] sm:$0xf]
    %v7420 = vld [vmem:[%s7256 + $0x28c] sm:$0xf]
    %v7421 = vld [vmem:[%s7256 + $0x290] sm:$0xf]
    %v7422 = vld [vmem:[%s7256 + $0x294] sm:$0xf]
    %v7423 = vld [vmem:[%s7256 + $0x298] sm:$0xf]
    %v7424 = vld [vmem:[%s7256 + $0x29c] sm:$0xf]
    %v7425 = vld [vmem:[%s7256 + $0x2a0] sm:$0xf]
    %v7426 = vld [vmem:[%s7256 + $0x2a4] sm:$0xf]
    %v7427 = vld [vmem:[%s7256 + $0x2a8] sm:$0xf]
    %v7428 = vld [vmem:[%s7256 + $0x2ac] sm:$0xf]
    %v7429 = vld [vmem:[%s7256 + $0x2b0] sm:$0xf]
    %v7430 = vld [vmem:[%s7256 + $0x2b4] sm:$0xf]
    %v7431 = vld [vmem:[%s7256 + $0x2b8] sm:$0xf]
    %v7432 = vld [vmem:[%s7256 + $0x2bc] sm:$0xf]
    %v7433 = vld [vmem:[%s7256 + $0x2c0] sm:$0xf]
    %v7434 = vld [vmem:[%s7256 + $0x2c4] sm:$0xf]
    %v7435 = vld [vmem:[%s7256 + $0x2c8] sm:$0xf]
    %v7436 = vld [vmem:[%s7256 + $0x2cc] sm:$0xf]
    %v7437 = vld [vmem:[%s7256 + $0x2d0] sm:$0xf]
    %v7438 = vld [vmem:[%s7256 + $0x2d4] sm:$0xf]
    %v7439 = vld [vmem:[%s7256 + $0x2d8] sm:$0xf]
    %v7440 = vld [vmem:[%s7256 + $0x2dc] sm:$0xf]
    %v7441 = vld [vmem:[%s7256 + $0x2e0] sm:$0xf]
    %v7442 = vld [vmem:[%s7256 + $0x2e4] sm:$0xf]
    %v7443 = vld [vmem:[%s7256 + $0x2e8] sm:$0xf]
    %v7444 = vld [vmem:[%s7256 + $0x2ec] sm:$0xf]
    %v7445 = vld [vmem:[%s7256 + $0x2f0] sm:$0xf]
    %v7446 = vld [vmem:[%s7256 + $0x2f4] sm:$0xf]
    %v7447 = vld [vmem:[%s7256 + $0x2f8] sm:$0xf]
    %v7448 = vld [vmem:[%s7256 + $0x2fc] sm:$0xf]
    %v7449 = vld [vmem:[%s7256 + $0x300] sm:$0xf]
    %v7450 = vld [vmem:[%s7256 + $0x304] sm:$0xf]
    %v7451 = vld [vmem:[%s7256 + $0x308] sm:$0xf]
    %v7452 = vld [vmem:[%s7256 + $0x30c] sm:$0xf]
    %v7453 = vld [vmem:[%s7256 + $0x310] sm:$0xf]
    %v7454 = vld [vmem:[%s7256 + $0x314] sm:$0xf]
    %v7455 = vld [vmem:[%s7256 + $0x318] sm:$0xf]
    %v7456 = vld [vmem:[%s7256 + $0x31c] sm:$0xf]
    %v7457 = vld [vmem:[%s7256 + $0x320] sm:$0xf]
    %v7458 = vld [vmem:[%s7256 + $0x324] sm:$0xf]
    %v7459 = vld [vmem:[%s7256 + $0x328] sm:$0xf]
    %v7460 = vld [vmem:[%s7256 + $0x32c] sm:$0xf]
    %v7461 = vld [vmem:[%s7256 + $0x330] sm:$0xf]
    %v7462 = vld [vmem:[%s7256 + $0x334] sm:$0xf]
    %v7463 = vld [vmem:[%s7256 + $0x338] sm:$0xf]
    %v7464 = vld [vmem:[%s7256 + $0x33c] sm:$0xf]
    %v7465 = vld [vmem:[%s7256 + $0x340] sm:$0xf]
    %v7466 = vld [vmem:[%s7256 + $0x344] sm:$0xf]
    %v7467 = vld [vmem:[%s7256 + $0x348] sm:$0xf]
    %v7468 = vld [vmem:[%s7256 + $0x34c] sm:$0xf]
    %v7469 = vld [vmem:[%s7256 + $0x350] sm:$0xf]
    %v7470 = vld [vmem:[%s7256 + $0x354] sm:$0xf]
    %v7471 = vld [vmem:[%s7256 + $0x358] sm:$0xf]
    %v7472 = vld [vmem:[%s7256 + $0x35c] sm:$0xf]
    %v7473 = vld [vmem:[%s7256 + $0x360] sm:$0xf]
    %v7474 = vld [vmem:[%s7256 + $0x364] sm:$0xf]
    %v7475 = vld [vmem:[%s7256 + $0x368] sm:$0xf]
    %v7476 = vld [vmem:[%s7256 + $0x36c] sm:$0xf]
    %v7477 = vld [vmem:[%s7256 + $0x370] sm:$0xf]
    %v7478 = vld [vmem:[%s7256 + $0x374] sm:$0xf]
    %v7479 = vld [vmem:[%s7256 + $0x378] sm:$0xf]
    %v7480 = vld [vmem:[%s7256 + $0x37c] sm:$0xf]
    %v7481 = vld [vmem:[%s7256 + $0x380] sm:$0xf]
    %v7482 = vld [vmem:[%s7256 + $0x384] sm:$0xf]
    %v7483 = vld [vmem:[%s7256 + $0x388] sm:$0xf]
    %v7484 = vld [vmem:[%s7256 + $0x38c] sm:$0xf]
    %v7485 = vld [vmem:[%s7256 + $0x390] sm:$0xf]
    %v7486 = vld [vmem:[%s7256 + $0x394] sm:$0xf]
    %v7487 = vld [vmem:[%s7256 + $0x398] sm:$0xf]
    %v7488 = vld [vmem:[%s7256 + $0x39c] sm:$0xf]
    %v7489 = vld [vmem:[%s7256 + $0x3a0] sm:$0xf]
    %v7490 = vld [vmem:[%s7256 + $0x3a4] sm:$0xf]
    %v7491 = vld [vmem:[%s7256 + $0x3a8] sm:$0xf]
    %v7492 = vld [vmem:[%s7256 + $0x3ac] sm:$0xf]
    %v7493 = vld [vmem:[%s7256 + $0x3b0] sm:$0xf]
    %v7494 = vld [vmem:[%s7256 + $0x3b4] sm:$0xf]
    %v7495 = vld [vmem:[%s7256 + $0x3b8] sm:$0xf]
    %v7496 = vld [vmem:[%s7256 + $0x3bc] sm:$0xf]
    %v7497 = vld [vmem:[%s7256 + $0x3c0] sm:$0xf]
    %v7498 = vld [vmem:[%s7256 + $0x3c4] sm:$0xf]
    %v7499 = vld [vmem:[%s7256 + $0x3c8] sm:$0xf]
    %v7500 = vld [vmem:[%s7256 + $0x3cc] sm:$0xf]
    %v7501 = vld [vmem:[%s7256 + $0x3d0] sm:$0xf]
    %v7502 = vld [vmem:[%s7256 + $0x3d4] sm:$0xf]
    %v7503 = vld [vmem:[%s7256 + $0x3d8] sm:$0xf]
    %v7504 = vld [vmem:[%s7256 + $0x3dc] sm:$0xf]
    %v7505 = vld [vmem:[%s7256 + $0x3e0] sm:$0xf]
    %v7506 = vld [vmem:[%s7256 + $0x3e4] sm:$0xf]
    %v7507 = vld [vmem:[%s7256 + $0x3e8] sm:$0xf]
    %v7508 = vld [vmem:[%s7256 + $0x3ec] sm:$0xf]
    %v7509 = vld [vmem:[%s7256 + $0x3f0] sm:$0xf]
    %v7510 = vld [vmem:[%s7256 + $0x3f4] sm:$0xf]
    %v7511 = vld [vmem:[%s7256 + $0x3f8] sm:$0xf]
    %v7512 = vld [vmem:[%s7256 + $0x3fc] sm:$0xf]
    %s7513 = scalar_lea.vmem %s13, 1
    %v7514 = vld [vmem:[%s7513] sm:$0x1]
    %v7516 = vlaneseq
    %v7517 = vshrl.u32 %v7516, 7
    %v7518 = vsub.s32 0, %v7517
    %v7519 = vrot.slane %v7514, %v7518
    %v7777 = vunpack.c.l.b16 %v7257
    %v7778 = vunpack.c.l.b16 %v7258
    %v7779 = vunpack.c.l.b16 %v7259
    %v7780 = vunpack.c.l.b16 %v7260
    %v7781 = vunpack.c.l.b16 %v7261
    %v7782 = vunpack.c.l.b16 %v7262
    %v7783 = vunpack.c.l.b16 %v7263
    %v7784 = vunpack.c.l.b16 %v7264
    %v7785 = vunpack.c.l.b16 %v7265
    %v7786 = vunpack.c.l.b16 %v7266
    %v7787 = vunpack.c.l.b16 %v7267
    %v7788 = vunpack.c.l.b16 %v7268
    %v7789 = vunpack.c.l.b16 %v7269
    %v7790 = vunpack.c.l.b16 %v7270
    %v7791 = vunpack.c.l.b16 %v7271
    %v7792 = vunpack.c.l.b16 %v7272
    %v7793 = vunpack.c.l.b16 %v7273
    %v7794 = vunpack.c.l.b16 %v7274
    %v7795 = vunpack.c.l.b16 %v7275
    %v7796 = vunpack.c.l.b16 %v7276
    %v7797 = vunpack.c.l.b16 %v7277
    %v7798 = vunpack.c.l.b16 %v7278
    %v7799 = vunpack.c.l.b16 %v7279
    %v7800 = vunpack.c.l.b16 %v7280
    %v7801 = vunpack.c.l.b16 %v7281
    %v7802 = vunpack.c.l.b16 %v7282
    %v7803 = vunpack.c.l.b16 %v7283
    %v7804 = vunpack.c.l.b16 %v7284
    %v7805 = vunpack.c.l.b16 %v7285
    %v7806 = vunpack.c.l.b16 %v7286
    %v7807 = vunpack.c.l.b16 %v7287
    %v7808 = vunpack.c.l.b16 %v7288
    %v7809 = vunpack.c.l.b16 %v7289
    %v7810 = vunpack.c.l.b16 %v7290
    %v7811 = vunpack.c.l.b16 %v7291
    %v7812 = vunpack.c.l.b16 %v7292
    %v7813 = vunpack.c.l.b16 %v7293
    %v7814 = vunpack.c.l.b16 %v7294
    %v7815 = vunpack.c.l.b16 %v7295
    %v7816 = vunpack.c.l.b16 %v7296
    %v7817 = vunpack.c.l.b16 %v7297
    %v7818 = vunpack.c.l.b16 %v7298
    %v7819 = vunpack.c.l.b16 %v7299
    %v7820 = vunpack.c.l.b16 %v7300
    %v7821 = vunpack.c.l.b16 %v7301
    %v7822 = vunpack.c.l.b16 %v7302
    %v7823 = vunpack.c.l.b16 %v7303
    %v7824 = vunpack.c.l.b16 %v7304
    %v7825 = vunpack.c.l.b16 %v7305
    %v7826 = vunpack.c.l.b16 %v7306
    %v7827 = vunpack.c.l.b16 %v7307
    %v7828 = vunpack.c.l.b16 %v7308
    %v7829 = vunpack.c.l.b16 %v7309
    %v7830 = vunpack.c.l.b16 %v7310
    %v7831 = vunpack.c.l.b16 %v7311
    %v7832 = vunpack.c.l.b16 %v7312
    %v7833 = vunpack.c.l.b16 %v7313
    %v7834 = vunpack.c.l.b16 %v7314
    %v7835 = vunpack.c.l.b16 %v7315
    %v7836 = vunpack.c.l.b16 %v7316
    %v7837 = vunpack.c.l.b16 %v7317
    %v7838 = vunpack.c.l.b16 %v7318
    %v7839 = vunpack.c.l.b16 %v7319
    %v7840 = vunpack.c.l.b16 %v7320
    %v7841 = vunpack.c.l.b16 %v7321
    %v7842 = vunpack.c.l.b16 %v7322
    %v7843 = vunpack.c.l.b16 %v7323
    %v7844 = vunpack.c.l.b16 %v7324
    %v7845 = vunpack.c.l.b16 %v7325
    %v7846 = vunpack.c.l.b16 %v7326
    %v7847 = vunpack.c.l.b16 %v7327
    %v7848 = vunpack.c.l.b16 %v7328
    %v7849 = vunpack.c.l.b16 %v7329
    %v7850 = vunpack.c.l.b16 %v7330
    %v7851 = vunpack.c.l.b16 %v7331
    %v7852 = vunpack.c.l.b16 %v7332
    %v7853 = vunpack.c.l.b16 %v7333
    %v7854 = vunpack.c.l.b16 %v7334
    %v7855 = vunpack.c.l.b16 %v7335
    %v7856 = vunpack.c.l.b16 %v7336
    %v7857 = vunpack.c.l.b16 %v7337
    %v7858 = vunpack.c.l.b16 %v7338
    %v7859 = vunpack.c.l.b16 %v7339
    %v7860 = vunpack.c.l.b16 %v7340
    %v7861 = vunpack.c.l.b16 %v7341
    %v7862 = vunpack.c.l.b16 %v7342
    %v7863 = vunpack.c.l.b16 %v7343
    %v7864 = vunpack.c.l.b16 %v7344
    %v7865 = vunpack.c.l.b16 %v7345
    %v7866 = vunpack.c.l.b16 %v7346
    %v7867 = vunpack.c.l.b16 %v7347
    %v7868 = vunpack.c.l.b16 %v7348
    %v7869 = vunpack.c.l.b16 %v7349
    %v7870 = vunpack.c.l.b16 %v7350
    %v7871 = vunpack.c.l.b16 %v7351
    %v7872 = vunpack.c.l.b16 %v7352
    %v7873 = vunpack.c.l.b16 %v7353
    %v7874 = vunpack.c.l.b16 %v7354
    %v7875 = vunpack.c.l.b16 %v7355
    %v7876 = vunpack.c.l.b16 %v7356
    %v7877 = vunpack.c.l.b16 %v7357
    %v7878 = vunpack.c.l.b16 %v7358
    %v7879 = vunpack.c.l.b16 %v7359
    %v7880 = vunpack.c.l.b16 %v7360
    %v7881 = vunpack.c.l.b16 %v7361
    %v7882 = vunpack.c.l.b16 %v7362
    %v7883 = vunpack.c.l.b16 %v7363
    %v7884 = vunpack.c.l.b16 %v7364
    %v7885 = vunpack.c.l.b16 %v7365
    %v7886 = vunpack.c.l.b16 %v7366
    %v7887 = vunpack.c.l.b16 %v7367
    %v7888 = vunpack.c.l.b16 %v7368
    %v7889 = vunpack.c.l.b16 %v7369
    %v7890 = vunpack.c.l.b16 %v7370
    %v7891 = vunpack.c.l.b16 %v7371
    %v7892 = vunpack.c.l.b16 %v7372
    %v7893 = vunpack.c.l.b16 %v7373
    %v7894 = vunpack.c.l.b16 %v7374
    %v7895 = vunpack.c.l.b16 %v7375
    %v7896 = vunpack.c.l.b16 %v7376
    %v7897 = vunpack.c.l.b16 %v7377
    %v7898 = vunpack.c.l.b16 %v7378
    %v7899 = vunpack.c.l.b16 %v7379
    %v7900 = vunpack.c.l.b16 %v7380
    %v7901 = vunpack.c.l.b16 %v7381
    %v7902 = vunpack.c.l.b16 %v7382
    %v7903 = vunpack.c.l.b16 %v7383
    %v7904 = vunpack.c.l.b16 %v7384
    %v7905 = vunpack.c.l.b16 %v7385
    %v7906 = vunpack.c.l.b16 %v7386
    %v7907 = vunpack.c.l.b16 %v7387
    %v7908 = vunpack.c.l.b16 %v7388
    %v7909 = vunpack.c.l.b16 %v7389
    %v7910 = vunpack.c.l.b16 %v7390
    %v7911 = vunpack.c.l.b16 %v7391
    %v7912 = vunpack.c.l.b16 %v7392
    %v7913 = vunpack.c.l.b16 %v7393
    %v7914 = vunpack.c.l.b16 %v7394
    %v7915 = vunpack.c.l.b16 %v7395
    %v7916 = vunpack.c.l.b16 %v7396
    %v7917 = vunpack.c.l.b16 %v7397
    %v7918 = vunpack.c.l.b16 %v7398
    %v7919 = vunpack.c.l.b16 %v7399
    %v7920 = vunpack.c.l.b16 %v7400
    %v7921 = vunpack.c.l.b16 %v7401
    %v7922 = vunpack.c.l.b16 %v7402
    %v7923 = vunpack.c.l.b16 %v7403
    %v7924 = vunpack.c.l.b16 %v7404
    %v7925 = vunpack.c.l.b16 %v7405
    %v7926 = vunpack.c.l.b16 %v7406
    %v7927 = vunpack.c.l.b16 %v7407
    %v7928 = vunpack.c.l.b16 %v7408
    %v7929 = vunpack.c.l.b16 %v7409
    %v7930 = vunpack.c.l.b16 %v7410
    %v7931 = vunpack.c.l.b16 %v7411
    %v7932 = vunpack.c.l.b16 %v7412
    %v7933 = vunpack.c.l.b16 %v7413
    %v7934 = vunpack.c.l.b16 %v7414
    %v7935 = vunpack.c.l.b16 %v7415
    %v7936 = vunpack.c.l.b16 %v7416
    %v7937 = vunpack.c.l.b16 %v7417
    %v7938 = vunpack.c.l.b16 %v7418
    %v7939 = vunpack.c.l.b16 %v7419
    %v7940 = vunpack.c.l.b16 %v7420
    %v7941 = vunpack.c.l.b16 %v7421
    %v7942 = vunpack.c.l.b16 %v7422
    %v7943 = vunpack.c.l.b16 %v7423
    %v7944 = vunpack.c.l.b16 %v7424
    %v7945 = vunpack.c.l.b16 %v7425
    %v7946 = vunpack.c.l.b16 %v7426
    %v7947 = vunpack.c.l.b16 %v7427
    %v7948 = vunpack.c.l.b16 %v7428
    %v7949 = vunpack.c.l.b16 %v7429
    %v7950 = vunpack.c.l.b16 %v7430
    %v7951 = vunpack.c.l.b16 %v7431
    %v7952 = vunpack.c.l.b16 %v7432
    %v7953 = vunpack.c.l.b16 %v7433
    %v7954 = vunpack.c.l.b16 %v7434
    %v7955 = vunpack.c.l.b16 %v7435
    %v7956 = vunpack.c.l.b16 %v7436
    %v7957 = vunpack.c.l.b16 %v7437
    %v7958 = vunpack.c.l.b16 %v7438
    %v7959 = vunpack.c.l.b16 %v7439
    %v7960 = vunpack.c.l.b16 %v7440
    %v7961 = vunpack.c.l.b16 %v7441
    %v7962 = vunpack.c.l.b16 %v7442
    %v7963 = vunpack.c.l.b16 %v7443
    %v7964 = vunpack.c.l.b16 %v7444
    %v7965 = vunpack.c.l.b16 %v7445
    %v7966 = vunpack.c.l.b16 %v7446
    %v7967 = vunpack.c.l.b16 %v7447
    %v7968 = vunpack.c.l.b16 %v7448
    %v7969 = vunpack.c.l.b16 %v7449
    %v7970 = vunpack.c.l.b16 %v7450
    %v7971 = vunpack.c.l.b16 %v7451
    %v7972 = vunpack.c.l.b16 %v7452
    %v7973 = vunpack.c.l.b16 %v7453
    %v7974 = vunpack.c.l.b16 %v7454
    %v7975 = vunpack.c.l.b16 %v7455
    %v7976 = vunpack.c.l.b16 %v7456
    %v7977 = vunpack.c.l.b16 %v7457
    %v7978 = vunpack.c.l.b16 %v7458
    %v7979 = vunpack.c.l.b16 %v7459
    %v7980 = vunpack.c.l.b16 %v7460
    %v7981 = vunpack.c.l.b16 %v7461
    %v7982 = vunpack.c.l.b16 %v7462
    %v7983 = vunpack.c.l.b16 %v7463
    %v7984 = vunpack.c.l.b16 %v7464
    %v7985 = vunpack.c.l.b16 %v7465
    %v7986 = vunpack.c.l.b16 %v7466
    %v7987 = vunpack.c.l.b16 %v7467
    %v7988 = vunpack.c.l.b16 %v7468
    %v7989 = vunpack.c.l.b16 %v7469
    %v7990 = vunpack.c.l.b16 %v7470
    %v7991 = vunpack.c.l.b16 %v7471
    %v7992 = vunpack.c.l.b16 %v7472
    %v7993 = vunpack.c.l.b16 %v7473
    %v7994 = vunpack.c.l.b16 %v7474
    %v7995 = vunpack.c.l.b16 %v7475
    %v7996 = vunpack.c.l.b16 %v7476
    %v7997 = vunpack.c.l.b16 %v7477
    %v7998 = vunpack.c.l.b16 %v7478
    %v7999 = vunpack.c.l.b16 %v7479
    %v8000 = vunpack.c.l.b16 %v7480
    %v8001 = vunpack.c.l.b16 %v7481
    %v8002 = vunpack.c.l.b16 %v7482
    %v8003 = vunpack.c.l.b16 %v7483
    %v8004 = vunpack.c.l.b16 %v7484
    %v8005 = vunpack.c.l.b16 %v7485
    %v8006 = vunpack.c.l.b16 %v7486
    %v8007 = vunpack.c.l.b16 %v7487
    %v8008 = vunpack.c.l.b16 %v7488
    %v8009 = vunpack.c.l.b16 %v7489
    %v8010 = vunpack.c.l.b16 %v7490
    %v8011 = vunpack.c.l.b16 %v7491
    %v8012 = vunpack.c.l.b16 %v7492
    %v8013 = vunpack.c.l.b16 %v7493
    %v8014 = vunpack.c.l.b16 %v7494
    %v8015 = vunpack.c.l.b16 %v7495
    %v8016 = vunpack.c.l.b16 %v7496
    %v8017 = vunpack.c.l.b16 %v7497
    %v8018 = vunpack.c.l.b16 %v7498
    %v8019 = vunpack.c.l.b16 %v7499
    %v8020 = vunpack.c.l.b16 %v7500
    %v8021 = vunpack.c.l.b16 %v7501
    %v8022 = vunpack.c.l.b16 %v7502
    %v8023 = vunpack.c.l.b16 %v7503
    %v8024 = vunpack.c.l.b16 %v7504
    %v8025 = vunpack.c.l.b16 %v7505
    %v8026 = vunpack.c.l.b16 %v7506
    %v8027 = vunpack.c.l.b16 %v7507
    %v8028 = vunpack.c.l.b16 %v7508
    %v8029 = vunpack.c.l.b16 %v7509
    %v8030 = vunpack.c.l.b16 %v7510
    %v8031 = vunpack.c.l.b16 %v7511
    %v8032 = vunpack.c.l.b16 %v7512
    %v8033 = vpack.c.b16 %v7778, %v7777
    %v8034 = vpack.c.b16 %v7780, %v7779
    %v8035 = vpack.c.b16 %v7782, %v7781
    %v8036 = vpack.c.b16 %v7784, %v7783
    %v8037 = vpack.c.b16 %v7786, %v7785
    %v8038 = vpack.c.b16 %v7788, %v7787
    %v8039 = vpack.c.b16 %v7790, %v7789
    %v8040 = vpack.c.b16 %v7792, %v7791
    %v8041 = vpack.c.b16 %v7794, %v7793
    %v8042 = vpack.c.b16 %v7796, %v7795
    %v8043 = vpack.c.b16 %v7798, %v7797
    %v8044 = vpack.c.b16 %v7800, %v7799
    %v8045 = vpack.c.b16 %v7802, %v7801
    %v8046 = vpack.c.b16 %v7804, %v7803
    %v8047 = vpack.c.b16 %v7806, %v7805
    %v8048 = vpack.c.b16 %v7808, %v7807
    %v8049 = vpack.c.b16 %v7810, %v7809
    %v8050 = vpack.c.b16 %v7812, %v7811
    %v8051 = vpack.c.b16 %v7814, %v7813
    %v8052 = vpack.c.b16 %v7816, %v7815
    %v8053 = vpack.c.b16 %v7818, %v7817
    %v8054 = vpack.c.b16 %v7820, %v7819
    %v8055 = vpack.c.b16 %v7822, %v7821
    %v8056 = vpack.c.b16 %v7824, %v7823
    %v8057 = vpack.c.b16 %v7826, %v7825
    %v8058 = vpack.c.b16 %v7828, %v7827
    %v8059 = vpack.c.b16 %v7830, %v7829
    %v8060 = vpack.c.b16 %v7832, %v7831
    %v8061 = vpack.c.b16 %v7834, %v7833
    %v8062 = vpack.c.b16 %v7836, %v7835
    %v8063 = vpack.c.b16 %v7838, %v7837
    %v8064 = vpack.c.b16 %v7840, %v7839
    %v8065 = vpack.c.b16 %v7842, %v7841
    %v8066 = vpack.c.b16 %v7844, %v7843
    %v8067 = vpack.c.b16 %v7846, %v7845
    %v8068 = vpack.c.b16 %v7848, %v7847
    %v8069 = vpack.c.b16 %v7850, %v7849
    %v8070 = vpack.c.b16 %v7852, %v7851
    %v8071 = vpack.c.b16 %v7854, %v7853
    %v8072 = vpack.c.b16 %v7856, %v7855
    %v8073 = vpack.c.b16 %v7858, %v7857
    %v8074 = vpack.c.b16 %v7860, %v7859
    %v8075 = vpack.c.b16 %v7862, %v7861
    %v8076 = vpack.c.b16 %v7864, %v7863
    %v8077 = vpack.c.b16 %v7866, %v7865
    %v8078 = vpack.c.b16 %v7868, %v7867
    %v8079 = vpack.c.b16 %v7870, %v7869
    %v8080 = vpack.c.b16 %v7872, %v7871
    %v8081 = vpack.c.b16 %v7874, %v7873
    %v8082 = vpack.c.b16 %v7876, %v7875
    %v8083 = vpack.c.b16 %v7878, %v7877
    %v8084 = vpack.c.b16 %v7880, %v7879
    %v8085 = vpack.c.b16 %v7882, %v7881
    %v8086 = vpack.c.b16 %v7884, %v7883
    %v8087 = vpack.c.b16 %v7886, %v7885
    %v8088 = vpack.c.b16 %v7888, %v7887
    %v8089 = vpack.c.b16 %v7890, %v7889
    %v8090 = vpack.c.b16 %v7892, %v7891
    %v8091 = vpack.c.b16 %v7894, %v7893
    %v8092 = vpack.c.b16 %v7896, %v7895
    %v8093 = vpack.c.b16 %v7898, %v7897
    %v8094 = vpack.c.b16 %v7900, %v7899
    %v8095 = vpack.c.b16 %v7902, %v7901
    %v8096 = vpack.c.b16 %v7904, %v7903
    %v8097 = vpack.c.b16 %v7906, %v7905
    %v8098 = vpack.c.b16 %v7908, %v7907
    %v8099 = vpack.c.b16 %v7910, %v7909
    %v8100 = vpack.c.b16 %v7912, %v7911
    %v8101 = vpack.c.b16 %v7914, %v7913
    %v8102 = vpack.c.b16 %v7916, %v7915
    %v8103 = vpack.c.b16 %v7918, %v7917
    %v8104 = vpack.c.b16 %v7920, %v7919
    %v8105 = vpack.c.b16 %v7922, %v7921
    %v8106 = vpack.c.b16 %v7924, %v7923
    %v8107 = vpack.c.b16 %v7926, %v7925
    %v8108 = vpack.c.b16 %v7928, %v7927
    %v8109 = vpack.c.b16 %v7930, %v7929
    %v8110 = vpack.c.b16 %v7932, %v7931
    %v8111 = vpack.c.b16 %v7934, %v7933
    %v8112 = vpack.c.b16 %v7936, %v7935
    %v8113 = vpack.c.b16 %v7938, %v7937
    %v8114 = vpack.c.b16 %v7940, %v7939
    %v8115 = vpack.c.b16 %v7942, %v7941
    %v8116 = vpack.c.b16 %v7944, %v7943
    %v8117 = vpack.c.b16 %v7946, %v7945
    %v8118 = vpack.c.b16 %v7948, %v7947
    %v8119 = vpack.c.b16 %v7950, %v7949
    %v8120 = vpack.c.b16 %v7952, %v7951
    %v8121 = vpack.c.b16 %v7954, %v7953
    %v8122 = vpack.c.b16 %v7956, %v7955
    %v8123 = vpack.c.b16 %v7958, %v7957
    %v8124 = vpack.c.b16 %v7960, %v7959
    %v8125 = vpack.c.b16 %v7962, %v7961
    %v8126 = vpack.c.b16 %v7964, %v7963
    %v8127 = vpack.c.b16 %v7966, %v7965
    %v8128 = vpack.c.b16 %v7968, %v7967
    %v8129 = vpack.c.b16 %v7970, %v7969
    %v8130 = vpack.c.b16 %v7972, %v7971
    %v8131 = vpack.c.b16 %v7974, %v7973
    %v8132 = vpack.c.b16 %v7976, %v7975
    %v8133 = vpack.c.b16 %v7978, %v7977
    %v8134 = vpack.c.b16 %v7980, %v7979
    %v8135 = vpack.c.b16 %v7982, %v7981
    %v8136 = vpack.c.b16 %v7984, %v7983
    %v8137 = vpack.c.b16 %v7986, %v7985
    %v8138 = vpack.c.b16 %v7988, %v7987
    %v8139 = vpack.c.b16 %v7990, %v7989
    %v8140 = vpack.c.b16 %v7992, %v7991
    %v8141 = vpack.c.b16 %v7994, %v7993
    %v8142 = vpack.c.b16 %v7996, %v7995
    %v8143 = vpack.c.b16 %v7998, %v7997
    %v8144 = vpack.c.b16 %v8000, %v7999
    %v8145 = vpack.c.b16 %v8002, %v8001
    %v8146 = vpack.c.b16 %v8004, %v8003
    %v8147 = vpack.c.b16 %v8006, %v8005
    %v8148 = vpack.c.b16 %v8008, %v8007
    %v8149 = vpack.c.b16 %v8010, %v8009
    %v8150 = vpack.c.b16 %v8012, %v8011
    %v8151 = vpack.c.b16 %v8014, %v8013
    %v8152 = vpack.c.b16 %v8016, %v8015
    %v8153 = vpack.c.b16 %v8018, %v8017
    %v8154 = vpack.c.b16 %v8020, %v8019
    %v8155 = vpack.c.b16 %v8022, %v8021
    %v8156 = vpack.c.b16 %v8024, %v8023
    %v8157 = vpack.c.b16 %v8026, %v8025
    %v8158 = vpack.c.b16 %v8028, %v8027
    %v8159 = vpack.c.b16 %v8030, %v8029
    %v8160 = vpack.c.b16 %v8032, %v8031
    %8289 = vmatprep.subr.bf16.mxu0 0
    %8290 = vmatpush1.bf16.msra.mxu0 %v8033
    %8291 = vmatprep.subr.bf16.mxu0 0
    %8292 = vmatpush1.bf16.msra.mxu0 %v8034
    %8293 = vmatprep.subr.bf16.mxu0 0
    %8294 = vmatpush1.bf16.msra.mxu0 %v8035
    %8295 = vmatprep.subr.bf16.mxu0 0
    %8296 = vmatpush1.bf16.msra.mxu0 %v8036
    %8297 = vmatprep.subr.bf16.mxu0 0
    %8298 = vmatpush1.bf16.msra.mxu0 %v8037
    %8299 = vmatprep.subr.bf16.mxu0 0
    %8300 = vmatpush1.bf16.msra.mxu0 %v8038
    %8301 = vmatprep.subr.bf16.mxu0 0
    %8302 = vmatpush1.bf16.msra.mxu0 %v8039
    %8303 = vmatprep.subr.bf16.mxu0 0
    %8304 = vmatpush1.bf16.msra.mxu0 %v8040
    %8305 = vmatprep.subr.bf16.mxu0 0
    %8306 = vmatpush1.bf16.msra.mxu0 %v8041
    %8307 = vmatprep.subr.bf16.mxu0 0
    %8308 = vmatpush1.bf16.msra.mxu0 %v8042
    %8309 = vmatprep.subr.bf16.mxu0 0
    %8310 = vmatpush1.bf16.msra.mxu0 %v8043
    %8311 = vmatprep.subr.bf16.mxu0 0
    %8312 = vmatpush1.bf16.msra.mxu0 %v8044
    %8313 = vmatprep.subr.bf16.mxu0 0
    %8314 = vmatpush1.bf16.msra.mxu0 %v8045
    %8315 = vmatprep.subr.bf16.mxu0 0
    %8316 = vmatpush1.bf16.msra.mxu0 %v8046
    %8317 = vmatprep.subr.bf16.mxu0 0
    %8318 = vmatpush1.bf16.msra.mxu0 %v8047
    %8319 = vmatprep.subr.bf16.mxu0 0
    %8320 = vmatpush1.bf16.msra.mxu0 %v8048
    %8321 = vmatprep.mubr.bf16.mxu0 %v7241
    %8322 = vmatmul.mubr.bf16.gmra.mrb[0].mxu0 %v7240
    %v8323 = vpop.f32.mrb[0].mxu0
    %v8324 = vpop.f32.mrb[0].mxu0
    %v8325 = vpop.f32.mrb[0].mxu0
    %v8326 = vadd.f32 %v7519, %v8325
    %v8327 = vpop.f32.mrb[0].mxu0
    %8328 = vdwg.mxu0
    %8329 = vmatprep.subr.bf16.mxu0 0
    %8330 = vmatpush1.bf16.msra.mxu0 %v8049
    %8331 = vmatprep.subr.bf16.mxu0 0
    %8332 = vmatpush1.bf16.msra.mxu0 %v8050
    %8333 = vmatprep.subr.bf16.mxu0 0
    %8334 = vmatpush1.bf16.msra.mxu0 %v8051
    %8335 = vmatprep.subr.bf16.mxu0 0
    %8336 = vmatpush1.bf16.msra.mxu0 %v8052
    %8337 = vmatprep.subr.bf16.mxu0 0
    %8338 = vmatpush1.bf16.msra.mxu0 %v8053
    %8339 = vmatprep.subr.bf16.mxu0 0
    %8340 = vmatpush1.bf16.msra.mxu0 %v8054
    %8341 = vmatprep.subr.bf16.mxu0 0
    %8342 = vmatpush1.bf16.msra.mxu0 %v8055
    %8343 = vmatprep.subr.bf16.mxu0 0
    %8344 = vmatpush1.bf16.msra.mxu0 %v8056
    %8345 = vmatprep.subr.bf16.mxu0 0
    %8346 = vmatpush1.bf16.msra.mxu0 %v8057
    %8347 = vmatprep.subr.bf16.mxu0 0
    %8348 = vmatpush1.bf16.msra.mxu0 %v8058
    %8349 = vmatprep.subr.bf16.mxu0 0
    %8350 = vmatpush1.bf16.msra.mxu0 %v8059
    %8351 = vmatprep.subr.bf16.mxu0 0
    %8352 = vmatpush1.bf16.msra.mxu0 %v8060
    %8353 = vmatprep.subr.bf16.mxu0 0
    %8354 = vmatpush1.bf16.msra.mxu0 %v8061
    %8355 = vmatprep.subr.bf16.mxu0 0
    %8356 = vmatpush1.bf16.msra.mxu0 %v8062
    %8357 = vmatprep.subr.bf16.mxu0 0
    %8358 = vmatpush1.bf16.msra.mxu0 %v8063
    %8359 = vmatprep.subr.bf16.mxu0 0
    %8360 = vmatpush1.bf16.msra.mxu0 %v8064
    %8361 = vmatprep.mubr.bf16.mxu0 %v7243
    %8362 = vmatmul.mubr.bf16.gmra.mrb[0].mxu0 %v7242
    %v8363 = vpop.f32.mrb[0].mxu0
    %v8364 = vpop.f32.mrb[0].mxu0
    %v8365 = vpop.f32.mrb[0].mxu0
    %v8366 = vadd.f32 %v8326, %v8365
    %v8367 = vpop.f32.mrb[0].mxu0
    %8368 = vdwg.mxu0
    %8369 = vmatprep.subr.bf16.mxu0 0
    %8370 = vmatpush1.bf16.msra.mxu0 %v8065
    %8371 = vmatprep.subr.bf16.mxu0 0
    %8372 = vmatpush1.bf16.msra.mxu0 %v8066
    %8373 = vmatprep.subr.bf16.mxu0 0
    %8374 = vmatpush1.bf16.msra.mxu0 %v8067
    %8375 = vmatprep.subr.bf16.mxu0 0
    %8376 = vmatpush1.bf16.msra.mxu0 %v8068
    %8377 = vmatprep.subr.bf16.mxu0 0
    %8378 = vmatpush1.bf16.msra.mxu0 %v8069
    %8379 = vmatprep.subr.bf16.mxu0 0
    %8380 = vmatpush1.bf16.msra.mxu0 %v8070
    %8381 = vmatprep.subr.bf16.mxu0 0
    %8382 = vmatpush1.bf16.msra.mxu0 %v8071
    %8383 = vmatprep.subr.bf16.mxu0 0
    %8384 = vmatpush1.bf16.msra.mxu0 %v8072
    %8385 = vmatprep.subr.bf16.mxu0 0
    %8386 = vmatpush1.bf16.msra.mxu0 %v8073
    %8387 = vmatprep.subr.bf16.mxu0 0
    %8388 = vmatpush1.bf16.msra.mxu0 %v8074
    %8389 = vmatprep.subr.bf16.mxu0 0
    %8390 = vmatpush1.bf16.msra.mxu0 %v8075
    %8391 = vmatprep.subr.bf16.mxu0 0
    %8392 = vmatpush1.bf16.msra.mxu0 %v8076
    %8393 = vmatprep.subr.bf16.mxu0 0
    %8394 = vmatpush1.bf16.msra.mxu0 %v8077
    %8395 = vmatprep.subr.bf16.mxu0 0
    %8396 = vmatpush1.bf16.msra.mxu0 %v8078
    %8397 = vmatprep.subr.bf16.mxu0 0
    %8398 = vmatpush1.bf16.msra.mxu0 %v8079
    %8399 = vmatprep.subr.bf16.mxu0 0
    %8400 = vmatpush1.bf16.msra.mxu0 %v8080
    %8401 = vmatprep.mubr.bf16.mxu0 %v7245
    %8402 = vmatmul.mubr.bf16.gmra.mrb[0].mxu0 %v7244
    %v8403 = vpop.f32.mrb[0].mxu0
    %v8404 = vpop.f32.mrb[0].mxu0
    %v8405 = vpop.f32.mrb[0].mxu0
    %v8406 = vadd.f32 %v8366, %v8405
    %v8407 = vpop.f32.mrb[0].mxu0
    %8408 = vdwg.mxu0
    %8409 = vmatprep.subr.bf16.mxu0 0
    %8410 = vmatpush1.bf16.msra.mxu0 %v8081
    %8411 = vmatprep.subr.bf16.mxu0 0
    %8412 = vmatpush1.bf16.msra.mxu0 %v8082
    %8413 = vmatprep.subr.bf16.mxu0 0
    %8414 = vmatpush1.bf16.msra.mxu0 %v8083
    %8415 = vmatprep.subr.bf16.mxu0 0
    %8416 = vmatpush1.bf16.msra.mxu0 %v8084
    %8417 = vmatprep.subr.bf16.mxu0 0
    %8418 = vmatpush1.bf16.msra.mxu0 %v8085
    %8419 = vmatprep.subr.bf16.mxu0 0
    %8420 = vmatpush1.bf16.msra.mxu0 %v8086
    %8421 = vmatprep.subr.bf16.mxu0 0
    %8422 = vmatpush1.bf16.msra.mxu0 %v8087
    %8423 = vmatprep.subr.bf16.mxu0 0
    %8424 = vmatpush1.bf16.msra.mxu0 %v8088
    %8425 = vmatprep.subr.bf16.mxu0 0
    %8426 = vmatpush1.bf16.msra.mxu0 %v8089
    %8427 = vmatprep.subr.bf16.mxu0 0
    %8428 = vmatpush1.bf16.msra.mxu0 %v8090
    %8429 = vmatprep.subr.bf16.mxu0 0
    %8430 = vmatpush1.bf16.msra.mxu0 %v8091
    %8431 = vmatprep.subr.bf16.mxu0 0
    %8432 = vmatpush1.bf16.msra.mxu0 %v8092
    %8433 = vmatprep.subr.bf16.mxu0 0
    %8434 = vmatpush1.bf16.msra.mxu0 %v8093
    %8435 = vmatprep.subr.bf16.mxu0 0
    %8436 = vmatpush1.bf16.msra.mxu0 %v8094
    %8437 = vmatprep.subr.bf16.mxu0 0
    %8438 = vmatpush1.bf16.msra.mxu0 %v8095
    %8439 = vmatprep.subr.bf16.mxu0 0
    %8440 = vmatpush1.bf16.msra.mxu0 %v8096
    %8441 = vmatprep.mubr.bf16.mxu0 %v7247
    %8442 = vmatmul.mubr.bf16.gmra.mrb[0].mxu0 %v7246
    %v8443 = vpop.f32.mrb[0].mxu0
    %v8444 = vpop.f32.mrb[0].mxu0
    %v8445 = vpop.f32.mrb[0].mxu0
    %v8446 = vadd.f32 %v8406, %v8445
    %v8447 = vpop.f32.mrb[0].mxu0
    %8448 = vdwg.mxu0
    %8449 = vmatprep.subr.bf16.mxu0 0
    %8450 = vmatpush1.bf16.msra.mxu0 %v8097
    %8451 = vmatprep.subr.bf16.mxu0 0
    %8452 = vmatpush1.bf16.msra.mxu0 %v8098
    %8453 = vmatprep.subr.bf16.mxu0 0
    %8454 = vmatpush1.bf16.msra.mxu0 %v8099
    %8455 = vmatprep.subr.bf16.mxu0 0
    %8456 = vmatpush1.bf16.msra.mxu0 %v8100
    %8457 = vmatprep.subr.bf16.mxu0 0
    %8458 = vmatpush1.bf16.msra.mxu0 %v8101
    %8459 = vmatprep.subr.bf16.mxu0 0
    %8460 = vmatpush1.bf16.msra.mxu0 %v8102
    %8461 = vmatprep.subr.bf16.mxu0 0
    %8462 = vmatpush1.bf16.msra.mxu0 %v8103
    %8463 = vmatprep.subr.bf16.mxu0 0
    %8464 = vmatpush1.bf16.msra.mxu0 %v8104
    %8465 = vmatprep.subr.bf16.mxu0 0
    %8466 = vmatpush1.bf16.msra.mxu0 %v8105
    %8467 = vmatprep.subr.bf16.mxu0 0
    %8468 = vmatpush1.bf16.msra.mxu0 %v8106
    %8469 = vmatprep.subr.bf16.mxu0 0
    %8470 = vmatpush1.bf16.msra.mxu0 %v8107
    %8471 = vmatprep.subr.bf16.mxu0 0
    %8472 = vmatpush1.bf16.msra.mxu0 %v8108
    %8473 = vmatprep.subr.bf16.mxu0 0
    %8474 = vmatpush1.bf16.msra.mxu0 %v8109
    %8475 = vmatprep.subr.bf16.mxu0 0
    %8476 = vmatpush1.bf16.msra.mxu0 %v8110
    %8477 = vmatprep.subr.bf16.mxu0 0
    %8478 = vmatpush1.bf16.msra.mxu0 %v8111
    %8479 = vmatprep.subr.bf16.mxu0 0
    %8480 = vmatpush1.bf16.msra.mxu0 %v8112
    %8481 = vmatprep.mubr.bf16.mxu0 %v7249
    %8482 = vmatmul.mubr.bf16.gmra.mrb[0].mxu0 %v7248
    %v8483 = vpop.f32.mrb[0].mxu0
    %v8484 = vpop.f32.mrb[0].mxu0
    %v8485 = vpop.f32.mrb[0].mxu0
    %v8486 = vadd.f32 %v8446, %v8485
    %v8487 = vpop.f32.mrb[0].mxu0
    %8488 = vdwg.mxu0
    %8489 = vmatprep.subr.bf16.mxu0 0
    %8490 = vmatpush1.bf16.msra.mxu0 %v8113
    %8491 = vmatprep.subr.bf16.mxu0 0
    %8492 = vmatpush1.bf16.msra.mxu0 %v8114
    %8493 = vmatprep.subr.bf16.mxu0 0
    %8494 = vmatpush1.bf16.msra.mxu0 %v8115
    %8495 = vmatprep.subr.bf16.mxu0 0
    %8496 = vmatpush1.bf16.msra.mxu0 %v8116
    %8497 = vmatprep.subr.bf16.mxu0 0
    %8498 = vmatpush1.bf16.msra.mxu0 %v8117
    %8499 = vmatprep.subr.bf16.mxu0 0
    %8500 = vmatpush1.bf16.msra.mxu0 %v8118
    %8501 = vmatprep.subr.bf16.mxu0 0
    %8502 = vmatpush1.bf16.msra.mxu0 %v8119
    %8503 = vmatprep.subr.bf16.mxu0 0
    %8504 = vmatpush1.bf16.msra.mxu0 %v8120
    %8505 = vmatprep.subr.bf16.mxu0 0
    %8506 = vmatpush1.bf16.msra.mxu0 %v8121
    %8507 = vmatprep.subr.bf16.mxu0 0
    %8508 = vmatpush1.bf16.msra.mxu0 %v8122
    %8509 = vmatprep.subr.bf16.mxu0 0
    %8510 = vmatpush1.bf16.msra.mxu0 %v8123
    %8511 = vmatprep.subr.bf16.mxu0 0
    %8512 = vmatpush1.bf16.msra.mxu0 %v8124
    %8513 = vmatprep.subr.bf16.mxu0 0
    %8514 = vmatpush1.bf16.msra.mxu0 %v8125
    %8515 = vmatprep.subr.bf16.mxu0 0
    %8516 = vmatpush1.bf16.msra.mxu0 %v8126
    %8517 = vmatprep.subr.bf16.mxu0 0
    %8518 = vmatpush1.bf16.msra.mxu0 %v8127
    %8519 = vmatprep.subr.bf16.mxu0 0
    %8520 = vmatpush1.bf16.msra.mxu0 %v8128
    %8521 = vmatprep.mubr.bf16.mxu0 %v7251
    %8522 = vmatmul.mubr.bf16.gmra.mrb[0].mxu0 %v7250
    %v8523 = vpop.f32.mrb[0].mxu0
    %v8524 = vpop.f32.mrb[0].mxu0
    %v8525 = vpop.f32.mrb[0].mxu0
    %v8526 = vadd.f32 %v8486, %v8525
    %v8527 = vpop.f32.mrb[0].mxu0
    %8528 = vdwg.mxu0
    %8529 = vmatprep.subr.bf16.mxu0 0
    %8530 = vmatpush1.bf16.msra.mxu0 %v8129
    %8531 = vmatprep.subr.bf16.mxu0 0
    %8532 = vmatpush1.bf16.msra.mxu0 %v8130
    %8533 = vmatprep.subr.bf16.mxu0 0
    %8534 = vmatpush1.bf16.msra.mxu0 %v8131
    %8535 = vmatprep.subr.bf16.mxu0 0
    %8536 = vmatpush1.bf16.msra.mxu0 %v8132
    %8537 = vmatprep.subr.bf16.mxu0 0
    %8538 = vmatpush1.bf16.msra.mxu0 %v8133
    %8539 = vmatprep.subr.bf16.mxu0 0
    %8540 = vmatpush1.bf16.msra.mxu0 %v8134
    %8541 = vmatprep.subr.bf16.mxu0 0
    %8542 = vmatpush1.bf16.msra.mxu0 %v8135
    %8543 = vmatprep.subr.bf16.mxu0 0
    %8544 = vmatpush1.bf16.msra.mxu0 %v8136
    %8545 = vmatprep.subr.bf16.mxu0 0
    %8546 = vmatpush1.bf16.msra.mxu0 %v8137
    %8547 = vmatprep.subr.bf16.mxu0 0
    %8548 = vmatpush1.bf16.msra.mxu0 %v8138
    %8549 = vmatprep.subr.bf16.mxu0 0
    %8550 = vmatpush1.bf16.msra.mxu0 %v8139
    %8551 = vmatprep.subr.bf16.mxu0 0
    %8552 = vmatpush1.bf16.msra.mxu0 %v8140
    %8553 = vmatprep.subr.bf16.mxu0 0
    %8554 = vmatpush1.bf16.msra.mxu0 %v8141
    %8555 = vmatprep.subr.bf16.mxu0 0
    %8556 = vmatpush1.bf16.msra.mxu0 %v8142
    %8557 = vmatprep.subr.bf16.mxu0 0
    %8558 = vmatpush1.bf16.msra.mxu0 %v8143
    %8559 = vmatprep.subr.bf16.mxu0 0
    %8560 = vmatpush1.bf16.msra.mxu0 %v8144
    %8561 = vmatprep.mubr.bf16.mxu0 %v7253
    %8562 = vmatmul.mubr.bf16.gmra.mrb[0].mxu0 %v7252
    %v8563 = vpop.f32.mrb[0].mxu0
    %v8564 = vpop.f32.mrb[0].mxu0
    %v8565 = vpop.f32.mrb[0].mxu0
    %v8566 = vadd.f32 %v8526, %v8565
    %v8567 = vpop.f32.mrb[0].mxu0
    %8568 = vdwg.mxu0
    %8569 = vmatprep.subr.bf16.mxu0 0
    %8570 = vmatpush1.bf16.msra.mxu0 %v8145
    %8571 = vmatprep.subr.bf16.mxu0 0
    %8572 = vmatpush1.bf16.msra.mxu0 %v8146
    %8573 = vmatprep.subr.bf16.mxu0 0
    %8574 = vmatpush1.bf16.msra.mxu0 %v8147
    %8575 = vmatprep.subr.bf16.mxu0 0
    %8576 = vmatpush1.bf16.msra.mxu0 %v8148
    %8577 = vmatprep.subr.bf16.mxu0 0
    %8578 = vmatpush1.bf16.msra.mxu0 %v8149
    %8579 = vmatprep.subr.bf16.mxu0 0
    %8580 = vmatpush1.bf16.msra.mxu0 %v8150
    %8581 = vmatprep.subr.bf16.mxu0 0
    %8582 = vmatpush1.bf16.msra.mxu0 %v8151
    %8583 = vmatprep.subr.bf16.mxu0 0
    %8584 = vmatpush1.bf16.msra.mxu0 %v8152
    %8585 = vmatprep.subr.bf16.mxu0 0
    %8586 = vmatpush1.bf16.msra.mxu0 %v8153
    %8587 = vmatprep.subr.bf16.mxu0 0
    %8588 = vmatpush1.bf16.msra.mxu0 %v8154
    %8589 = vmatprep.subr.bf16.mxu0 0
    %8590 = vmatpush1.bf16.msra.mxu0 %v8155
    %8591 = vmatprep.subr.bf16.mxu0 0
    %8592 = vmatpush1.bf16.msra.mxu0 %v8156
    %8593 = vmatprep.subr.bf16.mxu0 0
    %8594 = vmatpush1.bf16.msra.mxu0 %v8157
    %8595 = vmatprep.subr.bf16.mxu0 0
    %8596 = vmatpush1.bf16.msra.mxu0 %v8158
    %8597 = vmatprep.subr.bf16.mxu0 0
    %8598 = vmatpush1.bf16.msra.mxu0 %v8159
    %8599 = vmatprep.subr.bf16.mxu0 0
    %8600 = vmatpush1.bf16.msra.mxu0 %v8160
    %8601 = vmatprep.mubr.bf16.mxu0 %v7255
    %8602 = vmatmul.mubr.bf16.gmra.mrb[0].mxu0 %v7254
    %v8603 = vpop.f32.mrb[0].mxu0
    %v8604 = vpop.f32.mrb[0].mxu0
    %v8605 = vpop.f32.mrb[0].mxu0
    %v8606 = vadd.f32 %v8566, %v8605
    %v8607 = vpop.f32.mrb[0].mxu0
    %8608 = vdwg.mxu0
    %v8609 = vadd.f32 %v6581, %v8606
    %s8610 = scalar_lea.vmem %s16, 1
    %v8611 = vld [vmem:[%s8610] sm:$0x1]
    %s8612 = scalar_lea.vmem %s17, 1
    %v8613 = vld [vmem:[%s8612] sm:$0x1]
    %v8614 = vsel %vm90, %v8609, 0.0
    %8615 = vadd.xlane.f32.xlu0 %v8614
    %v8616 = vpop.xlane.xlu0 %8615
    %v8617 = vmul.f32 %v8616, %v2252
    %v8618 = vsub.f32 %v8609, %v8617
    %v8619 = vmul.f32 %v8618, %v8618
    %v8620 = vsel %vm90, %v8619, 0.0
    %8621 = vadd.xlane.f32.xlu0 %v8620
    %v8622 = vpop.xlane.xlu0 %8621
    %v8623 = vmul.f32 %v8622, %v2252
    %v8624 = vadd.f32 %v8623, 1e-05
    %v8625 = vrsqrt.pop %v8624
    %v8626 = vmul.f32 %v8618, %v8625
    %v8628 = vlaneseq
    %v8629 = vshrl.u32 %v8628, 7
    %v8630 = vsub.s32 0, %v8629
    %v8631 = vrot.slane %v8611, %v8630
    %v8633 = vmul.f32 %v8626, %v8631
    %v8635 = vlaneseq
    %v8636 = vshrl.u32 %v8635, 7
    %v8637 = vsub.s32 0, %v8636
    %v8638 = vrot.slane %v8613, %v8637
    %v8640 = vadd.f32 %v8633, %v8638
    %v8641 = vld [vmem:[%s18] sm:$0xff]
    %v8642 = vld [vmem:[%s18 + $0x8] sm:$0xff]
    %v8643 = vld [vmem:[%s18 + $0x10] sm:$0xff]
    %v8644 = vld [vmem:[%s18 + $0x18] sm:$0xff]
    %v8645 = vld [vmem:[%s19] sm:$0x1]
    %v8647 = vlaneseq
    %v8648 = vshrl.u32 %v8647, 7
    %v8649 = vsub.s32 0, %v8648
    %v8650 = vrot.slane %v8645, %v8649
    %v8653 = vrot.slane %v8640, 6
    %v8654 = vsel %vm90, %v8653, 0
    %8656 = vmatprep.subr.mxu0 0.0
    %8657 = vmatpush1.msra.mxu0 %v8641
    %8658 = vmatprep.subr.mxu0 0.0
    %8659 = vmatpush1.msra.mxu0 %v8642
    %8660 = vmatprep.subr.mxu0 0.0
    %8661 = vmatpush1.msra.mxu0 %v8643
    %8662 = vmatprep.subr.mxu0 0.0
    %8663 = vmatpush1.msra.mxu0 %v8644
    %8664 = vmatprep.subr.mxu0 0.0
    %8665 = vmatpush1.msra.mxu0 0.0
    %8666 = vmatprep.subr.mxu0 0.0
    %8667 = vmatpush1.msra.mxu0 0.0
    %8668 = vmatprep.subr.mxu0 0.0
    %8669 = vmatpush1.msra.mxu0 0.0
    %8670 = vmatprep.subr.mxu0 0.0
    %8671 = vmatpush1.msra.mxu0 0.0
    %8672 = vmatprep.subr.mxu0 0.0
    %8673 = vmatpush1.msra.mxu0 0.0
    %8674 = vmatprep.subr.mxu0 0.0
    %8675 = vmatpush1.msra.mxu0 0.0
    %8676 = vmatprep.subr.mxu0 0.0
    %8677 = vmatpush1.msra.mxu0 0.0
    %8678 = vmatprep.subr.mxu0 0.0
    %8679 = vmatpush1.msra.mxu0 0.0
    %8680 = vmatprep.subr.mxu0 0.0
    %8681 = vmatpush1.msra.mxu0 0.0
    %8682 = vmatprep.subr.mxu0 0.0
    %8683 = vmatpush1.msra.mxu0 0.0
    %8684 = vmatprep.subr.mxu0 0.0
    %8685 = vmatpush1.msra.mxu0 0.0
    %8686 = vmatprep.subr.mxu0 0.0
    %8687 = vmatpush1.msra.mxu0 0.0
    %8688 = vmatprep.subr.mxu0 0.0
    %8689 = vmatpush1.msra.mxu0 0.0
    %8690 = vmatprep.subr.mxu0 0.0
    %8691 = vmatpush1.msra.mxu0 0.0
    %8692 = vmatprep.subr.mxu0 0.0
    %8693 = vmatpush1.msra.mxu0 0.0
    %8694 = vmatprep.subr.mxu0 0.0
    %8695 = vmatpush1.msra.mxu0 0.0
    %8696 = vmatprep.subr.mxu0 0.0
    %8697 = vmatpush1.msra.mxu0 0.0
    %8698 = vmatprep.subr.mxu0 0.0
    %8699 = vmatpush1.msra.mxu0 0.0
    %8700 = vmatprep.subr.mxu0 0.0
    %8701 = vmatpush1.msra.mxu0 0.0
    %8702 = vmatprep.subr.mxu0 0.0
    %8703 = vmatpush1.msra.mxu0 0.0
    %8704 = vmatprep.subr.mxu0 0.0
    %8705 = vmatpush1.msra.mxu0 0.0
    %8706 = vmatprep.subr.mxu0 0.0
    %8707 = vmatpush1.msra.mxu0 0.0
    %8708 = vmatprep.subr.mxu0 0.0
    %8709 = vmatpush1.msra.mxu0 0.0
    %8710 = vmatprep.subr.mxu0 0.0
    %8711 = vmatpush1.msra.mxu0 0.0
    %8712 = vmatprep.subr.mxu0 0.0
    %8713 = vmatpush1.msra.mxu0 0.0
    %8714 = vmatprep.subr.mxu0 0.0
    %8715 = vmatpush1.msra.mxu0 0.0
    %8716 = vmatprep.subr.mxu0 0.0
    %8717 = vmatpush1.msra.mxu0 0.0
    %8718 = vmatprep.subr.mxu0 0.0
    %8719 = vmatpush1.msra.mxu0 0.0
    %8720 = vmatprep.mubr.f32.mxu0 0.0
    %8721 = vmatmul.mubr.f32.gmra.mrb[0].mxu0 %v8654
    %v8722 = vpop.f32.mrb[0].mxu0
    %v8723 = vadd.f32 %v8650, %v8722
    %v8724 = vpop.f32.mrb[0].mxu0
    %8725 = vdwg.mxu0
    %s8726 = sld [smem:[#allocation3]]
    %v8727 = vstv %s8726
    %v8728 = vmul.f32 %v8727, %v8723
    %s8729 = sld [smem:[#allocation2]]
    %v8730 = vstv %s8729
    %v8731 = vsub.f32 %v8728, %v8730
    %v8732 = vsub.f32 0.0, %v8731
    %v8733 = vmul.f32 %v8732, 1.442695
    %v8734 = vpow.pop %v8733
    %v8735 = vadd.f32 %v8734, 1.0
    %v8736 = vrcp.pop %v8735
    %v8737 = vmul.f32 1.0, %v8736
    %vm8738 = vcmask 9216
    %8739 = vst.msk [vmem:[#allocation4] sm:$0x3] %vm8738, %v8737
    // Predicated region
    $region90: #{transformer_model_forward.1} parent=1 // pred_check
      _
    $region91: #{transformer_model_forward.1} parent=1 // pred_check_branch
      %8741 = sbr.rel (0) target = $region93
    $region92: #{transformer_model_forward.1} parent=1 // pred_region
      %s8743 = ssub.s32 32, 32
      %8744 = vsyncadd [#allocation5], %s8743
      %s8746 = sshll.u32 [#allocation4], 4
      %s8747 = int_to_ptr.vmem [resolvable:$true] %s8746
      %8749 = dma.vmem_to_hbm [thread:$0]  %s8747, 32, %s22, [#allocation5]
    $region93: #{transformer_model_forward.1} parent=1 // pred_fallthru
      _
    // Predicated region
    $region94: #{transformer_model_forward.1} parent=1 // pred_check
      _
    $region95: #{transformer_model_forward.1} parent=1 // pred_check_branch
      %8751 = sbr.rel (0) target = $region97
    $region96: #{transformer_model_forward.1} parent=1 // pred_region
      %8752 = dma.done [#allocation5], 32
    $region97: #{transformer_model_forward.1} parent=1 // pred_fallthru
      _
    %8753 = vsyncpa [#allocation5], 1

</llo_original>
